<compile_context>
chip_gen: v7x
topology: tpu7x:2x2x1
jax: 0.10.0
libtpu: 0.0.40
codegen_flags: <defaults>
</compile_context>

<pallas_src>
import jax
import jax.numpy as jnp
import numpy as np
from jax import lax
from jax.experimental import pallas as pl
from jax.experimental.pallas import tpu as pltpu

N_BINS = 15
LANES = 128          # padded bin axis; bins >= 15 never receive samples (conf <= 1)
NUM_SPLITS = 2       # leading "parallel" grid axis (both TCs on v7x; harmless elsewhere)


def _vmem_capacity_bytes():
    try:
        return int(pltpu.get_tpu_info().vmem_capacity_bytes)
    except Exception:
        return 64 << 20          # conservative fallback (v7x per-core VMEM)


def _choose_tile_n(n, c, itemsize, vmem_cap):
    """Byte-budget-driven row tile.

    Per-row VMEM (double-buffered by the Pallas pipeline):
      logits row: c * itemsize bytes
      labels row: (tile_n, 1) int32 block is lane-padded to 128 lanes -> 512 B/row
    """
    row_bytes = c * itemsize + 512
    budget = max(int(vmem_cap * 3 // 5) - (8 << 20), 4 << 20)
    tile_n = budget // (2 * row_bytes)
    tile_n = min(tile_n, 1 << 18)                     # sanity cap
    per_split = -(-n // NUM_SPLITS)                   # ceil(n / splits)
    per_split = -(-per_split // 8) * 8                # round up to sublane multiple
    tile_n = min(tile_n, per_split)
    return max(8, (tile_n // 8) * 8)


def _build_kernel(n_rows, steps, tile_n):
    def kernel(bounds_ref, logits_ref, labels_ref, acc_ref):
        s = pl.program_id(0)          # parallel split
        i = pl.program_id(1)          # reduction step within the split

        @pl.when(i == 0)
        def _():
            acc_ref[...] = jnp.zeros_like(acc_ref)

        x = logits_ref[...].astype(jnp.float32)               # (TN, C) cast-on-load
        tn, c = x.shape

        # confidence = max(softmax) = 1 / sum(exp(x - x_max)); no (TN,C) divide.
        x_max = jnp.max(x, axis=-1, keepdims=True)            # (TN, 1)
        row_sum = jnp.sum(jnp.exp(x - x_max), axis=-1, keepdims=True)
        conf = 1.0 / row_sum                                   # (TN, 1)

        # prediction = first argmax of the raw logits (== argmax of softmax).
        col = lax.broadcasted_iota(jnp.int32, (tn, c), 1)
        pred = jnp.min(jnp.where(x == x_max, col, c), axis=-1, keepdims=True)
        acc01 = (pred == labels_ref[...]).astype(jnp.float32)  # (TN, 1)

        # Row validity (ragged tail + clamped duplicate blocks of the split grid).
        base = (s * steps + i) * tile_n
        rid = lax.broadcasted_iota(jnp.int32, (tn, 1), 0) + base
        valid = rid < n_rows
        validf = valid.astype(jnp.float32)
        confm = jnp.where(valid, conf, 0.0)    # also kills NaN/Inf from pad rows
        accm = jnp.where(valid, acc01, 0.0)

        # One-hot bin membership with the reference's exact float32 boundaries:
        # bin b  <=>  lower[b] < conf <= upper[b]   (pad lanes have lower = 2.0).
        lower = bounds_ref[0:1, :]                              # (1, 128)
        upper = bounds_ref[1:2, :]                              # (1, 128)
        in_bin = jnp.logical_and(conf > lower, conf <= upper).astype(jnp.float32)

        # Per-bin [count, conf_sum, acc_sum] as masked f32 sublane reductions.
        cnt_p = jnp.sum(in_bin * validf, axis=0, keepdims=True)   # (1, 128)
        csum_p = jnp.sum(in_bin * confm, axis=0, keepdims=True)   # (1, 128)
        asum_p = jnp.sum(in_bin * accm, axis=0, keepdims=True)    # (1, 128)

        # Scatter the three rows into the resident (8,128) accumulator block.
        ridx = lax.broadcasted_iota(jnp.int32, (8, 1), 0)
        partial = (jnp.where(ridx == 0, cnt_p, 0.0)
                   + jnp.where(ridx == 1, csum_p, 0.0)
                   + jnp.where(ridx == 2, asum_p, 0.0))           # (8, 128)
        acc_ref[...] += partial

    return kernel


def ece_loss_pallas(logits, labels):
    """logits: (N, C) float, labels: (N,) int.  Returns shape (1,) float32 ECE."""
    n, c = logits.shape
    itemsize = jnp.dtype(logits.dtype).itemsize
    cap = _vmem_capacity_bytes()
    tile_n = _choose_tile_n(n, c, itemsize, cap)

    nb = -(-n // tile_n)              # total row blocks
    steps = -(-nb // NUM_SPLITS)      # reduction steps per split

    labels2d = labels.reshape(n, 1).astype(jnp.int32)

    # Exact reference bin boundaries (float32 linspace); pad lanes never match.
    b = np.linspace(0.0, 1.0, N_BINS + 1).astype(np.float32)
    bounds_np = np.zeros((8, LANES), np.float32)
    bounds_np[0, :] = 2.0
    bounds_np[1, :] = 3.0
    bounds_np[0, :N_BINS] = b[:-1]
    bounds_np[1, :N_BINS] = b[1:]
    bounds = jnp.asarray(bounds_np)

    # Generation-aware VMEM limit derived from the same budget as the tile.
    needed = (2 * tile_n * c * itemsize     # logits double buffer
              + 2 * tile_n * 512            # labels double buffer (lane-padded)
              + 4 * 8 * LANES * 4           # bounds + accumulator blocks
              + (8 << 20))                  # headroom
    vmem_limit = int(min(max(needed, 32 << 20), cap * 3 // 4))

    def row_block_map(s, i):
        return (jnp.minimum(s * steps + i, nb - 1), 0)

    kernel = _build_kernel(n, steps, tile_n)

    acc = pl.pallas_call(
        kernel,
        out_shape=jax.ShapeDtypeStruct((NUM_SPLITS * 8, LANES), jnp.float32),
        grid_spec=pltpu.PrefetchScalarGridSpec(
            num_scalar_prefetch=0,
            grid=(NUM_SPLITS, steps),
            in_specs=[
                pl.BlockSpec((8, LANES), lambda s, i: (0, 0)),   # bin boundaries
                pl.BlockSpec((tile_n, c), row_block_map),        # logits tile
                pl.BlockSpec((tile_n, 1), row_block_map),        # labels tile
            ],
            out_specs=pl.BlockSpec((8, LANES), lambda s, i: (s, 0)),
        ),
        compiler_params=pltpu.CompilerParams(
            dimension_semantics=("parallel", "arbitrary"),
            vmem_limit_bytes=vmem_limit,
        ),
    )(bounds, logits, labels2d)

    # Finalize in plain JAX from the per-split lane-dense accumulator slabs.
    slab = acc.reshape(NUM_SPLITS, 8, LANES).sum(axis=0)   # (8, 128)
    cnt, csum, asum = slab[0], slab[1], slab[2]            # (128,); bins >= 15 empty
    safe = jnp.where(cnt > 0.0, cnt, 1.0)
    gap = jnp.abs(csum / safe - asum / safe)
    ece = jnp.sum(jnp.where(cnt > 0.0, gap * (cnt / jnp.float32(n)), 0.0))
    return ece.reshape(1)


def ece_loss_ref(logits, labels, n_bins=N_BINS):
    """Pure-JAX reference mirroring the PyTorch _ECELoss.forward."""
    sm = jax.nn.softmax(logits.astype(jnp.float32), axis=1)
    conf = jnp.max(sm, axis=1)
    pred = jnp.argmax(sm, axis=1)
    acc = (pred == labels).astype(jnp.float32)
    boundaries = np.linspace(0.0, 1.0, n_bins + 1).astype(np.float32)
    ece = jnp.zeros((1,), jnp.float32)
    for bi in range(n_bins):
        in_bin = (conf > boundaries[bi]) & (conf <= boundaries[bi + 1])
        in_bin_f = in_bin.astype(jnp.float32)
        prop = jnp.mean(in_bin_f)
        cnt = jnp.maximum(jnp.sum(in_bin_f), 1.0)
        acc_in = jnp.sum(acc * in_bin_f) / cnt
        conf_in = jnp.sum(conf * in_bin_f) / cnt
        ece = ece + jnp.where(prop > 0, jnp.abs(conf_in - acc_in) * prop, 0.0)
    return ece


if __name__ == "__main__":
    key = jax.random.PRNGKey(0)
    k1, k2 = jax.random.split(key)

    N, C = 2048, 16   # small demo shape -> tile_n = 1024, grid (2 splits, 1 step)
    logits = 2.0 * jax.random.normal(k1, (N, C), dtype=jnp.float32)
    labels = jax.random.randint(k2, (N,), 0, C, dtype=jnp.int32)

    ece = jax.block_until_ready(ece_loss_pallas(logits, labels))
    ece_ref = jax.block_until_ready(ece_loss_ref(logits, labels))

    np.testing.assert_allclose(np.asarray(ece), np.asarray(ece_ref),
                               rtol=1e-5, atol=1e-5)
    print("KERNEL_OK")
</pallas_src>

<mosaic_0001>
module attributes {stable_mosaic.version = 11 : i64} {
  func.func @kernel(%arg0: i32, %arg1: i32, %arg2: memref<8x128xf32, #tpu.memory_space<vmem>>, %arg3: memref<1024x16xf32, #tpu.memory_space<vmem>>, %arg4: memref<1024x1xi32, #tpu.memory_space<vmem>>, %arg5: memref<8x128xf32, #tpu.memory_space<vmem>>) attributes {dimension_semantics = [#tpu.dimension_semantics<parallel>, #tpu.dimension_semantics<arbitrary>], iteration_bounds = array<i64: 2, 1>, scalar_prefetch = 0 : i64, scratch_operands = 0 : i64, tpu.core_type = #tpu.core_type<tc>, window_params = [{pipeline_mode = #tpu.pipeline_mode<synchronous>, transform_indices = @transform_0, window_bounds = array<i64: 8, 128>}, {transform_indices = @transform_1, window_bounds = array<i64: 1024, 16>}, {transform_indices = @transform_2, window_bounds = array<i64: 1024, 1>}, {transform_indices = @transform_3, window_bounds = array<i64: 8, 128>}]} {
    %c0_i32 = arith.constant 0 : i32
    %0 = arith.cmpi eq, %arg1, %c0_i32 : i32
    %1 = arith.extui %0 : i1 to i32
    %c0_i32_0 = arith.constant 0 : i32
    %2 = arith.cmpi ne, %1, %c0_i32_0 : i32
    scf.if %2 {
      %cst_24 = arith.constant 0.000000e+00 : f32
      %91 = vector.broadcast %cst_24 : f32 to vector<8x128xf32>
      %c0_25 = arith.constant 0 : index
      %c0_26 = arith.constant 0 : index
      %92 = vector.load %arg5[%c0_25, %c0_26] : memref<8x128xf32, #tpu.memory_space<vmem>>, vector<8x128xf32>
      tpu.vector_store %arg5[%c0_25, %c0_26], %91 {strides = array<i32>} : memref<8x128xf32, #tpu.memory_space<vmem>>, vector<8x128xf32>,
    } else {
    }
    %c0 = arith.constant 0 : index
    %c0_1 = arith.constant 0 : index
    %3 = vector.load %arg3[%c0, %c0_1] : memref<1024x16xf32, #tpu.memory_space<vmem>>, vector<1024x16xf32>
    %cst = arith.constant dense<0xFF800000> : vector<1024xf32>
    %4 = vector.multi_reduction <maximumf>, %3, %cst [1] : vector<1024x16xf32> to vector<1024xf32>
    %5 = vector.shape_cast %4 : vector<1024xf32> to vector<1024x1xf32>
    %6 = vector.broadcast %5 : vector<1024x1xf32> to vector<1024x16xf32>
    %7 = arith.subf %3, %6 : vector<1024x16xf32>
    %8 = math.exp %7 : vector<1024x16xf32>
    %cst_2 = arith.constant dense<0.000000e+00> : vector<1024xf32>
    %9 = vector.multi_reduction <add>, %8, %cst_2 [1] : vector<1024x16xf32> to vector<1024xf32>
    %10 = vector.shape_cast %9 : vector<1024xf32> to vector<1024x1xf32>
    %cst_3 = arith.constant 1.000000e+00 : f32
    %11 = vector.broadcast %cst_3 : f32 to vector<1024x1xf32>
    %12 = arith.divf %11, %10 : vector<1024x1xf32>
    %13 = tpu.iota {dimensions = array<i32: 1>} : vector<1024x16xi32>
    %14 = vector.broadcast %5 : vector<1024x1xf32> to vector<1024x16xf32>
    %15 = arith.cmpf oeq, %3, %14 : vector<1024x16xf32>
    %c16_i32 = arith.constant 16 : i32
    %16 = vector.broadcast %c16_i32 : i32 to vector<1024x16xi32>
    %17 = arith.select %15, %13, %16 : vector<1024x16xi1>, vector<1024x16xi32>
    %cst_4 = arith.constant dense<2147483647> : vector<1024xi32>
    %18 = vector.multi_reduction <minsi>, %17, %cst_4 [1] : vector<1024x16xi32> to vector<1024xi32>
    %19 = vector.shape_cast %18 : vector<1024xi32> to vector<1024x1xi32>
    %c0_5 = arith.constant 0 : index
    %c0_6 = arith.constant 0 : index
    %20 = vector.load %arg4[%c0_5, %c0_6] : memref<1024x1xi32, #tpu.memory_space<vmem>>, vector<1024x1xi32>
    %21 = arith.cmpi eq, %19, %20 : vector<1024x1xi32>
    %22 = arith.extui %21 : vector<1024x1xi1> to vector<1024x1xi32>
    %23 = arith.sitofp %22 : vector<1024x1xi32> to vector<1024x1xf32>
    %c1_i32 = arith.constant 1 : i32
    %24 = arith.muli %arg0, %c1_i32 : i32
    %25 = arith.addi %24, %arg1 : i32
    %c1024_i32 = arith.constant 1024 : i32
    %26 = arith.muli %25, %c1024_i32 : i32
    %27 = tpu.iota {dimensions = array<i32: 0>} : vector<1024x1xi32>
    %28 = vector.broadcast %26 : i32 to vector<1024x1xi32>
    %29 = arith.addi %27, %28 : vector<1024x1xi32>
    %c2048_i32 = arith.constant 2048 : i32
    %30 = vector.broadcast %c2048_i32 : i32 to vector<1024x1xi32>
    %31 = arith.cmpi slt, %29, %30 : vector<1024x1xi32>
    %32 = arith.extui %31 : vector<1024x1xi1> to vector<1024x1xi32>
    %33 = arith.sitofp %32 : vector<1024x1xi32> to vector<1024x1xf32>
    %cst_7 = arith.constant 0.000000e+00 : f32
    %34 = vector.broadcast %cst_7 : f32 to vector<1024x1xf32>
    %35 = arith.select %31, %12, %34 : vector<1024x1xi1>, vector<1024x1xf32>
    %cst_8 = arith.constant 0.000000e+00 : f32
    %36 = vector.broadcast %cst_8 : f32 to vector<1024x1xf32>
    %37 = arith.select %31, %23, %36 : vector<1024x1xi1>, vector<1024x1xf32>
    %c0_9 = arith.constant 0 : index
    %c0_10 = arith.constant 0 : index
    %38 = vector.load %arg2[%c0_9, %c0_10] : memref<8x128xf32, #tpu.memory_space<vmem>>, vector<1x128xf32>
    %c1 = arith.constant 1 : index
    %c0_11 = arith.constant 0 : index
    %39 = vector.load %arg2[%c1, %c0_11] : memref<8x128xf32, #tpu.memory_space<vmem>>, vector<1x128xf32>
    %40 = vector.broadcast %12 : vector<1024x1xf32> to vector<1024x128xf32>
    %41 = vector.broadcast %38 : vector<1x128xf32> to vector<1024x128xf32>
    %42 = arith.cmpf ogt, %40, %41 : vector<1024x128xf32>
    %43 = vector.broadcast %12 : vector<1024x1xf32> to vector<1024x128xf32>
    %44 = vector.broadcast %39 : vector<1x128xf32> to vector<1024x128xf32>
    %45 = arith.cmpf ole, %43, %44 : vector<1024x128xf32>
    %46 = arith.andi %42, %45 : vector<1024x128xi1>
    %47 = arith.extui %46 : vector<1024x128xi1> to vector<1024x128xi32>
    %48 = arith.sitofp %47 : vector<1024x128xi32> to vector<1024x128xf32>
    %49 = vector.broadcast %33 : vector<1024x1xf32> to vector<1024x128xf32>
    %50 = arith.mulf %48, %49 : vector<1024x128xf32>
    %cst_12 = arith.constant dense<0.000000e+00> : vector<128xf32>
    %51 = vector.multi_reduction <add>, %50, %cst_12 [0] : vector<1024x128xf32> to vector<128xf32>
    %52 = vector.shape_cast %51 : vector<128xf32> to vector<1x128xf32>
    %53 = vector.broadcast %35 : vector<1024x1xf32> to vector<1024x128xf32>
    %54 = arith.mulf %48, %53 : vector<1024x128xf32>
    %cst_13 = arith.constant dense<0.000000e+00> : vector<128xf32>
    %55 = vector.multi_reduction <add>, %54, %cst_13 [0] : vector<1024x128xf32> to vector<128xf32>
    %56 = vector.shape_cast %55 : vector<128xf32> to vector<1x128xf32>
    %57 = vector.broadcast %37 : vector<1024x1xf32> to vector<1024x128xf32>
    %58 = arith.mulf %48, %57 : vector<1024x128xf32>
    %cst_14 = arith.constant dense<0.000000e+00> : vector<128xf32>
    %59 = vector.multi_reduction <add>, %58, %cst_14 [0] : vector<1024x128xf32> to vector<128xf32>
    %60 = vector.shape_cast %59 : vector<128xf32> to vector<1x128xf32>
    %61 = tpu.iota {dimensions = array<i32: 0>} : vector<8x1xi32>
    %c0_i32_15 = arith.constant 0 : i32
    %62 = vector.broadcast %c0_i32_15 : i32 to vector<8x1xi32>
    %63 = arith.cmpi eq, %61, %62 : vector<8x1xi32>
    %cst_16 = arith.constant 0.000000e+00 : f32
    %64 = vector.shape_cast %63 : vector<8x1xi1> to vector<8x1xi1>
    %65 = vector.broadcast %64 : vector<8x1xi1> to vector<8x128xi1>
    %66 = vector.shape_cast %52 : vector<1x128xf32> to vector<1x128xf32>
    %67 = vector.broadcast %66 : vector<1x128xf32> to vector<8x128xf32>
    %68 = vector.broadcast %cst_16 : f32 to vector<8x128xf32>
    %69 = arith.select %65, %67, %68 : vector<8x128xi1>, vector<8x128xf32>
    %c1_i32_17 = arith.constant 1 : i32
    %70 = vector.broadcast %c1_i32_17 : i32 to vector<8x1xi32>
    %71 = arith.cmpi eq, %61, %70 : vector<8x1xi32>
    %cst_18 = arith.constant 0.000000e+00 : f32
    %72 = vector.shape_cast %71 : vector<8x1xi1> to vector<8x1xi1>
    %73 = vector.broadcast %72 : vector<8x1xi1> to vector<8x128xi1>
    %74 = vector.shape_cast %56 : vector<1x128xf32> to vector<1x128xf32>
    %75 = vector.broadcast %74 : vector<1x128xf32> to vector<8x128xf32>
    %76 = vector.broadcast %cst_18 : f32 to vector<8x128xf32>
    %77 = arith.select %73, %75, %76 : vector<8x128xi1>, vector<8x128xf32>
    %78 = arith.addf %69, %77 : vector<8x128xf32>
    %c2_i32 = arith.constant 2 : i32
    %79 = vector.broadcast %c2_i32 : i32 to vector<8x1xi32>
    %80 = arith.cmpi eq, %61, %79 : vector<8x1xi32>
    %cst_19 = arith.constant 0.000000e+00 : f32
    %81 = vector.shape_cast %80 : vector<8x1xi1> to vector<8x1xi1>
    %82 = vector.broadcast %81 : vector<8x1xi1> to vector<8x128xi1>
    %83 = vector.shape_cast %60 : vector<1x128xf32> to vector<1x128xf32>
    %84 = vector.broadcast %83 : vector<1x128xf32> to vector<8x128xf32>
    %85 = vector.broadcast %cst_19 : f32 to vector<8x128xf32>
    %86 = arith.select %82, %84, %85 : vector<8x128xi1>, vector<8x128xf32>
    %87 = arith.addf %78, %86 : vector<8x128xf32>
    %c0_20 = arith.constant 0 : index
    %c0_21 = arith.constant 0 : index
    %88 = vector.load %arg5[%c0_20, %c0_21] : memref<8x128xf32, #tpu.memory_space<vmem>>, vector<8x128xf32>
    %89 = arith.addf %88, %87 : vector<8x128xf32>
    %c0_22 = arith.constant 0 : index
    %c0_23 = arith.constant 0 : index
    %90 = vector.load %arg5[%c0_22, %c0_23] : memref<8x128xf32, #tpu.memory_space<vmem>>, vector<8x128xf32>
    tpu.vector_store %arg5[%c0_22, %c0_23], %89 {strides = array<i32>} : memref<8x128xf32, #tpu.memory_space<vmem>>, vector<8x128xf32>,
    return
  }
  func.func @transform_0(%arg0: i32, %arg1: i32) -> (i32, i32) {
    %c0_i32 = arith.constant 0 : i32
    %c0_i32_0 = arith.constant 0 : i32
    %c0_i32_1 = arith.constant 0 : i32
    return %c0_i32, %c0_i32_0 : i32, i32
  }
  func.func @transform_1(%arg0: i32, %arg1: i32) -> (i32, i32) {
    %c1_i32 = arith.constant 1 : i32
    %0 = arith.muli %arg0, %c1_i32 : i32
    %1 = arith.addi %0, %arg1 : i32
    %c1_i32_0 = arith.constant 1 : i32
    %2 = arith.minsi %1, %c1_i32_0 : i32
    %c0_i32 = arith.constant 0 : i32
    %c0_i32_1 = arith.constant 0 : i32
    return %2, %c0_i32 : i32, i32
  }
  func.func @transform_2(%arg0: i32, %arg1: i32) -> (i32, i32) {
    %c1_i32 = arith.constant 1 : i32
    %0 = arith.muli %arg0, %c1_i32 : i32
    %1 = arith.addi %0, %arg1 : i32
    %c1_i32_0 = arith.constant 1 : i32
    %2 = arith.minsi %1, %c1_i32_0 : i32
    %c0_i32 = arith.constant 0 : i32
    %c0_i32_1 = arith.constant 0 : i32
    return %2, %c0_i32 : i32, i32
  }
  func.func @transform_3(%arg0: i32, %arg1: i32) -> (i32, i32) {
    %c0_i32 = arith.constant 0 : i32
    %c0_i32_0 = arith.constant 0 : i32
    return %arg0, %c0_i32 : i32, i32
  }
}

</mosaic_0001>

<llo_original>
// kernel: tpu_custom_call.1
$region0: #{tpu_custom_call.1}
  #allocation0 [shape = 'u32[]', space=smem, size = 0x4, offset = 0x4, fixed_abs, tag = 'smem constant byte address 0x4 - core index']
  #allocation1 [shape = 'u32[144,128]{1,0:T(1,128)}', space=vmem, size = 0x12000, scoped, tag = 'internal scratch']
  %s0 = inlined_call_operand.vmem [shape: f32[8,128], index: 0, kind: input, shape index: {}]
  %s1 = inlined_call_operand.vmem [shape: f32[2048,16], index: 1, kind: input, shape index: {}]
  %s2 = inlined_call_operand.vmem [shape: s32[2048,1], index: 2, kind: input, shape index: {}]
  %s3 = inlined_call_operand.hbm [shape: f32[16,128], index: 3, kind: output, shape index: {}]
  %s4 = sld [smem:[#allocation0]]
  $region49: #{tpu_custom_call.1} parent=0
    _
  %s6 = ssub.s32 1, %s4
  %s7 = scalar_select 0, %s6, %s4
  $region1: #{tpu_custom_call.1} parent=0
    #allocation2 [shape = 'u8[8192]{0}', space=vmem, size = 0x2000, scoped, tag = 'output window, operand 0']
    #allocation3 [shape = 's32[2]{0}', space=sflag, size = 0x8, scoped, tag = 'scoped memory for tpu_custom_call.1']
    %8 = vsyncpa [#allocation3], 0
    %s9 = scalar_lea.sflag [#allocation3], 1
    %10 = vsyncpa %s9, 0
    loop: start=0, step=1, limit=4
    $region2: #{tpu_custom_call.1} parent=1 // loop_pre_header
      _
    $region3: #{tpu_custom_call.1} parent=1 // loop_header
      %s12 = sphi 0, %s16
      %p13 = scmp.ge.s32.totalorder %s12, 4
      %s19 = sphi 0, %s31
      %s20 = sphi 0, %s27
      %s21 = sphi 0, %s19
      %s22 = sphi 0, %s20
      %s23 = sphi 0, %s21
      %s24 = sphi 0, %s22
      %s32 = sphi 0, %s32
      %s34 = sphi 0, %s32
      %s35 = sphi 0, %s34
      %s49 = sphi 0, %s35
      %s61 = sphi 0, %s63
      %s64 = sphi 0, %s61
      %s65 = sphi 0, %s64
      %s81 = sphi 0, %s65
      %s93 = sphi 0, %s95
      %s96 = sphi 0, %s93
      %s97 = sphi 0, %s96
      %s113 = sphi 0, %s97
      %s119 = sphi 0, %s121
      %s122 = sphi 0, %s119
      %s123 = sphi 0, %s122
      %s139 = sphi 0, %s123
    $region4: #{tpu_custom_call.1} parent=1 // loop_header_branch
      %15 = sbr.rel (%p13) target = $region8
    $region5: #{tpu_custom_call.1} parent=1 // loop_body
      %s17 = ssub.s32 %s12, 1
      %s18 = ssub.s32 %s12, 2
      %s25 = sadd.s32 1, %s20
      %p26 = scmp.ge.s32.totalorder %s25, 1
      %s27 = scalar_select %p26, 0, %s25
      %s28 = sadd.s32 1, %s19
      %s29 = scalar_select %p26, %s28, %s19
      %p30 = scmp.ge.s32.totalorder %s29, 2
      %s31 = scalar_select %p30, 0, %s29
      %s33 = sadd.s32 %s32, 1
      %p36 = scmp.eq.s32.totalorder %s12, 1
      %p37 = scmp.ne.s32.totalorder %s32, %s34
      %p38 = scmp.eq.s32.totalorder %s12, 0
      %p39 = por %p37, %p38
      %p40 = scmp.ne.s32.totalorder %s32, %s34
      %p41 = scmp.eq.s32.totalorder %s17, 1
      %p42 = por %p40, %p41
      %p43 = scmp.ne.s32.totalorder %s34, %s35
      %p44 = scmp.eq.s32.totalorder %s17, 0
      %p45 = por %p43, %p44
      %p46 = scmp.ne.s32.totalorder %s34, %s35
      %p47 = scmp.eq.s32.totalorder %s18, 1
      %p48 = por %p46, %p47
      %p50 = scmp.ne.s32.totalorder %s35, %s49
      %p51 = scmp.eq.s32.totalorder %s18, 0
      %p52 = por %p50, %p51
      %s53 = sadd.s32 %s19, %s20
      %p54 = scmp.lt.s32.totalorder %s53, 1
      %s55 = scalar_select %p54, %s53, 1
      %s56 = sadd.s32 %s31, %s27
      %p57 = scmp.lt.s32.totalorder %s56, 1
      %s58 = scalar_select %p57, %s56, 1
      %s59 = ssub.s32 %s55, %s58
      %p60 = scmp.eq.s32.totalorder %s59, 0
      %s62 = sadd.s32 %s61, 1
      %s63 = scalar_select %p60, %s61, %s62
      %p66 = pneg %p60
      %p67 = scmp.eq.s32.totalorder %s12, 1
      %p68 = por %p66, %p67
      %p69 = scmp.ne.s32.totalorder %s61, %s64
      %p70 = scmp.eq.s32.totalorder %s12, 0
      %p71 = por %p69, %p70
      %p72 = scmp.ne.s32.totalorder %s61, %s64
      %p73 = scmp.eq.s32.totalorder %s17, 1
      %p74 = por %p72, %p73
      %p75 = scmp.ne.s32.totalorder %s64, %s65
      %p76 = scmp.eq.s32.totalorder %s17, 0
      %p77 = por %p75, %p76
      %p78 = scmp.ne.s32.totalorder %s64, %s65
      %p79 = scmp.eq.s32.totalorder %s18, 1
      %p80 = por %p78, %p79
      %p82 = scmp.ne.s32.totalorder %s65, %s81
      %p83 = scmp.eq.s32.totalorder %s18, 0
      %p84 = por %p82, %p83
      %s85 = sadd.s32 %s19, %s20
      %p86 = scmp.lt.s32.totalorder %s85, 1
      %s87 = scalar_select %p86, %s85, 1
      %s88 = sadd.s32 %s31, %s27
      %p89 = scmp.lt.s32.totalorder %s88, 1
      %s90 = scalar_select %p89, %s88, 1
      %s91 = ssub.s32 %s87, %s90
      %p92 = scmp.eq.s32.totalorder %s91, 0
      %s94 = sadd.s32 %s93, 1
      %s95 = scalar_select %p92, %s93, %s94
      %p98 = pneg %p92
      %p99 = scmp.eq.s32.totalorder %s12, 1
      %p100 = por %p98, %p99
      %p101 = scmp.ne.s32.totalorder %s93, %s96
      %p102 = scmp.eq.s32.totalorder %s12, 0
      %p103 = por %p101, %p102
      %p104 = scmp.ne.s32.totalorder %s93, %s96
      %p105 = scmp.eq.s32.totalorder %s17, 1
      %p106 = por %p104, %p105
      %p107 = scmp.ne.s32.totalorder %s96, %s97
      %p108 = scmp.eq.s32.totalorder %s17, 0
      %p109 = por %p107, %p108
      %p110 = scmp.ne.s32.totalorder %s96, %s97
      %p111 = scmp.eq.s32.totalorder %s18, 1
      %p112 = por %p110, %p111
      %p114 = scmp.ne.s32.totalorder %s97, %s113
      %p115 = scmp.eq.s32.totalorder %s18, 0
      %p116 = por %p114, %p115
      %s117 = ssub.s32 %s19, %s31
      %p118 = scmp.eq.s32.totalorder %s117, 0
      %s120 = sadd.s32 %s119, 1
      %s121 = scalar_select %p118, %s119, %s120
      %p124 = pneg %p118
      %p125 = scmp.eq.s32.totalorder %s12, 1
      %p126 = por %p124, %p125
      %p127 = scmp.ne.s32.totalorder %s119, %s122
      %p128 = scmp.eq.s32.totalorder %s12, 0
      %p129 = por %p127, %p128
      %p130 = scmp.ne.s32.totalorder %s119, %s122
      %p131 = scmp.eq.s32.totalorder %s17, 1
      %p132 = por %p130, %p131
      %p133 = scmp.ne.s32.totalorder %s122, %s123
      %p134 = scmp.eq.s32.totalorder %s17, 0
      %p135 = por %p133, %p134
      %p136 = scmp.ne.s32.totalorder %s122, %s123
      %p137 = scmp.eq.s32.totalorder %s18, 1
      %p138 = por %p136, %p137
      %p140 = scmp.ne.s32.totalorder %s123, %s139
      %p141 = scmp.eq.s32.totalorder %s18, 0
      %p142 = por %p140, %p141
      %p143 = scmp.le.s32.totalorder 1, %s12
      %p144 = scmp.lt.s32.totalorder %s12, 3
      %p145 = pnand %p143, %p144
      %p146 = pneg %p145
      // Predicated region
      $region9: #{tpu_custom_call.1} parent=5 // pred_check
        _
      $region10: #{tpu_custom_call.1} parent=5 // pred_check_branch
        %148 = sbr.rel (%p145) target = $region12
      $region11: #{tpu_custom_call.1} parent=5 // pred_region
        %s149 = ssub.s32 %s12, 1
        // Predicated region
        $region13: #{tpu_custom_call.1} parent=11 // pred_check
          %p150 = pneg %p45
        $region14: #{tpu_custom_call.1} parent=11 // pred_check_branch
          %152 = sbr.rel (%p150) target = $region16
        $region15: #{tpu_custom_call.1} parent=11 // pred_region
          _
        $region16: #{tpu_custom_call.1} parent=11 // pred_fallthru
          _
      $region12: #{tpu_custom_call.1} parent=5 // pred_fallthru
        _
      %p153 = scmp.lt.s32.totalorder %s12, 2
      // Predicated region
      $region17: #{tpu_custom_call.1} parent=5 // pred_check
        %p154 = pneg %p153
      $region18: #{tpu_custom_call.1} parent=5 // pred_check_branch
        %156 = sbr.rel (%p154) target = $region20
      $region19: #{tpu_custom_call.1} parent=5 // pred_region
        // Predicated region
        $region21: #{tpu_custom_call.1} parent=19 // pred_check
          %p157 = pneg %p71
        $region22: #{tpu_custom_call.1} parent=19 // pred_check_branch
          %159 = sbr.rel (%p157) target = $region24
        $region23: #{tpu_custom_call.1} parent=19 // pred_region
          %s160 = sadd.s32 %s19, %s20
          %p161 = scmp.lt.s32.totalorder %s160, 1
          %s162 = scalar_select %p161, %s160, 1
          %s163 = smul.u32 128, %s162
          %p164 = scmp.lt.s32.totalorder %s163, 255
          %s165 = scalar_select %p164, %s163, 255
          %s166 = smul.addr %s165, 8
          %s167 = scalar_lea.vmem %s1, %s166
          %s168 = sadd.s32 %s19, %s20
          %p169 = scmp.lt.s32.totalorder %s168, 1
          %s170 = scalar_select %p169, %s168, 1
          %s171 = smul.u32 128, %s170
        $region24: #{tpu_custom_call.1} parent=19 // pred_fallthru
          _
        // Predicated region
        $region25: #{tpu_custom_call.1} parent=19 // pred_check
          %p172 = pneg %p103
        $region26: #{tpu_custom_call.1} parent=19 // pred_check_branch
          %174 = sbr.rel (%p172) target = $region28
        $region27: #{tpu_custom_call.1} parent=19 // pred_region
          %s175 = sadd.s32 %s19, %s20
          %p176 = scmp.lt.s32.totalorder %s175, 1
          %s177 = scalar_select %p176, %s175, 1
          %s178 = smul.u32 128, %s177
          %p179 = scmp.lt.s32.totalorder %s178, 255
          %s180 = scalar_select %p179, %s178, 255
          %s181 = smul.addr %s180, 8
          %s182 = scalar_lea.vmem %s2, %s181
          %s183 = sadd.s32 %s19, %s20
          %p184 = scmp.lt.s32.totalorder %s183, 1
          %s185 = scalar_select %p184, %s183, 1
          %s186 = smul.u32 128, %s185
        $region28: #{tpu_custom_call.1} parent=19 // pred_fallthru
          _
      $region20: #{tpu_custom_call.1} parent=5 // pred_fallthru
        _
      %p187 = scmp.le.s32.totalorder 1, %s12
      %p188 = scmp.lt.s32.totalorder %s12, 3
      %p189 = pnand %p187, %p188
      %p190 = pneg %p189
      // Predicated region
      $region29: #{tpu_custom_call.1} parent=5 // pred_check
        _
      $region30: #{tpu_custom_call.1} parent=5 // pred_check_branch
        %192 = sbr.rel (%p189) target = $region32
      $region31: #{tpu_custom_call.1} parent=5 // pred_region
        %s193 = ssub.s32 %s12, 1
        %p194 = pneg %p45
        %p195 = pneg %p42
        %s196 = sadd.s32 %s21, %s22
        %p197 = scmp.lt.s32.totalorder %s196, 1
        %s198 = scalar_select %p197, %s196, 1
        %s199 = smul.u32 128, %s198
        %p200 = scmp.lt.s32.totalorder %s199, 255
        %s201 = scalar_select %p200, %s199, 255
        %s202 = smul.addr %s201, 8
        %s203 = scalar_lea.vmem %s1, %s202
        %p204 = pneg %p77
        %p205 = pneg %p74
        %s206 = sadd.s32 %s21, %s22
        %p207 = scmp.lt.s32.totalorder %s206, 1
        %s208 = scalar_select %p207, %s206, 1
        %s209 = smul.u32 128, %s208
        %p210 = scmp.lt.s32.totalorder %s209, 255
        %s211 = scalar_select %p210, %s209, 255
        %s212 = smul.addr %s211, 8
        %s213 = scalar_lea.vmem %s2, %s212
        %p214 = pneg %p109
        %p215 = pneg %p106
        %p216 = pneg %p135
        %p217 = pneg %p132
        %s218 = sand.u32 %s122, 1
        %s219 = scalar_lea.sflag [#allocation3], %s218
        %s220 = sand.u32 %s122, 1
        %s221 = smul.addr %s220, 8
        %s222 = scalar_lea.vmem [#allocation2], %s221
        %s223 = sadd.s32 %s21, %s22
        %p224 = scmp.lt.s32.totalorder %s223, 1
        %s225 = scalar_select %p224, %s223, 1
        %s226 = smul.u32 128, %s225
        %p227 = scmp.lt.s32.totalorder %s226, 255
        %s228 = scalar_select %p227, %s226, 255
        %s229 = smul.addr %s228, 8
        %s230 = scalar_lea.vmem %s1, %s229
        %s231 = sadd.s32 %s21, %s22
        %p232 = scmp.lt.s32.totalorder %s231, 1
        %s233 = scalar_select %p232, %s231, 1
        %s234 = smul.u32 128, %s233
        %s235 = sadd.s32 %s21, %s22
        %p236 = scmp.lt.s32.totalorder %s235, 1
        %s237 = scalar_select %p236, %s235, 1
        %s238 = smul.u32 128, %s237
        %p239 = scmp.lt.s32.totalorder %s238, 255
        %s240 = scalar_select %p239, %s238, 255
        %s241 = smul.addr %s240, 8
        %s242 = scalar_lea.vmem %s2, %s241
        %s243 = sadd.s32 %s21, %s22
        %p244 = scmp.lt.s32.totalorder %s243, 1
        %s245 = scalar_select %p244, %s243, 1
        %s246 = smul.u32 128, %s245
        %p247 = scmp.eq.s32.totalorder %s22, 0
        // Predicated region
        $region33: #{tpu_custom_call.1} parent=31 // pred_check
          %p248 = pneg %p247
        $region34: #{tpu_custom_call.1} parent=31 // pred_check_branch
          %250 = sbr.rel (%p248) target = $region36
        $region35: #{tpu_custom_call.1} parent=31 // pred_region
          %251 = vst [vmem:[%s222] sm:$0xff] 0.0
        $region36: #{tpu_custom_call.1} parent=31 // pred_fallthru
          _
        %v252 = vld [vmem:[%s230] sm:$0xff]
        %v253 = vld [vmem:[%s230 + $0x8] sm:$0xff]
        %v254 = vld [vmem:[%s230 + $0x10] sm:$0xff]
        %v255 = vld [vmem:[%s230 + $0x18] sm:$0xff]
        %v256 = vld [vmem:[%s230 + $0x20] sm:$0xff]
        %v257 = vld [vmem:[%s230 + $0x28] sm:$0xff]
        %v258 = vld [vmem:[%s230 + $0x30] sm:$0xff]
        %v259 = vld [vmem:[%s230 + $0x38] sm:$0xff]
        %v260 = vld [vmem:[%s230 + $0x40] sm:$0xff]
        %v261 = vld [vmem:[%s230 + $0x48] sm:$0xff]
        %v262 = vld [vmem:[%s230 + $0x50] sm:$0xff]
        %v263 = vld [vmem:[%s230 + $0x58] sm:$0xff]
        %v264 = vld [vmem:[%s230 + $0x60] sm:$0xff]
        %v265 = vld [vmem:[%s230 + $0x68] sm:$0xff]
        %v266 = vld [vmem:[%s230 + $0x70] sm:$0xff]
        %v267 = vld [vmem:[%s230 + $0x78] sm:$0xff]
        %v268 = vld [vmem:[%s230 + $0x80] sm:$0xff]
        %v269 = vld [vmem:[%s230 + $0x88] sm:$0xff]
        %v270 = vld [vmem:[%s230 + $0x90] sm:$0xff]
        %v271 = vld [vmem:[%s230 + $0x98] sm:$0xff]
        %v272 = vld [vmem:[%s230 + $0xa0] sm:$0xff]
        %v273 = vld [vmem:[%s230 + $0xa8] sm:$0xff]
        %v274 = vld [vmem:[%s230 + $0xb0] sm:$0xff]
        %v275 = vld [vmem:[%s230 + $0xb8] sm:$0xff]
        %v276 = vld [vmem:[%s230 + $0xc0] sm:$0xff]
        %v277 = vld [vmem:[%s230 + $0xc8] sm:$0xff]
        %v278 = vld [vmem:[%s230 + $0xd0] sm:$0xff]
        %v279 = vld [vmem:[%s230 + $0xd8] sm:$0xff]
        %v280 = vld [vmem:[%s230 + $0xe0] sm:$0xff]
        %v281 = vld [vmem:[%s230 + $0xe8] sm:$0xff]
        %v282 = vld [vmem:[%s230 + $0xf0] sm:$0xff]
        %v283 = vld [vmem:[%s230 + $0xf8] sm:$0xff]
        %v284 = vld [vmem:[%s230 + $0x100] sm:$0xff]
        %v285 = vld [vmem:[%s230 + $0x108] sm:$0xff]
        %v286 = vld [vmem:[%s230 + $0x110] sm:$0xff]
        %v287 = vld [vmem:[%s230 + $0x118] sm:$0xff]
        %v288 = vld [vmem:[%s230 + $0x120] sm:$0xff]
        %v289 = vld [vmem:[%s230 + $0x128] sm:$0xff]
        %v290 = vld [vmem:[%s230 + $0x130] sm:$0xff]
        %v291 = vld [vmem:[%s230 + $0x138] sm:$0xff]
        %v292 = vld [vmem:[%s230 + $0x140] sm:$0xff]
        %v293 = vld [vmem:[%s230 + $0x148] sm:$0xff]
        %v294 = vld [vmem:[%s230 + $0x150] sm:$0xff]
        %v295 = vld [vmem:[%s230 + $0x158] sm:$0xff]
        %v296 = vld [vmem:[%s230 + $0x160] sm:$0xff]
        %v297 = vld [vmem:[%s230 + $0x168] sm:$0xff]
        %v298 = vld [vmem:[%s230 + $0x170] sm:$0xff]
        %v299 = vld [vmem:[%s230 + $0x178] sm:$0xff]
        %v300 = vld [vmem:[%s230 + $0x180] sm:$0xff]
        %v301 = vld [vmem:[%s230 + $0x188] sm:$0xff]
        %v302 = vld [vmem:[%s230 + $0x190] sm:$0xff]
        %v303 = vld [vmem:[%s230 + $0x198] sm:$0xff]
        %v304 = vld [vmem:[%s230 + $0x1a0] sm:$0xff]
        %v305 = vld [vmem:[%s230 + $0x1a8] sm:$0xff]
        %v306 = vld [vmem:[%s230 + $0x1b0] sm:$0xff]
        %v307 = vld [vmem:[%s230 + $0x1b8] sm:$0xff]
        %v308 = vld [vmem:[%s230 + $0x1c0] sm:$0xff]
        %v309 = vld [vmem:[%s230 + $0x1c8] sm:$0xff]
        %v310 = vld [vmem:[%s230 + $0x1d0] sm:$0xff]
        %v311 = vld [vmem:[%s230 + $0x1d8] sm:$0xff]
        %v312 = vld [vmem:[%s230 + $0x1e0] sm:$0xff]
        %v313 = vld [vmem:[%s230 + $0x1e8] sm:$0xff]
        %v314 = vld [vmem:[%s230 + $0x1f0] sm:$0xff]
        %v315 = vld [vmem:[%s230 + $0x1f8] sm:$0xff]
        %v316 = vld [vmem:[%s230 + $0x200] sm:$0xff]
        %v317 = vld [vmem:[%s230 + $0x208] sm:$0xff]
        %v318 = vld [vmem:[%s230 + $0x210] sm:$0xff]
        %v319 = vld [vmem:[%s230 + $0x218] sm:$0xff]
        %v320 = vld [vmem:[%s230 + $0x220] sm:$0xff]
        %v321 = vld [vmem:[%s230 + $0x228] sm:$0xff]
        %v322 = vld [vmem:[%s230 + $0x230] sm:$0xff]
        %v323 = vld [vmem:[%s230 + $0x238] sm:$0xff]
        %v324 = vld [vmem:[%s230 + $0x240] sm:$0xff]
        %v325 = vld [vmem:[%s230 + $0x248] sm:$0xff]
        %v326 = vld [vmem:[%s230 + $0x250] sm:$0xff]
        %v327 = vld [vmem:[%s230 + $0x258] sm:$0xff]
        %v328 = vld [vmem:[%s230 + $0x260] sm:$0xff]
        %v329 = vld [vmem:[%s230 + $0x268] sm:$0xff]
        %v330 = vld [vmem:[%s230 + $0x270] sm:$0xff]
        %v331 = vld [vmem:[%s230 + $0x278] sm:$0xff]
        %v332 = vld [vmem:[%s230 + $0x280] sm:$0xff]
        %v333 = vld [vmem:[%s230 + $0x288] sm:$0xff]
        %v334 = vld [vmem:[%s230 + $0x290] sm:$0xff]
        %v335 = vld [vmem:[%s230 + $0x298] sm:$0xff]
        %v336 = vld [vmem:[%s230 + $0x2a0] sm:$0xff]
        %v337 = vld [vmem:[%s230 + $0x2a8] sm:$0xff]
        %v338 = vld [vmem:[%s230 + $0x2b0] sm:$0xff]
        %v339 = vld [vmem:[%s230 + $0x2b8] sm:$0xff]
        %v340 = vld [vmem:[%s230 + $0x2c0] sm:$0xff]
        %v341 = vld [vmem:[%s230 + $0x2c8] sm:$0xff]
        %v342 = vld [vmem:[%s230 + $0x2d0] sm:$0xff]
        %v343 = vld [vmem:[%s230 + $0x2d8] sm:$0xff]
        %v344 = vld [vmem:[%s230 + $0x2e0] sm:$0xff]
        %v345 = vld [vmem:[%s230 + $0x2e8] sm:$0xff]
        %v346 = vld [vmem:[%s230 + $0x2f0] sm:$0xff]
        %v347 = vld [vmem:[%s230 + $0x2f8] sm:$0xff]
        %v348 = vld [vmem:[%s230 + $0x300] sm:$0xff]
        %v349 = vld [vmem:[%s230 + $0x308] sm:$0xff]
        %v350 = vld [vmem:[%s230 + $0x310] sm:$0xff]
        %v351 = vld [vmem:[%s230 + $0x318] sm:$0xff]
        %v352 = vld [vmem:[%s230 + $0x320] sm:$0xff]
        %v353 = vld [vmem:[%s230 + $0x328] sm:$0xff]
        %v354 = vld [vmem:[%s230 + $0x330] sm:$0xff]
        %v355 = vld [vmem:[%s230 + $0x338] sm:$0xff]
        %v356 = vld [vmem:[%s230 + $0x340] sm:$0xff]
        %v357 = vld [vmem:[%s230 + $0x348] sm:$0xff]
        %v358 = vld [vmem:[%s230 + $0x350] sm:$0xff]
        %v359 = vld [vmem:[%s230 + $0x358] sm:$0xff]
        %v360 = vld [vmem:[%s230 + $0x360] sm:$0xff]
        %v361 = vld [vmem:[%s230 + $0x368] sm:$0xff]
        %v362 = vld [vmem:[%s230 + $0x370] sm:$0xff]
        %v363 = vld [vmem:[%s230 + $0x378] sm:$0xff]
        %v364 = vld [vmem:[%s230 + $0x380] sm:$0xff]
        %v365 = vld [vmem:[%s230 + $0x388] sm:$0xff]
        %v366 = vld [vmem:[%s230 + $0x390] sm:$0xff]
        %v367 = vld [vmem:[%s230 + $0x398] sm:$0xff]
        %v368 = vld [vmem:[%s230 + $0x3a0] sm:$0xff]
        %v369 = vld [vmem:[%s230 + $0x3a8] sm:$0xff]
        %v370 = vld [vmem:[%s230 + $0x3b0] sm:$0xff]
        %v371 = vld [vmem:[%s230 + $0x3b8] sm:$0xff]
        %v372 = vld [vmem:[%s230 + $0x3c0] sm:$0xff]
        %v373 = vld [vmem:[%s230 + $0x3c8] sm:$0xff]
        %v374 = vld [vmem:[%s230 + $0x3d0] sm:$0xff]
        %v375 = vld [vmem:[%s230 + $0x3d8] sm:$0xff]
        %v376 = vld [vmem:[%s230 + $0x3e0] sm:$0xff]
        %v377 = vld [vmem:[%s230 + $0x3e8] sm:$0xff]
        %v378 = vld [vmem:[%s230 + $0x3f0] sm:$0xff]
        %v379 = vld [vmem:[%s230 + $0x3f8] sm:$0xff]
        %vm380 = vcmask 130048
        %v381 = vsel %vm380, %v252, -inf
        %382 = vmax.xlane.f32.xlu0 %v381
        %v383 = vpop.xlane.xlu0 %382
        %v384 = vsel %vm380, %v253, -inf
        %385 = vmax.xlane.f32.xlu0 %v384
        %v386 = vpop.xlane.xlu0 %385
        %v387 = vsel %vm380, %v254, -inf
        %388 = vmax.xlane.f32.xlu0 %v387
        %v389 = vpop.xlane.xlu0 %388
        %v390 = vsel %vm380, %v255, -inf
        %391 = vmax.xlane.f32.xlu0 %v390
        %v392 = vpop.xlane.xlu0 %391
        %v393 = vsel %vm380, %v256, -inf
        %394 = vmax.xlane.f32.xlu0 %v393
        %v395 = vpop.xlane.xlu0 %394
        %v396 = vsel %vm380, %v257, -inf
        %397 = vmax.xlane.f32.xlu0 %v396
        %v398 = vpop.xlane.xlu0 %397
        %v399 = vsel %vm380, %v258, -inf
        %400 = vmax.xlane.f32.xlu0 %v399
        %v401 = vpop.xlane.xlu0 %400
        %v402 = vsel %vm380, %v259, -inf
        %403 = vmax.xlane.f32.xlu0 %v402
        %v404 = vpop.xlane.xlu0 %403
        %v405 = vsel %vm380, %v260, -inf
        %406 = vmax.xlane.f32.xlu0 %v405
        %v407 = vpop.xlane.xlu0 %406
        %v408 = vsel %vm380, %v261, -inf
        %409 = vmax.xlane.f32.xlu0 %v408
        %v410 = vpop.xlane.xlu0 %409
        %v411 = vsel %vm380, %v262, -inf
        %412 = vmax.xlane.f32.xlu0 %v411
        %v413 = vpop.xlane.xlu0 %412
        %v414 = vsel %vm380, %v263, -inf
        %415 = vmax.xlane.f32.xlu0 %v414
        %v416 = vpop.xlane.xlu0 %415
        %v417 = vsel %vm380, %v264, -inf
        %418 = vmax.xlane.f32.xlu0 %v417
        %v419 = vpop.xlane.xlu0 %418
        %v420 = vsel %vm380, %v265, -inf
        %421 = vmax.xlane.f32.xlu0 %v420
        %v422 = vpop.xlane.xlu0 %421
        %v423 = vsel %vm380, %v266, -inf
        %424 = vmax.xlane.f32.xlu0 %v423
        %v425 = vpop.xlane.xlu0 %424
        %v426 = vsel %vm380, %v267, -inf
        %427 = vmax.xlane.f32.xlu0 %v426
        %v428 = vpop.xlane.xlu0 %427
        %v429 = vsel %vm380, %v268, -inf
        %430 = vmax.xlane.f32.xlu0 %v429
        %v431 = vpop.xlane.xlu0 %430
        %v432 = vsel %vm380, %v269, -inf
        %433 = vmax.xlane.f32.xlu0 %v432
        %v434 = vpop.xlane.xlu0 %433
        %v435 = vsel %vm380, %v270, -inf
        %436 = vmax.xlane.f32.xlu0 %v435
        %v437 = vpop.xlane.xlu0 %436
        %v438 = vsel %vm380, %v271, -inf
        %439 = vmax.xlane.f32.xlu0 %v438
        %v440 = vpop.xlane.xlu0 %439
        %v441 = vsel %vm380, %v272, -inf
        %442 = vmax.xlane.f32.xlu0 %v441
        %v443 = vpop.xlane.xlu0 %442
        %v444 = vsel %vm380, %v273, -inf
        %445 = vmax.xlane.f32.xlu0 %v444
        %v446 = vpop.xlane.xlu0 %445
        %v447 = vsel %vm380, %v274, -inf
        %448 = vmax.xlane.f32.xlu0 %v447
        %v449 = vpop.xlane.xlu0 %448
        %v450 = vsel %vm380, %v275, -inf
        %451 = vmax.xlane.f32.xlu0 %v450
        %v452 = vpop.xlane.xlu0 %451
        %v453 = vsel %vm380, %v276, -inf
        %454 = vmax.xlane.f32.xlu0 %v453
        %v455 = vpop.xlane.xlu0 %454
        %v456 = vsel %vm380, %v277, -inf
        %457 = vmax.xlane.f32.xlu0 %v456
        %v458 = vpop.xlane.xlu0 %457
        %v459 = vsel %vm380, %v278, -inf
        %460 = vmax.xlane.f32.xlu0 %v459
        %v461 = vpop.xlane.xlu0 %460
        %v462 = vsel %vm380, %v279, -inf
        %463 = vmax.xlane.f32.xlu0 %v462
        %v464 = vpop.xlane.xlu0 %463
        %v465 = vsel %vm380, %v280, -inf
        %466 = vmax.xlane.f32.xlu0 %v465
        %v467 = vpop.xlane.xlu0 %466
        %v468 = vsel %vm380, %v281, -inf
        %469 = vmax.xlane.f32.xlu0 %v468
        %v470 = vpop.xlane.xlu0 %469
        %v471 = vsel %vm380, %v282, -inf
        %472 = vmax.xlane.f32.xlu0 %v471
        %v473 = vpop.xlane.xlu0 %472
        %v474 = vsel %vm380, %v283, -inf
        %475 = vmax.xlane.f32.xlu0 %v474
        %v476 = vpop.xlane.xlu0 %475
        %v477 = vsel %vm380, %v284, -inf
        %478 = vmax.xlane.f32.xlu0 %v477
        %v479 = vpop.xlane.xlu0 %478
        %v480 = vsel %vm380, %v285, -inf
        %481 = vmax.xlane.f32.xlu0 %v480
        %v482 = vpop.xlane.xlu0 %481
        %v483 = vsel %vm380, %v286, -inf
        %484 = vmax.xlane.f32.xlu0 %v483
        %v485 = vpop.xlane.xlu0 %484
        %v486 = vsel %vm380, %v287, -inf
        %487 = vmax.xlane.f32.xlu0 %v486
        %v488 = vpop.xlane.xlu0 %487
        %v489 = vsel %vm380, %v288, -inf
        %490 = vmax.xlane.f32.xlu0 %v489
        %v491 = vpop.xlane.xlu0 %490
        %v492 = vsel %vm380, %v289, -inf
        %493 = vmax.xlane.f32.xlu0 %v492
        %v494 = vpop.xlane.xlu0 %493
        %v495 = vsel %vm380, %v290, -inf
        %496 = vmax.xlane.f32.xlu0 %v495
        %v497 = vpop.xlane.xlu0 %496
        %v498 = vsel %vm380, %v291, -inf
        %499 = vmax.xlane.f32.xlu0 %v498
        %v500 = vpop.xlane.xlu0 %499
        %v501 = vsel %vm380, %v292, -inf
        %502 = vmax.xlane.f32.xlu0 %v501
        %v503 = vpop.xlane.xlu0 %502
        %v504 = vsel %vm380, %v293, -inf
        %505 = vmax.xlane.f32.xlu0 %v504
        %v506 = vpop.xlane.xlu0 %505
        %v507 = vsel %vm380, %v294, -inf
        %508 = vmax.xlane.f32.xlu0 %v507
        %v509 = vpop.xlane.xlu0 %508
        %v510 = vsel %vm380, %v295, -inf
        %511 = vmax.xlane.f32.xlu0 %v510
        %v512 = vpop.xlane.xlu0 %511
        %v513 = vsel %vm380, %v296, -inf
        %514 = vmax.xlane.f32.xlu0 %v513
        %v515 = vpop.xlane.xlu0 %514
        %v516 = vsel %vm380, %v297, -inf
        %517 = vmax.xlane.f32.xlu0 %v516
        %v518 = vpop.xlane.xlu0 %517
        %v519 = vsel %vm380, %v298, -inf
        %520 = vmax.xlane.f32.xlu0 %v519
        %v521 = vpop.xlane.xlu0 %520
        %v522 = vsel %vm380, %v299, -inf
        %523 = vmax.xlane.f32.xlu0 %v522
        %v524 = vpop.xlane.xlu0 %523
        %v525 = vsel %vm380, %v300, -inf
        %526 = vmax.xlane.f32.xlu0 %v525
        %v527 = vpop.xlane.xlu0 %526
        %v528 = vsel %vm380, %v301, -inf
        %529 = vmax.xlane.f32.xlu0 %v528
        %v530 = vpop.xlane.xlu0 %529
        %v531 = vsel %vm380, %v302, -inf
        %532 = vmax.xlane.f32.xlu0 %v531
        %v533 = vpop.xlane.xlu0 %532
        %v534 = vsel %vm380, %v303, -inf
        %535 = vmax.xlane.f32.xlu0 %v534
        %v536 = vpop.xlane.xlu0 %535
        %v537 = vsel %vm380, %v304, -inf
        %538 = vmax.xlane.f32.xlu0 %v537
        %v539 = vpop.xlane.xlu0 %538
        %v540 = vsel %vm380, %v305, -inf
        %541 = vmax.xlane.f32.xlu0 %v540
        %v542 = vpop.xlane.xlu0 %541
        %v543 = vsel %vm380, %v306, -inf
        %544 = vmax.xlane.f32.xlu0 %v543
        %v545 = vpop.xlane.xlu0 %544
        %v546 = vsel %vm380, %v307, -inf
        %547 = vmax.xlane.f32.xlu0 %v546
        %v548 = vpop.xlane.xlu0 %547
        %v549 = vsel %vm380, %v308, -inf
        %550 = vmax.xlane.f32.xlu0 %v549
        %v551 = vpop.xlane.xlu0 %550
        %v552 = vsel %vm380, %v309, -inf
        %553 = vmax.xlane.f32.xlu0 %v552
        %v554 = vpop.xlane.xlu0 %553
        %v555 = vsel %vm380, %v310, -inf
        %556 = vmax.xlane.f32.xlu0 %v555
        %v557 = vpop.xlane.xlu0 %556
        %v558 = vsel %vm380, %v311, -inf
        %559 = vmax.xlane.f32.xlu0 %v558
        %v560 = vpop.xlane.xlu0 %559
        %v561 = vsel %vm380, %v312, -inf
        %562 = vmax.xlane.f32.xlu0 %v561
        %v563 = vpop.xlane.xlu0 %562
        %v564 = vsel %vm380, %v313, -inf
        %565 = vmax.xlane.f32.xlu0 %v564
        %v566 = vpop.xlane.xlu0 %565
        %v567 = vsel %vm380, %v314, -inf
        %568 = vmax.xlane.f32.xlu0 %v567
        %v569 = vpop.xlane.xlu0 %568
        %v570 = vsel %vm380, %v315, -inf
        %571 = vmax.xlane.f32.xlu0 %v570
        %v572 = vpop.xlane.xlu0 %571
        %v573 = vsel %vm380, %v316, -inf
        %574 = vmax.xlane.f32.xlu0 %v573
        %v575 = vpop.xlane.xlu0 %574
        %v576 = vsel %vm380, %v317, -inf
        %577 = vmax.xlane.f32.xlu0 %v576
        %v578 = vpop.xlane.xlu0 %577
        %v579 = vsel %vm380, %v318, -inf
        %580 = vmax.xlane.f32.xlu0 %v579
        %v581 = vpop.xlane.xlu0 %580
        %v582 = vsel %vm380, %v319, -inf
        %583 = vmax.xlane.f32.xlu0 %v582
        %v584 = vpop.xlane.xlu0 %583
        %v585 = vsel %vm380, %v320, -inf
        %586 = vmax.xlane.f32.xlu0 %v585
        %v587 = vpop.xlane.xlu0 %586
        %v588 = vsel %vm380, %v321, -inf
        %589 = vmax.xlane.f32.xlu0 %v588
        %v590 = vpop.xlane.xlu0 %589
        %v591 = vsel %vm380, %v322, -inf
        %592 = vmax.xlane.f32.xlu0 %v591
        %v593 = vpop.xlane.xlu0 %592
        %v594 = vsel %vm380, %v323, -inf
        %595 = vmax.xlane.f32.xlu0 %v594
        %v596 = vpop.xlane.xlu0 %595
        %v597 = vsel %vm380, %v324, -inf
        %598 = vmax.xlane.f32.xlu0 %v597
        %v599 = vpop.xlane.xlu0 %598
        %v600 = vsel %vm380, %v325, -inf
        %601 = vmax.xlane.f32.xlu0 %v600
        %v602 = vpop.xlane.xlu0 %601
        %v603 = vsel %vm380, %v326, -inf
        %604 = vmax.xlane.f32.xlu0 %v603
        %v605 = vpop.xlane.xlu0 %604
        %v606 = vsel %vm380, %v327, -inf
        %607 = vmax.xlane.f32.xlu0 %v606
        %v608 = vpop.xlane.xlu0 %607
        %v609 = vsel %vm380, %v328, -inf
        %610 = vmax.xlane.f32.xlu0 %v609
        %v611 = vpop.xlane.xlu0 %610
        %v612 = vsel %vm380, %v329, -inf
        %613 = vmax.xlane.f32.xlu0 %v612
        %v614 = vpop.xlane.xlu0 %613
        %v615 = vsel %vm380, %v330, -inf
        %616 = vmax.xlane.f32.xlu0 %v615
        %v617 = vpop.xlane.xlu0 %616
        %v618 = vsel %vm380, %v331, -inf
        %619 = vmax.xlane.f32.xlu0 %v618
        %v620 = vpop.xlane.xlu0 %619
        %v621 = vsel %vm380, %v332, -inf
        %622 = vmax.xlane.f32.xlu0 %v621
        %v623 = vpop.xlane.xlu0 %622
        %v624 = vsel %vm380, %v333, -inf
        %625 = vmax.xlane.f32.xlu0 %v624
        %v626 = vpop.xlane.xlu0 %625
        %v627 = vsel %vm380, %v334, -inf
        %628 = vmax.xlane.f32.xlu0 %v627
        %v629 = vpop.xlane.xlu0 %628
        %v630 = vsel %vm380, %v335, -inf
        %631 = vmax.xlane.f32.xlu0 %v630
        %v632 = vpop.xlane.xlu0 %631
        %v633 = vsel %vm380, %v336, -inf
        %634 = vmax.xlane.f32.xlu0 %v633
        %v635 = vpop.xlane.xlu0 %634
        %v636 = vsel %vm380, %v337, -inf
        %637 = vmax.xlane.f32.xlu0 %v636
        %v638 = vpop.xlane.xlu0 %637
        %v639 = vsel %vm380, %v338, -inf
        %640 = vmax.xlane.f32.xlu0 %v639
        %v641 = vpop.xlane.xlu0 %640
        %v642 = vsel %vm380, %v339, -inf
        %643 = vmax.xlane.f32.xlu0 %v642
        %v644 = vpop.xlane.xlu0 %643
        %v645 = vsel %vm380, %v340, -inf
        %646 = vmax.xlane.f32.xlu0 %v645
        %v647 = vpop.xlane.xlu0 %646
        %v648 = vsel %vm380, %v341, -inf
        %649 = vmax.xlane.f32.xlu0 %v648
        %v650 = vpop.xlane.xlu0 %649
        %v651 = vsel %vm380, %v342, -inf
        %652 = vmax.xlane.f32.xlu0 %v651
        %v653 = vpop.xlane.xlu0 %652
        %v654 = vsel %vm380, %v343, -inf
        %655 = vmax.xlane.f32.xlu0 %v654
        %v656 = vpop.xlane.xlu0 %655
        %v657 = vsel %vm380, %v344, -inf
        %658 = vmax.xlane.f32.xlu0 %v657
        %v659 = vpop.xlane.xlu0 %658
        %v660 = vsel %vm380, %v345, -inf
        %661 = vmax.xlane.f32.xlu0 %v660
        %v662 = vpop.xlane.xlu0 %661
        %v663 = vsel %vm380, %v346, -inf
        %664 = vmax.xlane.f32.xlu0 %v663
        %v665 = vpop.xlane.xlu0 %664
        %v666 = vsel %vm380, %v347, -inf
        %667 = vmax.xlane.f32.xlu0 %v666
        %v668 = vpop.xlane.xlu0 %667
        %v669 = vsel %vm380, %v348, -inf
        %670 = vmax.xlane.f32.xlu0 %v669
        %v671 = vpop.xlane.xlu0 %670
        %v672 = vsel %vm380, %v349, -inf
        %673 = vmax.xlane.f32.xlu0 %v672
        %v674 = vpop.xlane.xlu0 %673
        %v675 = vsel %vm380, %v350, -inf
        %676 = vmax.xlane.f32.xlu0 %v675
        %v677 = vpop.xlane.xlu0 %676
        %v678 = vsel %vm380, %v351, -inf
        %679 = vmax.xlane.f32.xlu0 %v678
        %v680 = vpop.xlane.xlu0 %679
        %v681 = vsel %vm380, %v352, -inf
        %682 = vmax.xlane.f32.xlu0 %v681
        %v683 = vpop.xlane.xlu0 %682
        %v684 = vsel %vm380, %v353, -inf
        %685 = vmax.xlane.f32.xlu0 %v684
        %v686 = vpop.xlane.xlu0 %685
        %v687 = vsel %vm380, %v354, -inf
        %688 = vmax.xlane.f32.xlu0 %v687
        %v689 = vpop.xlane.xlu0 %688
        %v690 = vsel %vm380, %v355, -inf
        %691 = vmax.xlane.f32.xlu0 %v690
        %v692 = vpop.xlane.xlu0 %691
        %v693 = vsel %vm380, %v356, -inf
        %694 = vmax.xlane.f32.xlu0 %v693
        %v695 = vpop.xlane.xlu0 %694
        %v696 = vsel %vm380, %v357, -inf
        %697 = vmax.xlane.f32.xlu0 %v696
        %v698 = vpop.xlane.xlu0 %697
        %v699 = vsel %vm380, %v358, -inf
        %700 = vmax.xlane.f32.xlu0 %v699
        %v701 = vpop.xlane.xlu0 %700
        %v702 = vsel %vm380, %v359, -inf
        %703 = vmax.xlane.f32.xlu0 %v702
        %v704 = vpop.xlane.xlu0 %703
        %v705 = vsel %vm380, %v360, -inf
        %706 = vmax.xlane.f32.xlu0 %v705
        %v707 = vpop.xlane.xlu0 %706
        %v708 = vsel %vm380, %v361, -inf
        %709 = vmax.xlane.f32.xlu0 %v708
        %v710 = vpop.xlane.xlu0 %709
        %v711 = vsel %vm380, %v362, -inf
        %712 = vmax.xlane.f32.xlu0 %v711
        %v713 = vpop.xlane.xlu0 %712
        %v714 = vsel %vm380, %v363, -inf
        %715 = vmax.xlane.f32.xlu0 %v714
        %v716 = vpop.xlane.xlu0 %715
        %v717 = vsel %vm380, %v364, -inf
        %718 = vmax.xlane.f32.xlu0 %v717
        %v719 = vpop.xlane.xlu0 %718
        %v720 = vsel %vm380, %v365, -inf
        %721 = vmax.xlane.f32.xlu0 %v720
        %v722 = vpop.xlane.xlu0 %721
        %v723 = vsel %vm380, %v366, -inf
        %724 = vmax.xlane.f32.xlu0 %v723
        %v725 = vpop.xlane.xlu0 %724
        %v726 = vsel %vm380, %v367, -inf
        %727 = vmax.xlane.f32.xlu0 %v726
        %v728 = vpop.xlane.xlu0 %727
        %v729 = vsel %vm380, %v368, -inf
        %730 = vmax.xlane.f32.xlu0 %v729
        %v731 = vpop.xlane.xlu0 %730
        %v732 = vsel %vm380, %v369, -inf
        %733 = vmax.xlane.f32.xlu0 %v732
        %v734 = vpop.xlane.xlu0 %733
        %v735 = vsel %vm380, %v370, -inf
        %736 = vmax.xlane.f32.xlu0 %v735
        %v737 = vpop.xlane.xlu0 %736
        %v738 = vsel %vm380, %v371, -inf
        %739 = vmax.xlane.f32.xlu0 %v738
        %v740 = vpop.xlane.xlu0 %739
        %v741 = vsel %vm380, %v372, -inf
        %742 = vmax.xlane.f32.xlu0 %v741
        %v743 = vpop.xlane.xlu0 %742
        %v744 = vsel %vm380, %v373, -inf
        %745 = vmax.xlane.f32.xlu0 %v744
        %v746 = vpop.xlane.xlu0 %745
        %v747 = vsel %vm380, %v374, -inf
        %748 = vmax.xlane.f32.xlu0 %v747
        %v749 = vpop.xlane.xlu0 %748
        %v750 = vsel %vm380, %v375, -inf
        %751 = vmax.xlane.f32.xlu0 %v750
        %v752 = vpop.xlane.xlu0 %751
        %v753 = vsel %vm380, %v376, -inf
        %754 = vmax.xlane.f32.xlu0 %v753
        %v755 = vpop.xlane.xlu0 %754
        %v756 = vsel %vm380, %v377, -inf
        %757 = vmax.xlane.f32.xlu0 %v756
        %v758 = vpop.xlane.xlu0 %757
        %v759 = vsel %vm380, %v378, -inf
        %760 = vmax.xlane.f32.xlu0 %v759
        %v761 = vpop.xlane.xlu0 %760
        %v762 = vsel %vm380, %v379, -inf
        %763 = vmax.xlane.f32.xlu0 %v762
        %v764 = vpop.xlane.xlu0 %763
        %v765 = vsub.f32 %v252, %v383
        %v766 = vsub.f32 %v253, %v386
        %v767 = vsub.f32 %v254, %v389
        %v768 = vsub.f32 %v255, %v392
        %v769 = vsub.f32 %v256, %v395
        %v770 = vsub.f32 %v257, %v398
        %v771 = vsub.f32 %v258, %v401
        %v772 = vsub.f32 %v259, %v404
        %v773 = vsub.f32 %v260, %v407
        %v774 = vsub.f32 %v261, %v410
        %v775 = vsub.f32 %v262, %v413
        %v776 = vsub.f32 %v263, %v416
        %v777 = vsub.f32 %v264, %v419
        %v778 = vsub.f32 %v265, %v422
        %v779 = vsub.f32 %v266, %v425
        %v780 = vsub.f32 %v267, %v428
        %v781 = vsub.f32 %v268, %v431
        %v782 = vsub.f32 %v269, %v434
        %v783 = vsub.f32 %v270, %v437
        %v784 = vsub.f32 %v271, %v440
        %v785 = vsub.f32 %v272, %v443
        %v786 = vsub.f32 %v273, %v446
        %v787 = vsub.f32 %v274, %v449
        %v788 = vsub.f32 %v275, %v452
        %v789 = vsub.f32 %v276, %v455
        %v790 = vsub.f32 %v277, %v458
        %v791 = vsub.f32 %v278, %v461
        %v792 = vsub.f32 %v279, %v464
        %v793 = vsub.f32 %v280, %v467
        %v794 = vsub.f32 %v281, %v470
        %v795 = vsub.f32 %v282, %v473
        %v796 = vsub.f32 %v283, %v476
        %v797 = vsub.f32 %v284, %v479
        %v798 = vsub.f32 %v285, %v482
        %v799 = vsub.f32 %v286, %v485
        %v800 = vsub.f32 %v287, %v488
        %v801 = vsub.f32 %v288, %v491
        %v802 = vsub.f32 %v289, %v494
        %v803 = vsub.f32 %v290, %v497
        %v804 = vsub.f32 %v291, %v500
        %v805 = vsub.f32 %v292, %v503
        %v806 = vsub.f32 %v293, %v506
        %v807 = vsub.f32 %v294, %v509
        %v808 = vsub.f32 %v295, %v512
        %v809 = vsub.f32 %v296, %v515
        %v810 = vsub.f32 %v297, %v518
        %v811 = vsub.f32 %v298, %v521
        %v812 = vsub.f32 %v299, %v524
        %v813 = vsub.f32 %v300, %v527
        %v814 = vsub.f32 %v301, %v530
        %v815 = vsub.f32 %v302, %v533
        %v816 = vsub.f32 %v303, %v536
        %v817 = vsub.f32 %v304, %v539
        %v818 = vsub.f32 %v305, %v542
        %v819 = vsub.f32 %v306, %v545
        %v820 = vsub.f32 %v307, %v548
        %v821 = vsub.f32 %v308, %v551
        %v822 = vsub.f32 %v309, %v554
        %v823 = vsub.f32 %v310, %v557
        %v824 = vsub.f32 %v311, %v560
        %v825 = vsub.f32 %v312, %v563
        %v826 = vsub.f32 %v313, %v566
        %v827 = vsub.f32 %v314, %v569
        %v828 = vsub.f32 %v315, %v572
        %v829 = vsub.f32 %v316, %v575
        %v830 = vsub.f32 %v317, %v578
        %v831 = vsub.f32 %v318, %v581
        %v832 = vsub.f32 %v319, %v584
        %v833 = vsub.f32 %v320, %v587
        %v834 = vsub.f32 %v321, %v590
        %v835 = vsub.f32 %v322, %v593
        %v836 = vsub.f32 %v323, %v596
        %v837 = vsub.f32 %v324, %v599
        %v838 = vsub.f32 %v325, %v602
        %v839 = vsub.f32 %v326, %v605
        %v840 = vsub.f32 %v327, %v608
        %v841 = vsub.f32 %v328, %v611
        %v842 = vsub.f32 %v329, %v614
        %v843 = vsub.f32 %v330, %v617
        %v844 = vsub.f32 %v331, %v620
        %v845 = vsub.f32 %v332, %v623
        %v846 = vsub.f32 %v333, %v626
        %v847 = vsub.f32 %v334, %v629
        %v848 = vsub.f32 %v335, %v632
        %v849 = vsub.f32 %v336, %v635
        %v850 = vsub.f32 %v337, %v638
        %v851 = vsub.f32 %v338, %v641
        %v852 = vsub.f32 %v339, %v644
        %v853 = vsub.f32 %v340, %v647
        %v854 = vsub.f32 %v341, %v650
        %v855 = vsub.f32 %v342, %v653
        %v856 = vsub.f32 %v343, %v656
        %v857 = vsub.f32 %v344, %v659
        %v858 = vsub.f32 %v345, %v662
        %v859 = vsub.f32 %v346, %v665
        %v860 = vsub.f32 %v347, %v668
        %v861 = vsub.f32 %v348, %v671
        %v862 = vsub.f32 %v349, %v674
        %v863 = vsub.f32 %v350, %v677
        %v864 = vsub.f32 %v351, %v680
        %v865 = vsub.f32 %v352, %v683
        %v866 = vsub.f32 %v353, %v686
        %v867 = vsub.f32 %v354, %v689
        %v868 = vsub.f32 %v355, %v692
        %v869 = vsub.f32 %v356, %v695
        %v870 = vsub.f32 %v357, %v698
        %v871 = vsub.f32 %v358, %v701
        %v872 = vsub.f32 %v359, %v704
        %v873 = vsub.f32 %v360, %v707
        %v874 = vsub.f32 %v361, %v710
        %v875 = vsub.f32 %v362, %v713
        %v876 = vsub.f32 %v363, %v716
        %v877 = vsub.f32 %v364, %v719
        %v878 = vsub.f32 %v365, %v722
        %v879 = vsub.f32 %v366, %v725
        %v880 = vsub.f32 %v367, %v728
        %v881 = vsub.f32 %v368, %v731
        %v882 = vsub.f32 %v369, %v734
        %v883 = vsub.f32 %v370, %v737
        %v884 = vsub.f32 %v371, %v740
        %v885 = vsub.f32 %v372, %v743
        %v886 = vsub.f32 %v373, %v746
        %v887 = vsub.f32 %v374, %v749
        %v888 = vsub.f32 %v375, %v752
        %v889 = vsub.f32 %v376, %v755
        %v890 = vsub.f32 %v377, %v758
        %v891 = vsub.f32 %v378, %v761
        %v892 = vsub.f32 %v379, %v764
        %v893 = vmul.f32 %v765, 1.442695
        %v894 = vpow.pop %v893
        %v895 = vmul.f32 %v766, 1.442695
        %v896 = vpow.pop %v895
        %v897 = vmul.f32 %v767, 1.442695
        %v898 = vpow.pop %v897
        %v899 = vmul.f32 %v768, 1.442695
        %v900 = vpow.pop %v899
        %v901 = vmul.f32 %v769, 1.442695
        %v902 = vpow.pop %v901
        %v903 = vmul.f32 %v770, 1.442695
        %v904 = vpow.pop %v903
        %v905 = vmul.f32 %v771, 1.442695
        %v906 = vpow.pop %v905
        %v907 = vmul.f32 %v772, 1.442695
        %v908 = vpow.pop %v907
        %v909 = vmul.f32 %v773, 1.442695
        %v910 = vpow.pop %v909
        %v911 = vmul.f32 %v774, 1.442695
        %v912 = vpow.pop %v911
        %v913 = vmul.f32 %v775, 1.442695
        %v914 = vpow.pop %v913
        %v915 = vmul.f32 %v776, 1.442695
        %v916 = vpow.pop %v915
        %v917 = vmul.f32 %v777, 1.442695
        %v918 = vpow.pop %v917
        %v919 = vmul.f32 %v778, 1.442695
        %v920 = vpow.pop %v919
        %v921 = vmul.f32 %v779, 1.442695
        %v922 = vpow.pop %v921
        %v923 = vmul.f32 %v780, 1.442695
        %v924 = vpow.pop %v923
        %v925 = vmul.f32 %v781, 1.442695
        %v926 = vpow.pop %v925
        %v927 = vmul.f32 %v782, 1.442695
        %v928 = vpow.pop %v927
        %v929 = vmul.f32 %v783, 1.442695
        %v930 = vpow.pop %v929
        %v931 = vmul.f32 %v784, 1.442695
        %v932 = vpow.pop %v931
        %v933 = vmul.f32 %v785, 1.442695
        %v934 = vpow.pop %v933
        %v935 = vmul.f32 %v786, 1.442695
        %v936 = vpow.pop %v935
        %v937 = vmul.f32 %v787, 1.442695
        %v938 = vpow.pop %v937
        %v939 = vmul.f32 %v788, 1.442695
        %v940 = vpow.pop %v939
        %v941 = vmul.f32 %v789, 1.442695
        %v942 = vpow.pop %v941
        %v943 = vmul.f32 %v790, 1.442695
        %v944 = vpow.pop %v943
        %v945 = vmul.f32 %v791, 1.442695
        %v946 = vpow.pop %v945
        %v947 = vmul.f32 %v792, 1.442695
        %v948 = vpow.pop %v947
        %v949 = vmul.f32 %v793, 1.442695
        %v950 = vpow.pop %v949
        %v951 = vmul.f32 %v794, 1.442695
        %v952 = vpow.pop %v951
        %v953 = vmul.f32 %v795, 1.442695
        %v954 = vpow.pop %v953
        %v955 = vmul.f32 %v796, 1.442695
        %v956 = vpow.pop %v955
        %v957 = vmul.f32 %v797, 1.442695
        %v958 = vpow.pop %v957
        %v959 = vmul.f32 %v798, 1.442695
        %v960 = vpow.pop %v959
        %v961 = vmul.f32 %v799, 1.442695
        %v962 = vpow.pop %v961
        %v963 = vmul.f32 %v800, 1.442695
        %v964 = vpow.pop %v963
        %v965 = vmul.f32 %v801, 1.442695
        %v966 = vpow.pop %v965
        %v967 = vmul.f32 %v802, 1.442695
        %v968 = vpow.pop %v967
        %v969 = vmul.f32 %v803, 1.442695
        %v970 = vpow.pop %v969
        %v971 = vmul.f32 %v804, 1.442695
        %v972 = vpow.pop %v971
        %v973 = vmul.f32 %v805, 1.442695
        %v974 = vpow.pop %v973
        %v975 = vmul.f32 %v806, 1.442695
        %v976 = vpow.pop %v975
        %v977 = vmul.f32 %v807, 1.442695
        %v978 = vpow.pop %v977
        %v979 = vmul.f32 %v808, 1.442695
        %v980 = vpow.pop %v979
        %v981 = vmul.f32 %v809, 1.442695
        %v982 = vpow.pop %v981
        %v983 = vmul.f32 %v810, 1.442695
        %v984 = vpow.pop %v983
        %v985 = vmul.f32 %v811, 1.442695
        %v986 = vpow.pop %v985
        %v987 = vmul.f32 %v812, 1.442695
        %v988 = vpow.pop %v987
        %v989 = vmul.f32 %v813, 1.442695
        %v990 = vpow.pop %v989
        %v991 = vmul.f32 %v814, 1.442695
        %v992 = vpow.pop %v991
        %v993 = vmul.f32 %v815, 1.442695
        %v994 = vpow.pop %v993
        %v995 = vmul.f32 %v816, 1.442695
        %v996 = vpow.pop %v995
        %v997 = vmul.f32 %v817, 1.442695
        %v998 = vpow.pop %v997
        %v999 = vmul.f32 %v818, 1.442695
        %v1000 = vpow.pop %v999
        %v1001 = vmul.f32 %v819, 1.442695
        %v1002 = vpow.pop %v1001
        %v1003 = vmul.f32 %v820, 1.442695
        %v1004 = vpow.pop %v1003
        %v1005 = vmul.f32 %v821, 1.442695
        %v1006 = vpow.pop %v1005
        %v1007 = vmul.f32 %v822, 1.442695
        %v1008 = vpow.pop %v1007
        %v1009 = vmul.f32 %v823, 1.442695
        %v1010 = vpow.pop %v1009
        %v1011 = vmul.f32 %v824, 1.442695
        %v1012 = vpow.pop %v1011
        %v1013 = vmul.f32 %v825, 1.442695
        %v1014 = vpow.pop %v1013
        %v1015 = vmul.f32 %v826, 1.442695
        %v1016 = vpow.pop %v1015
        %v1017 = vmul.f32 %v827, 1.442695
        %v1018 = vpow.pop %v1017
        %v1019 = vmul.f32 %v828, 1.442695
        %v1020 = vpow.pop %v1019
        %v1021 = vmul.f32 %v829, 1.442695
        %v1022 = vpow.pop %v1021
        %v1023 = vmul.f32 %v830, 1.442695
        %v1024 = vpow.pop %v1023
        %v1025 = vmul.f32 %v831, 1.442695
        %v1026 = vpow.pop %v1025
        %v1027 = vmul.f32 %v832, 1.442695
        %v1028 = vpow.pop %v1027
        %v1029 = vmul.f32 %v833, 1.442695
        %v1030 = vpow.pop %v1029
        %v1031 = vmul.f32 %v834, 1.442695
        %v1032 = vpow.pop %v1031
        %v1033 = vmul.f32 %v835, 1.442695
        %v1034 = vpow.pop %v1033
        %v1035 = vmul.f32 %v836, 1.442695
        %v1036 = vpow.pop %v1035
        %v1037 = vmul.f32 %v837, 1.442695
        %v1038 = vpow.pop %v1037
        %v1039 = vmul.f32 %v838, 1.442695
        %v1040 = vpow.pop %v1039
        %v1041 = vmul.f32 %v839, 1.442695
        %v1042 = vpow.pop %v1041
        %v1043 = vmul.f32 %v840, 1.442695
        %v1044 = vpow.pop %v1043
        %v1045 = vmul.f32 %v841, 1.442695
        %v1046 = vpow.pop %v1045
        %v1047 = vmul.f32 %v842, 1.442695
        %v1048 = vpow.pop %v1047
        %v1049 = vmul.f32 %v843, 1.442695
        %v1050 = vpow.pop %v1049
        %v1051 = vmul.f32 %v844, 1.442695
        %v1052 = vpow.pop %v1051
        %v1053 = vmul.f32 %v845, 1.442695
        %v1054 = vpow.pop %v1053
        %v1055 = vmul.f32 %v846, 1.442695
        %v1056 = vpow.pop %v1055
        %v1057 = vmul.f32 %v847, 1.442695
        %v1058 = vpow.pop %v1057
        %v1059 = vmul.f32 %v848, 1.442695
        %v1060 = vpow.pop %v1059
        %v1061 = vmul.f32 %v849, 1.442695
        %v1062 = vpow.pop %v1061
        %v1063 = vmul.f32 %v850, 1.442695
        %v1064 = vpow.pop %v1063
        %v1065 = vmul.f32 %v851, 1.442695
        %v1066 = vpow.pop %v1065
        %v1067 = vmul.f32 %v852, 1.442695
        %v1068 = vpow.pop %v1067
        %v1069 = vmul.f32 %v853, 1.442695
        %v1070 = vpow.pop %v1069
        %v1071 = vmul.f32 %v854, 1.442695
        %v1072 = vpow.pop %v1071
        %v1073 = vmul.f32 %v855, 1.442695
        %v1074 = vpow.pop %v1073
        %v1075 = vmul.f32 %v856, 1.442695
        %v1076 = vpow.pop %v1075
        %v1077 = vmul.f32 %v857, 1.442695
        %v1078 = vpow.pop %v1077
        %v1079 = vmul.f32 %v858, 1.442695
        %v1080 = vpow.pop %v1079
        %v1081 = vmul.f32 %v859, 1.442695
        %v1082 = vpow.pop %v1081
        %v1083 = vmul.f32 %v860, 1.442695
        %v1084 = vpow.pop %v1083
        %v1085 = vmul.f32 %v861, 1.442695
        %v1086 = vpow.pop %v1085
        %v1087 = vmul.f32 %v862, 1.442695
        %v1088 = vpow.pop %v1087
        %v1089 = vmul.f32 %v863, 1.442695
        %v1090 = vpow.pop %v1089
        %v1091 = vmul.f32 %v864, 1.442695
        %v1092 = vpow.pop %v1091
        %v1093 = vmul.f32 %v865, 1.442695
        %v1094 = vpow.pop %v1093
        %v1095 = vmul.f32 %v866, 1.442695
        %v1096 = vpow.pop %v1095
        %v1097 = vmul.f32 %v867, 1.442695
        %v1098 = vpow.pop %v1097
        %v1099 = vmul.f32 %v868, 1.442695
        %v1100 = vpow.pop %v1099
        %v1101 = vmul.f32 %v869, 1.442695
        %v1102 = vpow.pop %v1101
        %v1103 = vmul.f32 %v870, 1.442695
        %v1104 = vpow.pop %v1103
        %v1105 = vmul.f32 %v871, 1.442695
        %v1106 = vpow.pop %v1105
        %v1107 = vmul.f32 %v872, 1.442695
        %v1108 = vpow.pop %v1107
        %v1109 = vmul.f32 %v873, 1.442695
        %v1110 = vpow.pop %v1109
        %v1111 = vmul.f32 %v874, 1.442695
        %v1112 = vpow.pop %v1111
        %v1113 = vmul.f32 %v875, 1.442695
        %v1114 = vpow.pop %v1113
        %v1115 = vmul.f32 %v876, 1.442695
        %v1116 = vpow.pop %v1115
        %v1117 = vmul.f32 %v877, 1.442695
        %v1118 = vpow.pop %v1117
        %v1119 = vmul.f32 %v878, 1.442695
        %v1120 = vpow.pop %v1119
        %v1121 = vmul.f32 %v879, 1.442695
        %v1122 = vpow.pop %v1121
        %v1123 = vmul.f32 %v880, 1.442695
        %v1124 = vpow.pop %v1123
        %v1125 = vmul.f32 %v881, 1.442695
        %v1126 = vpow.pop %v1125
        %v1127 = vmul.f32 %v882, 1.442695
        %v1128 = vpow.pop %v1127
        %v1129 = vmul.f32 %v883, 1.442695
        %v1130 = vpow.pop %v1129
        %v1131 = vmul.f32 %v884, 1.442695
        %v1132 = vpow.pop %v1131
        %v1133 = vmul.f32 %v885, 1.442695
        %v1134 = vpow.pop %v1133
        %v1135 = vmul.f32 %v886, 1.442695
        %v1136 = vpow.pop %v1135
        %v1137 = vmul.f32 %v887, 1.442695
        %v1138 = vpow.pop %v1137
        %v1139 = vmul.f32 %v888, 1.442695
        %v1140 = vpow.pop %v1139
        %v1141 = vmul.f32 %v889, 1.442695
        %v1142 = vpow.pop %v1141
        %v1143 = vmul.f32 %v890, 1.442695
        %v1144 = vpow.pop %v1143
        %v1145 = vmul.f32 %v891, 1.442695
        %v1146 = vpow.pop %v1145
        %v1147 = vmul.f32 %v892, 1.442695
        %v1148 = vpow.pop %v1147
        %v1149 = vsel %vm380, %v894, 0.0
        %1150 = vadd.xlane.f32.xlu0 %v1149
        %v1151 = vpop.xlane.xlu0 %1150
        %v1152 = vsel %vm380, %v896, 0.0
        %1153 = vadd.xlane.f32.xlu0 %v1152
        %v1154 = vpop.xlane.xlu0 %1153
        %v1155 = vsel %vm380, %v898, 0.0
        %1156 = vadd.xlane.f32.xlu0 %v1155
        %v1157 = vpop.xlane.xlu0 %1156
        %v1158 = vsel %vm380, %v900, 0.0
        %1159 = vadd.xlane.f32.xlu0 %v1158
        %v1160 = vpop.xlane.xlu0 %1159
        %v1161 = vsel %vm380, %v902, 0.0
        %1162 = vadd.xlane.f32.xlu0 %v1161
        %v1163 = vpop.xlane.xlu0 %1162
        %v1164 = vsel %vm380, %v904, 0.0
        %1165 = vadd.xlane.f32.xlu0 %v1164
        %v1166 = vpop.xlane.xlu0 %1165
        %v1167 = vsel %vm380, %v906, 0.0
        %1168 = vadd.xlane.f32.xlu0 %v1167
        %v1169 = vpop.xlane.xlu0 %1168
        %v1170 = vsel %vm380, %v908, 0.0
        %1171 = vadd.xlane.f32.xlu0 %v1170
        %v1172 = vpop.xlane.xlu0 %1171
        %v1173 = vsel %vm380, %v910, 0.0
        %1174 = vadd.xlane.f32.xlu0 %v1173
        %v1175 = vpop.xlane.xlu0 %1174
        %v1176 = vsel %vm380, %v912, 0.0
        %1177 = vadd.xlane.f32.xlu0 %v1176
        %v1178 = vpop.xlane.xlu0 %1177
        %v1179 = vsel %vm380, %v914, 0.0
        %1180 = vadd.xlane.f32.xlu0 %v1179
        %v1181 = vpop.xlane.xlu0 %1180
        %v1182 = vsel %vm380, %v916, 0.0
        %1183 = vadd.xlane.f32.xlu0 %v1182
        %v1184 = vpop.xlane.xlu0 %1183
        %v1185 = vsel %vm380, %v918, 0.0
        %1186 = vadd.xlane.f32.xlu0 %v1185
        %v1187 = vpop.xlane.xlu0 %1186
        %v1188 = vsel %vm380, %v920, 0.0
        %1189 = vadd.xlane.f32.xlu0 %v1188
        %v1190 = vpop.xlane.xlu0 %1189
        %v1191 = vsel %vm380, %v922, 0.0
        %1192 = vadd.xlane.f32.xlu0 %v1191
        %v1193 = vpop.xlane.xlu0 %1192
        %v1194 = vsel %vm380, %v924, 0.0
        %1195 = vadd.xlane.f32.xlu0 %v1194
        %v1196 = vpop.xlane.xlu0 %1195
        %v1197 = vsel %vm380, %v926, 0.0
        %1198 = vadd.xlane.f32.xlu0 %v1197
        %v1199 = vpop.xlane.xlu0 %1198
        %v1200 = vsel %vm380, %v928, 0.0
        %1201 = vadd.xlane.f32.xlu0 %v1200
        %v1202 = vpop.xlane.xlu0 %1201
        %v1203 = vsel %vm380, %v930, 0.0
        %1204 = vadd.xlane.f32.xlu0 %v1203
        %v1205 = vpop.xlane.xlu0 %1204
        %v1206 = vsel %vm380, %v932, 0.0
        %1207 = vadd.xlane.f32.xlu0 %v1206
        %v1208 = vpop.xlane.xlu0 %1207
        %v1209 = vsel %vm380, %v934, 0.0
        %1210 = vadd.xlane.f32.xlu0 %v1209
        %v1211 = vpop.xlane.xlu0 %1210
        %v1212 = vsel %vm380, %v936, 0.0
        %1213 = vadd.xlane.f32.xlu0 %v1212
        %v1214 = vpop.xlane.xlu0 %1213
        %v1215 = vsel %vm380, %v938, 0.0
        %1216 = vadd.xlane.f32.xlu0 %v1215
        %v1217 = vpop.xlane.xlu0 %1216
        %v1218 = vsel %vm380, %v940, 0.0
        %1219 = vadd.xlane.f32.xlu0 %v1218
        %v1220 = vpop.xlane.xlu0 %1219
        %v1221 = vsel %vm380, %v942, 0.0
        %1222 = vadd.xlane.f32.xlu0 %v1221
        %v1223 = vpop.xlane.xlu0 %1222
        %v1224 = vsel %vm380, %v944, 0.0
        %1225 = vadd.xlane.f32.xlu0 %v1224
        %v1226 = vpop.xlane.xlu0 %1225
        %v1227 = vsel %vm380, %v946, 0.0
        %1228 = vadd.xlane.f32.xlu0 %v1227
        %v1229 = vpop.xlane.xlu0 %1228
        %v1230 = vsel %vm380, %v948, 0.0
        %1231 = vadd.xlane.f32.xlu0 %v1230
        %v1232 = vpop.xlane.xlu0 %1231
        %v1233 = vsel %vm380, %v950, 0.0
        %1234 = vadd.xlane.f32.xlu0 %v1233
        %v1235 = vpop.xlane.xlu0 %1234
        %v1236 = vsel %vm380, %v952, 0.0
        %1237 = vadd.xlane.f32.xlu0 %v1236
        %v1238 = vpop.xlane.xlu0 %1237
        %v1239 = vsel %vm380, %v954, 0.0
        %1240 = vadd.xlane.f32.xlu0 %v1239
        %v1241 = vpop.xlane.xlu0 %1240
        %v1242 = vsel %vm380, %v956, 0.0
        %1243 = vadd.xlane.f32.xlu0 %v1242
        %v1244 = vpop.xlane.xlu0 %1243
        %v1245 = vsel %vm380, %v958, 0.0
        %1246 = vadd.xlane.f32.xlu0 %v1245
        %v1247 = vpop.xlane.xlu0 %1246
        %v1248 = vsel %vm380, %v960, 0.0
        %1249 = vadd.xlane.f32.xlu0 %v1248
        %v1250 = vpop.xlane.xlu0 %1249
        %v1251 = vsel %vm380, %v962, 0.0
        %1252 = vadd.xlane.f32.xlu0 %v1251
        %v1253 = vpop.xlane.xlu0 %1252
        %v1254 = vsel %vm380, %v964, 0.0
        %1255 = vadd.xlane.f32.xlu0 %v1254
        %v1256 = vpop.xlane.xlu0 %1255
        %v1257 = vsel %vm380, %v966, 0.0
        %1258 = vadd.xlane.f32.xlu0 %v1257
        %v1259 = vpop.xlane.xlu0 %1258
        %v1260 = vsel %vm380, %v968, 0.0
        %1261 = vadd.xlane.f32.xlu0 %v1260
        %v1262 = vpop.xlane.xlu0 %1261
        %v1263 = vsel %vm380, %v970, 0.0
        %1264 = vadd.xlane.f32.xlu0 %v1263
        %v1265 = vpop.xlane.xlu0 %1264
        %v1266 = vsel %vm380, %v972, 0.0
        %1267 = vadd.xlane.f32.xlu0 %v1266
        %v1268 = vpop.xlane.xlu0 %1267
        %v1269 = vsel %vm380, %v974, 0.0
        %1270 = vadd.xlane.f32.xlu0 %v1269
        %v1271 = vpop.xlane.xlu0 %1270
        %v1272 = vsel %vm380, %v976, 0.0
        %1273 = vadd.xlane.f32.xlu0 %v1272
        %v1274 = vpop.xlane.xlu0 %1273
        %v1275 = vsel %vm380, %v978, 0.0
        %1276 = vadd.xlane.f32.xlu0 %v1275
        %v1277 = vpop.xlane.xlu0 %1276
        %v1278 = vsel %vm380, %v980, 0.0
        %1279 = vadd.xlane.f32.xlu0 %v1278
        %v1280 = vpop.xlane.xlu0 %1279
        %v1281 = vsel %vm380, %v982, 0.0
        %1282 = vadd.xlane.f32.xlu0 %v1281
        %v1283 = vpop.xlane.xlu0 %1282
        %v1284 = vsel %vm380, %v984, 0.0
        %1285 = vadd.xlane.f32.xlu0 %v1284
        %v1286 = vpop.xlane.xlu0 %1285
        %v1287 = vsel %vm380, %v986, 0.0
        %1288 = vadd.xlane.f32.xlu0 %v1287
        %v1289 = vpop.xlane.xlu0 %1288
        %v1290 = vsel %vm380, %v988, 0.0
        %1291 = vadd.xlane.f32.xlu0 %v1290
        %v1292 = vpop.xlane.xlu0 %1291
        %v1293 = vsel %vm380, %v990, 0.0
        %1294 = vadd.xlane.f32.xlu0 %v1293
        %v1295 = vpop.xlane.xlu0 %1294
        %v1296 = vsel %vm380, %v992, 0.0
        %1297 = vadd.xlane.f32.xlu0 %v1296
        %v1298 = vpop.xlane.xlu0 %1297
        %v1299 = vsel %vm380, %v994, 0.0
        %1300 = vadd.xlane.f32.xlu0 %v1299
        %v1301 = vpop.xlane.xlu0 %1300
        %v1302 = vsel %vm380, %v996, 0.0
        %1303 = vadd.xlane.f32.xlu0 %v1302
        %v1304 = vpop.xlane.xlu0 %1303
        %v1305 = vsel %vm380, %v998, 0.0
        %1306 = vadd.xlane.f32.xlu0 %v1305
        %v1307 = vpop.xlane.xlu0 %1306
        %v1308 = vsel %vm380, %v1000, 0.0
        %1309 = vadd.xlane.f32.xlu0 %v1308
        %v1310 = vpop.xlane.xlu0 %1309
        %v1311 = vsel %vm380, %v1002, 0.0
        %1312 = vadd.xlane.f32.xlu0 %v1311
        %v1313 = vpop.xlane.xlu0 %1312
        %v1314 = vsel %vm380, %v1004, 0.0
        %1315 = vadd.xlane.f32.xlu0 %v1314
        %v1316 = vpop.xlane.xlu0 %1315
        %v1317 = vsel %vm380, %v1006, 0.0
        %1318 = vadd.xlane.f32.xlu0 %v1317
        %v1319 = vpop.xlane.xlu0 %1318
        %v1320 = vsel %vm380, %v1008, 0.0
        %1321 = vadd.xlane.f32.xlu0 %v1320
        %v1322 = vpop.xlane.xlu0 %1321
        %v1323 = vsel %vm380, %v1010, 0.0
        %1324 = vadd.xlane.f32.xlu0 %v1323
        %v1325 = vpop.xlane.xlu0 %1324
        %v1326 = vsel %vm380, %v1012, 0.0
        %1327 = vadd.xlane.f32.xlu0 %v1326
        %v1328 = vpop.xlane.xlu0 %1327
        %v1329 = vsel %vm380, %v1014, 0.0
        %1330 = vadd.xlane.f32.xlu0 %v1329
        %v1331 = vpop.xlane.xlu0 %1330
        %v1332 = vsel %vm380, %v1016, 0.0
        %1333 = vadd.xlane.f32.xlu0 %v1332
        %v1334 = vpop.xlane.xlu0 %1333
        %v1335 = vsel %vm380, %v1018, 0.0
        %1336 = vadd.xlane.f32.xlu0 %v1335
        %v1337 = vpop.xlane.xlu0 %1336
        %v1338 = vsel %vm380, %v1020, 0.0
        %1339 = vadd.xlane.f32.xlu0 %v1338
        %v1340 = vpop.xlane.xlu0 %1339
        %v1341 = vsel %vm380, %v1022, 0.0
        %1342 = vadd.xlane.f32.xlu0 %v1341
        %v1343 = vpop.xlane.xlu0 %1342
        %v1344 = vsel %vm380, %v1024, 0.0
        %1345 = vadd.xlane.f32.xlu0 %v1344
        %v1346 = vpop.xlane.xlu0 %1345
        %v1347 = vsel %vm380, %v1026, 0.0
        %1348 = vadd.xlane.f32.xlu0 %v1347
        %v1349 = vpop.xlane.xlu0 %1348
        %v1350 = vsel %vm380, %v1028, 0.0
        %1351 = vadd.xlane.f32.xlu0 %v1350
        %v1352 = vpop.xlane.xlu0 %1351
        %v1353 = vsel %vm380, %v1030, 0.0
        %1354 = vadd.xlane.f32.xlu0 %v1353
        %v1355 = vpop.xlane.xlu0 %1354
        %v1356 = vsel %vm380, %v1032, 0.0
        %1357 = vadd.xlane.f32.xlu0 %v1356
        %v1358 = vpop.xlane.xlu0 %1357
        %v1359 = vsel %vm380, %v1034, 0.0
        %1360 = vadd.xlane.f32.xlu0 %v1359
        %v1361 = vpop.xlane.xlu0 %1360
        %v1362 = vsel %vm380, %v1036, 0.0
        %1363 = vadd.xlane.f32.xlu0 %v1362
        %v1364 = vpop.xlane.xlu0 %1363
        %v1365 = vsel %vm380, %v1038, 0.0
        %1366 = vadd.xlane.f32.xlu0 %v1365
        %v1367 = vpop.xlane.xlu0 %1366
        %v1368 = vsel %vm380, %v1040, 0.0
        %1369 = vadd.xlane.f32.xlu0 %v1368
        %v1370 = vpop.xlane.xlu0 %1369
        %v1371 = vsel %vm380, %v1042, 0.0
        %1372 = vadd.xlane.f32.xlu0 %v1371
        %v1373 = vpop.xlane.xlu0 %1372
        %v1374 = vsel %vm380, %v1044, 0.0
        %1375 = vadd.xlane.f32.xlu0 %v1374
        %v1376 = vpop.xlane.xlu0 %1375
        %v1377 = vsel %vm380, %v1046, 0.0
        %1378 = vadd.xlane.f32.xlu0 %v1377
        %v1379 = vpop.xlane.xlu0 %1378
        %v1380 = vsel %vm380, %v1048, 0.0
        %1381 = vadd.xlane.f32.xlu0 %v1380
        %v1382 = vpop.xlane.xlu0 %1381
        %v1383 = vsel %vm380, %v1050, 0.0
        %1384 = vadd.xlane.f32.xlu0 %v1383
        %v1385 = vpop.xlane.xlu0 %1384
        %v1386 = vsel %vm380, %v1052, 0.0
        %1387 = vadd.xlane.f32.xlu0 %v1386
        %v1388 = vpop.xlane.xlu0 %1387
        %v1389 = vsel %vm380, %v1054, 0.0
        %1390 = vadd.xlane.f32.xlu0 %v1389
        %v1391 = vpop.xlane.xlu0 %1390
        %v1392 = vsel %vm380, %v1056, 0.0
        %1393 = vadd.xlane.f32.xlu0 %v1392
        %v1394 = vpop.xlane.xlu0 %1393
        %v1395 = vsel %vm380, %v1058, 0.0
        %1396 = vadd.xlane.f32.xlu0 %v1395
        %v1397 = vpop.xlane.xlu0 %1396
        %v1398 = vsel %vm380, %v1060, 0.0
        %1399 = vadd.xlane.f32.xlu0 %v1398
        %v1400 = vpop.xlane.xlu0 %1399
        %v1401 = vsel %vm380, %v1062, 0.0
        %1402 = vadd.xlane.f32.xlu0 %v1401
        %v1403 = vpop.xlane.xlu0 %1402
        %v1404 = vsel %vm380, %v1064, 0.0
        %1405 = vadd.xlane.f32.xlu0 %v1404
        %v1406 = vpop.xlane.xlu0 %1405
        %v1407 = vsel %vm380, %v1066, 0.0
        %1408 = vadd.xlane.f32.xlu0 %v1407
        %v1409 = vpop.xlane.xlu0 %1408
        %v1410 = vsel %vm380, %v1068, 0.0
        %1411 = vadd.xlane.f32.xlu0 %v1410
        %v1412 = vpop.xlane.xlu0 %1411
        %v1413 = vsel %vm380, %v1070, 0.0
        %1414 = vadd.xlane.f32.xlu0 %v1413
        %v1415 = vpop.xlane.xlu0 %1414
        %v1416 = vsel %vm380, %v1072, 0.0
        %1417 = vadd.xlane.f32.xlu0 %v1416
        %v1418 = vpop.xlane.xlu0 %1417
        %v1419 = vsel %vm380, %v1074, 0.0
        %1420 = vadd.xlane.f32.xlu0 %v1419
        %v1421 = vpop.xlane.xlu0 %1420
        %v1422 = vsel %vm380, %v1076, 0.0
        %1423 = vadd.xlane.f32.xlu0 %v1422
        %v1424 = vpop.xlane.xlu0 %1423
        %v1425 = vsel %vm380, %v1078, 0.0
        %1426 = vadd.xlane.f32.xlu0 %v1425
        %v1427 = vpop.xlane.xlu0 %1426
        %v1428 = vsel %vm380, %v1080, 0.0
        %1429 = vadd.xlane.f32.xlu0 %v1428
        %v1430 = vpop.xlane.xlu0 %1429
        %v1431 = vsel %vm380, %v1082, 0.0
        %1432 = vadd.xlane.f32.xlu0 %v1431
        %v1433 = vpop.xlane.xlu0 %1432
        %v1434 = vsel %vm380, %v1084, 0.0
        %1435 = vadd.xlane.f32.xlu0 %v1434
        %v1436 = vpop.xlane.xlu0 %1435
        %v1437 = vsel %vm380, %v1086, 0.0
        %1438 = vadd.xlane.f32.xlu0 %v1437
        %v1439 = vpop.xlane.xlu0 %1438
        %v1440 = vsel %vm380, %v1088, 0.0
        %1441 = vadd.xlane.f32.xlu0 %v1440
        %v1442 = vpop.xlane.xlu0 %1441
        %v1443 = vsel %vm380, %v1090, 0.0
        %1444 = vadd.xlane.f32.xlu0 %v1443
        %v1445 = vpop.xlane.xlu0 %1444
        %v1446 = vsel %vm380, %v1092, 0.0
        %1447 = vadd.xlane.f32.xlu0 %v1446
        %v1448 = vpop.xlane.xlu0 %1447
        %v1449 = vsel %vm380, %v1094, 0.0
        %1450 = vadd.xlane.f32.xlu0 %v1449
        %v1451 = vpop.xlane.xlu0 %1450
        %v1452 = vsel %vm380, %v1096, 0.0
        %1453 = vadd.xlane.f32.xlu0 %v1452
        %v1454 = vpop.xlane.xlu0 %1453
        %v1455 = vsel %vm380, %v1098, 0.0
        %1456 = vadd.xlane.f32.xlu0 %v1455
        %v1457 = vpop.xlane.xlu0 %1456
        %v1458 = vsel %vm380, %v1100, 0.0
        %1459 = vadd.xlane.f32.xlu0 %v1458
        %v1460 = vpop.xlane.xlu0 %1459
        %v1461 = vsel %vm380, %v1102, 0.0
        %1462 = vadd.xlane.f32.xlu0 %v1461
        %v1463 = vpop.xlane.xlu0 %1462
        %v1464 = vsel %vm380, %v1104, 0.0
        %1465 = vadd.xlane.f32.xlu0 %v1464
        %v1466 = vpop.xlane.xlu0 %1465
        %v1467 = vsel %vm380, %v1106, 0.0
        %1468 = vadd.xlane.f32.xlu0 %v1467
        %v1469 = vpop.xlane.xlu0 %1468
        %v1470 = vsel %vm380, %v1108, 0.0
        %1471 = vadd.xlane.f32.xlu0 %v1470
        %v1472 = vpop.xlane.xlu0 %1471
        %v1473 = vsel %vm380, %v1110, 0.0
        %1474 = vadd.xlane.f32.xlu0 %v1473
        %v1475 = vpop.xlane.xlu0 %1474
        %v1476 = vsel %vm380, %v1112, 0.0
        %1477 = vadd.xlane.f32.xlu0 %v1476
        %v1478 = vpop.xlane.xlu0 %1477
        %v1479 = vsel %vm380, %v1114, 0.0
        %1480 = vadd.xlane.f32.xlu0 %v1479
        %v1481 = vpop.xlane.xlu0 %1480
        %v1482 = vsel %vm380, %v1116, 0.0
        %1483 = vadd.xlane.f32.xlu0 %v1482
        %v1484 = vpop.xlane.xlu0 %1483
        %v1485 = vsel %vm380, %v1118, 0.0
        %1486 = vadd.xlane.f32.xlu0 %v1485
        %v1487 = vpop.xlane.xlu0 %1486
        %v1488 = vsel %vm380, %v1120, 0.0
        %1489 = vadd.xlane.f32.xlu0 %v1488
        %v1490 = vpop.xlane.xlu0 %1489
        %v1491 = vsel %vm380, %v1122, 0.0
        %1492 = vadd.xlane.f32.xlu0 %v1491
        %v1493 = vpop.xlane.xlu0 %1492
        %v1494 = vsel %vm380, %v1124, 0.0
        %1495 = vadd.xlane.f32.xlu0 %v1494
        %v1496 = vpop.xlane.xlu0 %1495
        %v1497 = vsel %vm380, %v1126, 0.0
        %1498 = vadd.xlane.f32.xlu0 %v1497
        %v1499 = vpop.xlane.xlu0 %1498
        %v1500 = vsel %vm380, %v1128, 0.0
        %1501 = vadd.xlane.f32.xlu0 %v1500
        %v1502 = vpop.xlane.xlu0 %1501
        %v1503 = vsel %vm380, %v1130, 0.0
        %1504 = vadd.xlane.f32.xlu0 %v1503
        %v1505 = vpop.xlane.xlu0 %1504
        %v1506 = vsel %vm380, %v1132, 0.0
        %1507 = vadd.xlane.f32.xlu0 %v1506
        %v1508 = vpop.xlane.xlu0 %1507
        %v1509 = vsel %vm380, %v1134, 0.0
        %1510 = vadd.xlane.f32.xlu0 %v1509
        %v1511 = vpop.xlane.xlu0 %1510
        %v1512 = vsel %vm380, %v1136, 0.0
        %1513 = vadd.xlane.f32.xlu0 %v1512
        %v1514 = vpop.xlane.xlu0 %1513
        %v1515 = vsel %vm380, %v1138, 0.0
        %1516 = vadd.xlane.f32.xlu0 %v1515
        %v1517 = vpop.xlane.xlu0 %1516
        %v1518 = vsel %vm380, %v1140, 0.0
        %1519 = vadd.xlane.f32.xlu0 %v1518
        %v1520 = vpop.xlane.xlu0 %1519
        %v1521 = vsel %vm380, %v1142, 0.0
        %1522 = vadd.xlane.f32.xlu0 %v1521
        %v1523 = vpop.xlane.xlu0 %1522
        %v1524 = vsel %vm380, %v1144, 0.0
        %1525 = vadd.xlane.f32.xlu0 %v1524
        %v1526 = vpop.xlane.xlu0 %1525
        %v1527 = vsel %vm380, %v1146, 0.0
        %1528 = vadd.xlane.f32.xlu0 %v1527
        %v1529 = vpop.xlane.xlu0 %1528
        %v1530 = vsel %vm380, %v1148, 0.0
        %1531 = vadd.xlane.f32.xlu0 %v1530
        %v1532 = vpop.xlane.xlu0 %1531
        %v1533 = vrcp.pop %v1151
        %v1534 = vmul.f32 1.0, %v1533
        %v1535 = vrcp.pop %v1154
        %v1536 = vmul.f32 1.0, %v1535
        %v1537 = vrcp.pop %v1157
        %v1538 = vmul.f32 1.0, %v1537
        %v1539 = vrcp.pop %v1160
        %v1540 = vmul.f32 1.0, %v1539
        %v1541 = vrcp.pop %v1163
        %v1542 = vmul.f32 1.0, %v1541
        %v1543 = vrcp.pop %v1166
        %v1544 = vmul.f32 1.0, %v1543
        %v1545 = vrcp.pop %v1169
        %v1546 = vmul.f32 1.0, %v1545
        %v1547 = vrcp.pop %v1172
        %v1548 = vmul.f32 1.0, %v1547
        %v1549 = vrcp.pop %v1175
        %v1550 = vmul.f32 1.0, %v1549
        %v1551 = vrcp.pop %v1178
        %v1552 = vmul.f32 1.0, %v1551
        %v1553 = vrcp.pop %v1181
        %v1554 = vmul.f32 1.0, %v1553
        %v1555 = vrcp.pop %v1184
        %v1556 = vmul.f32 1.0, %v1555
        %v1557 = vrcp.pop %v1187
        %v1558 = vmul.f32 1.0, %v1557
        %v1559 = vrcp.pop %v1190
        %v1560 = vmul.f32 1.0, %v1559
        %v1561 = vrcp.pop %v1193
        %v1562 = vmul.f32 1.0, %v1561
        %v1563 = vrcp.pop %v1196
        %v1564 = vmul.f32 1.0, %v1563
        %v1565 = vrcp.pop %v1199
        %v1566 = vmul.f32 1.0, %v1565
        %v1567 = vrcp.pop %v1202
        %v1568 = vmul.f32 1.0, %v1567
        %v1569 = vrcp.pop %v1205
        %v1570 = vmul.f32 1.0, %v1569
        %v1571 = vrcp.pop %v1208
        %v1572 = vmul.f32 1.0, %v1571
        %v1573 = vrcp.pop %v1211
        %v1574 = vmul.f32 1.0, %v1573
        %v1575 = vrcp.pop %v1214
        %v1576 = vmul.f32 1.0, %v1575
        %v1577 = vrcp.pop %v1217
        %v1578 = vmul.f32 1.0, %v1577
        %v1579 = vrcp.pop %v1220
        %v1580 = vmul.f32 1.0, %v1579
        %v1581 = vrcp.pop %v1223
        %v1582 = vmul.f32 1.0, %v1581
        %v1583 = vrcp.pop %v1226
        %v1584 = vmul.f32 1.0, %v1583
        %v1585 = vrcp.pop %v1229
        %v1586 = vmul.f32 1.0, %v1585
        %v1587 = vrcp.pop %v1232
        %v1588 = vmul.f32 1.0, %v1587
        %v1589 = vrcp.pop %v1235
        %v1590 = vmul.f32 1.0, %v1589
        %v1591 = vrcp.pop %v1238
        %v1592 = vmul.f32 1.0, %v1591
        %v1593 = vrcp.pop %v1241
        %v1594 = vmul.f32 1.0, %v1593
        %v1595 = vrcp.pop %v1244
        %v1596 = vmul.f32 1.0, %v1595
        %v1597 = vrcp.pop %v1247
        %v1598 = vmul.f32 1.0, %v1597
        %v1599 = vrcp.pop %v1250
        %v1600 = vmul.f32 1.0, %v1599
        %v1601 = vrcp.pop %v1253
        %v1602 = vmul.f32 1.0, %v1601
        %v1603 = vrcp.pop %v1256
        %v1604 = vmul.f32 1.0, %v1603
        %v1605 = vrcp.pop %v1259
        %v1606 = vmul.f32 1.0, %v1605
        %v1607 = vrcp.pop %v1262
        %v1608 = vmul.f32 1.0, %v1607
        %v1609 = vrcp.pop %v1265
        %v1610 = vmul.f32 1.0, %v1609
        %v1611 = vrcp.pop %v1268
        %v1612 = vmul.f32 1.0, %v1611
        %v1613 = vrcp.pop %v1271
        %v1614 = vmul.f32 1.0, %v1613
        %v1615 = vrcp.pop %v1274
        %v1616 = vmul.f32 1.0, %v1615
        %v1617 = vrcp.pop %v1277
        %v1618 = vmul.f32 1.0, %v1617
        %v1619 = vrcp.pop %v1280
        %v1620 = vmul.f32 1.0, %v1619
        %v1621 = vrcp.pop %v1283
        %v1622 = vmul.f32 1.0, %v1621
        %v1623 = vrcp.pop %v1286
        %v1624 = vmul.f32 1.0, %v1623
        %v1625 = vrcp.pop %v1289
        %v1626 = vmul.f32 1.0, %v1625
        %v1627 = vrcp.pop %v1292
        %v1628 = vmul.f32 1.0, %v1627
        %v1629 = vrcp.pop %v1295
        %v1630 = vmul.f32 1.0, %v1629
        %v1631 = vrcp.pop %v1298
        %v1632 = vmul.f32 1.0, %v1631
        %v1633 = vrcp.pop %v1301
        %v1634 = vmul.f32 1.0, %v1633
        %v1635 = vrcp.pop %v1304
        %v1636 = vmul.f32 1.0, %v1635
        %v1637 = vrcp.pop %v1307
        %v1638 = vmul.f32 1.0, %v1637
        %v1639 = vrcp.pop %v1310
        %v1640 = vmul.f32 1.0, %v1639
        %v1641 = vrcp.pop %v1313
        %v1642 = vmul.f32 1.0, %v1641
        %v1643 = vrcp.pop %v1316
        %v1644 = vmul.f32 1.0, %v1643
        %v1645 = vrcp.pop %v1319
        %v1646 = vmul.f32 1.0, %v1645
        %v1647 = vrcp.pop %v1322
        %v1648 = vmul.f32 1.0, %v1647
        %v1649 = vrcp.pop %v1325
        %v1650 = vmul.f32 1.0, %v1649
        %v1651 = vrcp.pop %v1328
        %v1652 = vmul.f32 1.0, %v1651
        %v1653 = vrcp.pop %v1331
        %v1654 = vmul.f32 1.0, %v1653
        %v1655 = vrcp.pop %v1334
        %v1656 = vmul.f32 1.0, %v1655
        %v1657 = vrcp.pop %v1337
        %v1658 = vmul.f32 1.0, %v1657
        %v1659 = vrcp.pop %v1340
        %v1660 = vmul.f32 1.0, %v1659
        %v1661 = vrcp.pop %v1343
        %v1662 = vmul.f32 1.0, %v1661
        %v1663 = vrcp.pop %v1346
        %v1664 = vmul.f32 1.0, %v1663
        %v1665 = vrcp.pop %v1349
        %v1666 = vmul.f32 1.0, %v1665
        %v1667 = vrcp.pop %v1352
        %v1668 = vmul.f32 1.0, %v1667
        %v1669 = vrcp.pop %v1355
        %v1670 = vmul.f32 1.0, %v1669
        %v1671 = vrcp.pop %v1358
        %v1672 = vmul.f32 1.0, %v1671
        %v1673 = vrcp.pop %v1361
        %v1674 = vmul.f32 1.0, %v1673
        %v1675 = vrcp.pop %v1364
        %v1676 = vmul.f32 1.0, %v1675
        %v1677 = vrcp.pop %v1367
        %v1678 = vmul.f32 1.0, %v1677
        %v1679 = vrcp.pop %v1370
        %v1680 = vmul.f32 1.0, %v1679
        %v1681 = vrcp.pop %v1373
        %v1682 = vmul.f32 1.0, %v1681
        %v1683 = vrcp.pop %v1376
        %v1684 = vmul.f32 1.0, %v1683
        %v1685 = vrcp.pop %v1379
        %v1686 = vmul.f32 1.0, %v1685
        %v1687 = vrcp.pop %v1382
        %v1688 = vmul.f32 1.0, %v1687
        %v1689 = vrcp.pop %v1385
        %v1690 = vmul.f32 1.0, %v1689
        %v1691 = vrcp.pop %v1388
        %v1692 = vmul.f32 1.0, %v1691
        %v1693 = vrcp.pop %v1391
        %v1694 = vmul.f32 1.0, %v1693
        %v1695 = vrcp.pop %v1394
        %v1696 = vmul.f32 1.0, %v1695
        %v1697 = vrcp.pop %v1397
        %v1698 = vmul.f32 1.0, %v1697
        %v1699 = vrcp.pop %v1400
        %v1700 = vmul.f32 1.0, %v1699
        %v1701 = vrcp.pop %v1403
        %v1702 = vmul.f32 1.0, %v1701
        %v1703 = vrcp.pop %v1406
        %v1704 = vmul.f32 1.0, %v1703
        %v1705 = vrcp.pop %v1409
        %v1706 = vmul.f32 1.0, %v1705
        %v1707 = vrcp.pop %v1412
        %v1708 = vmul.f32 1.0, %v1707
        %v1709 = vrcp.pop %v1415
        %v1710 = vmul.f32 1.0, %v1709
        %v1711 = vrcp.pop %v1418
        %v1712 = vmul.f32 1.0, %v1711
        %v1713 = vrcp.pop %v1421
        %v1714 = vmul.f32 1.0, %v1713
        %v1715 = vrcp.pop %v1424
        %v1716 = vmul.f32 1.0, %v1715
        %v1717 = vrcp.pop %v1427
        %v1718 = vmul.f32 1.0, %v1717
        %v1719 = vrcp.pop %v1430
        %v1720 = vmul.f32 1.0, %v1719
        %v1721 = vrcp.pop %v1433
        %v1722 = vmul.f32 1.0, %v1721
        %v1723 = vrcp.pop %v1436
        %v1724 = vmul.f32 1.0, %v1723
        %v1725 = vrcp.pop %v1439
        %v1726 = vmul.f32 1.0, %v1725
        %v1727 = vrcp.pop %v1442
        %v1728 = vmul.f32 1.0, %v1727
        %v1729 = vrcp.pop %v1445
        %v1730 = vmul.f32 1.0, %v1729
        %v1731 = vrcp.pop %v1448
        %v1732 = vmul.f32 1.0, %v1731
        %v1733 = vrcp.pop %v1451
        %v1734 = vmul.f32 1.0, %v1733
        %v1735 = vrcp.pop %v1454
        %v1736 = vmul.f32 1.0, %v1735
        %v1737 = vrcp.pop %v1457
        %v1738 = vmul.f32 1.0, %v1737
        %v1739 = vrcp.pop %v1460
        %v1740 = vmul.f32 1.0, %v1739
        %v1741 = vrcp.pop %v1463
        %v1742 = vmul.f32 1.0, %v1741
        %v1743 = vrcp.pop %v1466
        %v1744 = vmul.f32 1.0, %v1743
        %v1745 = vrcp.pop %v1469
        %v1746 = vmul.f32 1.0, %v1745
        %v1747 = vrcp.pop %v1472
        %v1748 = vmul.f32 1.0, %v1747
        %v1749 = vrcp.pop %v1475
        %v1750 = vmul.f32 1.0, %v1749
        %v1751 = vrcp.pop %v1478
        %v1752 = vmul.f32 1.0, %v1751
        %v1753 = vrcp.pop %v1481
        %v1754 = vmul.f32 1.0, %v1753
        %v1755 = vrcp.pop %v1484
        %v1756 = vmul.f32 1.0, %v1755
        %v1757 = vrcp.pop %v1487
        %v1758 = vmul.f32 1.0, %v1757
        %v1759 = vrcp.pop %v1490
        %v1760 = vmul.f32 1.0, %v1759
        %v1761 = vrcp.pop %v1493
        %v1762 = vmul.f32 1.0, %v1761
        %v1763 = vrcp.pop %v1496
        %v1764 = vmul.f32 1.0, %v1763
        %v1765 = vrcp.pop %v1499
        %v1766 = vmul.f32 1.0, %v1765
        %v1767 = vrcp.pop %v1502
        %v1768 = vmul.f32 1.0, %v1767
        %v1769 = vrcp.pop %v1505
        %v1770 = vmul.f32 1.0, %v1769
        %v1771 = vrcp.pop %v1508
        %v1772 = vmul.f32 1.0, %v1771
        %v1773 = vrcp.pop %v1511
        %v1774 = vmul.f32 1.0, %v1773
        %v1775 = vrcp.pop %v1514
        %v1776 = vmul.f32 1.0, %v1775
        %v1777 = vrcp.pop %v1517
        %v1778 = vmul.f32 1.0, %v1777
        %v1779 = vrcp.pop %v1520
        %v1780 = vmul.f32 1.0, %v1779
        %v1781 = vrcp.pop %v1523
        %v1782 = vmul.f32 1.0, %v1781
        %v1783 = vrcp.pop %v1526
        %v1784 = vmul.f32 1.0, %v1783
        %v1785 = vrcp.pop %v1529
        %v1786 = vmul.f32 1.0, %v1785
        %v1787 = vrcp.pop %v1532
        %v1788 = vmul.f32 1.0, %v1787
        %v1789 = vlaneseq
        %v1790 = vand.u32 %v1789, 127
        %vm1791 = vcmp.eq.f32.partialorder %v252, %v383
        %vm1792 = vcmp.eq.f32.partialorder %v253, %v386
        %vm1793 = vcmp.eq.f32.partialorder %v254, %v389
        %vm1794 = vcmp.eq.f32.partialorder %v255, %v392
        %vm1795 = vcmp.eq.f32.partialorder %v256, %v395
        %vm1796 = vcmp.eq.f32.partialorder %v257, %v398
        %vm1797 = vcmp.eq.f32.partialorder %v258, %v401
        %vm1798 = vcmp.eq.f32.partialorder %v259, %v404
        %vm1799 = vcmp.eq.f32.partialorder %v260, %v407
        %vm1800 = vcmp.eq.f32.partialorder %v261, %v410
        %vm1801 = vcmp.eq.f32.partialorder %v262, %v413
        %vm1802 = vcmp.eq.f32.partialorder %v263, %v416
        %vm1803 = vcmp.eq.f32.partialorder %v264, %v419
        %vm1804 = vcmp.eq.f32.partialorder %v265, %v422
        %vm1805 = vcmp.eq.f32.partialorder %v266, %v425
        %vm1806 = vcmp.eq.f32.partialorder %v267, %v428
        %vm1807 = vcmp.eq.f32.partialorder %v268, %v431
        %vm1808 = vcmp.eq.f32.partialorder %v269, %v434
        %vm1809 = vcmp.eq.f32.partialorder %v270, %v437
        %vm1810 = vcmp.eq.f32.partialorder %v271, %v440
        %vm1811 = vcmp.eq.f32.partialorder %v272, %v443
        %vm1812 = vcmp.eq.f32.partialorder %v273, %v446
        %vm1813 = vcmp.eq.f32.partialorder %v274, %v449
        %vm1814 = vcmp.eq.f32.partialorder %v275, %v452
        %vm1815 = vcmp.eq.f32.partialorder %v276, %v455
        %vm1816 = vcmp.eq.f32.partialorder %v277, %v458
        %vm1817 = vcmp.eq.f32.partialorder %v278, %v461
        %vm1818 = vcmp.eq.f32.partialorder %v279, %v464
        %vm1819 = vcmp.eq.f32.partialorder %v280, %v467
        %vm1820 = vcmp.eq.f32.partialorder %v281, %v470
        %vm1821 = vcmp.eq.f32.partialorder %v282, %v473
        %vm1822 = vcmp.eq.f32.partialorder %v283, %v476
        %vm1823 = vcmp.eq.f32.partialorder %v284, %v479
        %vm1824 = vcmp.eq.f32.partialorder %v285, %v482
        %vm1825 = vcmp.eq.f32.partialorder %v286, %v485
        %vm1826 = vcmp.eq.f32.partialorder %v287, %v488
        %vm1827 = vcmp.eq.f32.partialorder %v288, %v491
        %vm1828 = vcmp.eq.f32.partialorder %v289, %v494
        %vm1829 = vcmp.eq.f32.partialorder %v290, %v497
        %vm1830 = vcmp.eq.f32.partialorder %v291, %v500
        %vm1831 = vcmp.eq.f32.partialorder %v292, %v503
        %vm1832 = vcmp.eq.f32.partialorder %v293, %v506
        %vm1833 = vcmp.eq.f32.partialorder %v294, %v509
        %vm1834 = vcmp.eq.f32.partialorder %v295, %v512
        %vm1835 = vcmp.eq.f32.partialorder %v296, %v515
        %vm1836 = vcmp.eq.f32.partialorder %v297, %v518
        %vm1837 = vcmp.eq.f32.partialorder %v298, %v521
        %vm1838 = vcmp.eq.f32.partialorder %v299, %v524
        %vm1839 = vcmp.eq.f32.partialorder %v300, %v527
        %vm1840 = vcmp.eq.f32.partialorder %v301, %v530
        %vm1841 = vcmp.eq.f32.partialorder %v302, %v533
        %vm1842 = vcmp.eq.f32.partialorder %v303, %v536
        %vm1843 = vcmp.eq.f32.partialorder %v304, %v539
        %vm1844 = vcmp.eq.f32.partialorder %v305, %v542
        %vm1845 = vcmp.eq.f32.partialorder %v306, %v545
        %vm1846 = vcmp.eq.f32.partialorder %v307, %v548
        %vm1847 = vcmp.eq.f32.partialorder %v308, %v551
        %vm1848 = vcmp.eq.f32.partialorder %v309, %v554
        %vm1849 = vcmp.eq.f32.partialorder %v310, %v557
        %vm1850 = vcmp.eq.f32.partialorder %v311, %v560
        %vm1851 = vcmp.eq.f32.partialorder %v312, %v563
        %vm1852 = vcmp.eq.f32.partialorder %v313, %v566
        %vm1853 = vcmp.eq.f32.partialorder %v314, %v569
        %vm1854 = vcmp.eq.f32.partialorder %v315, %v572
        %vm1855 = vcmp.eq.f32.partialorder %v316, %v575
        %vm1856 = vcmp.eq.f32.partialorder %v317, %v578
        %vm1857 = vcmp.eq.f32.partialorder %v318, %v581
        %vm1858 = vcmp.eq.f32.partialorder %v319, %v584
        %vm1859 = vcmp.eq.f32.partialorder %v320, %v587
        %vm1860 = vcmp.eq.f32.partialorder %v321, %v590
        %vm1861 = vcmp.eq.f32.partialorder %v322, %v593
        %vm1862 = vcmp.eq.f32.partialorder %v323, %v596
        %vm1863 = vcmp.eq.f32.partialorder %v324, %v599
        %vm1864 = vcmp.eq.f32.partialorder %v325, %v602
        %vm1865 = vcmp.eq.f32.partialorder %v326, %v605
        %vm1866 = vcmp.eq.f32.partialorder %v327, %v608
        %vm1867 = vcmp.eq.f32.partialorder %v328, %v611
        %vm1868 = vcmp.eq.f32.partialorder %v329, %v614
        %vm1869 = vcmp.eq.f32.partialorder %v330, %v617
        %vm1870 = vcmp.eq.f32.partialorder %v331, %v620
        %vm1871 = vcmp.eq.f32.partialorder %v332, %v623
        %vm1872 = vcmp.eq.f32.partialorder %v333, %v626
        %vm1873 = vcmp.eq.f32.partialorder %v334, %v629
        %vm1874 = vcmp.eq.f32.partialorder %v335, %v632
        %vm1875 = vcmp.eq.f32.partialorder %v336, %v635
        %vm1876 = vcmp.eq.f32.partialorder %v337, %v638
        %vm1877 = vcmp.eq.f32.partialorder %v338, %v641
        %vm1878 = vcmp.eq.f32.partialorder %v339, %v644
        %vm1879 = vcmp.eq.f32.partialorder %v340, %v647
        %vm1880 = vcmp.eq.f32.partialorder %v341, %v650
        %vm1881 = vcmp.eq.f32.partialorder %v342, %v653
        %vm1882 = vcmp.eq.f32.partialorder %v343, %v656
        %vm1883 = vcmp.eq.f32.partialorder %v344, %v659
        %vm1884 = vcmp.eq.f32.partialorder %v345, %v662
        %vm1885 = vcmp.eq.f32.partialorder %v346, %v665
        %vm1886 = vcmp.eq.f32.partialorder %v347, %v668
        %vm1887 = vcmp.eq.f32.partialorder %v348, %v671
        %vm1888 = vcmp.eq.f32.partialorder %v349, %v674
        %vm1889 = vcmp.eq.f32.partialorder %v350, %v677
        %vm1890 = vcmp.eq.f32.partialorder %v351, %v680
        %vm1891 = vcmp.eq.f32.partialorder %v352, %v683
        %vm1892 = vcmp.eq.f32.partialorder %v353, %v686
        %vm1893 = vcmp.eq.f32.partialorder %v354, %v689
        %vm1894 = vcmp.eq.f32.partialorder %v355, %v692
        %vm1895 = vcmp.eq.f32.partialorder %v356, %v695
        %vm1896 = vcmp.eq.f32.partialorder %v357, %v698
        %vm1897 = vcmp.eq.f32.partialorder %v358, %v701
        %vm1898 = vcmp.eq.f32.partialorder %v359, %v704
        %vm1899 = vcmp.eq.f32.partialorder %v360, %v707
        %vm1900 = vcmp.eq.f32.partialorder %v361, %v710
        %vm1901 = vcmp.eq.f32.partialorder %v362, %v713
        %vm1902 = vcmp.eq.f32.partialorder %v363, %v716
        %vm1903 = vcmp.eq.f32.partialorder %v364, %v719
        %vm1904 = vcmp.eq.f32.partialorder %v365, %v722
        %vm1905 = vcmp.eq.f32.partialorder %v366, %v725
        %vm1906 = vcmp.eq.f32.partialorder %v367, %v728
        %vm1907 = vcmp.eq.f32.partialorder %v368, %v731
        %vm1908 = vcmp.eq.f32.partialorder %v369, %v734
        %vm1909 = vcmp.eq.f32.partialorder %v370, %v737
        %vm1910 = vcmp.eq.f32.partialorder %v371, %v740
        %vm1911 = vcmp.eq.f32.partialorder %v372, %v743
        %vm1912 = vcmp.eq.f32.partialorder %v373, %v746
        %vm1913 = vcmp.eq.f32.partialorder %v374, %v749
        %vm1914 = vcmp.eq.f32.partialorder %v375, %v752
        %vm1915 = vcmp.eq.f32.partialorder %v376, %v755
        %vm1916 = vcmp.eq.f32.partialorder %v377, %v758
        %vm1917 = vcmp.eq.f32.partialorder %v378, %v761
        %vm1918 = vcmp.eq.f32.partialorder %v379, %v764
        %v1919 = vsel %vm1791, %v1790, 16
        %v1920 = vsel %vm1792, %v1790, 16
        %v1921 = vsel %vm1793, %v1790, 16
        %v1922 = vsel %vm1794, %v1790, 16
        %v1923 = vsel %vm1795, %v1790, 16
        %v1924 = vsel %vm1796, %v1790, 16
        %v1925 = vsel %vm1797, %v1790, 16
        %v1926 = vsel %vm1798, %v1790, 16
        %v1927 = vsel %vm1799, %v1790, 16
        %v1928 = vsel %vm1800, %v1790, 16
        %v1929 = vsel %vm1801, %v1790, 16
        %v1930 = vsel %vm1802, %v1790, 16
        %v1931 = vsel %vm1803, %v1790, 16
        %v1932 = vsel %vm1804, %v1790, 16
        %v1933 = vsel %vm1805, %v1790, 16
        %v1934 = vsel %vm1806, %v1790, 16
        %v1935 = vsel %vm1807, %v1790, 16
        %v1936 = vsel %vm1808, %v1790, 16
        %v1937 = vsel %vm1809, %v1790, 16
        %v1938 = vsel %vm1810, %v1790, 16
        %v1939 = vsel %vm1811, %v1790, 16
        %v1940 = vsel %vm1812, %v1790, 16
        %v1941 = vsel %vm1813, %v1790, 16
        %v1942 = vsel %vm1814, %v1790, 16
        %v1943 = vsel %vm1815, %v1790, 16
        %v1944 = vsel %vm1816, %v1790, 16
        %v1945 = vsel %vm1817, %v1790, 16
        %v1946 = vsel %vm1818, %v1790, 16
        %v1947 = vsel %vm1819, %v1790, 16
        %v1948 = vsel %vm1820, %v1790, 16
        %v1949 = vsel %vm1821, %v1790, 16
        %v1950 = vsel %vm1822, %v1790, 16
        %v1951 = vsel %vm1823, %v1790, 16
        %v1952 = vsel %vm1824, %v1790, 16
        %v1953 = vsel %vm1825, %v1790, 16
        %v1954 = vsel %vm1826, %v1790, 16
        %v1955 = vsel %vm1827, %v1790, 16
        %v1956 = vsel %vm1828, %v1790, 16
        %v1957 = vsel %vm1829, %v1790, 16
        %v1958 = vsel %vm1830, %v1790, 16
        %v1959 = vsel %vm1831, %v1790, 16
        %v1960 = vsel %vm1832, %v1790, 16
        %v1961 = vsel %vm1833, %v1790, 16
        %v1962 = vsel %vm1834, %v1790, 16
        %v1963 = vsel %vm1835, %v1790, 16
        %v1964 = vsel %vm1836, %v1790, 16
        %v1965 = vsel %vm1837, %v1790, 16
        %v1966 = vsel %vm1838, %v1790, 16
        %v1967 = vsel %vm1839, %v1790, 16
        %v1968 = vsel %vm1840, %v1790, 16
        %v1969 = vsel %vm1841, %v1790, 16
        %v1970 = vsel %vm1842, %v1790, 16
        %v1971 = vsel %vm1843, %v1790, 16
        %v1972 = vsel %vm1844, %v1790, 16
        %v1973 = vsel %vm1845, %v1790, 16
        %v1974 = vsel %vm1846, %v1790, 16
        %v1975 = vsel %vm1847, %v1790, 16
        %v1976 = vsel %vm1848, %v1790, 16
        %v1977 = vsel %vm1849, %v1790, 16
        %v1978 = vsel %vm1850, %v1790, 16
        %v1979 = vsel %vm1851, %v1790, 16
        %v1980 = vsel %vm1852, %v1790, 16
        %v1981 = vsel %vm1853, %v1790, 16
        %v1982 = vsel %vm1854, %v1790, 16
        %v1983 = vsel %vm1855, %v1790, 16
        %v1984 = vsel %vm1856, %v1790, 16
        %v1985 = vsel %vm1857, %v1790, 16
        %v1986 = vsel %vm1858, %v1790, 16
        %v1987 = vsel %vm1859, %v1790, 16
        %v1988 = vsel %vm1860, %v1790, 16
        %v1989 = vsel %vm1861, %v1790, 16
        %v1990 = vsel %vm1862, %v1790, 16
        %v1991 = vsel %vm1863, %v1790, 16
        %v1992 = vsel %vm1864, %v1790, 16
        %v1993 = vsel %vm1865, %v1790, 16
        %v1994 = vsel %vm1866, %v1790, 16
        %v1995 = vsel %vm1867, %v1790, 16
        %v1996 = vsel %vm1868, %v1790, 16
        %v1997 = vsel %vm1869, %v1790, 16
        %v1998 = vsel %vm1870, %v1790, 16
        %v1999 = vsel %vm1871, %v1790, 16
        %v2000 = vsel %vm1872, %v1790, 16
        %v2001 = vsel %vm1873, %v1790, 16
        %v2002 = vsel %vm1874, %v1790, 16
        %v2003 = vsel %vm1875, %v1790, 16
        %v2004 = vsel %vm1876, %v1790, 16
        %v2005 = vsel %vm1877, %v1790, 16
        %v2006 = vsel %vm1878, %v1790, 16
        %v2007 = vsel %vm1879, %v1790, 16
        %v2008 = vsel %vm1880, %v1790, 16
        %v2009 = vsel %vm1881, %v1790, 16
        %v2010 = vsel %vm1882, %v1790, 16
        %v2011 = vsel %vm1883, %v1790, 16
        %v2012 = vsel %vm1884, %v1790, 16
        %v2013 = vsel %vm1885, %v1790, 16
        %v2014 = vsel %vm1886, %v1790, 16
        %v2015 = vsel %vm1887, %v1790, 16
        %v2016 = vsel %vm1888, %v1790, 16
        %v2017 = vsel %vm1889, %v1790, 16
        %v2018 = vsel %vm1890, %v1790, 16
        %v2019 = vsel %vm1891, %v1790, 16
        %v2020 = vsel %vm1892, %v1790, 16
        %v2021 = vsel %vm1893, %v1790, 16
        %v2022 = vsel %vm1894, %v1790, 16
        %v2023 = vsel %vm1895, %v1790, 16
        %v2024 = vsel %vm1896, %v1790, 16
        %v2025 = vsel %vm1897, %v1790, 16
        %v2026 = vsel %vm1898, %v1790, 16
        %v2027 = vsel %vm1899, %v1790, 16
        %v2028 = vsel %vm1900, %v1790, 16
        %v2029 = vsel %vm1901, %v1790, 16
        %v2030 = vsel %vm1902, %v1790, 16
        %v2031 = vsel %vm1903, %v1790, 16
        %v2032 = vsel %vm1904, %v1790, 16
        %v2033 = vsel %vm1905, %v1790, 16
        %v2034 = vsel %vm1906, %v1790, 16
        %v2035 = vsel %vm1907, %v1790, 16
        %v2036 = vsel %vm1908, %v1790, 16
        %v2037 = vsel %vm1909, %v1790, 16
        %v2038 = vsel %vm1910, %v1790, 16
        %v2039 = vsel %vm1911, %v1790, 16
        %v2040 = vsel %vm1912, %v1790, 16
        %v2041 = vsel %vm1913, %v1790, 16
        %v2042 = vsel %vm1914, %v1790, 16
        %v2043 = vsel %vm1915, %v1790, 16
        %v2044 = vsel %vm1916, %v1790, 16
        %v2045 = vsel %vm1917, %v1790, 16
        %v2046 = vsel %vm1918, %v1790, 16
        %v2047 = vsel %vm380, %v1919, 2147483647
        %v2048 = vand.u32 %v2047, 65535
        %v2049 = vshra.s32 %v2047, 16
        %v2050 = vcvt.s32.f32 %v2048
        %v2051 = vcvt.s32.f32 %v2049
        %2052 = vmin.xlane.f32.xlu0 %v2051
        %v2053 = vpop.xlane.xlu0 %2052
        %vm2054 = vcmp.eq.f32.partialorder %v2051, %v2053
        %v2055 = vsel %vm2054, %v2050, inf
        %2056 = vmin.xlane.f32.xlu0 %v2055
        %v2057 = vpop.xlane.xlu0 %2056
        %v2058 = vcvt.f32.s32 %v2057
        %v2059 = vcvt.f32.s32 %v2053
        %v2060 = vshll.u32 %v2059, 16
        %v2061 = vadd.s32 %v2060, %v2058
        %v2062 = vsel %vm380, %v1920, 2147483647
        %v2063 = vand.u32 %v2062, 65535
        %v2064 = vshra.s32 %v2062, 16
        %v2065 = vcvt.s32.f32 %v2063
        %v2066 = vcvt.s32.f32 %v2064
        %2067 = vmin.xlane.f32.xlu0 %v2066
        %v2068 = vpop.xlane.xlu0 %2067
        %vm2069 = vcmp.eq.f32.partialorder %v2066, %v2068
        %v2070 = vsel %vm2069, %v2065, inf
        %2071 = vmin.xlane.f32.xlu0 %v2070
        %v2072 = vpop.xlane.xlu0 %2071
        %v2073 = vcvt.f32.s32 %v2072
        %v2074 = vcvt.f32.s32 %v2068
        %v2075 = vshll.u32 %v2074, 16
        %v2076 = vadd.s32 %v2075, %v2073
        %v2077 = vsel %vm380, %v1921, 2147483647
        %v2078 = vand.u32 %v2077, 65535
        %v2079 = vshra.s32 %v2077, 16
        %v2080 = vcvt.s32.f32 %v2078
        %v2081 = vcvt.s32.f32 %v2079
        %2082 = vmin.xlane.f32.xlu0 %v2081
        %v2083 = vpop.xlane.xlu0 %2082
        %vm2084 = vcmp.eq.f32.partialorder %v2081, %v2083
        %v2085 = vsel %vm2084, %v2080, inf
        %2086 = vmin.xlane.f32.xlu0 %v2085
        %v2087 = vpop.xlane.xlu0 %2086
        %v2088 = vcvt.f32.s32 %v2087
        %v2089 = vcvt.f32.s32 %v2083
        %v2090 = vshll.u32 %v2089, 16
        %v2091 = vadd.s32 %v2090, %v2088
        %v2092 = vsel %vm380, %v1922, 2147483647
        %v2093 = vand.u32 %v2092, 65535
        %v2094 = vshra.s32 %v2092, 16
        %v2095 = vcvt.s32.f32 %v2093
        %v2096 = vcvt.s32.f32 %v2094
        %2097 = vmin.xlane.f32.xlu0 %v2096
        %v2098 = vpop.xlane.xlu0 %2097
        %vm2099 = vcmp.eq.f32.partialorder %v2096, %v2098
        %v2100 = vsel %vm2099, %v2095, inf
        %2101 = vmin.xlane.f32.xlu0 %v2100
        %v2102 = vpop.xlane.xlu0 %2101
        %v2103 = vcvt.f32.s32 %v2102
        %v2104 = vcvt.f32.s32 %v2098
        %v2105 = vshll.u32 %v2104, 16
        %v2106 = vadd.s32 %v2105, %v2103
        %v2107 = vsel %vm380, %v1923, 2147483647
        %v2108 = vand.u32 %v2107, 65535
        %v2109 = vshra.s32 %v2107, 16
        %v2110 = vcvt.s32.f32 %v2108
        %v2111 = vcvt.s32.f32 %v2109
        %2112 = vmin.xlane.f32.xlu0 %v2111
        %v2113 = vpop.xlane.xlu0 %2112
        %vm2114 = vcmp.eq.f32.partialorder %v2111, %v2113
        %v2115 = vsel %vm2114, %v2110, inf
        %2116 = vmin.xlane.f32.xlu0 %v2115
        %v2117 = vpop.xlane.xlu0 %2116
        %v2118 = vcvt.f32.s32 %v2117
        %v2119 = vcvt.f32.s32 %v2113
        %v2120 = vshll.u32 %v2119, 16
        %v2121 = vadd.s32 %v2120, %v2118
        %v2122 = vsel %vm380, %v1924, 2147483647
        %v2123 = vand.u32 %v2122, 65535
        %v2124 = vshra.s32 %v2122, 16
        %v2125 = vcvt.s32.f32 %v2123
        %v2126 = vcvt.s32.f32 %v2124
        %2127 = vmin.xlane.f32.xlu0 %v2126
        %v2128 = vpop.xlane.xlu0 %2127
        %vm2129 = vcmp.eq.f32.partialorder %v2126, %v2128
        %v2130 = vsel %vm2129, %v2125, inf
        %2131 = vmin.xlane.f32.xlu0 %v2130
        %v2132 = vpop.xlane.xlu0 %2131
        %v2133 = vcvt.f32.s32 %v2132
        %v2134 = vcvt.f32.s32 %v2128
        %v2135 = vshll.u32 %v2134, 16
        %v2136 = vadd.s32 %v2135, %v2133
        %v2137 = vsel %vm380, %v1925, 2147483647
        %v2138 = vand.u32 %v2137, 65535
        %v2139 = vshra.s32 %v2137, 16
        %v2140 = vcvt.s32.f32 %v2138
        %v2141 = vcvt.s32.f32 %v2139
        %2142 = vmin.xlane.f32.xlu0 %v2141
        %v2143 = vpop.xlane.xlu0 %2142
        %vm2144 = vcmp.eq.f32.partialorder %v2141, %v2143
        %v2145 = vsel %vm2144, %v2140, inf
        %2146 = vmin.xlane.f32.xlu0 %v2145
        %v2147 = vpop.xlane.xlu0 %2146
        %v2148 = vcvt.f32.s32 %v2147
        %v2149 = vcvt.f32.s32 %v2143
        %v2150 = vshll.u32 %v2149, 16
        %v2151 = vadd.s32 %v2150, %v2148
        %v2152 = vsel %vm380, %v1926, 2147483647
        %v2153 = vand.u32 %v2152, 65535
        %v2154 = vshra.s32 %v2152, 16
        %v2155 = vcvt.s32.f32 %v2153
        %v2156 = vcvt.s32.f32 %v2154
        %2157 = vmin.xlane.f32.xlu0 %v2156
        %v2158 = vpop.xlane.xlu0 %2157
        %vm2159 = vcmp.eq.f32.partialorder %v2156, %v2158
        %v2160 = vsel %vm2159, %v2155, inf
        %2161 = vmin.xlane.f32.xlu0 %v2160
        %v2162 = vpop.xlane.xlu0 %2161
        %v2163 = vcvt.f32.s32 %v2162
        %v2164 = vcvt.f32.s32 %v2158
        %v2165 = vshll.u32 %v2164, 16
        %v2166 = vadd.s32 %v2165, %v2163
        %v2167 = vsel %vm380, %v1927, 2147483647
        %v2168 = vand.u32 %v2167, 65535
        %v2169 = vshra.s32 %v2167, 16
        %v2170 = vcvt.s32.f32 %v2168
        %v2171 = vcvt.s32.f32 %v2169
        %2172 = vmin.xlane.f32.xlu0 %v2171
        %v2173 = vpop.xlane.xlu0 %2172
        %vm2174 = vcmp.eq.f32.partialorder %v2171, %v2173
        %v2175 = vsel %vm2174, %v2170, inf
        %2176 = vmin.xlane.f32.xlu0 %v2175
        %v2177 = vpop.xlane.xlu0 %2176
        %v2178 = vcvt.f32.s32 %v2177
        %v2179 = vcvt.f32.s32 %v2173
        %v2180 = vshll.u32 %v2179, 16
        %v2181 = vadd.s32 %v2180, %v2178
        %v2182 = vsel %vm380, %v1928, 2147483647
        %v2183 = vand.u32 %v2182, 65535
        %v2184 = vshra.s32 %v2182, 16
        %v2185 = vcvt.s32.f32 %v2183
        %v2186 = vcvt.s32.f32 %v2184
        %2187 = vmin.xlane.f32.xlu0 %v2186
        %v2188 = vpop.xlane.xlu0 %2187
        %vm2189 = vcmp.eq.f32.partialorder %v2186, %v2188
        %v2190 = vsel %vm2189, %v2185, inf
        %2191 = vmin.xlane.f32.xlu0 %v2190
        %v2192 = vpop.xlane.xlu0 %2191
        %v2193 = vcvt.f32.s32 %v2192
        %v2194 = vcvt.f32.s32 %v2188
        %v2195 = vshll.u32 %v2194, 16
        %v2196 = vadd.s32 %v2195, %v2193
        %v2197 = vsel %vm380, %v1929, 2147483647
        %v2198 = vand.u32 %v2197, 65535
        %v2199 = vshra.s32 %v2197, 16
        %v2200 = vcvt.s32.f32 %v2198
        %v2201 = vcvt.s32.f32 %v2199
        %2202 = vmin.xlane.f32.xlu0 %v2201
        %v2203 = vpop.xlane.xlu0 %2202
        %vm2204 = vcmp.eq.f32.partialorder %v2201, %v2203
        %v2205 = vsel %vm2204, %v2200, inf
        %2206 = vmin.xlane.f32.xlu0 %v2205
        %v2207 = vpop.xlane.xlu0 %2206
        %v2208 = vcvt.f32.s32 %v2207
        %v2209 = vcvt.f32.s32 %v2203
        %v2210 = vshll.u32 %v2209, 16
        %v2211 = vadd.s32 %v2210, %v2208
        %v2212 = vsel %vm380, %v1930, 2147483647
        %v2213 = vand.u32 %v2212, 65535
        %v2214 = vshra.s32 %v2212, 16
        %v2215 = vcvt.s32.f32 %v2213
        %v2216 = vcvt.s32.f32 %v2214
        %2217 = vmin.xlane.f32.xlu0 %v2216
        %v2218 = vpop.xlane.xlu0 %2217
        %vm2219 = vcmp.eq.f32.partialorder %v2216, %v2218
        %v2220 = vsel %vm2219, %v2215, inf
        %2221 = vmin.xlane.f32.xlu0 %v2220
        %v2222 = vpop.xlane.xlu0 %2221
        %v2223 = vcvt.f32.s32 %v2222
        %v2224 = vcvt.f32.s32 %v2218
        %v2225 = vshll.u32 %v2224, 16
        %v2226 = vadd.s32 %v2225, %v2223
        %v2227 = vsel %vm380, %v1931, 2147483647
        %v2228 = vand.u32 %v2227, 65535
        %v2229 = vshra.s32 %v2227, 16
        %v2230 = vcvt.s32.f32 %v2228
        %v2231 = vcvt.s32.f32 %v2229
        %2232 = vmin.xlane.f32.xlu0 %v2231
        %v2233 = vpop.xlane.xlu0 %2232
        %vm2234 = vcmp.eq.f32.partialorder %v2231, %v2233
        %v2235 = vsel %vm2234, %v2230, inf
        %2236 = vmin.xlane.f32.xlu0 %v2235
        %v2237 = vpop.xlane.xlu0 %2236
        %v2238 = vcvt.f32.s32 %v2237
        %v2239 = vcvt.f32.s32 %v2233
        %v2240 = vshll.u32 %v2239, 16
        %v2241 = vadd.s32 %v2240, %v2238
        %v2242 = vsel %vm380, %v1932, 2147483647
        %v2243 = vand.u32 %v2242, 65535
        %v2244 = vshra.s32 %v2242, 16
        %v2245 = vcvt.s32.f32 %v2243
        %v2246 = vcvt.s32.f32 %v2244
        %2247 = vmin.xlane.f32.xlu0 %v2246
        %v2248 = vpop.xlane.xlu0 %2247
        %vm2249 = vcmp.eq.f32.partialorder %v2246, %v2248
        %v2250 = vsel %vm2249, %v2245, inf
        %2251 = vmin.xlane.f32.xlu0 %v2250
        %v2252 = vpop.xlane.xlu0 %2251
        %v2253 = vcvt.f32.s32 %v2252
        %v2254 = vcvt.f32.s32 %v2248
        %v2255 = vshll.u32 %v2254, 16
        %v2256 = vadd.s32 %v2255, %v2253
        %v2257 = vsel %vm380, %v1933, 2147483647
        %v2258 = vand.u32 %v2257, 65535
        %v2259 = vshra.s32 %v2257, 16
        %v2260 = vcvt.s32.f32 %v2258
        %v2261 = vcvt.s32.f32 %v2259
        %2262 = vmin.xlane.f32.xlu0 %v2261
        %v2263 = vpop.xlane.xlu0 %2262
        %vm2264 = vcmp.eq.f32.partialorder %v2261, %v2263
        %v2265 = vsel %vm2264, %v2260, inf
        %2266 = vmin.xlane.f32.xlu0 %v2265
        %v2267 = vpop.xlane.xlu0 %2266
        %v2268 = vcvt.f32.s32 %v2267
        %v2269 = vcvt.f32.s32 %v2263
        %v2270 = vshll.u32 %v2269, 16
        %v2271 = vadd.s32 %v2270, %v2268
        %v2272 = vsel %vm380, %v1934, 2147483647
        %v2273 = vand.u32 %v2272, 65535
        %v2274 = vshra.s32 %v2272, 16
        %v2275 = vcvt.s32.f32 %v2273
        %v2276 = vcvt.s32.f32 %v2274
        %2277 = vmin.xlane.f32.xlu0 %v2276
        %v2278 = vpop.xlane.xlu0 %2277
        %vm2279 = vcmp.eq.f32.partialorder %v2276, %v2278
        %v2280 = vsel %vm2279, %v2275, inf
        %2281 = vmin.xlane.f32.xlu0 %v2280
        %v2282 = vpop.xlane.xlu0 %2281
        %v2283 = vcvt.f32.s32 %v2282
        %v2284 = vcvt.f32.s32 %v2278
        %v2285 = vshll.u32 %v2284, 16
        %v2286 = vadd.s32 %v2285, %v2283
        %v2287 = vsel %vm380, %v1935, 2147483647
        %v2288 = vand.u32 %v2287, 65535
        %v2289 = vshra.s32 %v2287, 16
        %v2290 = vcvt.s32.f32 %v2288
        %v2291 = vcvt.s32.f32 %v2289
        %2292 = vmin.xlane.f32.xlu0 %v2291
        %v2293 = vpop.xlane.xlu0 %2292
        %vm2294 = vcmp.eq.f32.partialorder %v2291, %v2293
        %v2295 = vsel %vm2294, %v2290, inf
        %2296 = vmin.xlane.f32.xlu0 %v2295
        %v2297 = vpop.xlane.xlu0 %2296
        %v2298 = vcvt.f32.s32 %v2297
        %v2299 = vcvt.f32.s32 %v2293
        %v2300 = vshll.u32 %v2299, 16
        %v2301 = vadd.s32 %v2300, %v2298
        %v2302 = vsel %vm380, %v1936, 2147483647
        %v2303 = vand.u32 %v2302, 65535
        %v2304 = vshra.s32 %v2302, 16
        %v2305 = vcvt.s32.f32 %v2303
        %v2306 = vcvt.s32.f32 %v2304
        %2307 = vmin.xlane.f32.xlu0 %v2306
        %v2308 = vpop.xlane.xlu0 %2307
        %vm2309 = vcmp.eq.f32.partialorder %v2306, %v2308
        %v2310 = vsel %vm2309, %v2305, inf
        %2311 = vmin.xlane.f32.xlu0 %v2310
        %v2312 = vpop.xlane.xlu0 %2311
        %v2313 = vcvt.f32.s32 %v2312
        %v2314 = vcvt.f32.s32 %v2308
        %v2315 = vshll.u32 %v2314, 16
        %v2316 = vadd.s32 %v2315, %v2313
        %v2317 = vsel %vm380, %v1937, 2147483647
        %v2318 = vand.u32 %v2317, 65535
        %v2319 = vshra.s32 %v2317, 16
        %v2320 = vcvt.s32.f32 %v2318
        %v2321 = vcvt.s32.f32 %v2319
        %2322 = vmin.xlane.f32.xlu0 %v2321
        %v2323 = vpop.xlane.xlu0 %2322
        %vm2324 = vcmp.eq.f32.partialorder %v2321, %v2323
        %v2325 = vsel %vm2324, %v2320, inf
        %2326 = vmin.xlane.f32.xlu0 %v2325
        %v2327 = vpop.xlane.xlu0 %2326
        %v2328 = vcvt.f32.s32 %v2327
        %v2329 = vcvt.f32.s32 %v2323
        %v2330 = vshll.u32 %v2329, 16
        %v2331 = vadd.s32 %v2330, %v2328
        %v2332 = vsel %vm380, %v1938, 2147483647
        %v2333 = vand.u32 %v2332, 65535
        %v2334 = vshra.s32 %v2332, 16
        %v2335 = vcvt.s32.f32 %v2333
        %v2336 = vcvt.s32.f32 %v2334
        %2337 = vmin.xlane.f32.xlu0 %v2336
        %v2338 = vpop.xlane.xlu0 %2337
        %vm2339 = vcmp.eq.f32.partialorder %v2336, %v2338
        %v2340 = vsel %vm2339, %v2335, inf
        %2341 = vmin.xlane.f32.xlu0 %v2340
        %v2342 = vpop.xlane.xlu0 %2341
        %v2343 = vcvt.f32.s32 %v2342
        %v2344 = vcvt.f32.s32 %v2338
        %v2345 = vshll.u32 %v2344, 16
        %v2346 = vadd.s32 %v2345, %v2343
        %v2347 = vsel %vm380, %v1939, 2147483647
        %v2348 = vand.u32 %v2347, 65535
        %v2349 = vshra.s32 %v2347, 16
        %v2350 = vcvt.s32.f32 %v2348
        %v2351 = vcvt.s32.f32 %v2349
        %2352 = vmin.xlane.f32.xlu0 %v2351
        %v2353 = vpop.xlane.xlu0 %2352
        %vm2354 = vcmp.eq.f32.partialorder %v2351, %v2353
        %v2355 = vsel %vm2354, %v2350, inf
        %2356 = vmin.xlane.f32.xlu0 %v2355
        %v2357 = vpop.xlane.xlu0 %2356
        %v2358 = vcvt.f32.s32 %v2357
        %v2359 = vcvt.f32.s32 %v2353
        %v2360 = vshll.u32 %v2359, 16
        %v2361 = vadd.s32 %v2360, %v2358
        %v2362 = vsel %vm380, %v1940, 2147483647
        %v2363 = vand.u32 %v2362, 65535
        %v2364 = vshra.s32 %v2362, 16
        %v2365 = vcvt.s32.f32 %v2363
        %v2366 = vcvt.s32.f32 %v2364
        %2367 = vmin.xlane.f32.xlu0 %v2366
        %v2368 = vpop.xlane.xlu0 %2367
        %vm2369 = vcmp.eq.f32.partialorder %v2366, %v2368
        %v2370 = vsel %vm2369, %v2365, inf
        %2371 = vmin.xlane.f32.xlu0 %v2370
        %v2372 = vpop.xlane.xlu0 %2371
        %v2373 = vcvt.f32.s32 %v2372
        %v2374 = vcvt.f32.s32 %v2368
        %v2375 = vshll.u32 %v2374, 16
        %v2376 = vadd.s32 %v2375, %v2373
        %v2377 = vsel %vm380, %v1941, 2147483647
        %v2378 = vand.u32 %v2377, 65535
        %v2379 = vshra.s32 %v2377, 16
        %v2380 = vcvt.s32.f32 %v2378
        %v2381 = vcvt.s32.f32 %v2379
        %2382 = vmin.xlane.f32.xlu0 %v2381
        %v2383 = vpop.xlane.xlu0 %2382
        %vm2384 = vcmp.eq.f32.partialorder %v2381, %v2383
        %v2385 = vsel %vm2384, %v2380, inf
        %2386 = vmin.xlane.f32.xlu0 %v2385
        %v2387 = vpop.xlane.xlu0 %2386
        %v2388 = vcvt.f32.s32 %v2387
        %v2389 = vcvt.f32.s32 %v2383
        %v2390 = vshll.u32 %v2389, 16
        %v2391 = vadd.s32 %v2390, %v2388
        %v2392 = vsel %vm380, %v1942, 2147483647
        %v2393 = vand.u32 %v2392, 65535
        %v2394 = vshra.s32 %v2392, 16
        %v2395 = vcvt.s32.f32 %v2393
        %v2396 = vcvt.s32.f32 %v2394
        %2397 = vmin.xlane.f32.xlu0 %v2396
        %v2398 = vpop.xlane.xlu0 %2397
        %vm2399 = vcmp.eq.f32.partialorder %v2396, %v2398
        %v2400 = vsel %vm2399, %v2395, inf
        %2401 = vmin.xlane.f32.xlu0 %v2400
        %v2402 = vpop.xlane.xlu0 %2401
        %v2403 = vcvt.f32.s32 %v2402
        %v2404 = vcvt.f32.s32 %v2398
        %v2405 = vshll.u32 %v2404, 16
        %v2406 = vadd.s32 %v2405, %v2403
        %v2407 = vsel %vm380, %v1943, 2147483647
        %v2408 = vand.u32 %v2407, 65535
        %v2409 = vshra.s32 %v2407, 16
        %v2410 = vcvt.s32.f32 %v2408
        %v2411 = vcvt.s32.f32 %v2409
        %2412 = vmin.xlane.f32.xlu0 %v2411
        %v2413 = vpop.xlane.xlu0 %2412
        %vm2414 = vcmp.eq.f32.partialorder %v2411, %v2413
        %v2415 = vsel %vm2414, %v2410, inf
        %2416 = vmin.xlane.f32.xlu0 %v2415
        %v2417 = vpop.xlane.xlu0 %2416
        %v2418 = vcvt.f32.s32 %v2417
        %v2419 = vcvt.f32.s32 %v2413
        %v2420 = vshll.u32 %v2419, 16
        %v2421 = vadd.s32 %v2420, %v2418
        %v2422 = vsel %vm380, %v1944, 2147483647
        %v2423 = vand.u32 %v2422, 65535
        %v2424 = vshra.s32 %v2422, 16
        %v2425 = vcvt.s32.f32 %v2423
        %v2426 = vcvt.s32.f32 %v2424
        %2427 = vmin.xlane.f32.xlu0 %v2426
        %v2428 = vpop.xlane.xlu0 %2427
        %vm2429 = vcmp.eq.f32.partialorder %v2426, %v2428
        %v2430 = vsel %vm2429, %v2425, inf
        %2431 = vmin.xlane.f32.xlu0 %v2430
        %v2432 = vpop.xlane.xlu0 %2431
        %v2433 = vcvt.f32.s32 %v2432
        %v2434 = vcvt.f32.s32 %v2428
        %v2435 = vshll.u32 %v2434, 16
        %v2436 = vadd.s32 %v2435, %v2433
        %v2437 = vsel %vm380, %v1945, 2147483647
        %v2438 = vand.u32 %v2437, 65535
        %v2439 = vshra.s32 %v2437, 16
        %v2440 = vcvt.s32.f32 %v2438
        %v2441 = vcvt.s32.f32 %v2439
        %2442 = vmin.xlane.f32.xlu0 %v2441
        %v2443 = vpop.xlane.xlu0 %2442
        %vm2444 = vcmp.eq.f32.partialorder %v2441, %v2443
        %v2445 = vsel %vm2444, %v2440, inf
        %2446 = vmin.xlane.f32.xlu0 %v2445
        %v2447 = vpop.xlane.xlu0 %2446
        %v2448 = vcvt.f32.s32 %v2447
        %v2449 = vcvt.f32.s32 %v2443
        %v2450 = vshll.u32 %v2449, 16
        %v2451 = vadd.s32 %v2450, %v2448
        %v2452 = vsel %vm380, %v1946, 2147483647
        %v2453 = vand.u32 %v2452, 65535
        %v2454 = vshra.s32 %v2452, 16
        %v2455 = vcvt.s32.f32 %v2453
        %v2456 = vcvt.s32.f32 %v2454
        %2457 = vmin.xlane.f32.xlu0 %v2456
        %v2458 = vpop.xlane.xlu0 %2457
        %vm2459 = vcmp.eq.f32.partialorder %v2456, %v2458
        %v2460 = vsel %vm2459, %v2455, inf
        %2461 = vmin.xlane.f32.xlu0 %v2460
        %v2462 = vpop.xlane.xlu0 %2461
        %v2463 = vcvt.f32.s32 %v2462
        %v2464 = vcvt.f32.s32 %v2458
        %v2465 = vshll.u32 %v2464, 16
        %v2466 = vadd.s32 %v2465, %v2463
        %v2467 = vsel %vm380, %v1947, 2147483647
        %v2468 = vand.u32 %v2467, 65535
        %v2469 = vshra.s32 %v2467, 16
        %v2470 = vcvt.s32.f32 %v2468
        %v2471 = vcvt.s32.f32 %v2469
        %2472 = vmin.xlane.f32.xlu0 %v2471
        %v2473 = vpop.xlane.xlu0 %2472
        %vm2474 = vcmp.eq.f32.partialorder %v2471, %v2473
        %v2475 = vsel %vm2474, %v2470, inf
        %2476 = vmin.xlane.f32.xlu0 %v2475
        %v2477 = vpop.xlane.xlu0 %2476
        %v2478 = vcvt.f32.s32 %v2477
        %v2479 = vcvt.f32.s32 %v2473
        %v2480 = vshll.u32 %v2479, 16
        %v2481 = vadd.s32 %v2480, %v2478
        %v2482 = vsel %vm380, %v1948, 2147483647
        %v2483 = vand.u32 %v2482, 65535
        %v2484 = vshra.s32 %v2482, 16
        %v2485 = vcvt.s32.f32 %v2483
        %v2486 = vcvt.s32.f32 %v2484
        %2487 = vmin.xlane.f32.xlu0 %v2486
        %v2488 = vpop.xlane.xlu0 %2487
        %vm2489 = vcmp.eq.f32.partialorder %v2486, %v2488
        %v2490 = vsel %vm2489, %v2485, inf
        %2491 = vmin.xlane.f32.xlu0 %v2490
        %v2492 = vpop.xlane.xlu0 %2491
        %v2493 = vcvt.f32.s32 %v2492
        %v2494 = vcvt.f32.s32 %v2488
        %v2495 = vshll.u32 %v2494, 16
        %v2496 = vadd.s32 %v2495, %v2493
        %v2497 = vsel %vm380, %v1949, 2147483647
        %v2498 = vand.u32 %v2497, 65535
        %v2499 = vshra.s32 %v2497, 16
        %v2500 = vcvt.s32.f32 %v2498
        %v2501 = vcvt.s32.f32 %v2499
        %2502 = vmin.xlane.f32.xlu0 %v2501
        %v2503 = vpop.xlane.xlu0 %2502
        %vm2504 = vcmp.eq.f32.partialorder %v2501, %v2503
        %v2505 = vsel %vm2504, %v2500, inf
        %2506 = vmin.xlane.f32.xlu0 %v2505
        %v2507 = vpop.xlane.xlu0 %2506
        %v2508 = vcvt.f32.s32 %v2507
        %v2509 = vcvt.f32.s32 %v2503
        %v2510 = vshll.u32 %v2509, 16
        %v2511 = vadd.s32 %v2510, %v2508
        %v2512 = vsel %vm380, %v1950, 2147483647
        %v2513 = vand.u32 %v2512, 65535
        %v2514 = vshra.s32 %v2512, 16
        %v2515 = vcvt.s32.f32 %v2513
        %v2516 = vcvt.s32.f32 %v2514
        %2517 = vmin.xlane.f32.xlu0 %v2516
        %v2518 = vpop.xlane.xlu0 %2517
        %vm2519 = vcmp.eq.f32.partialorder %v2516, %v2518
        %v2520 = vsel %vm2519, %v2515, inf
        %2521 = vmin.xlane.f32.xlu0 %v2520
        %v2522 = vpop.xlane.xlu0 %2521
        %v2523 = vcvt.f32.s32 %v2522
        %v2524 = vcvt.f32.s32 %v2518
        %v2525 = vshll.u32 %v2524, 16
        %v2526 = vadd.s32 %v2525, %v2523
        %v2527 = vsel %vm380, %v1951, 2147483647
        %v2528 = vand.u32 %v2527, 65535
        %v2529 = vshra.s32 %v2527, 16
        %v2530 = vcvt.s32.f32 %v2528
        %v2531 = vcvt.s32.f32 %v2529
        %2532 = vmin.xlane.f32.xlu0 %v2531
        %v2533 = vpop.xlane.xlu0 %2532
        %vm2534 = vcmp.eq.f32.partialorder %v2531, %v2533
        %v2535 = vsel %vm2534, %v2530, inf
        %2536 = vmin.xlane.f32.xlu0 %v2535
        %v2537 = vpop.xlane.xlu0 %2536
        %v2538 = vcvt.f32.s32 %v2537
        %v2539 = vcvt.f32.s32 %v2533
        %v2540 = vshll.u32 %v2539, 16
        %v2541 = vadd.s32 %v2540, %v2538
        %v2542 = vsel %vm380, %v1952, 2147483647
        %v2543 = vand.u32 %v2542, 65535
        %v2544 = vshra.s32 %v2542, 16
        %v2545 = vcvt.s32.f32 %v2543
        %v2546 = vcvt.s32.f32 %v2544
        %2547 = vmin.xlane.f32.xlu0 %v2546
        %v2548 = vpop.xlane.xlu0 %2547
        %vm2549 = vcmp.eq.f32.partialorder %v2546, %v2548
        %v2550 = vsel %vm2549, %v2545, inf
        %2551 = vmin.xlane.f32.xlu0 %v2550
        %v2552 = vpop.xlane.xlu0 %2551
        %v2553 = vcvt.f32.s32 %v2552
        %v2554 = vcvt.f32.s32 %v2548
        %v2555 = vshll.u32 %v2554, 16
        %v2556 = vadd.s32 %v2555, %v2553
        %v2557 = vsel %vm380, %v1953, 2147483647
        %v2558 = vand.u32 %v2557, 65535
        %v2559 = vshra.s32 %v2557, 16
        %v2560 = vcvt.s32.f32 %v2558
        %v2561 = vcvt.s32.f32 %v2559
        %2562 = vmin.xlane.f32.xlu0 %v2561
        %v2563 = vpop.xlane.xlu0 %2562
        %vm2564 = vcmp.eq.f32.partialorder %v2561, %v2563
        %v2565 = vsel %vm2564, %v2560, inf
        %2566 = vmin.xlane.f32.xlu0 %v2565
        %v2567 = vpop.xlane.xlu0 %2566
        %v2568 = vcvt.f32.s32 %v2567
        %v2569 = vcvt.f32.s32 %v2563
        %v2570 = vshll.u32 %v2569, 16
        %v2571 = vadd.s32 %v2570, %v2568
        %v2572 = vsel %vm380, %v1954, 2147483647
        %v2573 = vand.u32 %v2572, 65535
        %v2574 = vshra.s32 %v2572, 16
        %v2575 = vcvt.s32.f32 %v2573
        %v2576 = vcvt.s32.f32 %v2574
        %2577 = vmin.xlane.f32.xlu0 %v2576
        %v2578 = vpop.xlane.xlu0 %2577
        %vm2579 = vcmp.eq.f32.partialorder %v2576, %v2578
        %v2580 = vsel %vm2579, %v2575, inf
        %2581 = vmin.xlane.f32.xlu0 %v2580
        %v2582 = vpop.xlane.xlu0 %2581
        %v2583 = vcvt.f32.s32 %v2582
        %v2584 = vcvt.f32.s32 %v2578
        %v2585 = vshll.u32 %v2584, 16
        %v2586 = vadd.s32 %v2585, %v2583
        %v2587 = vsel %vm380, %v1955, 2147483647
        %v2588 = vand.u32 %v2587, 65535
        %v2589 = vshra.s32 %v2587, 16
        %v2590 = vcvt.s32.f32 %v2588
        %v2591 = vcvt.s32.f32 %v2589
        %2592 = vmin.xlane.f32.xlu0 %v2591
        %v2593 = vpop.xlane.xlu0 %2592
        %vm2594 = vcmp.eq.f32.partialorder %v2591, %v2593
        %v2595 = vsel %vm2594, %v2590, inf
        %2596 = vmin.xlane.f32.xlu0 %v2595
        %v2597 = vpop.xlane.xlu0 %2596
        %v2598 = vcvt.f32.s32 %v2597
        %v2599 = vcvt.f32.s32 %v2593
        %v2600 = vshll.u32 %v2599, 16
        %v2601 = vadd.s32 %v2600, %v2598
        %v2602 = vsel %vm380, %v1956, 2147483647
        %v2603 = vand.u32 %v2602, 65535
        %v2604 = vshra.s32 %v2602, 16
        %v2605 = vcvt.s32.f32 %v2603
        %v2606 = vcvt.s32.f32 %v2604
        %2607 = vmin.xlane.f32.xlu0 %v2606
        %v2608 = vpop.xlane.xlu0 %2607
        %vm2609 = vcmp.eq.f32.partialorder %v2606, %v2608
        %v2610 = vsel %vm2609, %v2605, inf
        %2611 = vmin.xlane.f32.xlu0 %v2610
        %v2612 = vpop.xlane.xlu0 %2611
        %v2613 = vcvt.f32.s32 %v2612
        %v2614 = vcvt.f32.s32 %v2608
        %v2615 = vshll.u32 %v2614, 16
        %v2616 = vadd.s32 %v2615, %v2613
        %v2617 = vsel %vm380, %v1957, 2147483647
        %v2618 = vand.u32 %v2617, 65535
        %v2619 = vshra.s32 %v2617, 16
        %v2620 = vcvt.s32.f32 %v2618
        %v2621 = vcvt.s32.f32 %v2619
        %2622 = vmin.xlane.f32.xlu0 %v2621
        %v2623 = vpop.xlane.xlu0 %2622
        %vm2624 = vcmp.eq.f32.partialorder %v2621, %v2623
        %v2625 = vsel %vm2624, %v2620, inf
        %2626 = vmin.xlane.f32.xlu0 %v2625
        %v2627 = vpop.xlane.xlu0 %2626
        %v2628 = vcvt.f32.s32 %v2627
        %v2629 = vcvt.f32.s32 %v2623
        %v2630 = vshll.u32 %v2629, 16
        %v2631 = vadd.s32 %v2630, %v2628
        %v2632 = vsel %vm380, %v1958, 2147483647
        %v2633 = vand.u32 %v2632, 65535
        %v2634 = vshra.s32 %v2632, 16
        %v2635 = vcvt.s32.f32 %v2633
        %v2636 = vcvt.s32.f32 %v2634
        %2637 = vmin.xlane.f32.xlu0 %v2636
        %v2638 = vpop.xlane.xlu0 %2637
        %vm2639 = vcmp.eq.f32.partialorder %v2636, %v2638
        %v2640 = vsel %vm2639, %v2635, inf
        %2641 = vmin.xlane.f32.xlu0 %v2640
        %v2642 = vpop.xlane.xlu0 %2641
        %v2643 = vcvt.f32.s32 %v2642
        %v2644 = vcvt.f32.s32 %v2638
        %v2645 = vshll.u32 %v2644, 16
        %v2646 = vadd.s32 %v2645, %v2643
        %v2647 = vsel %vm380, %v1959, 2147483647
        %v2648 = vand.u32 %v2647, 65535
        %v2649 = vshra.s32 %v2647, 16
        %v2650 = vcvt.s32.f32 %v2648
        %v2651 = vcvt.s32.f32 %v2649
        %2652 = vmin.xlane.f32.xlu0 %v2651
        %v2653 = vpop.xlane.xlu0 %2652
        %vm2654 = vcmp.eq.f32.partialorder %v2651, %v2653
        %v2655 = vsel %vm2654, %v2650, inf
        %2656 = vmin.xlane.f32.xlu0 %v2655
        %v2657 = vpop.xlane.xlu0 %2656
        %v2658 = vcvt.f32.s32 %v2657
        %v2659 = vcvt.f32.s32 %v2653
        %v2660 = vshll.u32 %v2659, 16
        %v2661 = vadd.s32 %v2660, %v2658
        %v2662 = vsel %vm380, %v1960, 2147483647
        %v2663 = vand.u32 %v2662, 65535
        %v2664 = vshra.s32 %v2662, 16
        %v2665 = vcvt.s32.f32 %v2663
        %v2666 = vcvt.s32.f32 %v2664
        %2667 = vmin.xlane.f32.xlu0 %v2666
        %v2668 = vpop.xlane.xlu0 %2667
        %vm2669 = vcmp.eq.f32.partialorder %v2666, %v2668
        %v2670 = vsel %vm2669, %v2665, inf
        %2671 = vmin.xlane.f32.xlu0 %v2670
        %v2672 = vpop.xlane.xlu0 %2671
        %v2673 = vcvt.f32.s32 %v2672
        %v2674 = vcvt.f32.s32 %v2668
        %v2675 = vshll.u32 %v2674, 16
        %v2676 = vadd.s32 %v2675, %v2673
        %v2677 = vsel %vm380, %v1961, 2147483647
        %v2678 = vand.u32 %v2677, 65535
        %v2679 = vshra.s32 %v2677, 16
        %v2680 = vcvt.s32.f32 %v2678
        %v2681 = vcvt.s32.f32 %v2679
        %2682 = vmin.xlane.f32.xlu0 %v2681
        %v2683 = vpop.xlane.xlu0 %2682
        %vm2684 = vcmp.eq.f32.partialorder %v2681, %v2683
        %v2685 = vsel %vm2684, %v2680, inf
        %2686 = vmin.xlane.f32.xlu0 %v2685
        %v2687 = vpop.xlane.xlu0 %2686
        %v2688 = vcvt.f32.s32 %v2687
        %v2689 = vcvt.f32.s32 %v2683
        %v2690 = vshll.u32 %v2689, 16
        %v2691 = vadd.s32 %v2690, %v2688
        %v2692 = vsel %vm380, %v1962, 2147483647
        %v2693 = vand.u32 %v2692, 65535
        %v2694 = vshra.s32 %v2692, 16
        %v2695 = vcvt.s32.f32 %v2693
        %v2696 = vcvt.s32.f32 %v2694
        %2697 = vmin.xlane.f32.xlu0 %v2696
        %v2698 = vpop.xlane.xlu0 %2697
        %vm2699 = vcmp.eq.f32.partialorder %v2696, %v2698
        %v2700 = vsel %vm2699, %v2695, inf
        %2701 = vmin.xlane.f32.xlu0 %v2700
        %v2702 = vpop.xlane.xlu0 %2701
        %v2703 = vcvt.f32.s32 %v2702
        %v2704 = vcvt.f32.s32 %v2698
        %v2705 = vshll.u32 %v2704, 16
        %v2706 = vadd.s32 %v2705, %v2703
        %v2707 = vsel %vm380, %v1963, 2147483647
        %v2708 = vand.u32 %v2707, 65535
        %v2709 = vshra.s32 %v2707, 16
        %v2710 = vcvt.s32.f32 %v2708
        %v2711 = vcvt.s32.f32 %v2709
        %2712 = vmin.xlane.f32.xlu0 %v2711
        %v2713 = vpop.xlane.xlu0 %2712
        %vm2714 = vcmp.eq.f32.partialorder %v2711, %v2713
        %v2715 = vsel %vm2714, %v2710, inf
        %2716 = vmin.xlane.f32.xlu0 %v2715
        %v2717 = vpop.xlane.xlu0 %2716
        %v2718 = vcvt.f32.s32 %v2717
        %v2719 = vcvt.f32.s32 %v2713
        %v2720 = vshll.u32 %v2719, 16
        %v2721 = vadd.s32 %v2720, %v2718
        %v2722 = vsel %vm380, %v1964, 2147483647
        %v2723 = vand.u32 %v2722, 65535
        %v2724 = vshra.s32 %v2722, 16
        %v2725 = vcvt.s32.f32 %v2723
        %v2726 = vcvt.s32.f32 %v2724
        %2727 = vmin.xlane.f32.xlu0 %v2726
        %v2728 = vpop.xlane.xlu0 %2727
        %vm2729 = vcmp.eq.f32.partialorder %v2726, %v2728
        %v2730 = vsel %vm2729, %v2725, inf
        %2731 = vmin.xlane.f32.xlu0 %v2730
        %v2732 = vpop.xlane.xlu0 %2731
        %v2733 = vcvt.f32.s32 %v2732
        %v2734 = vcvt.f32.s32 %v2728
        %v2735 = vshll.u32 %v2734, 16
        %v2736 = vadd.s32 %v2735, %v2733
        %v2737 = vsel %vm380, %v1965, 2147483647
        %v2738 = vand.u32 %v2737, 65535
        %v2739 = vshra.s32 %v2737, 16
        %v2740 = vcvt.s32.f32 %v2738
        %v2741 = vcvt.s32.f32 %v2739
        %2742 = vmin.xlane.f32.xlu0 %v2741
        %v2743 = vpop.xlane.xlu0 %2742
        %vm2744 = vcmp.eq.f32.partialorder %v2741, %v2743
        %v2745 = vsel %vm2744, %v2740, inf
        %2746 = vmin.xlane.f32.xlu0 %v2745
        %v2747 = vpop.xlane.xlu0 %2746
        %v2748 = vcvt.f32.s32 %v2747
        %v2749 = vcvt.f32.s32 %v2743
        %v2750 = vshll.u32 %v2749, 16
        %v2751 = vadd.s32 %v2750, %v2748
        %v2752 = vsel %vm380, %v1966, 2147483647
        %v2753 = vand.u32 %v2752, 65535
        %v2754 = vshra.s32 %v2752, 16
        %v2755 = vcvt.s32.f32 %v2753
        %v2756 = vcvt.s32.f32 %v2754
        %2757 = vmin.xlane.f32.xlu0 %v2756
        %v2758 = vpop.xlane.xlu0 %2757
        %vm2759 = vcmp.eq.f32.partialorder %v2756, %v2758
        %v2760 = vsel %vm2759, %v2755, inf
        %2761 = vmin.xlane.f32.xlu0 %v2760
        %v2762 = vpop.xlane.xlu0 %2761
        %v2763 = vcvt.f32.s32 %v2762
        %v2764 = vcvt.f32.s32 %v2758
        %v2765 = vshll.u32 %v2764, 16
        %v2766 = vadd.s32 %v2765, %v2763
        %v2767 = vsel %vm380, %v1967, 2147483647
        %v2768 = vand.u32 %v2767, 65535
        %v2769 = vshra.s32 %v2767, 16
        %v2770 = vcvt.s32.f32 %v2768
        %v2771 = vcvt.s32.f32 %v2769
        %2772 = vmin.xlane.f32.xlu0 %v2771
        %v2773 = vpop.xlane.xlu0 %2772
        %vm2774 = vcmp.eq.f32.partialorder %v2771, %v2773
        %v2775 = vsel %vm2774, %v2770, inf
        %2776 = vmin.xlane.f32.xlu0 %v2775
        %v2777 = vpop.xlane.xlu0 %2776
        %v2778 = vcvt.f32.s32 %v2777
        %v2779 = vcvt.f32.s32 %v2773
        %v2780 = vshll.u32 %v2779, 16
        %v2781 = vadd.s32 %v2780, %v2778
        %v2782 = vsel %vm380, %v1968, 2147483647
        %v2783 = vand.u32 %v2782, 65535
        %v2784 = vshra.s32 %v2782, 16
        %v2785 = vcvt.s32.f32 %v2783
        %v2786 = vcvt.s32.f32 %v2784
        %2787 = vmin.xlane.f32.xlu0 %v2786
        %v2788 = vpop.xlane.xlu0 %2787
        %vm2789 = vcmp.eq.f32.partialorder %v2786, %v2788
        %v2790 = vsel %vm2789, %v2785, inf
        %2791 = vmin.xlane.f32.xlu0 %v2790
        %v2792 = vpop.xlane.xlu0 %2791
        %v2793 = vcvt.f32.s32 %v2792
        %v2794 = vcvt.f32.s32 %v2788
        %v2795 = vshll.u32 %v2794, 16
        %v2796 = vadd.s32 %v2795, %v2793
        %v2797 = vsel %vm380, %v1969, 2147483647
        %v2798 = vand.u32 %v2797, 65535
        %v2799 = vshra.s32 %v2797, 16
        %v2800 = vcvt.s32.f32 %v2798
        %v2801 = vcvt.s32.f32 %v2799
        %2802 = vmin.xlane.f32.xlu0 %v2801
        %v2803 = vpop.xlane.xlu0 %2802
        %vm2804 = vcmp.eq.f32.partialorder %v2801, %v2803
        %v2805 = vsel %vm2804, %v2800, inf
        %2806 = vmin.xlane.f32.xlu0 %v2805
        %v2807 = vpop.xlane.xlu0 %2806
        %v2808 = vcvt.f32.s32 %v2807
        %v2809 = vcvt.f32.s32 %v2803
        %v2810 = vshll.u32 %v2809, 16
        %v2811 = vadd.s32 %v2810, %v2808
        %v2812 = vsel %vm380, %v1970, 2147483647
        %v2813 = vand.u32 %v2812, 65535
        %v2814 = vshra.s32 %v2812, 16
        %v2815 = vcvt.s32.f32 %v2813
        %v2816 = vcvt.s32.f32 %v2814
        %2817 = vmin.xlane.f32.xlu0 %v2816
        %v2818 = vpop.xlane.xlu0 %2817
        %vm2819 = vcmp.eq.f32.partialorder %v2816, %v2818
        %v2820 = vsel %vm2819, %v2815, inf
        %2821 = vmin.xlane.f32.xlu0 %v2820
        %v2822 = vpop.xlane.xlu0 %2821
        %v2823 = vcvt.f32.s32 %v2822
        %v2824 = vcvt.f32.s32 %v2818
        %v2825 = vshll.u32 %v2824, 16
        %v2826 = vadd.s32 %v2825, %v2823
        %v2827 = vsel %vm380, %v1971, 2147483647
        %v2828 = vand.u32 %v2827, 65535
        %v2829 = vshra.s32 %v2827, 16
        %v2830 = vcvt.s32.f32 %v2828
        %v2831 = vcvt.s32.f32 %v2829
        %2832 = vmin.xlane.f32.xlu0 %v2831
        %v2833 = vpop.xlane.xlu0 %2832
        %vm2834 = vcmp.eq.f32.partialorder %v2831, %v2833
        %v2835 = vsel %vm2834, %v2830, inf
        %2836 = vmin.xlane.f32.xlu0 %v2835
        %v2837 = vpop.xlane.xlu0 %2836
        %v2838 = vcvt.f32.s32 %v2837
        %v2839 = vcvt.f32.s32 %v2833
        %v2840 = vshll.u32 %v2839, 16
        %v2841 = vadd.s32 %v2840, %v2838
        %v2842 = vsel %vm380, %v1972, 2147483647
        %v2843 = vand.u32 %v2842, 65535
        %v2844 = vshra.s32 %v2842, 16
        %v2845 = vcvt.s32.f32 %v2843
        %v2846 = vcvt.s32.f32 %v2844
        %2847 = vmin.xlane.f32.xlu0 %v2846
        %v2848 = vpop.xlane.xlu0 %2847
        %vm2849 = vcmp.eq.f32.partialorder %v2846, %v2848
        %v2850 = vsel %vm2849, %v2845, inf
        %2851 = vmin.xlane.f32.xlu0 %v2850
        %v2852 = vpop.xlane.xlu0 %2851
        %v2853 = vcvt.f32.s32 %v2852
        %v2854 = vcvt.f32.s32 %v2848
        %v2855 = vshll.u32 %v2854, 16
        %v2856 = vadd.s32 %v2855, %v2853
        %v2857 = vsel %vm380, %v1973, 2147483647
        %v2858 = vand.u32 %v2857, 65535
        %v2859 = vshra.s32 %v2857, 16
        %v2860 = vcvt.s32.f32 %v2858
        %v2861 = vcvt.s32.f32 %v2859
        %2862 = vmin.xlane.f32.xlu0 %v2861
        %v2863 = vpop.xlane.xlu0 %2862
        %vm2864 = vcmp.eq.f32.partialorder %v2861, %v2863
        %v2865 = vsel %vm2864, %v2860, inf
        %2866 = vmin.xlane.f32.xlu0 %v2865
        %v2867 = vpop.xlane.xlu0 %2866
        %v2868 = vcvt.f32.s32 %v2867
        %v2869 = vcvt.f32.s32 %v2863
        %v2870 = vshll.u32 %v2869, 16
        %v2871 = vadd.s32 %v2870, %v2868
        %v2872 = vsel %vm380, %v1974, 2147483647
        %v2873 = vand.u32 %v2872, 65535
        %v2874 = vshra.s32 %v2872, 16
        %v2875 = vcvt.s32.f32 %v2873
        %v2876 = vcvt.s32.f32 %v2874
        %2877 = vmin.xlane.f32.xlu0 %v2876
        %v2878 = vpop.xlane.xlu0 %2877
        %vm2879 = vcmp.eq.f32.partialorder %v2876, %v2878
        %v2880 = vsel %vm2879, %v2875, inf
        %2881 = vmin.xlane.f32.xlu0 %v2880
        %v2882 = vpop.xlane.xlu0 %2881
        %v2883 = vcvt.f32.s32 %v2882
        %v2884 = vcvt.f32.s32 %v2878
        %v2885 = vshll.u32 %v2884, 16
        %v2886 = vadd.s32 %v2885, %v2883
        %v2887 = vsel %vm380, %v1975, 2147483647
        %v2888 = vand.u32 %v2887, 65535
        %v2889 = vshra.s32 %v2887, 16
        %v2890 = vcvt.s32.f32 %v2888
        %v2891 = vcvt.s32.f32 %v2889
        %2892 = vmin.xlane.f32.xlu0 %v2891
        %v2893 = vpop.xlane.xlu0 %2892
        %vm2894 = vcmp.eq.f32.partialorder %v2891, %v2893
        %v2895 = vsel %vm2894, %v2890, inf
        %2896 = vmin.xlane.f32.xlu0 %v2895
        %v2897 = vpop.xlane.xlu0 %2896
        %v2898 = vcvt.f32.s32 %v2897
        %v2899 = vcvt.f32.s32 %v2893
        %v2900 = vshll.u32 %v2899, 16
        %v2901 = vadd.s32 %v2900, %v2898
        %v2902 = vsel %vm380, %v1976, 2147483647
        %v2903 = vand.u32 %v2902, 65535
        %v2904 = vshra.s32 %v2902, 16
        %v2905 = vcvt.s32.f32 %v2903
        %v2906 = vcvt.s32.f32 %v2904
        %2907 = vmin.xlane.f32.xlu0 %v2906
        %v2908 = vpop.xlane.xlu0 %2907
        %vm2909 = vcmp.eq.f32.partialorder %v2906, %v2908
        %v2910 = vsel %vm2909, %v2905, inf
        %2911 = vmin.xlane.f32.xlu0 %v2910
        %v2912 = vpop.xlane.xlu0 %2911
        %v2913 = vcvt.f32.s32 %v2912
        %v2914 = vcvt.f32.s32 %v2908
        %v2915 = vshll.u32 %v2914, 16
        %v2916 = vadd.s32 %v2915, %v2913
        %v2917 = vsel %vm380, %v1977, 2147483647
        %v2918 = vand.u32 %v2917, 65535
        %v2919 = vshra.s32 %v2917, 16
        %v2920 = vcvt.s32.f32 %v2918
        %v2921 = vcvt.s32.f32 %v2919
        %2922 = vmin.xlane.f32.xlu0 %v2921
        %v2923 = vpop.xlane.xlu0 %2922
        %vm2924 = vcmp.eq.f32.partialorder %v2921, %v2923
        %v2925 = vsel %vm2924, %v2920, inf
        %2926 = vmin.xlane.f32.xlu0 %v2925
        %v2927 = vpop.xlane.xlu0 %2926
        %v2928 = vcvt.f32.s32 %v2927
        %v2929 = vcvt.f32.s32 %v2923
        %v2930 = vshll.u32 %v2929, 16
        %v2931 = vadd.s32 %v2930, %v2928
        %v2932 = vsel %vm380, %v1978, 2147483647
        %v2933 = vand.u32 %v2932, 65535
        %v2934 = vshra.s32 %v2932, 16
        %v2935 = vcvt.s32.f32 %v2933
        %v2936 = vcvt.s32.f32 %v2934
        %2937 = vmin.xlane.f32.xlu0 %v2936
        %v2938 = vpop.xlane.xlu0 %2937
        %vm2939 = vcmp.eq.f32.partialorder %v2936, %v2938
        %v2940 = vsel %vm2939, %v2935, inf
        %2941 = vmin.xlane.f32.xlu0 %v2940
        %v2942 = vpop.xlane.xlu0 %2941
        %v2943 = vcvt.f32.s32 %v2942
        %v2944 = vcvt.f32.s32 %v2938
        %v2945 = vshll.u32 %v2944, 16
        %v2946 = vadd.s32 %v2945, %v2943
        %v2947 = vsel %vm380, %v1979, 2147483647
        %v2948 = vand.u32 %v2947, 65535
        %v2949 = vshra.s32 %v2947, 16
        %v2950 = vcvt.s32.f32 %v2948
        %v2951 = vcvt.s32.f32 %v2949
        %2952 = vmin.xlane.f32.xlu0 %v2951
        %v2953 = vpop.xlane.xlu0 %2952
        %vm2954 = vcmp.eq.f32.partialorder %v2951, %v2953
        %v2955 = vsel %vm2954, %v2950, inf
        %2956 = vmin.xlane.f32.xlu0 %v2955
        %v2957 = vpop.xlane.xlu0 %2956
        %v2958 = vcvt.f32.s32 %v2957
        %v2959 = vcvt.f32.s32 %v2953
        %v2960 = vshll.u32 %v2959, 16
        %v2961 = vadd.s32 %v2960, %v2958
        %v2962 = vsel %vm380, %v1980, 2147483647
        %v2963 = vand.u32 %v2962, 65535
        %v2964 = vshra.s32 %v2962, 16
        %v2965 = vcvt.s32.f32 %v2963
        %v2966 = vcvt.s32.f32 %v2964
        %2967 = vmin.xlane.f32.xlu0 %v2966
        %v2968 = vpop.xlane.xlu0 %2967
        %vm2969 = vcmp.eq.f32.partialorder %v2966, %v2968
        %v2970 = vsel %vm2969, %v2965, inf
        %2971 = vmin.xlane.f32.xlu0 %v2970
        %v2972 = vpop.xlane.xlu0 %2971
        %v2973 = vcvt.f32.s32 %v2972
        %v2974 = vcvt.f32.s32 %v2968
        %v2975 = vshll.u32 %v2974, 16
        %v2976 = vadd.s32 %v2975, %v2973
        %v2977 = vsel %vm380, %v1981, 2147483647
        %v2978 = vand.u32 %v2977, 65535
        %v2979 = vshra.s32 %v2977, 16
        %v2980 = vcvt.s32.f32 %v2978
        %v2981 = vcvt.s32.f32 %v2979
        %2982 = vmin.xlane.f32.xlu0 %v2981
        %v2983 = vpop.xlane.xlu0 %2982
        %vm2984 = vcmp.eq.f32.partialorder %v2981, %v2983
        %v2985 = vsel %vm2984, %v2980, inf
        %2986 = vmin.xlane.f32.xlu0 %v2985
        %v2987 = vpop.xlane.xlu0 %2986
        %v2988 = vcvt.f32.s32 %v2987
        %v2989 = vcvt.f32.s32 %v2983
        %v2990 = vshll.u32 %v2989, 16
        %v2991 = vadd.s32 %v2990, %v2988
        %v2992 = vsel %vm380, %v1982, 2147483647
        %v2993 = vand.u32 %v2992, 65535
        %v2994 = vshra.s32 %v2992, 16
        %v2995 = vcvt.s32.f32 %v2993
        %v2996 = vcvt.s32.f32 %v2994
        %2997 = vmin.xlane.f32.xlu0 %v2996
        %v2998 = vpop.xlane.xlu0 %2997
        %vm2999 = vcmp.eq.f32.partialorder %v2996, %v2998
        %v3000 = vsel %vm2999, %v2995, inf
        %3001 = vmin.xlane.f32.xlu0 %v3000
        %v3002 = vpop.xlane.xlu0 %3001
        %v3003 = vcvt.f32.s32 %v3002
        %v3004 = vcvt.f32.s32 %v2998
        %v3005 = vshll.u32 %v3004, 16
        %v3006 = vadd.s32 %v3005, %v3003
        %v3007 = vsel %vm380, %v1983, 2147483647
        %v3008 = vand.u32 %v3007, 65535
        %v3009 = vshra.s32 %v3007, 16
        %v3010 = vcvt.s32.f32 %v3008
        %v3011 = vcvt.s32.f32 %v3009
        %3012 = vmin.xlane.f32.xlu0 %v3011
        %v3013 = vpop.xlane.xlu0 %3012
        %vm3014 = vcmp.eq.f32.partialorder %v3011, %v3013
        %v3015 = vsel %vm3014, %v3010, inf
        %3016 = vmin.xlane.f32.xlu0 %v3015
        %v3017 = vpop.xlane.xlu0 %3016
        %v3018 = vcvt.f32.s32 %v3017
        %v3019 = vcvt.f32.s32 %v3013
        %v3020 = vshll.u32 %v3019, 16
        %v3021 = vadd.s32 %v3020, %v3018
        %v3022 = vsel %vm380, %v1984, 2147483647
        %v3023 = vand.u32 %v3022, 65535
        %v3024 = vshra.s32 %v3022, 16
        %v3025 = vcvt.s32.f32 %v3023
        %v3026 = vcvt.s32.f32 %v3024
        %3027 = vmin.xlane.f32.xlu0 %v3026
        %v3028 = vpop.xlane.xlu0 %3027
        %vm3029 = vcmp.eq.f32.partialorder %v3026, %v3028
        %v3030 = vsel %vm3029, %v3025, inf
        %3031 = vmin.xlane.f32.xlu0 %v3030
        %v3032 = vpop.xlane.xlu0 %3031
        %v3033 = vcvt.f32.s32 %v3032
        %v3034 = vcvt.f32.s32 %v3028
        %v3035 = vshll.u32 %v3034, 16
        %v3036 = vadd.s32 %v3035, %v3033
        %v3037 = vsel %vm380, %v1985, 2147483647
        %v3038 = vand.u32 %v3037, 65535
        %v3039 = vshra.s32 %v3037, 16
        %v3040 = vcvt.s32.f32 %v3038
        %v3041 = vcvt.s32.f32 %v3039
        %3042 = vmin.xlane.f32.xlu0 %v3041
        %v3043 = vpop.xlane.xlu0 %3042
        %vm3044 = vcmp.eq.f32.partialorder %v3041, %v3043
        %v3045 = vsel %vm3044, %v3040, inf
        %3046 = vmin.xlane.f32.xlu0 %v3045
        %v3047 = vpop.xlane.xlu0 %3046
        %v3048 = vcvt.f32.s32 %v3047
        %v3049 = vcvt.f32.s32 %v3043
        %v3050 = vshll.u32 %v3049, 16
        %v3051 = vadd.s32 %v3050, %v3048
        %v3052 = vsel %vm380, %v1986, 2147483647
        %v3053 = vand.u32 %v3052, 65535
        %v3054 = vshra.s32 %v3052, 16
        %v3055 = vcvt.s32.f32 %v3053
        %v3056 = vcvt.s32.f32 %v3054
        %3057 = vmin.xlane.f32.xlu0 %v3056
        %v3058 = vpop.xlane.xlu0 %3057
        %vm3059 = vcmp.eq.f32.partialorder %v3056, %v3058
        %v3060 = vsel %vm3059, %v3055, inf
        %3061 = vmin.xlane.f32.xlu0 %v3060
        %v3062 = vpop.xlane.xlu0 %3061
        %v3063 = vcvt.f32.s32 %v3062
        %v3064 = vcvt.f32.s32 %v3058
        %v3065 = vshll.u32 %v3064, 16
        %v3066 = vadd.s32 %v3065, %v3063
        %v3067 = vsel %vm380, %v1987, 2147483647
        %v3068 = vand.u32 %v3067, 65535
        %v3069 = vshra.s32 %v3067, 16
        %v3070 = vcvt.s32.f32 %v3068
        %v3071 = vcvt.s32.f32 %v3069
        %3072 = vmin.xlane.f32.xlu0 %v3071
        %v3073 = vpop.xlane.xlu0 %3072
        %vm3074 = vcmp.eq.f32.partialorder %v3071, %v3073
        %v3075 = vsel %vm3074, %v3070, inf
        %3076 = vmin.xlane.f32.xlu0 %v3075
        %v3077 = vpop.xlane.xlu0 %3076
        %v3078 = vcvt.f32.s32 %v3077
        %v3079 = vcvt.f32.s32 %v3073
        %v3080 = vshll.u32 %v3079, 16
        %v3081 = vadd.s32 %v3080, %v3078
        %v3082 = vsel %vm380, %v1988, 2147483647
        %v3083 = vand.u32 %v3082, 65535
        %v3084 = vshra.s32 %v3082, 16
        %v3085 = vcvt.s32.f32 %v3083
        %v3086 = vcvt.s32.f32 %v3084
        %3087 = vmin.xlane.f32.xlu0 %v3086
        %v3088 = vpop.xlane.xlu0 %3087
        %vm3089 = vcmp.eq.f32.partialorder %v3086, %v3088
        %v3090 = vsel %vm3089, %v3085, inf
        %3091 = vmin.xlane.f32.xlu0 %v3090
        %v3092 = vpop.xlane.xlu0 %3091
        %v3093 = vcvt.f32.s32 %v3092
        %v3094 = vcvt.f32.s32 %v3088
        %v3095 = vshll.u32 %v3094, 16
        %v3096 = vadd.s32 %v3095, %v3093
        %v3097 = vsel %vm380, %v1989, 2147483647
        %v3098 = vand.u32 %v3097, 65535
        %v3099 = vshra.s32 %v3097, 16
        %v3100 = vcvt.s32.f32 %v3098
        %v3101 = vcvt.s32.f32 %v3099
        %3102 = vmin.xlane.f32.xlu0 %v3101
        %v3103 = vpop.xlane.xlu0 %3102
        %vm3104 = vcmp.eq.f32.partialorder %v3101, %v3103
        %v3105 = vsel %vm3104, %v3100, inf
        %3106 = vmin.xlane.f32.xlu0 %v3105
        %v3107 = vpop.xlane.xlu0 %3106
        %v3108 = vcvt.f32.s32 %v3107
        %v3109 = vcvt.f32.s32 %v3103
        %v3110 = vshll.u32 %v3109, 16
        %v3111 = vadd.s32 %v3110, %v3108
        %v3112 = vsel %vm380, %v1990, 2147483647
        %v3113 = vand.u32 %v3112, 65535
        %v3114 = vshra.s32 %v3112, 16
        %v3115 = vcvt.s32.f32 %v3113
        %v3116 = vcvt.s32.f32 %v3114
        %3117 = vmin.xlane.f32.xlu0 %v3116
        %v3118 = vpop.xlane.xlu0 %3117
        %vm3119 = vcmp.eq.f32.partialorder %v3116, %v3118
        %v3120 = vsel %vm3119, %v3115, inf
        %3121 = vmin.xlane.f32.xlu0 %v3120
        %v3122 = vpop.xlane.xlu0 %3121
        %v3123 = vcvt.f32.s32 %v3122
        %v3124 = vcvt.f32.s32 %v3118
        %v3125 = vshll.u32 %v3124, 16
        %v3126 = vadd.s32 %v3125, %v3123
        %v3127 = vsel %vm380, %v1991, 2147483647
        %v3128 = vand.u32 %v3127, 65535
        %v3129 = vshra.s32 %v3127, 16
        %v3130 = vcvt.s32.f32 %v3128
        %v3131 = vcvt.s32.f32 %v3129
        %3132 = vmin.xlane.f32.xlu0 %v3131
        %v3133 = vpop.xlane.xlu0 %3132
        %vm3134 = vcmp.eq.f32.partialorder %v3131, %v3133
        %v3135 = vsel %vm3134, %v3130, inf
        %3136 = vmin.xlane.f32.xlu0 %v3135
        %v3137 = vpop.xlane.xlu0 %3136
        %v3138 = vcvt.f32.s32 %v3137
        %v3139 = vcvt.f32.s32 %v3133
        %v3140 = vshll.u32 %v3139, 16
        %v3141 = vadd.s32 %v3140, %v3138
        %v3142 = vsel %vm380, %v1992, 2147483647
        %v3143 = vand.u32 %v3142, 65535
        %v3144 = vshra.s32 %v3142, 16
        %v3145 = vcvt.s32.f32 %v3143
        %v3146 = vcvt.s32.f32 %v3144
        %3147 = vmin.xlane.f32.xlu0 %v3146
        %v3148 = vpop.xlane.xlu0 %3147
        %vm3149 = vcmp.eq.f32.partialorder %v3146, %v3148
        %v3150 = vsel %vm3149, %v3145, inf
        %3151 = vmin.xlane.f32.xlu0 %v3150
        %v3152 = vpop.xlane.xlu0 %3151
        %v3153 = vcvt.f32.s32 %v3152
        %v3154 = vcvt.f32.s32 %v3148
        %v3155 = vshll.u32 %v3154, 16
        %v3156 = vadd.s32 %v3155, %v3153
        %v3157 = vsel %vm380, %v1993, 2147483647
        %v3158 = vand.u32 %v3157, 65535
        %v3159 = vshra.s32 %v3157, 16
        %v3160 = vcvt.s32.f32 %v3158
        %v3161 = vcvt.s32.f32 %v3159
        %3162 = vmin.xlane.f32.xlu0 %v3161
        %v3163 = vpop.xlane.xlu0 %3162
        %vm3164 = vcmp.eq.f32.partialorder %v3161, %v3163
        %v3165 = vsel %vm3164, %v3160, inf
        %3166 = vmin.xlane.f32.xlu0 %v3165
        %v3167 = vpop.xlane.xlu0 %3166
        %v3168 = vcvt.f32.s32 %v3167
        %v3169 = vcvt.f32.s32 %v3163
        %v3170 = vshll.u32 %v3169, 16
        %v3171 = vadd.s32 %v3170, %v3168
        %v3172 = vsel %vm380, %v1994, 2147483647
        %v3173 = vand.u32 %v3172, 65535
        %v3174 = vshra.s32 %v3172, 16
        %v3175 = vcvt.s32.f32 %v3173
        %v3176 = vcvt.s32.f32 %v3174
        %3177 = vmin.xlane.f32.xlu0 %v3176
        %v3178 = vpop.xlane.xlu0 %3177
        %vm3179 = vcmp.eq.f32.partialorder %v3176, %v3178
        %v3180 = vsel %vm3179, %v3175, inf
        %3181 = vmin.xlane.f32.xlu0 %v3180
        %v3182 = vpop.xlane.xlu0 %3181
        %v3183 = vcvt.f32.s32 %v3182
        %v3184 = vcvt.f32.s32 %v3178
        %v3185 = vshll.u32 %v3184, 16
        %v3186 = vadd.s32 %v3185, %v3183
        %v3187 = vsel %vm380, %v1995, 2147483647
        %v3188 = vand.u32 %v3187, 65535
        %v3189 = vshra.s32 %v3187, 16
        %v3190 = vcvt.s32.f32 %v3188
        %v3191 = vcvt.s32.f32 %v3189
        %3192 = vmin.xlane.f32.xlu0 %v3191
        %v3193 = vpop.xlane.xlu0 %3192
        %vm3194 = vcmp.eq.f32.partialorder %v3191, %v3193
        %v3195 = vsel %vm3194, %v3190, inf
        %3196 = vmin.xlane.f32.xlu0 %v3195
        %v3197 = vpop.xlane.xlu0 %3196
        %v3198 = vcvt.f32.s32 %v3197
        %v3199 = vcvt.f32.s32 %v3193
        %v3200 = vshll.u32 %v3199, 16
        %v3201 = vadd.s32 %v3200, %v3198
        %v3202 = vsel %vm380, %v1996, 2147483647
        %v3203 = vand.u32 %v3202, 65535
        %v3204 = vshra.s32 %v3202, 16
        %v3205 = vcvt.s32.f32 %v3203
        %v3206 = vcvt.s32.f32 %v3204
        %3207 = vmin.xlane.f32.xlu0 %v3206
        %v3208 = vpop.xlane.xlu0 %3207
        %vm3209 = vcmp.eq.f32.partialorder %v3206, %v3208
        %v3210 = vsel %vm3209, %v3205, inf
        %3211 = vmin.xlane.f32.xlu0 %v3210
        %v3212 = vpop.xlane.xlu0 %3211
        %v3213 = vcvt.f32.s32 %v3212
        %v3214 = vcvt.f32.s32 %v3208
        %v3215 = vshll.u32 %v3214, 16
        %v3216 = vadd.s32 %v3215, %v3213
        %v3217 = vsel %vm380, %v1997, 2147483647
        %v3218 = vand.u32 %v3217, 65535
        %v3219 = vshra.s32 %v3217, 16
        %v3220 = vcvt.s32.f32 %v3218
        %v3221 = vcvt.s32.f32 %v3219
        %3222 = vmin.xlane.f32.xlu0 %v3221
        %v3223 = vpop.xlane.xlu0 %3222
        %vm3224 = vcmp.eq.f32.partialorder %v3221, %v3223
        %v3225 = vsel %vm3224, %v3220, inf
        %3226 = vmin.xlane.f32.xlu0 %v3225
        %v3227 = vpop.xlane.xlu0 %3226
        %v3228 = vcvt.f32.s32 %v3227
        %v3229 = vcvt.f32.s32 %v3223
        %v3230 = vshll.u32 %v3229, 16
        %v3231 = vadd.s32 %v3230, %v3228
        %v3232 = vsel %vm380, %v1998, 2147483647
        %v3233 = vand.u32 %v3232, 65535
        %v3234 = vshra.s32 %v3232, 16
        %v3235 = vcvt.s32.f32 %v3233
        %v3236 = vcvt.s32.f32 %v3234
        %3237 = vmin.xlane.f32.xlu0 %v3236
        %v3238 = vpop.xlane.xlu0 %3237
        %vm3239 = vcmp.eq.f32.partialorder %v3236, %v3238
        %v3240 = vsel %vm3239, %v3235, inf
        %3241 = vmin.xlane.f32.xlu0 %v3240
        %v3242 = vpop.xlane.xlu0 %3241
        %v3243 = vcvt.f32.s32 %v3242
        %v3244 = vcvt.f32.s32 %v3238
        %v3245 = vshll.u32 %v3244, 16
        %v3246 = vadd.s32 %v3245, %v3243
        %v3247 = vsel %vm380, %v1999, 2147483647
        %v3248 = vand.u32 %v3247, 65535
        %v3249 = vshra.s32 %v3247, 16
        %v3250 = vcvt.s32.f32 %v3248
        %v3251 = vcvt.s32.f32 %v3249
        %3252 = vmin.xlane.f32.xlu0 %v3251
        %v3253 = vpop.xlane.xlu0 %3252
        %vm3254 = vcmp.eq.f32.partialorder %v3251, %v3253
        %v3255 = vsel %vm3254, %v3250, inf
        %3256 = vmin.xlane.f32.xlu0 %v3255
        %v3257 = vpop.xlane.xlu0 %3256
        %v3258 = vcvt.f32.s32 %v3257
        %v3259 = vcvt.f32.s32 %v3253
        %v3260 = vshll.u32 %v3259, 16
        %v3261 = vadd.s32 %v3260, %v3258
        %v3262 = vsel %vm380, %v2000, 2147483647
        %v3263 = vand.u32 %v3262, 65535
        %v3264 = vshra.s32 %v3262, 16
        %v3265 = vcvt.s32.f32 %v3263
        %v3266 = vcvt.s32.f32 %v3264
        %3267 = vmin.xlane.f32.xlu0 %v3266
        %v3268 = vpop.xlane.xlu0 %3267
        %vm3269 = vcmp.eq.f32.partialorder %v3266, %v3268
        %v3270 = vsel %vm3269, %v3265, inf
        %3271 = vmin.xlane.f32.xlu0 %v3270
        %v3272 = vpop.xlane.xlu0 %3271
        %v3273 = vcvt.f32.s32 %v3272
        %v3274 = vcvt.f32.s32 %v3268
        %v3275 = vshll.u32 %v3274, 16
        %v3276 = vadd.s32 %v3275, %v3273
        %v3277 = vsel %vm380, %v2001, 2147483647
        %v3278 = vand.u32 %v3277, 65535
        %v3279 = vshra.s32 %v3277, 16
        %v3280 = vcvt.s32.f32 %v3278
        %v3281 = vcvt.s32.f32 %v3279
        %3282 = vmin.xlane.f32.xlu0 %v3281
        %v3283 = vpop.xlane.xlu0 %3282
        %vm3284 = vcmp.eq.f32.partialorder %v3281, %v3283
        %v3285 = vsel %vm3284, %v3280, inf
        %3286 = vmin.xlane.f32.xlu0 %v3285
        %v3287 = vpop.xlane.xlu0 %3286
        %v3288 = vcvt.f32.s32 %v3287
        %v3289 = vcvt.f32.s32 %v3283
        %v3290 = vshll.u32 %v3289, 16
        %v3291 = vadd.s32 %v3290, %v3288
        %v3292 = vsel %vm380, %v2002, 2147483647
        %v3293 = vand.u32 %v3292, 65535
        %v3294 = vshra.s32 %v3292, 16
        %v3295 = vcvt.s32.f32 %v3293
        %v3296 = vcvt.s32.f32 %v3294
        %3297 = vmin.xlane.f32.xlu0 %v3296
        %v3298 = vpop.xlane.xlu0 %3297
        %vm3299 = vcmp.eq.f32.partialorder %v3296, %v3298
        %v3300 = vsel %vm3299, %v3295, inf
        %3301 = vmin.xlane.f32.xlu0 %v3300
        %v3302 = vpop.xlane.xlu0 %3301
        %v3303 = vcvt.f32.s32 %v3302
        %v3304 = vcvt.f32.s32 %v3298
        %v3305 = vshll.u32 %v3304, 16
        %v3306 = vadd.s32 %v3305, %v3303
        %v3307 = vsel %vm380, %v2003, 2147483647
        %v3308 = vand.u32 %v3307, 65535
        %v3309 = vshra.s32 %v3307, 16
        %v3310 = vcvt.s32.f32 %v3308
        %v3311 = vcvt.s32.f32 %v3309
        %3312 = vmin.xlane.f32.xlu0 %v3311
        %v3313 = vpop.xlane.xlu0 %3312
        %vm3314 = vcmp.eq.f32.partialorder %v3311, %v3313
        %v3315 = vsel %vm3314, %v3310, inf
        %3316 = vmin.xlane.f32.xlu0 %v3315
        %v3317 = vpop.xlane.xlu0 %3316
        %v3318 = vcvt.f32.s32 %v3317
        %v3319 = vcvt.f32.s32 %v3313
        %v3320 = vshll.u32 %v3319, 16
        %v3321 = vadd.s32 %v3320, %v3318
        %v3322 = vsel %vm380, %v2004, 2147483647
        %v3323 = vand.u32 %v3322, 65535
        %v3324 = vshra.s32 %v3322, 16
        %v3325 = vcvt.s32.f32 %v3323
        %v3326 = vcvt.s32.f32 %v3324
        %3327 = vmin.xlane.f32.xlu0 %v3326
        %v3328 = vpop.xlane.xlu0 %3327
        %vm3329 = vcmp.eq.f32.partialorder %v3326, %v3328
        %v3330 = vsel %vm3329, %v3325, inf
        %3331 = vmin.xlane.f32.xlu0 %v3330
        %v3332 = vpop.xlane.xlu0 %3331
        %v3333 = vcvt.f32.s32 %v3332
        %v3334 = vcvt.f32.s32 %v3328
        %v3335 = vshll.u32 %v3334, 16
        %v3336 = vadd.s32 %v3335, %v3333
        %v3337 = vsel %vm380, %v2005, 2147483647
        %v3338 = vand.u32 %v3337, 65535
        %v3339 = vshra.s32 %v3337, 16
        %v3340 = vcvt.s32.f32 %v3338
        %v3341 = vcvt.s32.f32 %v3339
        %3342 = vmin.xlane.f32.xlu0 %v3341
        %v3343 = vpop.xlane.xlu0 %3342
        %vm3344 = vcmp.eq.f32.partialorder %v3341, %v3343
        %v3345 = vsel %vm3344, %v3340, inf
        %3346 = vmin.xlane.f32.xlu0 %v3345
        %v3347 = vpop.xlane.xlu0 %3346
        %v3348 = vcvt.f32.s32 %v3347
        %v3349 = vcvt.f32.s32 %v3343
        %v3350 = vshll.u32 %v3349, 16
        %v3351 = vadd.s32 %v3350, %v3348
        %v3352 = vsel %vm380, %v2006, 2147483647
        %v3353 = vand.u32 %v3352, 65535
        %v3354 = vshra.s32 %v3352, 16
        %v3355 = vcvt.s32.f32 %v3353
        %v3356 = vcvt.s32.f32 %v3354
        %3357 = vmin.xlane.f32.xlu0 %v3356
        %v3358 = vpop.xlane.xlu0 %3357
        %vm3359 = vcmp.eq.f32.partialorder %v3356, %v3358
        %v3360 = vsel %vm3359, %v3355, inf
        %3361 = vmin.xlane.f32.xlu0 %v3360
        %v3362 = vpop.xlane.xlu0 %3361
        %v3363 = vcvt.f32.s32 %v3362
        %v3364 = vcvt.f32.s32 %v3358
        %v3365 = vshll.u32 %v3364, 16
        %v3366 = vadd.s32 %v3365, %v3363
        %v3367 = vsel %vm380, %v2007, 2147483647
        %v3368 = vand.u32 %v3367, 65535
        %v3369 = vshra.s32 %v3367, 16
        %v3370 = vcvt.s32.f32 %v3368
        %v3371 = vcvt.s32.f32 %v3369
        %3372 = vmin.xlane.f32.xlu0 %v3371
        %v3373 = vpop.xlane.xlu0 %3372
        %vm3374 = vcmp.eq.f32.partialorder %v3371, %v3373
        %v3375 = vsel %vm3374, %v3370, inf
        %3376 = vmin.xlane.f32.xlu0 %v3375
        %v3377 = vpop.xlane.xlu0 %3376
        %v3378 = vcvt.f32.s32 %v3377
        %v3379 = vcvt.f32.s32 %v3373
        %v3380 = vshll.u32 %v3379, 16
        %v3381 = vadd.s32 %v3380, %v3378
        %v3382 = vsel %vm380, %v2008, 2147483647
        %v3383 = vand.u32 %v3382, 65535
        %v3384 = vshra.s32 %v3382, 16
        %v3385 = vcvt.s32.f32 %v3383
        %v3386 = vcvt.s32.f32 %v3384
        %3387 = vmin.xlane.f32.xlu0 %v3386
        %v3388 = vpop.xlane.xlu0 %3387
        %vm3389 = vcmp.eq.f32.partialorder %v3386, %v3388
        %v3390 = vsel %vm3389, %v3385, inf
        %3391 = vmin.xlane.f32.xlu0 %v3390
        %v3392 = vpop.xlane.xlu0 %3391
        %v3393 = vcvt.f32.s32 %v3392
        %v3394 = vcvt.f32.s32 %v3388
        %v3395 = vshll.u32 %v3394, 16
        %v3396 = vadd.s32 %v3395, %v3393
        %v3397 = vsel %vm380, %v2009, 2147483647
        %v3398 = vand.u32 %v3397, 65535
        %v3399 = vshra.s32 %v3397, 16
        %v3400 = vcvt.s32.f32 %v3398
        %v3401 = vcvt.s32.f32 %v3399
        %3402 = vmin.xlane.f32.xlu0 %v3401
        %v3403 = vpop.xlane.xlu0 %3402
        %vm3404 = vcmp.eq.f32.partialorder %v3401, %v3403
        %v3405 = vsel %vm3404, %v3400, inf
        %3406 = vmin.xlane.f32.xlu0 %v3405
        %v3407 = vpop.xlane.xlu0 %3406
        %v3408 = vcvt.f32.s32 %v3407
        %v3409 = vcvt.f32.s32 %v3403
        %v3410 = vshll.u32 %v3409, 16
        %v3411 = vadd.s32 %v3410, %v3408
        %v3412 = vsel %vm380, %v2010, 2147483647
        %v3413 = vand.u32 %v3412, 65535
        %v3414 = vshra.s32 %v3412, 16
        %v3415 = vcvt.s32.f32 %v3413
        %v3416 = vcvt.s32.f32 %v3414
        %3417 = vmin.xlane.f32.xlu0 %v3416
        %v3418 = vpop.xlane.xlu0 %3417
        %vm3419 = vcmp.eq.f32.partialorder %v3416, %v3418
        %v3420 = vsel %vm3419, %v3415, inf
        %3421 = vmin.xlane.f32.xlu0 %v3420
        %v3422 = vpop.xlane.xlu0 %3421
        %v3423 = vcvt.f32.s32 %v3422
        %v3424 = vcvt.f32.s32 %v3418
        %v3425 = vshll.u32 %v3424, 16
        %v3426 = vadd.s32 %v3425, %v3423
        %v3427 = vsel %vm380, %v2011, 2147483647
        %v3428 = vand.u32 %v3427, 65535
        %v3429 = vshra.s32 %v3427, 16
        %v3430 = vcvt.s32.f32 %v3428
        %v3431 = vcvt.s32.f32 %v3429
        %3432 = vmin.xlane.f32.xlu0 %v3431
        %v3433 = vpop.xlane.xlu0 %3432
        %vm3434 = vcmp.eq.f32.partialorder %v3431, %v3433
        %v3435 = vsel %vm3434, %v3430, inf
        %3436 = vmin.xlane.f32.xlu0 %v3435
        %v3437 = vpop.xlane.xlu0 %3436
        %v3438 = vcvt.f32.s32 %v3437
        %v3439 = vcvt.f32.s32 %v3433
        %v3440 = vshll.u32 %v3439, 16
        %v3441 = vadd.s32 %v3440, %v3438
        %v3442 = vsel %vm380, %v2012, 2147483647
        %v3443 = vand.u32 %v3442, 65535
        %v3444 = vshra.s32 %v3442, 16
        %v3445 = vcvt.s32.f32 %v3443
        %v3446 = vcvt.s32.f32 %v3444
        %3447 = vmin.xlane.f32.xlu0 %v3446
        %v3448 = vpop.xlane.xlu0 %3447
        %vm3449 = vcmp.eq.f32.partialorder %v3446, %v3448
        %v3450 = vsel %vm3449, %v3445, inf
        %3451 = vmin.xlane.f32.xlu0 %v3450
        %v3452 = vpop.xlane.xlu0 %3451
        %v3453 = vcvt.f32.s32 %v3452
        %v3454 = vcvt.f32.s32 %v3448
        %v3455 = vshll.u32 %v3454, 16
        %v3456 = vadd.s32 %v3455, %v3453
        %v3457 = vsel %vm380, %v2013, 2147483647
        %v3458 = vand.u32 %v3457, 65535
        %v3459 = vshra.s32 %v3457, 16
        %v3460 = vcvt.s32.f32 %v3458
        %v3461 = vcvt.s32.f32 %v3459
        %3462 = vmin.xlane.f32.xlu0 %v3461
        %v3463 = vpop.xlane.xlu0 %3462
        %vm3464 = vcmp.eq.f32.partialorder %v3461, %v3463
        %v3465 = vsel %vm3464, %v3460, inf
        %3466 = vmin.xlane.f32.xlu0 %v3465
        %v3467 = vpop.xlane.xlu0 %3466
        %v3468 = vcvt.f32.s32 %v3467
        %v3469 = vcvt.f32.s32 %v3463
        %v3470 = vshll.u32 %v3469, 16
        %v3471 = vadd.s32 %v3470, %v3468
        %v3472 = vsel %vm380, %v2014, 2147483647
        %v3473 = vand.u32 %v3472, 65535
        %v3474 = vshra.s32 %v3472, 16
        %v3475 = vcvt.s32.f32 %v3473
        %v3476 = vcvt.s32.f32 %v3474
        %3477 = vmin.xlane.f32.xlu0 %v3476
        %v3478 = vpop.xlane.xlu0 %3477
        %vm3479 = vcmp.eq.f32.partialorder %v3476, %v3478
        %v3480 = vsel %vm3479, %v3475, inf
        %3481 = vmin.xlane.f32.xlu0 %v3480
        %v3482 = vpop.xlane.xlu0 %3481
        %v3483 = vcvt.f32.s32 %v3482
        %v3484 = vcvt.f32.s32 %v3478
        %v3485 = vshll.u32 %v3484, 16
        %v3486 = vadd.s32 %v3485, %v3483
        %v3487 = vsel %vm380, %v2015, 2147483647
        %v3488 = vand.u32 %v3487, 65535
        %v3489 = vshra.s32 %v3487, 16
        %v3490 = vcvt.s32.f32 %v3488
        %v3491 = vcvt.s32.f32 %v3489
        %3492 = vmin.xlane.f32.xlu0 %v3491
        %v3493 = vpop.xlane.xlu0 %3492
        %vm3494 = vcmp.eq.f32.partialorder %v3491, %v3493
        %v3495 = vsel %vm3494, %v3490, inf
        %3496 = vmin.xlane.f32.xlu0 %v3495
        %v3497 = vpop.xlane.xlu0 %3496
        %v3498 = vcvt.f32.s32 %v3497
        %v3499 = vcvt.f32.s32 %v3493
        %v3500 = vshll.u32 %v3499, 16
        %v3501 = vadd.s32 %v3500, %v3498
        %v3502 = vsel %vm380, %v2016, 2147483647
        %v3503 = vand.u32 %v3502, 65535
        %v3504 = vshra.s32 %v3502, 16
        %v3505 = vcvt.s32.f32 %v3503
        %v3506 = vcvt.s32.f32 %v3504
        %3507 = vmin.xlane.f32.xlu0 %v3506
        %v3508 = vpop.xlane.xlu0 %3507
        %vm3509 = vcmp.eq.f32.partialorder %v3506, %v3508
        %v3510 = vsel %vm3509, %v3505, inf
        %3511 = vmin.xlane.f32.xlu0 %v3510
        %v3512 = vpop.xlane.xlu0 %3511
        %v3513 = vcvt.f32.s32 %v3512
        %v3514 = vcvt.f32.s32 %v3508
        %v3515 = vshll.u32 %v3514, 16
        %v3516 = vadd.s32 %v3515, %v3513
        %v3517 = vsel %vm380, %v2017, 2147483647
        %v3518 = vand.u32 %v3517, 65535
        %v3519 = vshra.s32 %v3517, 16
        %v3520 = vcvt.s32.f32 %v3518
        %v3521 = vcvt.s32.f32 %v3519
        %3522 = vmin.xlane.f32.xlu0 %v3521
        %v3523 = vpop.xlane.xlu0 %3522
        %vm3524 = vcmp.eq.f32.partialorder %v3521, %v3523
        %v3525 = vsel %vm3524, %v3520, inf
        %3526 = vmin.xlane.f32.xlu0 %v3525
        %v3527 = vpop.xlane.xlu0 %3526
        %v3528 = vcvt.f32.s32 %v3527
        %v3529 = vcvt.f32.s32 %v3523
        %v3530 = vshll.u32 %v3529, 16
        %v3531 = vadd.s32 %v3530, %v3528
        %v3532 = vsel %vm380, %v2018, 2147483647
        %v3533 = vand.u32 %v3532, 65535
        %v3534 = vshra.s32 %v3532, 16
        %v3535 = vcvt.s32.f32 %v3533
        %v3536 = vcvt.s32.f32 %v3534
        %3537 = vmin.xlane.f32.xlu0 %v3536
        %v3538 = vpop.xlane.xlu0 %3537
        %vm3539 = vcmp.eq.f32.partialorder %v3536, %v3538
        %v3540 = vsel %vm3539, %v3535, inf
        %3541 = vmin.xlane.f32.xlu0 %v3540
        %v3542 = vpop.xlane.xlu0 %3541
        %v3543 = vcvt.f32.s32 %v3542
        %v3544 = vcvt.f32.s32 %v3538
        %v3545 = vshll.u32 %v3544, 16
        %v3546 = vadd.s32 %v3545, %v3543
        %v3547 = vsel %vm380, %v2019, 2147483647
        %v3548 = vand.u32 %v3547, 65535
        %v3549 = vshra.s32 %v3547, 16
        %v3550 = vcvt.s32.f32 %v3548
        %v3551 = vcvt.s32.f32 %v3549
        %3552 = vmin.xlane.f32.xlu0 %v3551
        %v3553 = vpop.xlane.xlu0 %3552
        %vm3554 = vcmp.eq.f32.partialorder %v3551, %v3553
        %v3555 = vsel %vm3554, %v3550, inf
        %3556 = vmin.xlane.f32.xlu0 %v3555
        %v3557 = vpop.xlane.xlu0 %3556
        %v3558 = vcvt.f32.s32 %v3557
        %v3559 = vcvt.f32.s32 %v3553
        %v3560 = vshll.u32 %v3559, 16
        %v3561 = vadd.s32 %v3560, %v3558
        %v3562 = vsel %vm380, %v2020, 2147483647
        %v3563 = vand.u32 %v3562, 65535
        %v3564 = vshra.s32 %v3562, 16
        %v3565 = vcvt.s32.f32 %v3563
        %v3566 = vcvt.s32.f32 %v3564
        %3567 = vmin.xlane.f32.xlu0 %v3566
        %v3568 = vpop.xlane.xlu0 %3567
        %vm3569 = vcmp.eq.f32.partialorder %v3566, %v3568
        %v3570 = vsel %vm3569, %v3565, inf
        %3571 = vmin.xlane.f32.xlu0 %v3570
        %v3572 = vpop.xlane.xlu0 %3571
        %v3573 = vcvt.f32.s32 %v3572
        %v3574 = vcvt.f32.s32 %v3568
        %v3575 = vshll.u32 %v3574, 16
        %v3576 = vadd.s32 %v3575, %v3573
        %v3577 = vsel %vm380, %v2021, 2147483647
        %v3578 = vand.u32 %v3577, 65535
        %v3579 = vshra.s32 %v3577, 16
        %v3580 = vcvt.s32.f32 %v3578
        %v3581 = vcvt.s32.f32 %v3579
        %3582 = vmin.xlane.f32.xlu0 %v3581
        %v3583 = vpop.xlane.xlu0 %3582
        %vm3584 = vcmp.eq.f32.partialorder %v3581, %v3583
        %v3585 = vsel %vm3584, %v3580, inf
        %3586 = vmin.xlane.f32.xlu0 %v3585
        %v3587 = vpop.xlane.xlu0 %3586
        %v3588 = vcvt.f32.s32 %v3587
        %v3589 = vcvt.f32.s32 %v3583
        %v3590 = vshll.u32 %v3589, 16
        %v3591 = vadd.s32 %v3590, %v3588
        %v3592 = vsel %vm380, %v2022, 2147483647
        %v3593 = vand.u32 %v3592, 65535
        %v3594 = vshra.s32 %v3592, 16
        %v3595 = vcvt.s32.f32 %v3593
        %v3596 = vcvt.s32.f32 %v3594
        %3597 = vmin.xlane.f32.xlu0 %v3596
        %v3598 = vpop.xlane.xlu0 %3597
        %vm3599 = vcmp.eq.f32.partialorder %v3596, %v3598
        %v3600 = vsel %vm3599, %v3595, inf
        %3601 = vmin.xlane.f32.xlu0 %v3600
        %v3602 = vpop.xlane.xlu0 %3601
        %v3603 = vcvt.f32.s32 %v3602
        %v3604 = vcvt.f32.s32 %v3598
        %v3605 = vshll.u32 %v3604, 16
        %v3606 = vadd.s32 %v3605, %v3603
        %v3607 = vsel %vm380, %v2023, 2147483647
        %v3608 = vand.u32 %v3607, 65535
        %v3609 = vshra.s32 %v3607, 16
        %v3610 = vcvt.s32.f32 %v3608
        %v3611 = vcvt.s32.f32 %v3609
        %3612 = vmin.xlane.f32.xlu0 %v3611
        %v3613 = vpop.xlane.xlu0 %3612
        %vm3614 = vcmp.eq.f32.partialorder %v3611, %v3613
        %v3615 = vsel %vm3614, %v3610, inf
        %3616 = vmin.xlane.f32.xlu0 %v3615
        %v3617 = vpop.xlane.xlu0 %3616
        %v3618 = vcvt.f32.s32 %v3617
        %v3619 = vcvt.f32.s32 %v3613
        %v3620 = vshll.u32 %v3619, 16
        %v3621 = vadd.s32 %v3620, %v3618
        %v3622 = vsel %vm380, %v2024, 2147483647
        %v3623 = vand.u32 %v3622, 65535
        %v3624 = vshra.s32 %v3622, 16
        %v3625 = vcvt.s32.f32 %v3623
        %v3626 = vcvt.s32.f32 %v3624
        %3627 = vmin.xlane.f32.xlu0 %v3626
        %v3628 = vpop.xlane.xlu0 %3627
        %vm3629 = vcmp.eq.f32.partialorder %v3626, %v3628
        %v3630 = vsel %vm3629, %v3625, inf
        %3631 = vmin.xlane.f32.xlu0 %v3630
        %v3632 = vpop.xlane.xlu0 %3631
        %v3633 = vcvt.f32.s32 %v3632
        %v3634 = vcvt.f32.s32 %v3628
        %v3635 = vshll.u32 %v3634, 16
        %v3636 = vadd.s32 %v3635, %v3633
        %v3637 = vsel %vm380, %v2025, 2147483647
        %v3638 = vand.u32 %v3637, 65535
        %v3639 = vshra.s32 %v3637, 16
        %v3640 = vcvt.s32.f32 %v3638
        %v3641 = vcvt.s32.f32 %v3639
        %3642 = vmin.xlane.f32.xlu0 %v3641
        %v3643 = vpop.xlane.xlu0 %3642
        %vm3644 = vcmp.eq.f32.partialorder %v3641, %v3643
        %v3645 = vsel %vm3644, %v3640, inf
        %3646 = vmin.xlane.f32.xlu0 %v3645
        %v3647 = vpop.xlane.xlu0 %3646
        %v3648 = vcvt.f32.s32 %v3647
        %v3649 = vcvt.f32.s32 %v3643
        %v3650 = vshll.u32 %v3649, 16
        %v3651 = vadd.s32 %v3650, %v3648
        %v3652 = vsel %vm380, %v2026, 2147483647
        %v3653 = vand.u32 %v3652, 65535
        %v3654 = vshra.s32 %v3652, 16
        %v3655 = vcvt.s32.f32 %v3653
        %v3656 = vcvt.s32.f32 %v3654
        %3657 = vmin.xlane.f32.xlu0 %v3656
        %v3658 = vpop.xlane.xlu0 %3657
        %vm3659 = vcmp.eq.f32.partialorder %v3656, %v3658
        %v3660 = vsel %vm3659, %v3655, inf
        %3661 = vmin.xlane.f32.xlu0 %v3660
        %v3662 = vpop.xlane.xlu0 %3661
        %v3663 = vcvt.f32.s32 %v3662
        %v3664 = vcvt.f32.s32 %v3658
        %v3665 = vshll.u32 %v3664, 16
        %v3666 = vadd.s32 %v3665, %v3663
        %v3667 = vsel %vm380, %v2027, 2147483647
        %v3668 = vand.u32 %v3667, 65535
        %v3669 = vshra.s32 %v3667, 16
        %v3670 = vcvt.s32.f32 %v3668
        %v3671 = vcvt.s32.f32 %v3669
        %3672 = vmin.xlane.f32.xlu0 %v3671
        %v3673 = vpop.xlane.xlu0 %3672
        %vm3674 = vcmp.eq.f32.partialorder %v3671, %v3673
        %v3675 = vsel %vm3674, %v3670, inf
        %3676 = vmin.xlane.f32.xlu0 %v3675
        %v3677 = vpop.xlane.xlu0 %3676
        %v3678 = vcvt.f32.s32 %v3677
        %v3679 = vcvt.f32.s32 %v3673
        %v3680 = vshll.u32 %v3679, 16
        %v3681 = vadd.s32 %v3680, %v3678
        %v3682 = vsel %vm380, %v2028, 2147483647
        %v3683 = vand.u32 %v3682, 65535
        %v3684 = vshra.s32 %v3682, 16
        %v3685 = vcvt.s32.f32 %v3683
        %v3686 = vcvt.s32.f32 %v3684
        %3687 = vmin.xlane.f32.xlu0 %v3686
        %v3688 = vpop.xlane.xlu0 %3687
        %vm3689 = vcmp.eq.f32.partialorder %v3686, %v3688
        %v3690 = vsel %vm3689, %v3685, inf
        %3691 = vmin.xlane.f32.xlu0 %v3690
        %v3692 = vpop.xlane.xlu0 %3691
        %v3693 = vcvt.f32.s32 %v3692
        %v3694 = vcvt.f32.s32 %v3688
        %v3695 = vshll.u32 %v3694, 16
        %v3696 = vadd.s32 %v3695, %v3693
        %v3697 = vsel %vm380, %v2029, 2147483647
        %v3698 = vand.u32 %v3697, 65535
        %v3699 = vshra.s32 %v3697, 16
        %v3700 = vcvt.s32.f32 %v3698
        %v3701 = vcvt.s32.f32 %v3699
        %3702 = vmin.xlane.f32.xlu0 %v3701
        %v3703 = vpop.xlane.xlu0 %3702
        %vm3704 = vcmp.eq.f32.partialorder %v3701, %v3703
        %v3705 = vsel %vm3704, %v3700, inf
        %3706 = vmin.xlane.f32.xlu0 %v3705
        %v3707 = vpop.xlane.xlu0 %3706
        %v3708 = vcvt.f32.s32 %v3707
        %v3709 = vcvt.f32.s32 %v3703
        %v3710 = vshll.u32 %v3709, 16
        %v3711 = vadd.s32 %v3710, %v3708
        %v3712 = vsel %vm380, %v2030, 2147483647
        %v3713 = vand.u32 %v3712, 65535
        %v3714 = vshra.s32 %v3712, 16
        %v3715 = vcvt.s32.f32 %v3713
        %v3716 = vcvt.s32.f32 %v3714
        %3717 = vmin.xlane.f32.xlu0 %v3716
        %v3718 = vpop.xlane.xlu0 %3717
        %vm3719 = vcmp.eq.f32.partialorder %v3716, %v3718
        %v3720 = vsel %vm3719, %v3715, inf
        %3721 = vmin.xlane.f32.xlu0 %v3720
        %v3722 = vpop.xlane.xlu0 %3721
        %v3723 = vcvt.f32.s32 %v3722
        %v3724 = vcvt.f32.s32 %v3718
        %v3725 = vshll.u32 %v3724, 16
        %v3726 = vadd.s32 %v3725, %v3723
        %v3727 = vsel %vm380, %v2031, 2147483647
        %v3728 = vand.u32 %v3727, 65535
        %v3729 = vshra.s32 %v3727, 16
        %v3730 = vcvt.s32.f32 %v3728
        %v3731 = vcvt.s32.f32 %v3729
        %3732 = vmin.xlane.f32.xlu0 %v3731
        %v3733 = vpop.xlane.xlu0 %3732
        %vm3734 = vcmp.eq.f32.partialorder %v3731, %v3733
        %v3735 = vsel %vm3734, %v3730, inf
        %3736 = vmin.xlane.f32.xlu0 %v3735
        %v3737 = vpop.xlane.xlu0 %3736
        %v3738 = vcvt.f32.s32 %v3737
        %v3739 = vcvt.f32.s32 %v3733
        %v3740 = vshll.u32 %v3739, 16
        %v3741 = vadd.s32 %v3740, %v3738
        %v3742 = vsel %vm380, %v2032, 2147483647
        %v3743 = vand.u32 %v3742, 65535
        %v3744 = vshra.s32 %v3742, 16
        %v3745 = vcvt.s32.f32 %v3743
        %v3746 = vcvt.s32.f32 %v3744
        %3747 = vmin.xlane.f32.xlu0 %v3746
        %v3748 = vpop.xlane.xlu0 %3747
        %vm3749 = vcmp.eq.f32.partialorder %v3746, %v3748
        %v3750 = vsel %vm3749, %v3745, inf
        %3751 = vmin.xlane.f32.xlu0 %v3750
        %v3752 = vpop.xlane.xlu0 %3751
        %v3753 = vcvt.f32.s32 %v3752
        %v3754 = vcvt.f32.s32 %v3748
        %v3755 = vshll.u32 %v3754, 16
        %v3756 = vadd.s32 %v3755, %v3753
        %v3757 = vsel %vm380, %v2033, 2147483647
        %v3758 = vand.u32 %v3757, 65535
        %v3759 = vshra.s32 %v3757, 16
        %v3760 = vcvt.s32.f32 %v3758
        %v3761 = vcvt.s32.f32 %v3759
        %3762 = vmin.xlane.f32.xlu0 %v3761
        %v3763 = vpop.xlane.xlu0 %3762
        %vm3764 = vcmp.eq.f32.partialorder %v3761, %v3763
        %v3765 = vsel %vm3764, %v3760, inf
        %3766 = vmin.xlane.f32.xlu0 %v3765
        %v3767 = vpop.xlane.xlu0 %3766
        %v3768 = vcvt.f32.s32 %v3767
        %v3769 = vcvt.f32.s32 %v3763
        %v3770 = vshll.u32 %v3769, 16
        %v3771 = vadd.s32 %v3770, %v3768
        %v3772 = vsel %vm380, %v2034, 2147483647
        %v3773 = vand.u32 %v3772, 65535
        %v3774 = vshra.s32 %v3772, 16
        %v3775 = vcvt.s32.f32 %v3773
        %v3776 = vcvt.s32.f32 %v3774
        %3777 = vmin.xlane.f32.xlu0 %v3776
        %v3778 = vpop.xlane.xlu0 %3777
        %vm3779 = vcmp.eq.f32.partialorder %v3776, %v3778
        %v3780 = vsel %vm3779, %v3775, inf
        %3781 = vmin.xlane.f32.xlu0 %v3780
        %v3782 = vpop.xlane.xlu0 %3781
        %v3783 = vcvt.f32.s32 %v3782
        %v3784 = vcvt.f32.s32 %v3778
        %v3785 = vshll.u32 %v3784, 16
        %v3786 = vadd.s32 %v3785, %v3783
        %v3787 = vsel %vm380, %v2035, 2147483647
        %v3788 = vand.u32 %v3787, 65535
        %v3789 = vshra.s32 %v3787, 16
        %v3790 = vcvt.s32.f32 %v3788
        %v3791 = vcvt.s32.f32 %v3789
        %3792 = vmin.xlane.f32.xlu0 %v3791
        %v3793 = vpop.xlane.xlu0 %3792
        %vm3794 = vcmp.eq.f32.partialorder %v3791, %v3793
        %v3795 = vsel %vm3794, %v3790, inf
        %3796 = vmin.xlane.f32.xlu0 %v3795
        %v3797 = vpop.xlane.xlu0 %3796
        %v3798 = vcvt.f32.s32 %v3797
        %v3799 = vcvt.f32.s32 %v3793
        %v3800 = vshll.u32 %v3799, 16
        %v3801 = vadd.s32 %v3800, %v3798
        %v3802 = vsel %vm380, %v2036, 2147483647
        %v3803 = vand.u32 %v3802, 65535
        %v3804 = vshra.s32 %v3802, 16
        %v3805 = vcvt.s32.f32 %v3803
        %v3806 = vcvt.s32.f32 %v3804
        %3807 = vmin.xlane.f32.xlu0 %v3806
        %v3808 = vpop.xlane.xlu0 %3807
        %vm3809 = vcmp.eq.f32.partialorder %v3806, %v3808
        %v3810 = vsel %vm3809, %v3805, inf
        %3811 = vmin.xlane.f32.xlu0 %v3810
        %v3812 = vpop.xlane.xlu0 %3811
        %v3813 = vcvt.f32.s32 %v3812
        %v3814 = vcvt.f32.s32 %v3808
        %v3815 = vshll.u32 %v3814, 16
        %v3816 = vadd.s32 %v3815, %v3813
        %v3817 = vsel %vm380, %v2037, 2147483647
        %v3818 = vand.u32 %v3817, 65535
        %v3819 = vshra.s32 %v3817, 16
        %v3820 = vcvt.s32.f32 %v3818
        %v3821 = vcvt.s32.f32 %v3819
        %3822 = vmin.xlane.f32.xlu0 %v3821
        %v3823 = vpop.xlane.xlu0 %3822
        %vm3824 = vcmp.eq.f32.partialorder %v3821, %v3823
        %v3825 = vsel %vm3824, %v3820, inf
        %3826 = vmin.xlane.f32.xlu0 %v3825
        %v3827 = vpop.xlane.xlu0 %3826
        %v3828 = vcvt.f32.s32 %v3827
        %v3829 = vcvt.f32.s32 %v3823
        %v3830 = vshll.u32 %v3829, 16
        %v3831 = vadd.s32 %v3830, %v3828
        %v3832 = vsel %vm380, %v2038, 2147483647
        %v3833 = vand.u32 %v3832, 65535
        %v3834 = vshra.s32 %v3832, 16
        %v3835 = vcvt.s32.f32 %v3833
        %v3836 = vcvt.s32.f32 %v3834
        %3837 = vmin.xlane.f32.xlu0 %v3836
        %v3838 = vpop.xlane.xlu0 %3837
        %vm3839 = vcmp.eq.f32.partialorder %v3836, %v3838
        %v3840 = vsel %vm3839, %v3835, inf
        %3841 = vmin.xlane.f32.xlu0 %v3840
        %v3842 = vpop.xlane.xlu0 %3841
        %v3843 = vcvt.f32.s32 %v3842
        %v3844 = vcvt.f32.s32 %v3838
        %v3845 = vshll.u32 %v3844, 16
        %v3846 = vadd.s32 %v3845, %v3843
        %v3847 = vsel %vm380, %v2039, 2147483647
        %v3848 = vand.u32 %v3847, 65535
        %v3849 = vshra.s32 %v3847, 16
        %v3850 = vcvt.s32.f32 %v3848
        %v3851 = vcvt.s32.f32 %v3849
        %3852 = vmin.xlane.f32.xlu0 %v3851
        %v3853 = vpop.xlane.xlu0 %3852
        %vm3854 = vcmp.eq.f32.partialorder %v3851, %v3853
        %v3855 = vsel %vm3854, %v3850, inf
        %3856 = vmin.xlane.f32.xlu0 %v3855
        %v3857 = vpop.xlane.xlu0 %3856
        %v3858 = vcvt.f32.s32 %v3857
        %v3859 = vcvt.f32.s32 %v3853
        %v3860 = vshll.u32 %v3859, 16
        %v3861 = vadd.s32 %v3860, %v3858
        %v3862 = vsel %vm380, %v2040, 2147483647
        %v3863 = vand.u32 %v3862, 65535
        %v3864 = vshra.s32 %v3862, 16
        %v3865 = vcvt.s32.f32 %v3863
        %v3866 = vcvt.s32.f32 %v3864
        %3867 = vmin.xlane.f32.xlu0 %v3866
        %v3868 = vpop.xlane.xlu0 %3867
        %vm3869 = vcmp.eq.f32.partialorder %v3866, %v3868
        %v3870 = vsel %vm3869, %v3865, inf
        %3871 = vmin.xlane.f32.xlu0 %v3870
        %v3872 = vpop.xlane.xlu0 %3871
        %v3873 = vcvt.f32.s32 %v3872
        %v3874 = vcvt.f32.s32 %v3868
        %v3875 = vshll.u32 %v3874, 16
        %v3876 = vadd.s32 %v3875, %v3873
        %v3877 = vsel %vm380, %v2041, 2147483647
        %v3878 = vand.u32 %v3877, 65535
        %v3879 = vshra.s32 %v3877, 16
        %v3880 = vcvt.s32.f32 %v3878
        %v3881 = vcvt.s32.f32 %v3879
        %3882 = vmin.xlane.f32.xlu0 %v3881
        %v3883 = vpop.xlane.xlu0 %3882
        %vm3884 = vcmp.eq.f32.partialorder %v3881, %v3883
        %v3885 = vsel %vm3884, %v3880, inf
        %3886 = vmin.xlane.f32.xlu0 %v3885
        %v3887 = vpop.xlane.xlu0 %3886
        %v3888 = vcvt.f32.s32 %v3887
        %v3889 = vcvt.f32.s32 %v3883
        %v3890 = vshll.u32 %v3889, 16
        %v3891 = vadd.s32 %v3890, %v3888
        %v3892 = vsel %vm380, %v2042, 2147483647
        %v3893 = vand.u32 %v3892, 65535
        %v3894 = vshra.s32 %v3892, 16
        %v3895 = vcvt.s32.f32 %v3893
        %v3896 = vcvt.s32.f32 %v3894
        %3897 = vmin.xlane.f32.xlu0 %v3896
        %v3898 = vpop.xlane.xlu0 %3897
        %vm3899 = vcmp.eq.f32.partialorder %v3896, %v3898
        %v3900 = vsel %vm3899, %v3895, inf
        %3901 = vmin.xlane.f32.xlu0 %v3900
        %v3902 = vpop.xlane.xlu0 %3901
        %v3903 = vcvt.f32.s32 %v3902
        %v3904 = vcvt.f32.s32 %v3898
        %v3905 = vshll.u32 %v3904, 16
        %v3906 = vadd.s32 %v3905, %v3903
        %v3907 = vsel %vm380, %v2043, 2147483647
        %v3908 = vand.u32 %v3907, 65535
        %v3909 = vshra.s32 %v3907, 16
        %v3910 = vcvt.s32.f32 %v3908
        %v3911 = vcvt.s32.f32 %v3909
        %3912 = vmin.xlane.f32.xlu0 %v3911
        %v3913 = vpop.xlane.xlu0 %3912
        %vm3914 = vcmp.eq.f32.partialorder %v3911, %v3913
        %v3915 = vsel %vm3914, %v3910, inf
        %3916 = vmin.xlane.f32.xlu0 %v3915
        %v3917 = vpop.xlane.xlu0 %3916
        %v3918 = vcvt.f32.s32 %v3917
        %v3919 = vcvt.f32.s32 %v3913
        %v3920 = vshll.u32 %v3919, 16
        %v3921 = vadd.s32 %v3920, %v3918
        %v3922 = vsel %vm380, %v2044, 2147483647
        %v3923 = vand.u32 %v3922, 65535
        %v3924 = vshra.s32 %v3922, 16
        %v3925 = vcvt.s32.f32 %v3923
        %v3926 = vcvt.s32.f32 %v3924
        %3927 = vmin.xlane.f32.xlu0 %v3926
        %v3928 = vpop.xlane.xlu0 %3927
        %vm3929 = vcmp.eq.f32.partialorder %v3926, %v3928
        %v3930 = vsel %vm3929, %v3925, inf
        %3931 = vmin.xlane.f32.xlu0 %v3930
        %v3932 = vpop.xlane.xlu0 %3931
        %v3933 = vcvt.f32.s32 %v3932
        %v3934 = vcvt.f32.s32 %v3928
        %v3935 = vshll.u32 %v3934, 16
        %v3936 = vadd.s32 %v3935, %v3933
        %v3937 = vsel %vm380, %v2045, 2147483647
        %v3938 = vand.u32 %v3937, 65535
        %v3939 = vshra.s32 %v3937, 16
        %v3940 = vcvt.s32.f32 %v3938
        %v3941 = vcvt.s32.f32 %v3939
        %3942 = vmin.xlane.f32.xlu0 %v3941
        %v3943 = vpop.xlane.xlu0 %3942
        %vm3944 = vcmp.eq.f32.partialorder %v3941, %v3943
        %v3945 = vsel %vm3944, %v3940, inf
        %3946 = vmin.xlane.f32.xlu0 %v3945
        %v3947 = vpop.xlane.xlu0 %3946
        %v3948 = vcvt.f32.s32 %v3947
        %v3949 = vcvt.f32.s32 %v3943
        %v3950 = vshll.u32 %v3949, 16
        %v3951 = vadd.s32 %v3950, %v3948
        %v3952 = vsel %vm380, %v2046, 2147483647
        %v3953 = vand.u32 %v3952, 65535
        %v3954 = vshra.s32 %v3952, 16
        %v3955 = vcvt.s32.f32 %v3953
        %v3956 = vcvt.s32.f32 %v3954
        %3957 = vmin.xlane.f32.xlu0 %v3956
        %v3958 = vpop.xlane.xlu0 %3957
        %vm3959 = vcmp.eq.f32.partialorder %v3956, %v3958
        %v3960 = vsel %vm3959, %v3955, inf
        %3961 = vmin.xlane.f32.xlu0 %v3960
        %v3962 = vpop.xlane.xlu0 %3961
        %v3963 = vcvt.f32.s32 %v3962
        %v3964 = vcvt.f32.s32 %v3958
        %v3965 = vshll.u32 %v3964, 16
        %v3966 = vadd.s32 %v3965, %v3963
        %v3967 = vld [vmem:[%s242] sm:$0xff]
        %v3968 = vld [vmem:[%s242 + $0x8] sm:$0xff]
        %v3969 = vld [vmem:[%s242 + $0x10] sm:$0xff]
        %v3970 = vld [vmem:[%s242 + $0x18] sm:$0xff]
        %v3971 = vld [vmem:[%s242 + $0x20] sm:$0xff]
        %v3972 = vld [vmem:[%s242 + $0x28] sm:$0xff]
        %v3973 = vld [vmem:[%s242 + $0x30] sm:$0xff]
        %v3974 = vld [vmem:[%s242 + $0x38] sm:$0xff]
        %v3975 = vld [vmem:[%s242 + $0x40] sm:$0xff]
        %v3976 = vld [vmem:[%s242 + $0x48] sm:$0xff]
        %v3977 = vld [vmem:[%s242 + $0x50] sm:$0xff]
        %v3978 = vld [vmem:[%s242 + $0x58] sm:$0xff]
        %v3979 = vld [vmem:[%s242 + $0x60] sm:$0xff]
        %v3980 = vld [vmem:[%s242 + $0x68] sm:$0xff]
        %v3981 = vld [vmem:[%s242 + $0x70] sm:$0xff]
        %v3982 = vld [vmem:[%s242 + $0x78] sm:$0xff]
        %v3983 = vld [vmem:[%s242 + $0x80] sm:$0xff]
        %v3984 = vld [vmem:[%s242 + $0x88] sm:$0xff]
        %v3985 = vld [vmem:[%s242 + $0x90] sm:$0xff]
        %v3986 = vld [vmem:[%s242 + $0x98] sm:$0xff]
        %v3987 = vld [vmem:[%s242 + $0xa0] sm:$0xff]
        %v3988 = vld [vmem:[%s242 + $0xa8] sm:$0xff]
        %v3989 = vld [vmem:[%s242 + $0xb0] sm:$0xff]
        %v3990 = vld [vmem:[%s242 + $0xb8] sm:$0xff]
        %v3991 = vld [vmem:[%s242 + $0xc0] sm:$0xff]
        %v3992 = vld [vmem:[%s242 + $0xc8] sm:$0xff]
        %v3993 = vld [vmem:[%s242 + $0xd0] sm:$0xff]
        %v3994 = vld [vmem:[%s242 + $0xd8] sm:$0xff]
        %v3995 = vld [vmem:[%s242 + $0xe0] sm:$0xff]
        %v3996 = vld [vmem:[%s242 + $0xe8] sm:$0xff]
        %v3997 = vld [vmem:[%s242 + $0xf0] sm:$0xff]
        %v3998 = vld [vmem:[%s242 + $0xf8] sm:$0xff]
        %v3999 = vld [vmem:[%s242 + $0x100] sm:$0xff]
        %v4000 = vld [vmem:[%s242 + $0x108] sm:$0xff]
        %v4001 = vld [vmem:[%s242 + $0x110] sm:$0xff]
        %v4002 = vld [vmem:[%s242 + $0x118] sm:$0xff]
        %v4003 = vld [vmem:[%s242 + $0x120] sm:$0xff]
        %v4004 = vld [vmem:[%s242 + $0x128] sm:$0xff]
        %v4005 = vld [vmem:[%s242 + $0x130] sm:$0xff]
        %v4006 = vld [vmem:[%s242 + $0x138] sm:$0xff]
        %v4007 = vld [vmem:[%s242 + $0x140] sm:$0xff]
        %v4008 = vld [vmem:[%s242 + $0x148] sm:$0xff]
        %v4009 = vld [vmem:[%s242 + $0x150] sm:$0xff]
        %v4010 = vld [vmem:[%s242 + $0x158] sm:$0xff]
        %v4011 = vld [vmem:[%s242 + $0x160] sm:$0xff]
        %v4012 = vld [vmem:[%s242 + $0x168] sm:$0xff]
        %v4013 = vld [vmem:[%s242 + $0x170] sm:$0xff]
        %v4014 = vld [vmem:[%s242 + $0x178] sm:$0xff]
        %v4015 = vld [vmem:[%s242 + $0x180] sm:$0xff]
        %v4016 = vld [vmem:[%s242 + $0x188] sm:$0xff]
        %v4017 = vld [vmem:[%s242 + $0x190] sm:$0xff]
        %v4018 = vld [vmem:[%s242 + $0x198] sm:$0xff]
        %v4019 = vld [vmem:[%s242 + $0x1a0] sm:$0xff]
        %v4020 = vld [vmem:[%s242 + $0x1a8] sm:$0xff]
        %v4021 = vld [vmem:[%s242 + $0x1b0] sm:$0xff]
        %v4022 = vld [vmem:[%s242 + $0x1b8] sm:$0xff]
        %v4023 = vld [vmem:[%s242 + $0x1c0] sm:$0xff]
        %v4024 = vld [vmem:[%s242 + $0x1c8] sm:$0xff]
        %v4025 = vld [vmem:[%s242 + $0x1d0] sm:$0xff]
        %v4026 = vld [vmem:[%s242 + $0x1d8] sm:$0xff]
        %v4027 = vld [vmem:[%s242 + $0x1e0] sm:$0xff]
        %v4028 = vld [vmem:[%s242 + $0x1e8] sm:$0xff]
        %v4029 = vld [vmem:[%s242 + $0x1f0] sm:$0xff]
        %v4030 = vld [vmem:[%s242 + $0x1f8] sm:$0xff]
        %v4031 = vld [vmem:[%s242 + $0x200] sm:$0xff]
        %v4032 = vld [vmem:[%s242 + $0x208] sm:$0xff]
        %v4033 = vld [vmem:[%s242 + $0x210] sm:$0xff]
        %v4034 = vld [vmem:[%s242 + $0x218] sm:$0xff]
        %v4035 = vld [vmem:[%s242 + $0x220] sm:$0xff]
        %v4036 = vld [vmem:[%s242 + $0x228] sm:$0xff]
        %v4037 = vld [vmem:[%s242 + $0x230] sm:$0xff]
        %v4038 = vld [vmem:[%s242 + $0x238] sm:$0xff]
        %v4039 = vld [vmem:[%s242 + $0x240] sm:$0xff]
        %v4040 = vld [vmem:[%s242 + $0x248] sm:$0xff]
        %v4041 = vld [vmem:[%s242 + $0x250] sm:$0xff]
        %v4042 = vld [vmem:[%s242 + $0x258] sm:$0xff]
        %v4043 = vld [vmem:[%s242 + $0x260] sm:$0xff]
        %v4044 = vld [vmem:[%s242 + $0x268] sm:$0xff]
        %v4045 = vld [vmem:[%s242 + $0x270] sm:$0xff]
        %v4046 = vld [vmem:[%s242 + $0x278] sm:$0xff]
        %v4047 = vld [vmem:[%s242 + $0x280] sm:$0xff]
        %v4048 = vld [vmem:[%s242 + $0x288] sm:$0xff]
        %v4049 = vld [vmem:[%s242 + $0x290] sm:$0xff]
        %v4050 = vld [vmem:[%s242 + $0x298] sm:$0xff]
        %v4051 = vld [vmem:[%s242 + $0x2a0] sm:$0xff]
        %v4052 = vld [vmem:[%s242 + $0x2a8] sm:$0xff]
        %v4053 = vld [vmem:[%s242 + $0x2b0] sm:$0xff]
        %v4054 = vld [vmem:[%s242 + $0x2b8] sm:$0xff]
        %v4055 = vld [vmem:[%s242 + $0x2c0] sm:$0xff]
        %v4056 = vld [vmem:[%s242 + $0x2c8] sm:$0xff]
        %v4057 = vld [vmem:[%s242 + $0x2d0] sm:$0xff]
        %v4058 = vld [vmem:[%s242 + $0x2d8] sm:$0xff]
        %v4059 = vld [vmem:[%s242 + $0x2e0] sm:$0xff]
        %v4060 = vld [vmem:[%s242 + $0x2e8] sm:$0xff]
        %v4061 = vld [vmem:[%s242 + $0x2f0] sm:$0xff]
        %v4062 = vld [vmem:[%s242 + $0x2f8] sm:$0xff]
        %v4063 = vld [vmem:[%s242 + $0x300] sm:$0xff]
        %v4064 = vld [vmem:[%s242 + $0x308] sm:$0xff]
        %v4065 = vld [vmem:[%s242 + $0x310] sm:$0xff]
        %v4066 = vld [vmem:[%s242 + $0x318] sm:$0xff]
        %v4067 = vld [vmem:[%s242 + $0x320] sm:$0xff]
        %v4068 = vld [vmem:[%s242 + $0x328] sm:$0xff]
        %v4069 = vld [vmem:[%s242 + $0x330] sm:$0xff]
        %v4070 = vld [vmem:[%s242 + $0x338] sm:$0xff]
        %v4071 = vld [vmem:[%s242 + $0x340] sm:$0xff]
        %v4072 = vld [vmem:[%s242 + $0x348] sm:$0xff]
        %v4073 = vld [vmem:[%s242 + $0x350] sm:$0xff]
        %v4074 = vld [vmem:[%s242 + $0x358] sm:$0xff]
        %v4075 = vld [vmem:[%s242 + $0x360] sm:$0xff]
        %v4076 = vld [vmem:[%s242 + $0x368] sm:$0xff]
        %v4077 = vld [vmem:[%s242 + $0x370] sm:$0xff]
        %v4078 = vld [vmem:[%s242 + $0x378] sm:$0xff]
        %v4079 = vld [vmem:[%s242 + $0x380] sm:$0xff]
        %v4080 = vld [vmem:[%s242 + $0x388] sm:$0xff]
        %v4081 = vld [vmem:[%s242 + $0x390] sm:$0xff]
        %v4082 = vld [vmem:[%s242 + $0x398] sm:$0xff]
        %v4083 = vld [vmem:[%s242 + $0x3a0] sm:$0xff]
        %v4084 = vld [vmem:[%s242 + $0x3a8] sm:$0xff]
        %v4085 = vld [vmem:[%s242 + $0x3b0] sm:$0xff]
        %v4086 = vld [vmem:[%s242 + $0x3b8] sm:$0xff]
        %v4087 = vld [vmem:[%s242 + $0x3c0] sm:$0xff]
        %v4088 = vld [vmem:[%s242 + $0x3c8] sm:$0xff]
        %v4089 = vld [vmem:[%s242 + $0x3d0] sm:$0xff]
        %v4090 = vld [vmem:[%s242 + $0x3d8] sm:$0xff]
        %v4091 = vld [vmem:[%s242 + $0x3e0] sm:$0xff]
        %v4092 = vld [vmem:[%s242 + $0x3e8] sm:$0xff]
        %v4093 = vld [vmem:[%s242 + $0x3f0] sm:$0xff]
        %v4094 = vld [vmem:[%s242 + $0x3f8] sm:$0xff]
        %vm4095 = vcmp.eq.s32.totalorder %v2061, %v3967
        %vm4096 = vcmp.eq.s32.totalorder %v2076, %v3968
        %vm4097 = vcmp.eq.s32.totalorder %v2091, %v3969
        %vm4098 = vcmp.eq.s32.totalorder %v2106, %v3970
        %vm4099 = vcmp.eq.s32.totalorder %v2121, %v3971
        %vm4100 = vcmp.eq.s32.totalorder %v2136, %v3972
        %vm4101 = vcmp.eq.s32.totalorder %v2151, %v3973
        %vm4102 = vcmp.eq.s32.totalorder %v2166, %v3974
        %vm4103 = vcmp.eq.s32.totalorder %v2181, %v3975
        %vm4104 = vcmp.eq.s32.totalorder %v2196, %v3976
        %vm4105 = vcmp.eq.s32.totalorder %v2211, %v3977
        %vm4106 = vcmp.eq.s32.totalorder %v2226, %v3978
        %vm4107 = vcmp.eq.s32.totalorder %v2241, %v3979
        %vm4108 = vcmp.eq.s32.totalorder %v2256, %v3980
        %vm4109 = vcmp.eq.s32.totalorder %v2271, %v3981
        %vm4110 = vcmp.eq.s32.totalorder %v2286, %v3982
        %vm4111 = vcmp.eq.s32.totalorder %v2301, %v3983
        %vm4112 = vcmp.eq.s32.totalorder %v2316, %v3984
        %vm4113 = vcmp.eq.s32.totalorder %v2331, %v3985
        %vm4114 = vcmp.eq.s32.totalorder %v2346, %v3986
        %vm4115 = vcmp.eq.s32.totalorder %v2361, %v3987
        %vm4116 = vcmp.eq.s32.totalorder %v2376, %v3988
        %vm4117 = vcmp.eq.s32.totalorder %v2391, %v3989
        %vm4118 = vcmp.eq.s32.totalorder %v2406, %v3990
        %vm4119 = vcmp.eq.s32.totalorder %v2421, %v3991
        %vm4120 = vcmp.eq.s32.totalorder %v2436, %v3992
        %vm4121 = vcmp.eq.s32.totalorder %v2451, %v3993
        %vm4122 = vcmp.eq.s32.totalorder %v2466, %v3994
        %vm4123 = vcmp.eq.s32.totalorder %v2481, %v3995
        %vm4124 = vcmp.eq.s32.totalorder %v2496, %v3996
        %vm4125 = vcmp.eq.s32.totalorder %v2511, %v3997
        %vm4126 = vcmp.eq.s32.totalorder %v2526, %v3998
        %vm4127 = vcmp.eq.s32.totalorder %v2541, %v3999
        %vm4128 = vcmp.eq.s32.totalorder %v2556, %v4000
        %vm4129 = vcmp.eq.s32.totalorder %v2571, %v4001
        %vm4130 = vcmp.eq.s32.totalorder %v2586, %v4002
        %vm4131 = vcmp.eq.s32.totalorder %v2601, %v4003
        %vm4132 = vcmp.eq.s32.totalorder %v2616, %v4004
        %vm4133 = vcmp.eq.s32.totalorder %v2631, %v4005
        %vm4134 = vcmp.eq.s32.totalorder %v2646, %v4006
        %vm4135 = vcmp.eq.s32.totalorder %v2661, %v4007
        %vm4136 = vcmp.eq.s32.totalorder %v2676, %v4008
        %vm4137 = vcmp.eq.s32.totalorder %v2691, %v4009
        %vm4138 = vcmp.eq.s32.totalorder %v2706, %v4010
        %vm4139 = vcmp.eq.s32.totalorder %v2721, %v4011
        %vm4140 = vcmp.eq.s32.totalorder %v2736, %v4012
        %vm4141 = vcmp.eq.s32.totalorder %v2751, %v4013
        %vm4142 = vcmp.eq.s32.totalorder %v2766, %v4014
        %vm4143 = vcmp.eq.s32.totalorder %v2781, %v4015
        %vm4144 = vcmp.eq.s32.totalorder %v2796, %v4016
        %vm4145 = vcmp.eq.s32.totalorder %v2811, %v4017
        %vm4146 = vcmp.eq.s32.totalorder %v2826, %v4018
        %vm4147 = vcmp.eq.s32.totalorder %v2841, %v4019
        %vm4148 = vcmp.eq.s32.totalorder %v2856, %v4020
        %vm4149 = vcmp.eq.s32.totalorder %v2871, %v4021
        %vm4150 = vcmp.eq.s32.totalorder %v2886, %v4022
        %vm4151 = vcmp.eq.s32.totalorder %v2901, %v4023
        %vm4152 = vcmp.eq.s32.totalorder %v2916, %v4024
        %vm4153 = vcmp.eq.s32.totalorder %v2931, %v4025
        %vm4154 = vcmp.eq.s32.totalorder %v2946, %v4026
        %vm4155 = vcmp.eq.s32.totalorder %v2961, %v4027
        %vm4156 = vcmp.eq.s32.totalorder %v2976, %v4028
        %vm4157 = vcmp.eq.s32.totalorder %v2991, %v4029
        %vm4158 = vcmp.eq.s32.totalorder %v3006, %v4030
        %vm4159 = vcmp.eq.s32.totalorder %v3021, %v4031
        %vm4160 = vcmp.eq.s32.totalorder %v3036, %v4032
        %vm4161 = vcmp.eq.s32.totalorder %v3051, %v4033
        %vm4162 = vcmp.eq.s32.totalorder %v3066, %v4034
        %vm4163 = vcmp.eq.s32.totalorder %v3081, %v4035
        %vm4164 = vcmp.eq.s32.totalorder %v3096, %v4036
        %vm4165 = vcmp.eq.s32.totalorder %v3111, %v4037
        %vm4166 = vcmp.eq.s32.totalorder %v3126, %v4038
        %vm4167 = vcmp.eq.s32.totalorder %v3141, %v4039
        %vm4168 = vcmp.eq.s32.totalorder %v3156, %v4040
        %vm4169 = vcmp.eq.s32.totalorder %v3171, %v4041
        %vm4170 = vcmp.eq.s32.totalorder %v3186, %v4042
        %vm4171 = vcmp.eq.s32.totalorder %v3201, %v4043
        %vm4172 = vcmp.eq.s32.totalorder %v3216, %v4044
        %vm4173 = vcmp.eq.s32.totalorder %v3231, %v4045
        %vm4174 = vcmp.eq.s32.totalorder %v3246, %v4046
        %vm4175 = vcmp.eq.s32.totalorder %v3261, %v4047
        %vm4176 = vcmp.eq.s32.totalorder %v3276, %v4048
        %vm4177 = vcmp.eq.s32.totalorder %v3291, %v4049
        %vm4178 = vcmp.eq.s32.totalorder %v3306, %v4050
        %vm4179 = vcmp.eq.s32.totalorder %v3321, %v4051
        %vm4180 = vcmp.eq.s32.totalorder %v3336, %v4052
        %vm4181 = vcmp.eq.s32.totalorder %v3351, %v4053
        %vm4182 = vcmp.eq.s32.totalorder %v3366, %v4054
        %vm4183 = vcmp.eq.s32.totalorder %v3381, %v4055
        %vm4184 = vcmp.eq.s32.totalorder %v3396, %v4056
        %vm4185 = vcmp.eq.s32.totalorder %v3411, %v4057
        %vm4186 = vcmp.eq.s32.totalorder %v3426, %v4058
        %vm4187 = vcmp.eq.s32.totalorder %v3441, %v4059
        %vm4188 = vcmp.eq.s32.totalorder %v3456, %v4060
        %vm4189 = vcmp.eq.s32.totalorder %v3471, %v4061
        %vm4190 = vcmp.eq.s32.totalorder %v3486, %v4062
        %vm4191 = vcmp.eq.s32.totalorder %v3501, %v4063
        %vm4192 = vcmp.eq.s32.totalorder %v3516, %v4064
        %vm4193 = vcmp.eq.s32.totalorder %v3531, %v4065
        %vm4194 = vcmp.eq.s32.totalorder %v3546, %v4066
        %vm4195 = vcmp.eq.s32.totalorder %v3561, %v4067
        %vm4196 = vcmp.eq.s32.totalorder %v3576, %v4068
        %vm4197 = vcmp.eq.s32.totalorder %v3591, %v4069
        %vm4198 = vcmp.eq.s32.totalorder %v3606, %v4070
        %vm4199 = vcmp.eq.s32.totalorder %v3621, %v4071
        %vm4200 = vcmp.eq.s32.totalorder %v3636, %v4072
        %vm4201 = vcmp.eq.s32.totalorder %v3651, %v4073
        %vm4202 = vcmp.eq.s32.totalorder %v3666, %v4074
        %vm4203 = vcmp.eq.s32.totalorder %v3681, %v4075
        %vm4204 = vcmp.eq.s32.totalorder %v3696, %v4076
        %vm4205 = vcmp.eq.s32.totalorder %v3711, %v4077
        %vm4206 = vcmp.eq.s32.totalorder %v3726, %v4078
        %vm4207 = vcmp.eq.s32.totalorder %v3741, %v4079
        %vm4208 = vcmp.eq.s32.totalorder %v3756, %v4080
        %vm4209 = vcmp.eq.s32.totalorder %v3771, %v4081
        %vm4210 = vcmp.eq.s32.totalorder %v3786, %v4082
        %vm4211 = vcmp.eq.s32.totalorder %v3801, %v4083
        %vm4212 = vcmp.eq.s32.totalorder %v3816, %v4084
        %vm4213 = vcmp.eq.s32.totalorder %v3831, %v4085
        %vm4214 = vcmp.eq.s32.totalorder %v3846, %v4086
        %vm4215 = vcmp.eq.s32.totalorder %v3861, %v4087
        %vm4216 = vcmp.eq.s32.totalorder %v3876, %v4088
        %vm4217 = vcmp.eq.s32.totalorder %v3891, %v4089
        %vm4218 = vcmp.eq.s32.totalorder %v3906, %v4090
        %vm4219 = vcmp.eq.s32.totalorder %v3921, %v4091
        %vm4220 = vcmp.eq.s32.totalorder %v3936, %v4092
        %vm4221 = vcmp.eq.s32.totalorder %v3951, %v4093
        %vm4222 = vcmp.eq.s32.totalorder %v3966, %v4094
        %v4223 = vsel %vm4095, 1, 0
        %v4224 = vsel %vm4096, 1, 0
        %v4225 = vsel %vm4097, 1, 0
        %v4226 = vsel %vm4098, 1, 0
        %v4227 = vsel %vm4099, 1, 0
        %v4228 = vsel %vm4100, 1, 0
        %v4229 = vsel %vm4101, 1, 0
        %v4230 = vsel %vm4102, 1, 0
        %v4231 = vsel %vm4103, 1, 0
        %v4232 = vsel %vm4104, 1, 0
        %v4233 = vsel %vm4105, 1, 0
        %v4234 = vsel %vm4106, 1, 0
        %v4235 = vsel %vm4107, 1, 0
        %v4236 = vsel %vm4108, 1, 0
        %v4237 = vsel %vm4109, 1, 0
        %v4238 = vsel %vm4110, 1, 0
        %v4239 = vsel %vm4111, 1, 0
        %v4240 = vsel %vm4112, 1, 0
        %v4241 = vsel %vm4113, 1, 0
        %v4242 = vsel %vm4114, 1, 0
        %v4243 = vsel %vm4115, 1, 0
        %v4244 = vsel %vm4116, 1, 0
        %v4245 = vsel %vm4117, 1, 0
        %v4246 = vsel %vm4118, 1, 0
        %v4247 = vsel %vm4119, 1, 0
        %v4248 = vsel %vm4120, 1, 0
        %v4249 = vsel %vm4121, 1, 0
        %v4250 = vsel %vm4122, 1, 0
        %v4251 = vsel %vm4123, 1, 0
        %v4252 = vsel %vm4124, 1, 0
        %v4253 = vsel %vm4125, 1, 0
        %v4254 = vsel %vm4126, 1, 0
        %v4255 = vsel %vm4127, 1, 0
        %v4256 = vsel %vm4128, 1, 0
        %v4257 = vsel %vm4129, 1, 0
        %v4258 = vsel %vm4130, 1, 0
        %v4259 = vsel %vm4131, 1, 0
        %v4260 = vsel %vm4132, 1, 0
        %v4261 = vsel %vm4133, 1, 0
        %v4262 = vsel %vm4134, 1, 0
        %v4263 = vsel %vm4135, 1, 0
        %v4264 = vsel %vm4136, 1, 0
        %v4265 = vsel %vm4137, 1, 0
        %v4266 = vsel %vm4138, 1, 0
        %v4267 = vsel %vm4139, 1, 0
        %v4268 = vsel %vm4140, 1, 0
        %v4269 = vsel %vm4141, 1, 0
        %v4270 = vsel %vm4142, 1, 0
        %v4271 = vsel %vm4143, 1, 0
        %v4272 = vsel %vm4144, 1, 0
        %v4273 = vsel %vm4145, 1, 0
        %v4274 = vsel %vm4146, 1, 0
        %v4275 = vsel %vm4147, 1, 0
        %v4276 = vsel %vm4148, 1, 0
        %v4277 = vsel %vm4149, 1, 0
        %v4278 = vsel %vm4150, 1, 0
        %v4279 = vsel %vm4151, 1, 0
        %v4280 = vsel %vm4152, 1, 0
        %v4281 = vsel %vm4153, 1, 0
        %v4282 = vsel %vm4154, 1, 0
        %v4283 = vsel %vm4155, 1, 0
        %v4284 = vsel %vm4156, 1, 0
        %v4285 = vsel %vm4157, 1, 0
        %v4286 = vsel %vm4158, 1, 0
        %v4287 = vsel %vm4159, 1, 0
        %v4288 = vsel %vm4160, 1, 0
        %v4289 = vsel %vm4161, 1, 0
        %v4290 = vsel %vm4162, 1, 0
        %v4291 = vsel %vm4163, 1, 0
        %v4292 = vsel %vm4164, 1, 0
        %v4293 = vsel %vm4165, 1, 0
        %v4294 = vsel %vm4166, 1, 0
        %v4295 = vsel %vm4167, 1, 0
        %v4296 = vsel %vm4168, 1, 0
        %v4297 = vsel %vm4169, 1, 0
        %v4298 = vsel %vm4170, 1, 0
        %v4299 = vsel %vm4171, 1, 0
        %v4300 = vsel %vm4172, 1, 0
        %v4301 = vsel %vm4173, 1, 0
        %v4302 = vsel %vm4174, 1, 0
        %v4303 = vsel %vm4175, 1, 0
        %v4304 = vsel %vm4176, 1, 0
        %v4305 = vsel %vm4177, 1, 0
        %v4306 = vsel %vm4178, 1, 0
        %v4307 = vsel %vm4179, 1, 0
        %v4308 = vsel %vm4180, 1, 0
        %v4309 = vsel %vm4181, 1, 0
        %v4310 = vsel %vm4182, 1, 0
        %v4311 = vsel %vm4183, 1, 0
        %v4312 = vsel %vm4184, 1, 0
        %v4313 = vsel %vm4185, 1, 0
        %v4314 = vsel %vm4186, 1, 0
        %v4315 = vsel %vm4187, 1, 0
        %v4316 = vsel %vm4188, 1, 0
        %v4317 = vsel %vm4189, 1, 0
        %v4318 = vsel %vm4190, 1, 0
        %v4319 = vsel %vm4191, 1, 0
        %v4320 = vsel %vm4192, 1, 0
        %v4321 = vsel %vm4193, 1, 0
        %v4322 = vsel %vm4194, 1, 0
        %v4323 = vsel %vm4195, 1, 0
        %v4324 = vsel %vm4196, 1, 0
        %v4325 = vsel %vm4197, 1, 0
        %v4326 = vsel %vm4198, 1, 0
        %v4327 = vsel %vm4199, 1, 0
        %v4328 = vsel %vm4200, 1, 0
        %v4329 = vsel %vm4201, 1, 0
        %v4330 = vsel %vm4202, 1, 0
        %v4331 = vsel %vm4203, 1, 0
        %v4332 = vsel %vm4204, 1, 0
        %v4333 = vsel %vm4205, 1, 0
        %v4334 = vsel %vm4206, 1, 0
        %v4335 = vsel %vm4207, 1, 0
        %v4336 = vsel %vm4208, 1, 0
        %v4337 = vsel %vm4209, 1, 0
        %v4338 = vsel %vm4210, 1, 0
        %v4339 = vsel %vm4211, 1, 0
        %v4340 = vsel %vm4212, 1, 0
        %v4341 = vsel %vm4213, 1, 0
        %v4342 = vsel %vm4214, 1, 0
        %v4343 = vsel %vm4215, 1, 0
        %v4344 = vsel %vm4216, 1, 0
        %v4345 = vsel %vm4217, 1, 0
        %v4346 = vsel %vm4218, 1, 0
        %v4347 = vsel %vm4219, 1, 0
        %v4348 = vsel %vm4220, 1, 0
        %v4349 = vsel %vm4221, 1, 0
        %v4350 = vsel %vm4222, 1, 0
        %v4351 = vcvt.s32.f32 %v4223
        %v4352 = vcvt.s32.f32 %v4224
        %v4353 = vcvt.s32.f32 %v4225
        %v4354 = vcvt.s32.f32 %v4226
        %v4355 = vcvt.s32.f32 %v4227
        %v4356 = vcvt.s32.f32 %v4228
        %v4357 = vcvt.s32.f32 %v4229
        %v4358 = vcvt.s32.f32 %v4230
        %v4359 = vcvt.s32.f32 %v4231
        %v4360 = vcvt.s32.f32 %v4232
        %v4361 = vcvt.s32.f32 %v4233
        %v4362 = vcvt.s32.f32 %v4234
        %v4363 = vcvt.s32.f32 %v4235
        %v4364 = vcvt.s32.f32 %v4236
        %v4365 = vcvt.s32.f32 %v4237
        %v4366 = vcvt.s32.f32 %v4238
        %v4367 = vcvt.s32.f32 %v4239
        %v4368 = vcvt.s32.f32 %v4240
        %v4369 = vcvt.s32.f32 %v4241
        %v4370 = vcvt.s32.f32 %v4242
        %v4371 = vcvt.s32.f32 %v4243
        %v4372 = vcvt.s32.f32 %v4244
        %v4373 = vcvt.s32.f32 %v4245
        %v4374 = vcvt.s32.f32 %v4246
        %v4375 = vcvt.s32.f32 %v4247
        %v4376 = vcvt.s32.f32 %v4248
        %v4377 = vcvt.s32.f32 %v4249
        %v4378 = vcvt.s32.f32 %v4250
        %v4379 = vcvt.s32.f32 %v4251
        %v4380 = vcvt.s32.f32 %v4252
        %v4381 = vcvt.s32.f32 %v4253
        %v4382 = vcvt.s32.f32 %v4254
        %v4383 = vcvt.s32.f32 %v4255
        %v4384 = vcvt.s32.f32 %v4256
        %v4385 = vcvt.s32.f32 %v4257
        %v4386 = vcvt.s32.f32 %v4258
        %v4387 = vcvt.s32.f32 %v4259
        %v4388 = vcvt.s32.f32 %v4260
        %v4389 = vcvt.s32.f32 %v4261
        %v4390 = vcvt.s32.f32 %v4262
        %v4391 = vcvt.s32.f32 %v4263
        %v4392 = vcvt.s32.f32 %v4264
        %v4393 = vcvt.s32.f32 %v4265
        %v4394 = vcvt.s32.f32 %v4266
        %v4395 = vcvt.s32.f32 %v4267
        %v4396 = vcvt.s32.f32 %v4268
        %v4397 = vcvt.s32.f32 %v4269
        %v4398 = vcvt.s32.f32 %v4270
        %v4399 = vcvt.s32.f32 %v4271
        %v4400 = vcvt.s32.f32 %v4272
        %v4401 = vcvt.s32.f32 %v4273
        %v4402 = vcvt.s32.f32 %v4274
        %v4403 = vcvt.s32.f32 %v4275
        %v4404 = vcvt.s32.f32 %v4276
        %v4405 = vcvt.s32.f32 %v4277
        %v4406 = vcvt.s32.f32 %v4278
        %v4407 = vcvt.s32.f32 %v4279
        %v4408 = vcvt.s32.f32 %v4280
        %v4409 = vcvt.s32.f32 %v4281
        %v4410 = vcvt.s32.f32 %v4282
        %v4411 = vcvt.s32.f32 %v4283
        %v4412 = vcvt.s32.f32 %v4284
        %v4413 = vcvt.s32.f32 %v4285
        %v4414 = vcvt.s32.f32 %v4286
        %v4415 = vcvt.s32.f32 %v4287
        %v4416 = vcvt.s32.f32 %v4288
        %v4417 = vcvt.s32.f32 %v4289
        %v4418 = vcvt.s32.f32 %v4290
        %v4419 = vcvt.s32.f32 %v4291
        %v4420 = vcvt.s32.f32 %v4292
        %v4421 = vcvt.s32.f32 %v4293
        %v4422 = vcvt.s32.f32 %v4294
        %v4423 = vcvt.s32.f32 %v4295
        %v4424 = vcvt.s32.f32 %v4296
        %v4425 = vcvt.s32.f32 %v4297
        %v4426 = vcvt.s32.f32 %v4298
        %v4427 = vcvt.s32.f32 %v4299
        %v4428 = vcvt.s32.f32 %v4300
        %v4429 = vcvt.s32.f32 %v4301
        %v4430 = vcvt.s32.f32 %v4302
        %v4431 = vcvt.s32.f32 %v4303
        %v4432 = vcvt.s32.f32 %v4304
        %v4433 = vcvt.s32.f32 %v4305
        %v4434 = vcvt.s32.f32 %v4306
        %v4435 = vcvt.s32.f32 %v4307
        %v4436 = vcvt.s32.f32 %v4308
        %v4437 = vcvt.s32.f32 %v4309
        %v4438 = vcvt.s32.f32 %v4310
        %v4439 = vcvt.s32.f32 %v4311
        %v4440 = vcvt.s32.f32 %v4312
        %v4441 = vcvt.s32.f32 %v4313
        %v4442 = vcvt.s32.f32 %v4314
        %v4443 = vcvt.s32.f32 %v4315
        %v4444 = vcvt.s32.f32 %v4316
        %v4445 = vcvt.s32.f32 %v4317
        %v4446 = vcvt.s32.f32 %v4318
        %v4447 = vcvt.s32.f32 %v4319
        %v4448 = vcvt.s32.f32 %v4320
        %v4449 = vcvt.s32.f32 %v4321
        %v4450 = vcvt.s32.f32 %v4322
        %v4451 = vcvt.s32.f32 %v4323
        %v4452 = vcvt.s32.f32 %v4324
        %v4453 = vcvt.s32.f32 %v4325
        %v4454 = vcvt.s32.f32 %v4326
        %v4455 = vcvt.s32.f32 %v4327
        %v4456 = vcvt.s32.f32 %v4328
        %v4457 = vcvt.s32.f32 %v4329
        %v4458 = vcvt.s32.f32 %v4330
        %v4459 = vcvt.s32.f32 %v4331
        %v4460 = vcvt.s32.f32 %v4332
        %v4461 = vcvt.s32.f32 %v4333
        %v4462 = vcvt.s32.f32 %v4334
        %v4463 = vcvt.s32.f32 %v4335
        %v4464 = vcvt.s32.f32 %v4336
        %v4465 = vcvt.s32.f32 %v4337
        %v4466 = vcvt.s32.f32 %v4338
        %v4467 = vcvt.s32.f32 %v4339
        %v4468 = vcvt.s32.f32 %v4340
        %v4469 = vcvt.s32.f32 %v4341
        %v4470 = vcvt.s32.f32 %v4342
        %v4471 = vcvt.s32.f32 %v4343
        %v4472 = vcvt.s32.f32 %v4344
        %v4473 = vcvt.s32.f32 %v4345
        %v4474 = vcvt.s32.f32 %v4346
        %v4475 = vcvt.s32.f32 %v4347
        %v4476 = vcvt.s32.f32 %v4348
        %v4477 = vcvt.s32.f32 %v4349
        %v4478 = vcvt.s32.f32 %v4350
        %s4479 = sadd.s32 %s21, %s22
        %s4480 = smul.u32 %s4479, 1024
        %v4481 = vlaneseq
        %v4482 = vshrl.u32 %v4481, 7
        %v4483 = vadd.s32 %v4482, 8
        %v4484 = vadd.s32 %v4482, 16
        %v4485 = vadd.s32 %v4482, 24
        %v4486 = vadd.s32 %v4482, 32
        %v4487 = vadd.s32 %v4482, 40
        %v4488 = vadd.s32 %v4482, 48
        %v4489 = vadd.s32 %v4482, 56
        %v4490 = vadd.s32 %v4482, 64
        %v4491 = vadd.s32 %v4482, 72
        %v4492 = vadd.s32 %v4482, 80
        %v4493 = vadd.s32 %v4482, 88
        %v4494 = vadd.s32 %v4482, 96
        %v4495 = vadd.s32 %v4482, 104
        %v4496 = vadd.s32 %v4482, 112
        %v4497 = vadd.s32 %v4482, 120
        %v4498 = vadd.s32 %v4482, 128
        %v4499 = vadd.s32 %v4482, 136
        %v4500 = vadd.s32 %v4482, 144
        %v4501 = vadd.s32 %v4482, 152
        %v4502 = vadd.s32 %v4482, 160
        %v4503 = vadd.s32 %v4482, 168
        %v4504 = vadd.s32 %v4482, 176
        %v4505 = vadd.s32 %v4482, 184
        %v4506 = vadd.s32 %v4482, 192
        %v4507 = vadd.s32 %v4482, 200
        %v4508 = vadd.s32 %v4482, 208
        %v4509 = vadd.s32 %v4482, 216
        %v4510 = vadd.s32 %v4482, 224
        %v4511 = vadd.s32 %v4482, 232
        %v4512 = vadd.s32 %v4482, 240
        %v4513 = vadd.s32 %v4482, 248
        %v4514 = vadd.s32 %v4482, 256
        %v4515 = vadd.s32 %v4482, 264
        %v4516 = vadd.s32 %v4482, 272
        %v4517 = vadd.s32 %v4482, 280
        %v4518 = vadd.s32 %v4482, 288
        %v4519 = vadd.s32 %v4482, 296
        %v4520 = vadd.s32 %v4482, 304
        %v4521 = vadd.s32 %v4482, 312
        %v4522 = vadd.s32 %v4482, 320
        %v4523 = vadd.s32 %v4482, 328
        %v4524 = vadd.s32 %v4482, 336
        %v4525 = vadd.s32 %v4482, 344
        %v4526 = vadd.s32 %v4482, 352
        %v4527 = vadd.s32 %v4482, 360
        %v4528 = vadd.s32 %v4482, 368
        %v4529 = vadd.s32 %v4482, 376
        %v4530 = vadd.s32 %v4482, 384
        %v4531 = vadd.s32 %v4482, 392
        %v4532 = vadd.s32 %v4482, 400
        %v4533 = vadd.s32 %v4482, 408
        %v4534 = vadd.s32 %v4482, 416
        %v4535 = vadd.s32 %v4482, 424
        %v4536 = vadd.s32 %v4482, 432
        %v4537 = vadd.s32 %v4482, 440
        %v4538 = vadd.s32 %v4482, 448
        %v4539 = vadd.s32 %v4482, 456
        %v4540 = vadd.s32 %v4482, 464
        %v4541 = vadd.s32 %v4482, 472
        %v4542 = vadd.s32 %v4482, 480
        %v4543 = vadd.s32 %v4482, 488
        %v4544 = vadd.s32 %v4482, 496
        %v4545 = vadd.s32 %v4482, 504
        %v4546 = vadd.s32 %v4482, 512
        %v4547 = vadd.s32 %v4482, 520
        %v4548 = vadd.s32 %v4482, 528
        %v4549 = vadd.s32 %v4482, 536
        %v4550 = vadd.s32 %v4482, 544
        %v4551 = vadd.s32 %v4482, 552
        %v4552 = vadd.s32 %v4482, 560
        %v4553 = vadd.s32 %v4482, 568
        %v4554 = vadd.s32 %v4482, 576
        %v4555 = vadd.s32 %v4482, 584
        %v4556 = vadd.s32 %v4482, 592
        %v4557 = vadd.s32 %v4482, 600
        %v4558 = vadd.s32 %v4482, 608
        %v4559 = vadd.s32 %v4482, 616
        %v4560 = vadd.s32 %v4482, 624
        %v4561 = vadd.s32 %v4482, 632
        %v4562 = vadd.s32 %v4482, 640
        %v4563 = vadd.s32 %v4482, 648
        %v4564 = vadd.s32 %v4482, 656
        %v4565 = vadd.s32 %v4482, 664
        %v4566 = vadd.s32 %v4482, 672
        %v4567 = vadd.s32 %v4482, 680
        %v4568 = vadd.s32 %v4482, 688
        %v4569 = vadd.s32 %v4482, 696
        %v4570 = vadd.s32 %v4482, 704
        %v4571 = vadd.s32 %v4482, 712
        %v4572 = vadd.s32 %v4482, 720
        %v4573 = vadd.s32 %v4482, 728
        %v4574 = vadd.s32 %v4482, 736
        %v4575 = vadd.s32 %v4482, 744
        %v4576 = vadd.s32 %v4482, 752
        %v4577 = vadd.s32 %v4482, 760
        %v4578 = vadd.s32 %v4482, 768
        %v4579 = vadd.s32 %v4482, 776
        %v4580 = vadd.s32 %v4482, 784
        %v4581 = vadd.s32 %v4482, 792
        %v4582 = vadd.s32 %v4482, 800
        %v4583 = vadd.s32 %v4482, 808
        %v4584 = vadd.s32 %v4482, 816
        %v4585 = vadd.s32 %v4482, 824
        %v4586 = vadd.s32 %v4482, 832
        %v4587 = vadd.s32 %v4482, 840
        %v4588 = vadd.s32 %v4482, 848
        %v4589 = vadd.s32 %v4482, 856
        %v4590 = vadd.s32 %v4482, 864
        %v4591 = vadd.s32 %v4482, 872
        %v4592 = vadd.s32 %v4482, 880
        %v4593 = vadd.s32 %v4482, 888
        %v4594 = vadd.s32 %v4482, 896
        %v4595 = vadd.s32 %v4482, 904
        %v4596 = vadd.s32 %v4482, 912
        %v4597 = vadd.s32 %v4482, 920
        %v4598 = vadd.s32 %v4482, 928
        %v4599 = vadd.s32 %v4482, 936
        %v4600 = vadd.s32 %v4482, 944
        %v4601 = vadd.s32 %v4482, 952
        %v4602 = vadd.s32 %v4482, 960
        %v4603 = vadd.s32 %v4482, 968
        %v4604 = vadd.s32 %v4482, 976
        %v4605 = vadd.s32 %v4482, 984
        %v4606 = vadd.s32 %v4482, 992
        %v4607 = vadd.s32 %v4482, 1000
        %v4608 = vadd.s32 %v4482, 1008
        %v4609 = vadd.s32 %v4482, 1016
        %v4610 = vstv %s4480
        %v4611 = vadd.s32 %v4482, %v4610
        %v4612 = vadd.s32 %v4483, %v4610
        %v4613 = vadd.s32 %v4484, %v4610
        %v4614 = vadd.s32 %v4485, %v4610
        %v4615 = vadd.s32 %v4486, %v4610
        %v4616 = vadd.s32 %v4487, %v4610
        %v4617 = vadd.s32 %v4488, %v4610
        %v4618 = vadd.s32 %v4489, %v4610
        %v4619 = vadd.s32 %v4490, %v4610
        %v4620 = vadd.s32 %v4491, %v4610
        %v4621 = vadd.s32 %v4492, %v4610
        %v4622 = vadd.s32 %v4493, %v4610
        %v4623 = vadd.s32 %v4494, %v4610
        %v4624 = vadd.s32 %v4495, %v4610
        %v4625 = vadd.s32 %v4496, %v4610
        %v4626 = vadd.s32 %v4497, %v4610
        %v4627 = vadd.s32 %v4498, %v4610
        %v4628 = vadd.s32 %v4499, %v4610
        %v4629 = vadd.s32 %v4500, %v4610
        %v4630 = vadd.s32 %v4501, %v4610
        %v4631 = vadd.s32 %v4502, %v4610
        %v4632 = vadd.s32 %v4503, %v4610
        %v4633 = vadd.s32 %v4504, %v4610
        %v4634 = vadd.s32 %v4505, %v4610
        %v4635 = vadd.s32 %v4506, %v4610
        %v4636 = vadd.s32 %v4507, %v4610
        %v4637 = vadd.s32 %v4508, %v4610
        %v4638 = vadd.s32 %v4509, %v4610
        %v4639 = vadd.s32 %v4510, %v4610
        %v4640 = vadd.s32 %v4511, %v4610
        %v4641 = vadd.s32 %v4512, %v4610
        %v4642 = vadd.s32 %v4513, %v4610
        %v4643 = vadd.s32 %v4514, %v4610
        %v4644 = vadd.s32 %v4515, %v4610
        %v4645 = vadd.s32 %v4516, %v4610
        %v4646 = vadd.s32 %v4517, %v4610
        %v4647 = vadd.s32 %v4518, %v4610
        %v4648 = vadd.s32 %v4519, %v4610
        %v4649 = vadd.s32 %v4520, %v4610
        %v4650 = vadd.s32 %v4521, %v4610
        %v4651 = vadd.s32 %v4522, %v4610
        %v4652 = vadd.s32 %v4523, %v4610
        %v4653 = vadd.s32 %v4524, %v4610
        %v4654 = vadd.s32 %v4525, %v4610
        %v4655 = vadd.s32 %v4526, %v4610
        %v4656 = vadd.s32 %v4527, %v4610
        %v4657 = vadd.s32 %v4528, %v4610
        %v4658 = vadd.s32 %v4529, %v4610
        %v4659 = vadd.s32 %v4530, %v4610
        %v4660 = vadd.s32 %v4531, %v4610
        %v4661 = vadd.s32 %v4532, %v4610
        %v4662 = vadd.s32 %v4533, %v4610
        %v4663 = vadd.s32 %v4534, %v4610
        %v4664 = vadd.s32 %v4535, %v4610
        %v4665 = vadd.s32 %v4536, %v4610
        %v4666 = vadd.s32 %v4537, %v4610
        %v4667 = vadd.s32 %v4538, %v4610
        %v4668 = vadd.s32 %v4539, %v4610
        %v4669 = vadd.s32 %v4540, %v4610
        %v4670 = vadd.s32 %v4541, %v4610
        %v4671 = vadd.s32 %v4542, %v4610
        %v4672 = vadd.s32 %v4543, %v4610
        %v4673 = vadd.s32 %v4544, %v4610
        %v4674 = vadd.s32 %v4545, %v4610
        %v4675 = vadd.s32 %v4546, %v4610
        %v4676 = vadd.s32 %v4547, %v4610
        %v4677 = vadd.s32 %v4548, %v4610
        %v4678 = vadd.s32 %v4549, %v4610
        %v4679 = vadd.s32 %v4550, %v4610
        %v4680 = vadd.s32 %v4551, %v4610
        %v4681 = vadd.s32 %v4552, %v4610
        %v4682 = vadd.s32 %v4553, %v4610
        %v4683 = vadd.s32 %v4554, %v4610
        %v4684 = vadd.s32 %v4555, %v4610
        %v4685 = vadd.s32 %v4556, %v4610
        %v4686 = vadd.s32 %v4557, %v4610
        %v4687 = vadd.s32 %v4558, %v4610
        %v4688 = vadd.s32 %v4559, %v4610
        %v4689 = vadd.s32 %v4560, %v4610
        %v4690 = vadd.s32 %v4561, %v4610
        %v4691 = vadd.s32 %v4562, %v4610
        %v4692 = vadd.s32 %v4563, %v4610
        %v4693 = vadd.s32 %v4564, %v4610
        %v4694 = vadd.s32 %v4565, %v4610
        %v4695 = vadd.s32 %v4566, %v4610
        %v4696 = vadd.s32 %v4567, %v4610
        %v4697 = vadd.s32 %v4568, %v4610
        %v4698 = vadd.s32 %v4569, %v4610
        %v4699 = vadd.s32 %v4570, %v4610
        %v4700 = vadd.s32 %v4571, %v4610
        %v4701 = vadd.s32 %v4572, %v4610
        %v4702 = vadd.s32 %v4573, %v4610
        %v4703 = vadd.s32 %v4574, %v4610
        %v4704 = vadd.s32 %v4575, %v4610
        %v4705 = vadd.s32 %v4576, %v4610
        %v4706 = vadd.s32 %v4577, %v4610
        %v4707 = vadd.s32 %v4578, %v4610
        %v4708 = vadd.s32 %v4579, %v4610
        %v4709 = vadd.s32 %v4580, %v4610
        %v4710 = vadd.s32 %v4581, %v4610
        %v4711 = vadd.s32 %v4582, %v4610
        %v4712 = vadd.s32 %v4583, %v4610
        %v4713 = vadd.s32 %v4584, %v4610
        %v4714 = vadd.s32 %v4585, %v4610
        %v4715 = vadd.s32 %v4586, %v4610
        %v4716 = vadd.s32 %v4587, %v4610
        %v4717 = vadd.s32 %v4588, %v4610
        %v4718 = vadd.s32 %v4589, %v4610
        %v4719 = vadd.s32 %v4590, %v4610
        %v4720 = vadd.s32 %v4591, %v4610
        %v4721 = vadd.s32 %v4592, %v4610
        %v4722 = vadd.s32 %v4593, %v4610
        %v4723 = vadd.s32 %v4594, %v4610
        %v4724 = vadd.s32 %v4595, %v4610
        %v4725 = vadd.s32 %v4596, %v4610
        %v4726 = vadd.s32 %v4597, %v4610
        %v4727 = vadd.s32 %v4598, %v4610
        %v4728 = vadd.s32 %v4599, %v4610
        %v4729 = vadd.s32 %v4600, %v4610
        %v4730 = vadd.s32 %v4601, %v4610
        %v4731 = vadd.s32 %v4602, %v4610
        %v4732 = vadd.s32 %v4603, %v4610
        %v4733 = vadd.s32 %v4604, %v4610
        %v4734 = vadd.s32 %v4605, %v4610
        %v4735 = vadd.s32 %v4606, %v4610
        %v4736 = vadd.s32 %v4607, %v4610
        %v4737 = vadd.s32 %v4608, %v4610
        %v4738 = vadd.s32 %v4609, %v4610
        %vm4739 = vcmp.lt.s32.totalorder %v4611, 2048
        %vm4740 = vcmp.lt.s32.totalorder %v4612, 2048
        %vm4741 = vcmp.lt.s32.totalorder %v4613, 2048
        %vm4742 = vcmp.lt.s32.totalorder %v4614, 2048
        %vm4743 = vcmp.lt.s32.totalorder %v4615, 2048
        %vm4744 = vcmp.lt.s32.totalorder %v4616, 2048
        %vm4745 = vcmp.lt.s32.totalorder %v4617, 2048
        %vm4746 = vcmp.lt.s32.totalorder %v4618, 2048
        %vm4747 = vcmp.lt.s32.totalorder %v4619, 2048
        %vm4748 = vcmp.lt.s32.totalorder %v4620, 2048
        %vm4749 = vcmp.lt.s32.totalorder %v4621, 2048
        %vm4750 = vcmp.lt.s32.totalorder %v4622, 2048
        %vm4751 = vcmp.lt.s32.totalorder %v4623, 2048
        %vm4752 = vcmp.lt.s32.totalorder %v4624, 2048
        %vm4753 = vcmp.lt.s32.totalorder %v4625, 2048
        %vm4754 = vcmp.lt.s32.totalorder %v4626, 2048
        %vm4755 = vcmp.lt.s32.totalorder %v4627, 2048
        %vm4756 = vcmp.lt.s32.totalorder %v4628, 2048
        %vm4757 = vcmp.lt.s32.totalorder %v4629, 2048
        %vm4758 = vcmp.lt.s32.totalorder %v4630, 2048
        %vm4759 = vcmp.lt.s32.totalorder %v4631, 2048
        %vm4760 = vcmp.lt.s32.totalorder %v4632, 2048
        %vm4761 = vcmp.lt.s32.totalorder %v4633, 2048
        %vm4762 = vcmp.lt.s32.totalorder %v4634, 2048
        %vm4763 = vcmp.lt.s32.totalorder %v4635, 2048
        %vm4764 = vcmp.lt.s32.totalorder %v4636, 2048
        %vm4765 = vcmp.lt.s32.totalorder %v4637, 2048
        %vm4766 = vcmp.lt.s32.totalorder %v4638, 2048
        %vm4767 = vcmp.lt.s32.totalorder %v4639, 2048
        %vm4768 = vcmp.lt.s32.totalorder %v4640, 2048
        %vm4769 = vcmp.lt.s32.totalorder %v4641, 2048
        %vm4770 = vcmp.lt.s32.totalorder %v4642, 2048
        %vm4771 = vcmp.lt.s32.totalorder %v4643, 2048
        %vm4772 = vcmp.lt.s32.totalorder %v4644, 2048
        %vm4773 = vcmp.lt.s32.totalorder %v4645, 2048
        %vm4774 = vcmp.lt.s32.totalorder %v4646, 2048
        %vm4775 = vcmp.lt.s32.totalorder %v4647, 2048
        %vm4776 = vcmp.lt.s32.totalorder %v4648, 2048
        %vm4777 = vcmp.lt.s32.totalorder %v4649, 2048
        %vm4778 = vcmp.lt.s32.totalorder %v4650, 2048
        %vm4779 = vcmp.lt.s32.totalorder %v4651, 2048
        %vm4780 = vcmp.lt.s32.totalorder %v4652, 2048
        %vm4781 = vcmp.lt.s32.totalorder %v4653, 2048
        %vm4782 = vcmp.lt.s32.totalorder %v4654, 2048
        %vm4783 = vcmp.lt.s32.totalorder %v4655, 2048
        %vm4784 = vcmp.lt.s32.totalorder %v4656, 2048
        %vm4785 = vcmp.lt.s32.totalorder %v4657, 2048
        %vm4786 = vcmp.lt.s32.totalorder %v4658, 2048
        %vm4787 = vcmp.lt.s32.totalorder %v4659, 2048
        %vm4788 = vcmp.lt.s32.totalorder %v4660, 2048
        %vm4789 = vcmp.lt.s32.totalorder %v4661, 2048
        %vm4790 = vcmp.lt.s32.totalorder %v4662, 2048
        %vm4791 = vcmp.lt.s32.totalorder %v4663, 2048
        %vm4792 = vcmp.lt.s32.totalorder %v4664, 2048
        %vm4793 = vcmp.lt.s32.totalorder %v4665, 2048
        %vm4794 = vcmp.lt.s32.totalorder %v4666, 2048
        %vm4795 = vcmp.lt.s32.totalorder %v4667, 2048
        %vm4796 = vcmp.lt.s32.totalorder %v4668, 2048
        %vm4797 = vcmp.lt.s32.totalorder %v4669, 2048
        %vm4798 = vcmp.lt.s32.totalorder %v4670, 2048
        %vm4799 = vcmp.lt.s32.totalorder %v4671, 2048
        %vm4800 = vcmp.lt.s32.totalorder %v4672, 2048
        %vm4801 = vcmp.lt.s32.totalorder %v4673, 2048
        %vm4802 = vcmp.lt.s32.totalorder %v4674, 2048
        %vm4803 = vcmp.lt.s32.totalorder %v4675, 2048
        %vm4804 = vcmp.lt.s32.totalorder %v4676, 2048
        %vm4805 = vcmp.lt.s32.totalorder %v4677, 2048
        %vm4806 = vcmp.lt.s32.totalorder %v4678, 2048
        %vm4807 = vcmp.lt.s32.totalorder %v4679, 2048
        %vm4808 = vcmp.lt.s32.totalorder %v4680, 2048
        %vm4809 = vcmp.lt.s32.totalorder %v4681, 2048
        %vm4810 = vcmp.lt.s32.totalorder %v4682, 2048
        %vm4811 = vcmp.lt.s32.totalorder %v4683, 2048
        %vm4812 = vcmp.lt.s32.totalorder %v4684, 2048
        %vm4813 = vcmp.lt.s32.totalorder %v4685, 2048
        %vm4814 = vcmp.lt.s32.totalorder %v4686, 2048
        %vm4815 = vcmp.lt.s32.totalorder %v4687, 2048
        %vm4816 = vcmp.lt.s32.totalorder %v4688, 2048
        %vm4817 = vcmp.lt.s32.totalorder %v4689, 2048
        %vm4818 = vcmp.lt.s32.totalorder %v4690, 2048
        %vm4819 = vcmp.lt.s32.totalorder %v4691, 2048
        %vm4820 = vcmp.lt.s32.totalorder %v4692, 2048
        %vm4821 = vcmp.lt.s32.totalorder %v4693, 2048
        %vm4822 = vcmp.lt.s32.totalorder %v4694, 2048
        %vm4823 = vcmp.lt.s32.totalorder %v4695, 2048
        %vm4824 = vcmp.lt.s32.totalorder %v4696, 2048
        %vm4825 = vcmp.lt.s32.totalorder %v4697, 2048
        %vm4826 = vcmp.lt.s32.totalorder %v4698, 2048
        %vm4827 = vcmp.lt.s32.totalorder %v4699, 2048
        %vm4828 = vcmp.lt.s32.totalorder %v4700, 2048
        %vm4829 = vcmp.lt.s32.totalorder %v4701, 2048
        %vm4830 = vcmp.lt.s32.totalorder %v4702, 2048
        %vm4831 = vcmp.lt.s32.totalorder %v4703, 2048
        %vm4832 = vcmp.lt.s32.totalorder %v4704, 2048
        %vm4833 = vcmp.lt.s32.totalorder %v4705, 2048
        %vm4834 = vcmp.lt.s32.totalorder %v4706, 2048
        %vm4835 = vcmp.lt.s32.totalorder %v4707, 2048
        %vm4836 = vcmp.lt.s32.totalorder %v4708, 2048
        %vm4837 = vcmp.lt.s32.totalorder %v4709, 2048
        %vm4838 = vcmp.lt.s32.totalorder %v4710, 2048
        %vm4839 = vcmp.lt.s32.totalorder %v4711, 2048
        %vm4840 = vcmp.lt.s32.totalorder %v4712, 2048
        %vm4841 = vcmp.lt.s32.totalorder %v4713, 2048
        %vm4842 = vcmp.lt.s32.totalorder %v4714, 2048
        %vm4843 = vcmp.lt.s32.totalorder %v4715, 2048
        %vm4844 = vcmp.lt.s32.totalorder %v4716, 2048
        %vm4845 = vcmp.lt.s32.totalorder %v4717, 2048
        %vm4846 = vcmp.lt.s32.totalorder %v4718, 2048
        %vm4847 = vcmp.lt.s32.totalorder %v4719, 2048
        %vm4848 = vcmp.lt.s32.totalorder %v4720, 2048
        %vm4849 = vcmp.lt.s32.totalorder %v4721, 2048
        %vm4850 = vcmp.lt.s32.totalorder %v4722, 2048
        %vm4851 = vcmp.lt.s32.totalorder %v4723, 2048
        %vm4852 = vcmp.lt.s32.totalorder %v4724, 2048
        %vm4853 = vcmp.lt.s32.totalorder %v4725, 2048
        %vm4854 = vcmp.lt.s32.totalorder %v4726, 2048
        %vm4855 = vcmp.lt.s32.totalorder %v4727, 2048
        %vm4856 = vcmp.lt.s32.totalorder %v4728, 2048
        %vm4857 = vcmp.lt.s32.totalorder %v4729, 2048
        %vm4858 = vcmp.lt.s32.totalorder %v4730, 2048
        %vm4859 = vcmp.lt.s32.totalorder %v4731, 2048
        %vm4860 = vcmp.lt.s32.totalorder %v4732, 2048
        %vm4861 = vcmp.lt.s32.totalorder %v4733, 2048
        %vm4862 = vcmp.lt.s32.totalorder %v4734, 2048
        %vm4863 = vcmp.lt.s32.totalorder %v4735, 2048
        %vm4864 = vcmp.lt.s32.totalorder %v4736, 2048
        %vm4865 = vcmp.lt.s32.totalorder %v4737, 2048
        %vm4866 = vcmp.lt.s32.totalorder %v4738, 2048
        %v4867 = vsel %vm4739, 1, 0
        %v4868 = vsel %vm4740, 1, 0
        %v4869 = vsel %vm4741, 1, 0
        %v4870 = vsel %vm4742, 1, 0
        %v4871 = vsel %vm4743, 1, 0
        %v4872 = vsel %vm4744, 1, 0
        %v4873 = vsel %vm4745, 1, 0
        %v4874 = vsel %vm4746, 1, 0
        %v4875 = vsel %vm4747, 1, 0
        %v4876 = vsel %vm4748, 1, 0
        %v4877 = vsel %vm4749, 1, 0
        %v4878 = vsel %vm4750, 1, 0
        %v4879 = vsel %vm4751, 1, 0
        %v4880 = vsel %vm4752, 1, 0
        %v4881 = vsel %vm4753, 1, 0
        %v4882 = vsel %vm4754, 1, 0
        %v4883 = vsel %vm4755, 1, 0
        %v4884 = vsel %vm4756, 1, 0
        %v4885 = vsel %vm4757, 1, 0
        %v4886 = vsel %vm4758, 1, 0
        %v4887 = vsel %vm4759, 1, 0
        %v4888 = vsel %vm4760, 1, 0
        %v4889 = vsel %vm4761, 1, 0
        %v4890 = vsel %vm4762, 1, 0
        %v4891 = vsel %vm4763, 1, 0
        %v4892 = vsel %vm4764, 1, 0
        %v4893 = vsel %vm4765, 1, 0
        %v4894 = vsel %vm4766, 1, 0
        %v4895 = vsel %vm4767, 1, 0
        %v4896 = vsel %vm4768, 1, 0
        %v4897 = vsel %vm4769, 1, 0
        %v4898 = vsel %vm4770, 1, 0
        %v4899 = vsel %vm4771, 1, 0
        %v4900 = vsel %vm4772, 1, 0
        %v4901 = vsel %vm4773, 1, 0
        %v4902 = vsel %vm4774, 1, 0
        %v4903 = vsel %vm4775, 1, 0
        %v4904 = vsel %vm4776, 1, 0
        %v4905 = vsel %vm4777, 1, 0
        %v4906 = vsel %vm4778, 1, 0
        %v4907 = vsel %vm4779, 1, 0
        %v4908 = vsel %vm4780, 1, 0
        %v4909 = vsel %vm4781, 1, 0
        %v4910 = vsel %vm4782, 1, 0
        %v4911 = vsel %vm4783, 1, 0
        %v4912 = vsel %vm4784, 1, 0
        %v4913 = vsel %vm4785, 1, 0
        %v4914 = vsel %vm4786, 1, 0
        %v4915 = vsel %vm4787, 1, 0
        %v4916 = vsel %vm4788, 1, 0
        %v4917 = vsel %vm4789, 1, 0
        %v4918 = vsel %vm4790, 1, 0
        %v4919 = vsel %vm4791, 1, 0
        %v4920 = vsel %vm4792, 1, 0
        %v4921 = vsel %vm4793, 1, 0
        %v4922 = vsel %vm4794, 1, 0
        %v4923 = vsel %vm4795, 1, 0
        %v4924 = vsel %vm4796, 1, 0
        %v4925 = vsel %vm4797, 1, 0
        %v4926 = vsel %vm4798, 1, 0
        %v4927 = vsel %vm4799, 1, 0
        %v4928 = vsel %vm4800, 1, 0
        %v4929 = vsel %vm4801, 1, 0
        %v4930 = vsel %vm4802, 1, 0
        %v4931 = vsel %vm4803, 1, 0
        %v4932 = vsel %vm4804, 1, 0
        %v4933 = vsel %vm4805, 1, 0
        %v4934 = vsel %vm4806, 1, 0
        %v4935 = vsel %vm4807, 1, 0
        %v4936 = vsel %vm4808, 1, 0
        %v4937 = vsel %vm4809, 1, 0
        %v4938 = vsel %vm4810, 1, 0
        %v4939 = vsel %vm4811, 1, 0
        %v4940 = vsel %vm4812, 1, 0
        %v4941 = vsel %vm4813, 1, 0
        %v4942 = vsel %vm4814, 1, 0
        %v4943 = vsel %vm4815, 1, 0
        %v4944 = vsel %vm4816, 1, 0
        %v4945 = vsel %vm4817, 1, 0
        %v4946 = vsel %vm4818, 1, 0
        %v4947 = vsel %vm4819, 1, 0
        %v4948 = vsel %vm4820, 1, 0
        %v4949 = vsel %vm4821, 1, 0
        %v4950 = vsel %vm4822, 1, 0
        %v4951 = vsel %vm4823, 1, 0
        %v4952 = vsel %vm4824, 1, 0
        %v4953 = vsel %vm4825, 1, 0
        %v4954 = vsel %vm4826, 1, 0
        %v4955 = vsel %vm4827, 1, 0
        %v4956 = vsel %vm4828, 1, 0
        %v4957 = vsel %vm4829, 1, 0
        %v4958 = vsel %vm4830, 1, 0
        %v4959 = vsel %vm4831, 1, 0
        %v4960 = vsel %vm4832, 1, 0
        %v4961 = vsel %vm4833, 1, 0
        %v4962 = vsel %vm4834, 1, 0
        %v4963 = vsel %vm4835, 1, 0
        %v4964 = vsel %vm4836, 1, 0
        %v4965 = vsel %vm4837, 1, 0
        %v4966 = vsel %vm4838, 1, 0
        %v4967 = vsel %vm4839, 1, 0
        %v4968 = vsel %vm4840, 1, 0
        %v4969 = vsel %vm4841, 1, 0
        %v4970 = vsel %vm4842, 1, 0
        %v4971 = vsel %vm4843, 1, 0
        %v4972 = vsel %vm4844, 1, 0
        %v4973 = vsel %vm4845, 1, 0
        %v4974 = vsel %vm4846, 1, 0
        %v4975 = vsel %vm4847, 1, 0
        %v4976 = vsel %vm4848, 1, 0
        %v4977 = vsel %vm4849, 1, 0
        %v4978 = vsel %vm4850, 1, 0
        %v4979 = vsel %vm4851, 1, 0
        %v4980 = vsel %vm4852, 1, 0
        %v4981 = vsel %vm4853, 1, 0
        %v4982 = vsel %vm4854, 1, 0
        %v4983 = vsel %vm4855, 1, 0
        %v4984 = vsel %vm4856, 1, 0
        %v4985 = vsel %vm4857, 1, 0
        %v4986 = vsel %vm4858, 1, 0
        %v4987 = vsel %vm4859, 1, 0
        %v4988 = vsel %vm4860, 1, 0
        %v4989 = vsel %vm4861, 1, 0
        %v4990 = vsel %vm4862, 1, 0
        %v4991 = vsel %vm4863, 1, 0
        %v4992 = vsel %vm4864, 1, 0
        %v4993 = vsel %vm4865, 1, 0
        %v4994 = vsel %vm4866, 1, 0
        %v4995 = vcvt.s32.f32 %v4867
        %v4996 = vcvt.s32.f32 %v4868
        %v4997 = vcvt.s32.f32 %v4869
        %v4998 = vcvt.s32.f32 %v4870
        %v4999 = vcvt.s32.f32 %v4871
        %v5000 = vcvt.s32.f32 %v4872
        %v5001 = vcvt.s32.f32 %v4873
        %v5002 = vcvt.s32.f32 %v4874
        %v5003 = vcvt.s32.f32 %v4875
        %v5004 = vcvt.s32.f32 %v4876
        %v5005 = vcvt.s32.f32 %v4877
        %v5006 = vcvt.s32.f32 %v4878
        %v5007 = vcvt.s32.f32 %v4879
        %v5008 = vcvt.s32.f32 %v4880
        %v5009 = vcvt.s32.f32 %v4881
        %v5010 = vcvt.s32.f32 %v4882
        %v5011 = vcvt.s32.f32 %v4883
        %v5012 = vcvt.s32.f32 %v4884
        %v5013 = vcvt.s32.f32 %v4885
        %v5014 = vcvt.s32.f32 %v4886
        %v5015 = vcvt.s32.f32 %v4887
        %v5016 = vcvt.s32.f32 %v4888
        %v5017 = vcvt.s32.f32 %v4889
        %v5018 = vcvt.s32.f32 %v4890
        %v5019 = vcvt.s32.f32 %v4891
        %v5020 = vcvt.s32.f32 %v4892
        %v5021 = vcvt.s32.f32 %v4893
        %v5022 = vcvt.s32.f32 %v4894
        %v5023 = vcvt.s32.f32 %v4895
        %v5024 = vcvt.s32.f32 %v4896
        %v5025 = vcvt.s32.f32 %v4897
        %v5026 = vcvt.s32.f32 %v4898
        %v5027 = vcvt.s32.f32 %v4899
        %v5028 = vcvt.s32.f32 %v4900
        %v5029 = vcvt.s32.f32 %v4901
        %v5030 = vcvt.s32.f32 %v4902
        %v5031 = vcvt.s32.f32 %v4903
        %v5032 = vcvt.s32.f32 %v4904
        %v5033 = vcvt.s32.f32 %v4905
        %v5034 = vcvt.s32.f32 %v4906
        %v5035 = vcvt.s32.f32 %v4907
        %v5036 = vcvt.s32.f32 %v4908
        %v5037 = vcvt.s32.f32 %v4909
        %v5038 = vcvt.s32.f32 %v4910
        %v5039 = vcvt.s32.f32 %v4911
        %v5040 = vcvt.s32.f32 %v4912
        %v5041 = vcvt.s32.f32 %v4913
        %v5042 = vcvt.s32.f32 %v4914
        %v5043 = vcvt.s32.f32 %v4915
        %v5044 = vcvt.s32.f32 %v4916
        %v5045 = vcvt.s32.f32 %v4917
        %v5046 = vcvt.s32.f32 %v4918
        %v5047 = vcvt.s32.f32 %v4919
        %v5048 = vcvt.s32.f32 %v4920
        %v5049 = vcvt.s32.f32 %v4921
        %v5050 = vcvt.s32.f32 %v4922
        %v5051 = vcvt.s32.f32 %v4923
        %v5052 = vcvt.s32.f32 %v4924
        %v5053 = vcvt.s32.f32 %v4925
        %v5054 = vcvt.s32.f32 %v4926
        %v5055 = vcvt.s32.f32 %v4927
        %v5056 = vcvt.s32.f32 %v4928
        %v5057 = vcvt.s32.f32 %v4929
        %v5058 = vcvt.s32.f32 %v4930
        %v5059 = vcvt.s32.f32 %v4931
        %v5060 = vcvt.s32.f32 %v4932
        %v5061 = vcvt.s32.f32 %v4933
        %v5062 = vcvt.s32.f32 %v4934
        %v5063 = vcvt.s32.f32 %v4935
        %v5064 = vcvt.s32.f32 %v4936
        %v5065 = vcvt.s32.f32 %v4937
        %v5066 = vcvt.s32.f32 %v4938
        %v5067 = vcvt.s32.f32 %v4939
        %v5068 = vcvt.s32.f32 %v4940
        %v5069 = vcvt.s32.f32 %v4941
        %v5070 = vcvt.s32.f32 %v4942
        %v5071 = vcvt.s32.f32 %v4943
        %v5072 = vcvt.s32.f32 %v4944
        %v5073 = vcvt.s32.f32 %v4945
        %v5074 = vcvt.s32.f32 %v4946
        %v5075 = vcvt.s32.f32 %v4947
        %v5076 = vcvt.s32.f32 %v4948
        %v5077 = vcvt.s32.f32 %v4949
        %v5078 = vcvt.s32.f32 %v4950
        %v5079 = vcvt.s32.f32 %v4951
        %v5080 = vcvt.s32.f32 %v4952
        %v5081 = vcvt.s32.f32 %v4953
        %v5082 = vcvt.s32.f32 %v4954
        %v5083 = vcvt.s32.f32 %v4955
        %v5084 = vcvt.s32.f32 %v4956
        %v5085 = vcvt.s32.f32 %v4957
        %v5086 = vcvt.s32.f32 %v4958
        %v5087 = vcvt.s32.f32 %v4959
        %v5088 = vcvt.s32.f32 %v4960
        %v5089 = vcvt.s32.f32 %v4961
        %v5090 = vcvt.s32.f32 %v4962
        %v5091 = vcvt.s32.f32 %v4963
        %v5092 = vcvt.s32.f32 %v4964
        %v5093 = vcvt.s32.f32 %v4965
        %v5094 = vcvt.s32.f32 %v4966
        %v5095 = vcvt.s32.f32 %v4967
        %v5096 = vcvt.s32.f32 %v4968
        %v5097 = vcvt.s32.f32 %v4969
        %v5098 = vcvt.s32.f32 %v4970
        %v5099 = vcvt.s32.f32 %v4971
        %v5100 = vcvt.s32.f32 %v4972
        %v5101 = vcvt.s32.f32 %v4973
        %v5102 = vcvt.s32.f32 %v4974
        %v5103 = vcvt.s32.f32 %v4975
        %v5104 = vcvt.s32.f32 %v4976
        %v5105 = vcvt.s32.f32 %v4977
        %v5106 = vcvt.s32.f32 %v4978
        %v5107 = vcvt.s32.f32 %v4979
        %v5108 = vcvt.s32.f32 %v4980
        %v5109 = vcvt.s32.f32 %v4981
        %v5110 = vcvt.s32.f32 %v4982
        %v5111 = vcvt.s32.f32 %v4983
        %v5112 = vcvt.s32.f32 %v4984
        %v5113 = vcvt.s32.f32 %v4985
        %v5114 = vcvt.s32.f32 %v4986
        %v5115 = vcvt.s32.f32 %v4987
        %v5116 = vcvt.s32.f32 %v4988
        %v5117 = vcvt.s32.f32 %v4989
        %v5118 = vcvt.s32.f32 %v4990
        %v5119 = vcvt.s32.f32 %v4991
        %v5120 = vcvt.s32.f32 %v4992
        %v5121 = vcvt.s32.f32 %v4993
        %v5122 = vcvt.s32.f32 %v4994
        %v5123 = vsel %vm4739, %v1534, 0.0
        %v5124 = vsel %vm4740, %v1536, 0.0
        %v5125 = vsel %vm4741, %v1538, 0.0
        %v5126 = vsel %vm4742, %v1540, 0.0
        %v5127 = vsel %vm4743, %v1542, 0.0
        %v5128 = vsel %vm4744, %v1544, 0.0
        %v5129 = vsel %vm4745, %v1546, 0.0
        %v5130 = vsel %vm4746, %v1548, 0.0
        %v5131 = vsel %vm4747, %v1550, 0.0
        %v5132 = vsel %vm4748, %v1552, 0.0
        %v5133 = vsel %vm4749, %v1554, 0.0
        %v5134 = vsel %vm4750, %v1556, 0.0
        %v5135 = vsel %vm4751, %v1558, 0.0
        %v5136 = vsel %vm4752, %v1560, 0.0
        %v5137 = vsel %vm4753, %v1562, 0.0
        %v5138 = vsel %vm4754, %v1564, 0.0
        %v5139 = vsel %vm4755, %v1566, 0.0
        %v5140 = vsel %vm4756, %v1568, 0.0
        %v5141 = vsel %vm4757, %v1570, 0.0
        %v5142 = vsel %vm4758, %v1572, 0.0
        %v5143 = vsel %vm4759, %v1574, 0.0
        %v5144 = vsel %vm4760, %v1576, 0.0
        %v5145 = vsel %vm4761, %v1578, 0.0
        %v5146 = vsel %vm4762, %v1580, 0.0
        %v5147 = vsel %vm4763, %v1582, 0.0
        %v5148 = vsel %vm4764, %v1584, 0.0
        %v5149 = vsel %vm4765, %v1586, 0.0
        %v5150 = vsel %vm4766, %v1588, 0.0
        %v5151 = vsel %vm4767, %v1590, 0.0
        %v5152 = vsel %vm4768, %v1592, 0.0
        %v5153 = vsel %vm4769, %v1594, 0.0
        %v5154 = vsel %vm4770, %v1596, 0.0
        %v5155 = vsel %vm4771, %v1598, 0.0
        %v5156 = vsel %vm4772, %v1600, 0.0
        %v5157 = vsel %vm4773, %v1602, 0.0
        %v5158 = vsel %vm4774, %v1604, 0.0
        %v5159 = vsel %vm4775, %v1606, 0.0
        %v5160 = vsel %vm4776, %v1608, 0.0
        %v5161 = vsel %vm4777, %v1610, 0.0
        %v5162 = vsel %vm4778, %v1612, 0.0
        %v5163 = vsel %vm4779, %v1614, 0.0
        %v5164 = vsel %vm4780, %v1616, 0.0
        %v5165 = vsel %vm4781, %v1618, 0.0
        %v5166 = vsel %vm4782, %v1620, 0.0
        %v5167 = vsel %vm4783, %v1622, 0.0
        %v5168 = vsel %vm4784, %v1624, 0.0
        %v5169 = vsel %vm4785, %v1626, 0.0
        %v5170 = vsel %vm4786, %v1628, 0.0
        %v5171 = vsel %vm4787, %v1630, 0.0
        %v5172 = vsel %vm4788, %v1632, 0.0
        %v5173 = vsel %vm4789, %v1634, 0.0
        %v5174 = vsel %vm4790, %v1636, 0.0
        %v5175 = vsel %vm4791, %v1638, 0.0
        %v5176 = vsel %vm4792, %v1640, 0.0
        %v5177 = vsel %vm4793, %v1642, 0.0
        %v5178 = vsel %vm4794, %v1644, 0.0
        %v5179 = vsel %vm4795, %v1646, 0.0
        %v5180 = vsel %vm4796, %v1648, 0.0
        %v5181 = vsel %vm4797, %v1650, 0.0
        %v5182 = vsel %vm4798, %v1652, 0.0
        %v5183 = vsel %vm4799, %v1654, 0.0
        %v5184 = vsel %vm4800, %v1656, 0.0
        %v5185 = vsel %vm4801, %v1658, 0.0
        %v5186 = vsel %vm4802, %v1660, 0.0
        %v5187 = vsel %vm4803, %v1662, 0.0
        %v5188 = vsel %vm4804, %v1664, 0.0
        %v5189 = vsel %vm4805, %v1666, 0.0
        %v5190 = vsel %vm4806, %v1668, 0.0
        %v5191 = vsel %vm4807, %v1670, 0.0
        %v5192 = vsel %vm4808, %v1672, 0.0
        %v5193 = vsel %vm4809, %v1674, 0.0
        %v5194 = vsel %vm4810, %v1676, 0.0
        %v5195 = vsel %vm4811, %v1678, 0.0
        %v5196 = vsel %vm4812, %v1680, 0.0
        %v5197 = vsel %vm4813, %v1682, 0.0
        %v5198 = vsel %vm4814, %v1684, 0.0
        %v5199 = vsel %vm4815, %v1686, 0.0
        %v5200 = vsel %vm4816, %v1688, 0.0
        %v5201 = vsel %vm4817, %v1690, 0.0
        %v5202 = vsel %vm4818, %v1692, 0.0
        %v5203 = vsel %vm4819, %v1694, 0.0
        %v5204 = vsel %vm4820, %v1696, 0.0
        %v5205 = vsel %vm4821, %v1698, 0.0
        %v5206 = vsel %vm4822, %v1700, 0.0
        %v5207 = vsel %vm4823, %v1702, 0.0
        %v5208 = vsel %vm4824, %v1704, 0.0
        %v5209 = vsel %vm4825, %v1706, 0.0
        %v5210 = vsel %vm4826, %v1708, 0.0
        %v5211 = vsel %vm4827, %v1710, 0.0
        %v5212 = vsel %vm4828, %v1712, 0.0
        %v5213 = vsel %vm4829, %v1714, 0.0
        %v5214 = vsel %vm4830, %v1716, 0.0
        %v5215 = vsel %vm4831, %v1718, 0.0
        %v5216 = vsel %vm4832, %v1720, 0.0
        %v5217 = vsel %vm4833, %v1722, 0.0
        %v5218 = vsel %vm4834, %v1724, 0.0
        %v5219 = vsel %vm4835, %v1726, 0.0
        %v5220 = vsel %vm4836, %v1728, 0.0
        %v5221 = vsel %vm4837, %v1730, 0.0
        %v5222 = vsel %vm4838, %v1732, 0.0
        %v5223 = vsel %vm4839, %v1734, 0.0
        %v5224 = vsel %vm4840, %v1736, 0.0
        %v5225 = vsel %vm4841, %v1738, 0.0
        %v5226 = vsel %vm4842, %v1740, 0.0
        %v5227 = vsel %vm4843, %v1742, 0.0
        %v5228 = vsel %vm4844, %v1744, 0.0
        %v5229 = vsel %vm4845, %v1746, 0.0
        %v5230 = vsel %vm4846, %v1748, 0.0
        %v5231 = vsel %vm4847, %v1750, 0.0
        %v5232 = vsel %vm4848, %v1752, 0.0
        %v5233 = vsel %vm4849, %v1754, 0.0
        %v5234 = vsel %vm4850, %v1756, 0.0
        %v5235 = vsel %vm4851, %v1758, 0.0
        %v5236 = vsel %vm4852, %v1760, 0.0
        %v5237 = vsel %vm4853, %v1762, 0.0
        %v5238 = vsel %vm4854, %v1764, 0.0
        %v5239 = vsel %vm4855, %v1766, 0.0
        %v5240 = vsel %vm4856, %v1768, 0.0
        %v5241 = vsel %vm4857, %v1770, 0.0
        %v5242 = vsel %vm4858, %v1772, 0.0
        %v5243 = vsel %vm4859, %v1774, 0.0
        %v5244 = vsel %vm4860, %v1776, 0.0
        %v5245 = vsel %vm4861, %v1778, 0.0
        %v5246 = vsel %vm4862, %v1780, 0.0
        %v5247 = vsel %vm4863, %v1782, 0.0
        %v5248 = vsel %vm4864, %v1784, 0.0
        %v5249 = vsel %vm4865, %v1786, 0.0
        %v5250 = vsel %vm4866, %v1788, 0.0
        %v5251 = vsel %vm4739, %v4351, 0.0
        %v5252 = vsel %vm4740, %v4352, 0.0
        %v5253 = vsel %vm4741, %v4353, 0.0
        %v5254 = vsel %vm4742, %v4354, 0.0
        %v5255 = vsel %vm4743, %v4355, 0.0
        %v5256 = vsel %vm4744, %v4356, 0.0
        %v5257 = vsel %vm4745, %v4357, 0.0
        %v5258 = vsel %vm4746, %v4358, 0.0
        %v5259 = vsel %vm4747, %v4359, 0.0
        %v5260 = vsel %vm4748, %v4360, 0.0
        %v5261 = vsel %vm4749, %v4361, 0.0
        %v5262 = vsel %vm4750, %v4362, 0.0
        %v5263 = vsel %vm4751, %v4363, 0.0
        %v5264 = vsel %vm4752, %v4364, 0.0
        %v5265 = vsel %vm4753, %v4365, 0.0
        %v5266 = vsel %vm4754, %v4366, 0.0
        %v5267 = vsel %vm4755, %v4367, 0.0
        %v5268 = vsel %vm4756, %v4368, 0.0
        %v5269 = vsel %vm4757, %v4369, 0.0
        %v5270 = vsel %vm4758, %v4370, 0.0
        %v5271 = vsel %vm4759, %v4371, 0.0
        %v5272 = vsel %vm4760, %v4372, 0.0
        %v5273 = vsel %vm4761, %v4373, 0.0
        %v5274 = vsel %vm4762, %v4374, 0.0
        %v5275 = vsel %vm4763, %v4375, 0.0
        %v5276 = vsel %vm4764, %v4376, 0.0
        %v5277 = vsel %vm4765, %v4377, 0.0
        %v5278 = vsel %vm4766, %v4378, 0.0
        %v5279 = vsel %vm4767, %v4379, 0.0
        %v5280 = vsel %vm4768, %v4380, 0.0
        %v5281 = vsel %vm4769, %v4381, 0.0
        %v5282 = vsel %vm4770, %v4382, 0.0
        %v5283 = vsel %vm4771, %v4383, 0.0
        %v5284 = vsel %vm4772, %v4384, 0.0
        %v5285 = vsel %vm4773, %v4385, 0.0
        %v5286 = vsel %vm4774, %v4386, 0.0
        %v5287 = vsel %vm4775, %v4387, 0.0
        %v5288 = vsel %vm4776, %v4388, 0.0
        %v5289 = vsel %vm4777, %v4389, 0.0
        %v5290 = vsel %vm4778, %v4390, 0.0
        %v5291 = vsel %vm4779, %v4391, 0.0
        %v5292 = vsel %vm4780, %v4392, 0.0
        %v5293 = vsel %vm4781, %v4393, 0.0
        %v5294 = vsel %vm4782, %v4394, 0.0
        %v5295 = vsel %vm4783, %v4395, 0.0
        %v5296 = vsel %vm4784, %v4396, 0.0
        %v5297 = vsel %vm4785, %v4397, 0.0
        %v5298 = vsel %vm4786, %v4398, 0.0
        %v5299 = vsel %vm4787, %v4399, 0.0
        %v5300 = vsel %vm4788, %v4400, 0.0
        %v5301 = vsel %vm4789, %v4401, 0.0
        %v5302 = vsel %vm4790, %v4402, 0.0
        %v5303 = vsel %vm4791, %v4403, 0.0
        %v5304 = vsel %vm4792, %v4404, 0.0
        %v5305 = vsel %vm4793, %v4405, 0.0
        %v5306 = vsel %vm4794, %v4406, 0.0
        %v5307 = vsel %vm4795, %v4407, 0.0
        %v5308 = vsel %vm4796, %v4408, 0.0
        %v5309 = vsel %vm4797, %v4409, 0.0
        %v5310 = vsel %vm4798, %v4410, 0.0
        %v5311 = vsel %vm4799, %v4411, 0.0
        %v5312 = vsel %vm4800, %v4412, 0.0
        %v5313 = vsel %vm4801, %v4413, 0.0
        %v5314 = vsel %vm4802, %v4414, 0.0
        %v5315 = vsel %vm4803, %v4415, 0.0
        %v5316 = vsel %vm4804, %v4416, 0.0
        %v5317 = vsel %vm4805, %v4417, 0.0
        %v5318 = vsel %vm4806, %v4418, 0.0
        %v5319 = vsel %vm4807, %v4419, 0.0
        %v5320 = vsel %vm4808, %v4420, 0.0
        %v5321 = vsel %vm4809, %v4421, 0.0
        %v5322 = vsel %vm4810, %v4422, 0.0
        %v5323 = vsel %vm4811, %v4423, 0.0
        %v5324 = vsel %vm4812, %v4424, 0.0
        %v5325 = vsel %vm4813, %v4425, 0.0
        %v5326 = vsel %vm4814, %v4426, 0.0
        %v5327 = vsel %vm4815, %v4427, 0.0
        %v5328 = vsel %vm4816, %v4428, 0.0
        %v5329 = vsel %vm4817, %v4429, 0.0
        %v5330 = vsel %vm4818, %v4430, 0.0
        %v5331 = vsel %vm4819, %v4431, 0.0
        %v5332 = vsel %vm4820, %v4432, 0.0
        %v5333 = vsel %vm4821, %v4433, 0.0
        %v5334 = vsel %vm4822, %v4434, 0.0
        %v5335 = vsel %vm4823, %v4435, 0.0
        %v5336 = vsel %vm4824, %v4436, 0.0
        %v5337 = vsel %vm4825, %v4437, 0.0
        %v5338 = vsel %vm4826, %v4438, 0.0
        %v5339 = vsel %vm4827, %v4439, 0.0
        %v5340 = vsel %vm4828, %v4440, 0.0
        %v5341 = vsel %vm4829, %v4441, 0.0
        %v5342 = vsel %vm4830, %v4442, 0.0
        %v5343 = vsel %vm4831, %v4443, 0.0
        %v5344 = vsel %vm4832, %v4444, 0.0
        %v5345 = vsel %vm4833, %v4445, 0.0
        %v5346 = vsel %vm4834, %v4446, 0.0
        %v5347 = vsel %vm4835, %v4447, 0.0
        %v5348 = vsel %vm4836, %v4448, 0.0
        %v5349 = vsel %vm4837, %v4449, 0.0
        %v5350 = vsel %vm4838, %v4450, 0.0
        %v5351 = vsel %vm4839, %v4451, 0.0
        %v5352 = vsel %vm4840, %v4452, 0.0
        %v5353 = vsel %vm4841, %v4453, 0.0
        %v5354 = vsel %vm4842, %v4454, 0.0
        %v5355 = vsel %vm4843, %v4455, 0.0
        %v5356 = vsel %vm4844, %v4456, 0.0
        %v5357 = vsel %vm4845, %v4457, 0.0
        %v5358 = vsel %vm4846, %v4458, 0.0
        %v5359 = vsel %vm4847, %v4459, 0.0
        %v5360 = vsel %vm4848, %v4460, 0.0
        %v5361 = vsel %vm4849, %v4461, 0.0
        %v5362 = vsel %vm4850, %v4462, 0.0
        %v5363 = vsel %vm4851, %v4463, 0.0
        %v5364 = vsel %vm4852, %v4464, 0.0
        %v5365 = vsel %vm4853, %v4465, 0.0
        %v5366 = vsel %vm4854, %v4466, 0.0
        %v5367 = vsel %vm4855, %v4467, 0.0
        %v5368 = vsel %vm4856, %v4468, 0.0
        %v5369 = vsel %vm4857, %v4469, 0.0
        %v5370 = vsel %vm4858, %v4470, 0.0
        %v5371 = vsel %vm4859, %v4471, 0.0
        %v5372 = vsel %vm4860, %v4472, 0.0
        %v5373 = vsel %vm4861, %v4473, 0.0
        %v5374 = vsel %vm4862, %v4474, 0.0
        %v5375 = vsel %vm4863, %v4475, 0.0
        %v5376 = vsel %vm4864, %v4476, 0.0
        %v5377 = vsel %vm4865, %v4477, 0.0
        %v5378 = vsel %vm4866, %v4478, 0.0
        %v5379 = vld [vmem:[%s0] sm:$0x1]
        %v5380 = vld [vmem:[%s0 + $0x1] sm:$0x1]
        %v5381 = vlaneseq
        %v5382 = vshrl.u32 %v5381, 7
        %v5383 = vsub.s32 0, %v5382
        %v5384 = vrot.slane %v5379, %v5383
        %vm5385 = vcmp.gt.f32.partialorder %v1534, %v5384
        %vm5386 = vcmp.gt.f32.partialorder %v1536, %v5384
        %vm5387 = vcmp.gt.f32.partialorder %v1538, %v5384
        %vm5388 = vcmp.gt.f32.partialorder %v1540, %v5384
        %vm5389 = vcmp.gt.f32.partialorder %v1542, %v5384
        %vm5390 = vcmp.gt.f32.partialorder %v1544, %v5384
        %vm5391 = vcmp.gt.f32.partialorder %v1546, %v5384
        %vm5392 = vcmp.gt.f32.partialorder %v1548, %v5384
        %vm5393 = vcmp.gt.f32.partialorder %v1550, %v5384
        %vm5394 = vcmp.gt.f32.partialorder %v1552, %v5384
        %vm5395 = vcmp.gt.f32.partialorder %v1554, %v5384
        %vm5396 = vcmp.gt.f32.partialorder %v1556, %v5384
        %vm5397 = vcmp.gt.f32.partialorder %v1558, %v5384
        %vm5398 = vcmp.gt.f32.partialorder %v1560, %v5384
        %vm5399 = vcmp.gt.f32.partialorder %v1562, %v5384
        %vm5400 = vcmp.gt.f32.partialorder %v1564, %v5384
        %vm5401 = vcmp.gt.f32.partialorder %v1566, %v5384
        %vm5402 = vcmp.gt.f32.partialorder %v1568, %v5384
        %vm5403 = vcmp.gt.f32.partialorder %v1570, %v5384
        %vm5404 = vcmp.gt.f32.partialorder %v1572, %v5384
        %vm5405 = vcmp.gt.f32.partialorder %v1574, %v5384
        %vm5406 = vcmp.gt.f32.partialorder %v1576, %v5384
        %vm5407 = vcmp.gt.f32.partialorder %v1578, %v5384
        %vm5408 = vcmp.gt.f32.partialorder %v1580, %v5384
        %vm5409 = vcmp.gt.f32.partialorder %v1582, %v5384
        %vm5410 = vcmp.gt.f32.partialorder %v1584, %v5384
        %vm5411 = vcmp.gt.f32.partialorder %v1586, %v5384
        %vm5412 = vcmp.gt.f32.partialorder %v1588, %v5384
        %vm5413 = vcmp.gt.f32.partialorder %v1590, %v5384
        %vm5414 = vcmp.gt.f32.partialorder %v1592, %v5384
        %vm5415 = vcmp.gt.f32.partialorder %v1594, %v5384
        %vm5416 = vcmp.gt.f32.partialorder %v1596, %v5384
        %vm5417 = vcmp.gt.f32.partialorder %v1598, %v5384
        %vm5418 = vcmp.gt.f32.partialorder %v1600, %v5384
        %vm5419 = vcmp.gt.f32.partialorder %v1602, %v5384
        %vm5420 = vcmp.gt.f32.partialorder %v1604, %v5384
        %vm5421 = vcmp.gt.f32.partialorder %v1606, %v5384
        %vm5422 = vcmp.gt.f32.partialorder %v1608, %v5384
        %vm5423 = vcmp.gt.f32.partialorder %v1610, %v5384
        %vm5424 = vcmp.gt.f32.partialorder %v1612, %v5384
        %vm5425 = vcmp.gt.f32.partialorder %v1614, %v5384
        %vm5426 = vcmp.gt.f32.partialorder %v1616, %v5384
        %vm5427 = vcmp.gt.f32.partialorder %v1618, %v5384
        %vm5428 = vcmp.gt.f32.partialorder %v1620, %v5384
        %vm5429 = vcmp.gt.f32.partialorder %v1622, %v5384
        %vm5430 = vcmp.gt.f32.partialorder %v1624, %v5384
        %vm5431 = vcmp.gt.f32.partialorder %v1626, %v5384
        %vm5432 = vcmp.gt.f32.partialorder %v1628, %v5384
        %vm5433 = vcmp.gt.f32.partialorder %v1630, %v5384
        %vm5434 = vcmp.gt.f32.partialorder %v1632, %v5384
        %vm5435 = vcmp.gt.f32.partialorder %v1634, %v5384
        %vm5436 = vcmp.gt.f32.partialorder %v1636, %v5384
        %vm5437 = vcmp.gt.f32.partialorder %v1638, %v5384
        %vm5438 = vcmp.gt.f32.partialorder %v1640, %v5384
        %vm5439 = vcmp.gt.f32.partialorder %v1642, %v5384
        %vm5440 = vcmp.gt.f32.partialorder %v1644, %v5384
        %vm5441 = vcmp.gt.f32.partialorder %v1646, %v5384
        %vm5442 = vcmp.gt.f32.partialorder %v1648, %v5384
        %vm5443 = vcmp.gt.f32.partialorder %v1650, %v5384
        %vm5444 = vcmp.gt.f32.partialorder %v1652, %v5384
        %vm5445 = vcmp.gt.f32.partialorder %v1654, %v5384
        %vm5446 = vcmp.gt.f32.partialorder %v1656, %v5384
        %vm5447 = vcmp.gt.f32.partialorder %v1658, %v5384
        %vm5448 = vcmp.gt.f32.partialorder %v1660, %v5384
        %vm5449 = vcmp.gt.f32.partialorder %v1662, %v5384
        %vm5450 = vcmp.gt.f32.partialorder %v1664, %v5384
        %vm5451 = vcmp.gt.f32.partialorder %v1666, %v5384
        %vm5452 = vcmp.gt.f32.partialorder %v1668, %v5384
        %vm5453 = vcmp.gt.f32.partialorder %v1670, %v5384
        %vm5454 = vcmp.gt.f32.partialorder %v1672, %v5384
        %vm5455 = vcmp.gt.f32.partialorder %v1674, %v5384
        %vm5456 = vcmp.gt.f32.partialorder %v1676, %v5384
        %vm5457 = vcmp.gt.f32.partialorder %v1678, %v5384
        %vm5458 = vcmp.gt.f32.partialorder %v1680, %v5384
        %vm5459 = vcmp.gt.f32.partialorder %v1682, %v5384
        %vm5460 = vcmp.gt.f32.partialorder %v1684, %v5384
        %vm5461 = vcmp.gt.f32.partialorder %v1686, %v5384
        %vm5462 = vcmp.gt.f32.partialorder %v1688, %v5384
        %vm5463 = vcmp.gt.f32.partialorder %v1690, %v5384
        %vm5464 = vcmp.gt.f32.partialorder %v1692, %v5384
        %vm5465 = vcmp.gt.f32.partialorder %v1694, %v5384
        %vm5466 = vcmp.gt.f32.partialorder %v1696, %v5384
        %vm5467 = vcmp.gt.f32.partialorder %v1698, %v5384
        %vm5468 = vcmp.gt.f32.partialorder %v1700, %v5384
        %vm5469 = vcmp.gt.f32.partialorder %v1702, %v5384
        %vm5470 = vcmp.gt.f32.partialorder %v1704, %v5384
        %vm5471 = vcmp.gt.f32.partialorder %v1706, %v5384
        %vm5472 = vcmp.gt.f32.partialorder %v1708, %v5384
        %vm5473 = vcmp.gt.f32.partialorder %v1710, %v5384
        %vm5474 = vcmp.gt.f32.partialorder %v1712, %v5384
        %vm5475 = vcmp.gt.f32.partialorder %v1714, %v5384
        %vm5476 = vcmp.gt.f32.partialorder %v1716, %v5384
        %vm5477 = vcmp.gt.f32.partialorder %v1718, %v5384
        %vm5478 = vcmp.gt.f32.partialorder %v1720, %v5384
        %vm5479 = vcmp.gt.f32.partialorder %v1722, %v5384
        %vm5480 = vcmp.gt.f32.partialorder %v1724, %v5384
        %vm5481 = vcmp.gt.f32.partialorder %v1726, %v5384
        %vm5482 = vcmp.gt.f32.partialorder %v1728, %v5384
        %vm5483 = vcmp.gt.f32.partialorder %v1730, %v5384
        %vm5484 = vcmp.gt.f32.partialorder %v1732, %v5384
        %vm5485 = vcmp.gt.f32.partialorder %v1734, %v5384
        %vm5486 = vcmp.gt.f32.partialorder %v1736, %v5384
        %vm5487 = vcmp.gt.f32.partialorder %v1738, %v5384
        %vm5488 = vcmp.gt.f32.partialorder %v1740, %v5384
        %vm5489 = vcmp.gt.f32.partialorder %v1742, %v5384
        %vm5490 = vcmp.gt.f32.partialorder %v1744, %v5384
        %vm5491 = vcmp.gt.f32.partialorder %v1746, %v5384
        %vm5492 = vcmp.gt.f32.partialorder %v1748, %v5384
        %vm5493 = vcmp.gt.f32.partialorder %v1750, %v5384
        %vm5494 = vcmp.gt.f32.partialorder %v1752, %v5384
        %vm5495 = vcmp.gt.f32.partialorder %v1754, %v5384
        %vm5496 = vcmp.gt.f32.partialorder %v1756, %v5384
        %vm5497 = vcmp.gt.f32.partialorder %v1758, %v5384
        %vm5498 = vcmp.gt.f32.partialorder %v1760, %v5384
        %vm5499 = vcmp.gt.f32.partialorder %v1762, %v5384
        %vm5500 = vcmp.gt.f32.partialorder %v1764, %v5384
        %vm5501 = vcmp.gt.f32.partialorder %v1766, %v5384
        %vm5502 = vcmp.gt.f32.partialorder %v1768, %v5384
        %vm5503 = vcmp.gt.f32.partialorder %v1770, %v5384
        %vm5504 = vcmp.gt.f32.partialorder %v1772, %v5384
        %vm5505 = vcmp.gt.f32.partialorder %v1774, %v5384
        %vm5506 = vcmp.gt.f32.partialorder %v1776, %v5384
        %vm5507 = vcmp.gt.f32.partialorder %v1778, %v5384
        %vm5508 = vcmp.gt.f32.partialorder %v1780, %v5384
        %vm5509 = vcmp.gt.f32.partialorder %v1782, %v5384
        %vm5510 = vcmp.gt.f32.partialorder %v1784, %v5384
        %vm5511 = vcmp.gt.f32.partialorder %v1786, %v5384
        %vm5512 = vcmp.gt.f32.partialorder %v1788, %v5384
        %v5513 = vlaneseq
        %v5514 = vshrl.u32 %v5513, 7
        %v5515 = vsub.s32 0, %v5514
        %v5516 = vrot.slane %v5380, %v5515
        %vm5517 = vcmp.le.f32.partialorder %v1534, %v5516
        %vm5518 = vcmp.le.f32.partialorder %v1536, %v5516
        %vm5519 = vcmp.le.f32.partialorder %v1538, %v5516
        %vm5520 = vcmp.le.f32.partialorder %v1540, %v5516
        %vm5521 = vcmp.le.f32.partialorder %v1542, %v5516
        %vm5522 = vcmp.le.f32.partialorder %v1544, %v5516
        %vm5523 = vcmp.le.f32.partialorder %v1546, %v5516
        %vm5524 = vcmp.le.f32.partialorder %v1548, %v5516
        %vm5525 = vcmp.le.f32.partialorder %v1550, %v5516
        %vm5526 = vcmp.le.f32.partialorder %v1552, %v5516
        %vm5527 = vcmp.le.f32.partialorder %v1554, %v5516
        %vm5528 = vcmp.le.f32.partialorder %v1556, %v5516
        %vm5529 = vcmp.le.f32.partialorder %v1558, %v5516
        %vm5530 = vcmp.le.f32.partialorder %v1560, %v5516
        %vm5531 = vcmp.le.f32.partialorder %v1562, %v5516
        %vm5532 = vcmp.le.f32.partialorder %v1564, %v5516
        %vm5533 = vcmp.le.f32.partialorder %v1566, %v5516
        %vm5534 = vcmp.le.f32.partialorder %v1568, %v5516
        %vm5535 = vcmp.le.f32.partialorder %v1570, %v5516
        %vm5536 = vcmp.le.f32.partialorder %v1572, %v5516
        %vm5537 = vcmp.le.f32.partialorder %v1574, %v5516
        %vm5538 = vcmp.le.f32.partialorder %v1576, %v5516
        %vm5539 = vcmp.le.f32.partialorder %v1578, %v5516
        %vm5540 = vcmp.le.f32.partialorder %v1580, %v5516
        %vm5541 = vcmp.le.f32.partialorder %v1582, %v5516
        %vm5542 = vcmp.le.f32.partialorder %v1584, %v5516
        %vm5543 = vcmp.le.f32.partialorder %v1586, %v5516
        %vm5544 = vcmp.le.f32.partialorder %v1588, %v5516
        %vm5545 = vcmp.le.f32.partialorder %v1590, %v5516
        %vm5546 = vcmp.le.f32.partialorder %v1592, %v5516
        %vm5547 = vcmp.le.f32.partialorder %v1594, %v5516
        %vm5548 = vcmp.le.f32.partialorder %v1596, %v5516
        %vm5549 = vcmp.le.f32.partialorder %v1598, %v5516
        %vm5550 = vcmp.le.f32.partialorder %v1600, %v5516
        %vm5551 = vcmp.le.f32.partialorder %v1602, %v5516
        %vm5552 = vcmp.le.f32.partialorder %v1604, %v5516
        %vm5553 = vcmp.le.f32.partialorder %v1606, %v5516
        %vm5554 = vcmp.le.f32.partialorder %v1608, %v5516
        %vm5555 = vcmp.le.f32.partialorder %v1610, %v5516
        %vm5556 = vcmp.le.f32.partialorder %v1612, %v5516
        %vm5557 = vcmp.le.f32.partialorder %v1614, %v5516
        %vm5558 = vcmp.le.f32.partialorder %v1616, %v5516
        %vm5559 = vcmp.le.f32.partialorder %v1618, %v5516
        %vm5560 = vcmp.le.f32.partialorder %v1620, %v5516
        %vm5561 = vcmp.le.f32.partialorder %v1622, %v5516
        %vm5562 = vcmp.le.f32.partialorder %v1624, %v5516
        %vm5563 = vcmp.le.f32.partialorder %v1626, %v5516
        %vm5564 = vcmp.le.f32.partialorder %v1628, %v5516
        %vm5565 = vcmp.le.f32.partialorder %v1630, %v5516
        %vm5566 = vcmp.le.f32.partialorder %v1632, %v5516
        %vm5567 = vcmp.le.f32.partialorder %v1634, %v5516
        %vm5568 = vcmp.le.f32.partialorder %v1636, %v5516
        %vm5569 = vcmp.le.f32.partialorder %v1638, %v5516
        %vm5570 = vcmp.le.f32.partialorder %v1640, %v5516
        %vm5571 = vcmp.le.f32.partialorder %v1642, %v5516
        %vm5572 = vcmp.le.f32.partialorder %v1644, %v5516
        %vm5573 = vcmp.le.f32.partialorder %v1646, %v5516
        %vm5574 = vcmp.le.f32.partialorder %v1648, %v5516
        %vm5575 = vcmp.le.f32.partialorder %v1650, %v5516
        %vm5576 = vcmp.le.f32.partialorder %v1652, %v5516
        %vm5577 = vcmp.le.f32.partialorder %v1654, %v5516
        %vm5578 = vcmp.le.f32.partialorder %v1656, %v5516
        %vm5579 = vcmp.le.f32.partialorder %v1658, %v5516
        %vm5580 = vcmp.le.f32.partialorder %v1660, %v5516
        %vm5581 = vcmp.le.f32.partialorder %v1662, %v5516
        %vm5582 = vcmp.le.f32.partialorder %v1664, %v5516
        %vm5583 = vcmp.le.f32.partialorder %v1666, %v5516
        %vm5584 = vcmp.le.f32.partialorder %v1668, %v5516
        %vm5585 = vcmp.le.f32.partialorder %v1670, %v5516
        %vm5586 = vcmp.le.f32.partialorder %v1672, %v5516
        %vm5587 = vcmp.le.f32.partialorder %v1674, %v5516
        %vm5588 = vcmp.le.f32.partialorder %v1676, %v5516
        %vm5589 = vcmp.le.f32.partialorder %v1678, %v5516
        %vm5590 = vcmp.le.f32.partialorder %v1680, %v5516
        %vm5591 = vcmp.le.f32.partialorder %v1682, %v5516
        %vm5592 = vcmp.le.f32.partialorder %v1684, %v5516
        %vm5593 = vcmp.le.f32.partialorder %v1686, %v5516
        %vm5594 = vcmp.le.f32.partialorder %v1688, %v5516
        %vm5595 = vcmp.le.f32.partialorder %v1690, %v5516
        %vm5596 = vcmp.le.f32.partialorder %v1692, %v5516
        %vm5597 = vcmp.le.f32.partialorder %v1694, %v5516
        %vm5598 = vcmp.le.f32.partialorder %v1696, %v5516
        %vm5599 = vcmp.le.f32.partialorder %v1698, %v5516
        %vm5600 = vcmp.le.f32.partialorder %v1700, %v5516
        %vm5601 = vcmp.le.f32.partialorder %v1702, %v5516
        %vm5602 = vcmp.le.f32.partialorder %v1704, %v5516
        %vm5603 = vcmp.le.f32.partialorder %v1706, %v5516
        %vm5604 = vcmp.le.f32.partialorder %v1708, %v5516
        %vm5605 = vcmp.le.f32.partialorder %v1710, %v5516
        %vm5606 = vcmp.le.f32.partialorder %v1712, %v5516
        %vm5607 = vcmp.le.f32.partialorder %v1714, %v5516
        %vm5608 = vcmp.le.f32.partialorder %v1716, %v5516
        %vm5609 = vcmp.le.f32.partialorder %v1718, %v5516
        %vm5610 = vcmp.le.f32.partialorder %v1720, %v5516
        %vm5611 = vcmp.le.f32.partialorder %v1722, %v5516
        %vm5612 = vcmp.le.f32.partialorder %v1724, %v5516
        %vm5613 = vcmp.le.f32.partialorder %v1726, %v5516
        %vm5614 = vcmp.le.f32.partialorder %v1728, %v5516
        %vm5615 = vcmp.le.f32.partialorder %v1730, %v5516
        %vm5616 = vcmp.le.f32.partialorder %v1732, %v5516
        %vm5617 = vcmp.le.f32.partialorder %v1734, %v5516
        %vm5618 = vcmp.le.f32.partialorder %v1736, %v5516
        %vm5619 = vcmp.le.f32.partialorder %v1738, %v5516
        %vm5620 = vcmp.le.f32.partialorder %v1740, %v5516
        %vm5621 = vcmp.le.f32.partialorder %v1742, %v5516
        %vm5622 = vcmp.le.f32.partialorder %v1744, %v5516
        %vm5623 = vcmp.le.f32.partialorder %v1746, %v5516
        %vm5624 = vcmp.le.f32.partialorder %v1748, %v5516
        %vm5625 = vcmp.le.f32.partialorder %v1750, %v5516
        %vm5626 = vcmp.le.f32.partialorder %v1752, %v5516
        %vm5627 = vcmp.le.f32.partialorder %v1754, %v5516
        %vm5628 = vcmp.le.f32.partialorder %v1756, %v5516
        %vm5629 = vcmp.le.f32.partialorder %v1758, %v5516
        %vm5630 = vcmp.le.f32.partialorder %v1760, %v5516
        %vm5631 = vcmp.le.f32.partialorder %v1762, %v5516
        %vm5632 = vcmp.le.f32.partialorder %v1764, %v5516
        %vm5633 = vcmp.le.f32.partialorder %v1766, %v5516
        %vm5634 = vcmp.le.f32.partialorder %v1768, %v5516
        %vm5635 = vcmp.le.f32.partialorder %v1770, %v5516
        %vm5636 = vcmp.le.f32.partialorder %v1772, %v5516
        %vm5637 = vcmp.le.f32.partialorder %v1774, %v5516
        %vm5638 = vcmp.le.f32.partialorder %v1776, %v5516
        %vm5639 = vcmp.le.f32.partialorder %v1778, %v5516
        %vm5640 = vcmp.le.f32.partialorder %v1780, %v5516
        %vm5641 = vcmp.le.f32.partialorder %v1782, %v5516
        %vm5642 = vcmp.le.f32.partialorder %v1784, %v5516
        %vm5643 = vcmp.le.f32.partialorder %v1786, %v5516
        %vm5644 = vcmp.le.f32.partialorder %v1788, %v5516
        %vm5645 = vmand %vm5385, %vm5517
        %vm5646 = vmand %vm5386, %vm5518
        %vm5647 = vmand %vm5387, %vm5519
        %vm5648 = vmand %vm5388, %vm5520
        %vm5649 = vmand %vm5389, %vm5521
        %vm5650 = vmand %vm5390, %vm5522
        %vm5651 = vmand %vm5391, %vm5523
        %vm5652 = vmand %vm5392, %vm5524
        %vm5653 = vmand %vm5393, %vm5525
        %vm5654 = vmand %vm5394, %vm5526
        %vm5655 = vmand %vm5395, %vm5527
        %vm5656 = vmand %vm5396, %vm5528
        %vm5657 = vmand %vm5397, %vm5529
        %vm5658 = vmand %vm5398, %vm5530
        %vm5659 = vmand %vm5399, %vm5531
        %vm5660 = vmand %vm5400, %vm5532
        %vm5661 = vmand %vm5401, %vm5533
        %vm5662 = vmand %vm5402, %vm5534
        %vm5663 = vmand %vm5403, %vm5535
        %vm5664 = vmand %vm5404, %vm5536
        %vm5665 = vmand %vm5405, %vm5537
        %vm5666 = vmand %vm5406, %vm5538
        %vm5667 = vmand %vm5407, %vm5539
        %vm5668 = vmand %vm5408, %vm5540
        %vm5669 = vmand %vm5409, %vm5541
        %vm5670 = vmand %vm5410, %vm5542
        %vm5671 = vmand %vm5411, %vm5543
        %vm5672 = vmand %vm5412, %vm5544
        %vm5673 = vmand %vm5413, %vm5545
        %vm5674 = vmand %vm5414, %vm5546
        %vm5675 = vmand %vm5415, %vm5547
        %vm5676 = vmand %vm5416, %vm5548
        %vm5677 = vmand %vm5417, %vm5549
        %vm5678 = vmand %vm5418, %vm5550
        %vm5679 = vmand %vm5419, %vm5551
        %vm5680 = vmand %vm5420, %vm5552
        %vm5681 = vmand %vm5421, %vm5553
        %vm5682 = vmand %vm5422, %vm5554
        %vm5683 = vmand %vm5423, %vm5555
        %vm5684 = vmand %vm5424, %vm5556
        %vm5685 = vmand %vm5425, %vm5557
        %vm5686 = vmand %vm5426, %vm5558
        %vm5687 = vmand %vm5427, %vm5559
        %vm5688 = vmand %vm5428, %vm5560
        %vm5689 = vmand %vm5429, %vm5561
        %vm5690 = vmand %vm5430, %vm5562
        %vm5691 = vmand %vm5431, %vm5563
        %vm5692 = vmand %vm5432, %vm5564
        %vm5693 = vmand %vm5433, %vm5565
        %vm5694 = vmand %vm5434, %vm5566
        %vm5695 = vmand %vm5435, %vm5567
        %vm5696 = vmand %vm5436, %vm5568
        %vm5697 = vmand %vm5437, %vm5569
        %vm5698 = vmand %vm5438, %vm5570
        %vm5699 = vmand %vm5439, %vm5571
        %vm5700 = vmand %vm5440, %vm5572
        %vm5701 = vmand %vm5441, %vm5573
        %vm5702 = vmand %vm5442, %vm5574
        %vm5703 = vmand %vm5443, %vm5575
        %vm5704 = vmand %vm5444, %vm5576
        %vm5705 = vmand %vm5445, %vm5577
        %vm5706 = vmand %vm5446, %vm5578
        %vm5707 = vmand %vm5447, %vm5579
        %vm5708 = vmand %vm5448, %vm5580
        %vm5709 = vmand %vm5449, %vm5581
        %vm5710 = vmand %vm5450, %vm5582
        %vm5711 = vmand %vm5451, %vm5583
        %vm5712 = vmand %vm5452, %vm5584
        %vm5713 = vmand %vm5453, %vm5585
        %vm5714 = vmand %vm5454, %vm5586
        %vm5715 = vmand %vm5455, %vm5587
        %vm5716 = vmand %vm5456, %vm5588
        %vm5717 = vmand %vm5457, %vm5589
        %vm5718 = vmand %vm5458, %vm5590
        %vm5719 = vmand %vm5459, %vm5591
        %vm5720 = vmand %vm5460, %vm5592
        %vm5721 = vmand %vm5461, %vm5593
        %vm5722 = vmand %vm5462, %vm5594
        %vm5723 = vmand %vm5463, %vm5595
        %vm5724 = vmand %vm5464, %vm5596
        %vm5725 = vmand %vm5465, %vm5597
        %vm5726 = vmand %vm5466, %vm5598
        %vm5727 = vmand %vm5467, %vm5599
        %vm5728 = vmand %vm5468, %vm5600
        %vm5729 = vmand %vm5469, %vm5601
        %vm5730 = vmand %vm5470, %vm5602
        %vm5731 = vmand %vm5471, %vm5603
        %vm5732 = vmand %vm5472, %vm5604
        %vm5733 = vmand %vm5473, %vm5605
        %vm5734 = vmand %vm5474, %vm5606
        %vm5735 = vmand %vm5475, %vm5607
        %vm5736 = vmand %vm5476, %vm5608
        %vm5737 = vmand %vm5477, %vm5609
        %vm5738 = vmand %vm5478, %vm5610
        %vm5739 = vmand %vm5479, %vm5611
        %vm5740 = vmand %vm5480, %vm5612
        %vm5741 = vmand %vm5481, %vm5613
        %vm5742 = vmand %vm5482, %vm5614
        %vm5743 = vmand %vm5483, %vm5615
        %vm5744 = vmand %vm5484, %vm5616
        %vm5745 = vmand %vm5485, %vm5617
        %vm5746 = vmand %vm5486, %vm5618
        %vm5747 = vmand %vm5487, %vm5619
        %vm5748 = vmand %vm5488, %vm5620
        %vm5749 = vmand %vm5489, %vm5621
        %vm5750 = vmand %vm5490, %vm5622
        %vm5751 = vmand %vm5491, %vm5623
        %vm5752 = vmand %vm5492, %vm5624
        %vm5753 = vmand %vm5493, %vm5625
        %vm5754 = vmand %vm5494, %vm5626
        %vm5755 = vmand %vm5495, %vm5627
        %vm5756 = vmand %vm5496, %vm5628
        %vm5757 = vmand %vm5497, %vm5629
        %vm5758 = vmand %vm5498, %vm5630
        %vm5759 = vmand %vm5499, %vm5631
        %vm5760 = vmand %vm5500, %vm5632
        %vm5761 = vmand %vm5501, %vm5633
        %vm5762 = vmand %vm5502, %vm5634
        %vm5763 = vmand %vm5503, %vm5635
        %vm5764 = vmand %vm5504, %vm5636
        %vm5765 = vmand %vm5505, %vm5637
        %vm5766 = vmand %vm5506, %vm5638
        %vm5767 = vmand %vm5507, %vm5639
        %vm5768 = vmand %vm5508, %vm5640
        %vm5769 = vmand %vm5509, %vm5641
        %vm5770 = vmand %vm5510, %vm5642
        %vm5771 = vmand %vm5511, %vm5643
        %vm5772 = vmand %vm5512, %vm5644
        %v5773 = vsel %vm5645, 1, 0
        %v5774 = vsel %vm5646, 1, 0
        %v5775 = vsel %vm5647, 1, 0
        %v5776 = vsel %vm5648, 1, 0
        %v5777 = vsel %vm5649, 1, 0
        %v5778 = vsel %vm5650, 1, 0
        %v5779 = vsel %vm5651, 1, 0
        %v5780 = vsel %vm5652, 1, 0
        %v5781 = vsel %vm5653, 1, 0
        %v5782 = vsel %vm5654, 1, 0
        %v5783 = vsel %vm5655, 1, 0
        %v5784 = vsel %vm5656, 1, 0
        %v5785 = vsel %vm5657, 1, 0
        %v5786 = vsel %vm5658, 1, 0
        %v5787 = vsel %vm5659, 1, 0
        %v5788 = vsel %vm5660, 1, 0
        %v5789 = vsel %vm5661, 1, 0
        %v5790 = vsel %vm5662, 1, 0
        %v5791 = vsel %vm5663, 1, 0
        %v5792 = vsel %vm5664, 1, 0
        %v5793 = vsel %vm5665, 1, 0
        %v5794 = vsel %vm5666, 1, 0
        %v5795 = vsel %vm5667, 1, 0
        %v5796 = vsel %vm5668, 1, 0
        %v5797 = vsel %vm5669, 1, 0
        %v5798 = vsel %vm5670, 1, 0
        %v5799 = vsel %vm5671, 1, 0
        %v5800 = vsel %vm5672, 1, 0
        %v5801 = vsel %vm5673, 1, 0
        %v5802 = vsel %vm5674, 1, 0
        %v5803 = vsel %vm5675, 1, 0
        %v5804 = vsel %vm5676, 1, 0
        %v5805 = vsel %vm5677, 1, 0
        %v5806 = vsel %vm5678, 1, 0
        %v5807 = vsel %vm5679, 1, 0
        %v5808 = vsel %vm5680, 1, 0
        %v5809 = vsel %vm5681, 1, 0
        %v5810 = vsel %vm5682, 1, 0
        %v5811 = vsel %vm5683, 1, 0
        %v5812 = vsel %vm5684, 1, 0
        %v5813 = vsel %vm5685, 1, 0
        %v5814 = vsel %vm5686, 1, 0
        %v5815 = vsel %vm5687, 1, 0
        %v5816 = vsel %vm5688, 1, 0
        %v5817 = vsel %vm5689, 1, 0
        %v5818 = vsel %vm5690, 1, 0
        %v5819 = vsel %vm5691, 1, 0
        %v5820 = vsel %vm5692, 1, 0
        %v5821 = vsel %vm5693, 1, 0
        %v5822 = vsel %vm5694, 1, 0
        %v5823 = vsel %vm5695, 1, 0
        %v5824 = vsel %vm5696, 1, 0
        %v5825 = vsel %vm5697, 1, 0
        %v5826 = vsel %vm5698, 1, 0
        %v5827 = vsel %vm5699, 1, 0
        %v5828 = vsel %vm5700, 1, 0
        %v5829 = vsel %vm5701, 1, 0
        %v5830 = vsel %vm5702, 1, 0
        %v5831 = vsel %vm5703, 1, 0
        %v5832 = vsel %vm5704, 1, 0
        %v5833 = vsel %vm5705, 1, 0
        %v5834 = vsel %vm5706, 1, 0
        %v5835 = vsel %vm5707, 1, 0
        %v5836 = vsel %vm5708, 1, 0
        %v5837 = vsel %vm5709, 1, 0
        %v5838 = vsel %vm5710, 1, 0
        %v5839 = vsel %vm5711, 1, 0
        %v5840 = vsel %vm5712, 1, 0
        %v5841 = vsel %vm5713, 1, 0
        %v5842 = vsel %vm5714, 1, 0
        %v5843 = vsel %vm5715, 1, 0
        %v5844 = vsel %vm5716, 1, 0
        %v5845 = vsel %vm5717, 1, 0
        %v5846 = vsel %vm5718, 1, 0
        %v5847 = vsel %vm5719, 1, 0
        %v5848 = vsel %vm5720, 1, 0
        %v5849 = vsel %vm5721, 1, 0
        %v5850 = vsel %vm5722, 1, 0
        %v5851 = vsel %vm5723, 1, 0
        %v5852 = vsel %vm5724, 1, 0
        %v5853 = vsel %vm5725, 1, 0
        %v5854 = vsel %vm5726, 1, 0
        %v5855 = vsel %vm5727, 1, 0
        %v5856 = vsel %vm5728, 1, 0
        %v5857 = vsel %vm5729, 1, 0
        %v5858 = vsel %vm5730, 1, 0
        %v5859 = vsel %vm5731, 1, 0
        %v5860 = vsel %vm5732, 1, 0
        %v5861 = vsel %vm5733, 1, 0
        %v5862 = vsel %vm5734, 1, 0
        %v5863 = vsel %vm5735, 1, 0
        %v5864 = vsel %vm5736, 1, 0
        %v5865 = vsel %vm5737, 1, 0
        %v5866 = vsel %vm5738, 1, 0
        %v5867 = vsel %vm5739, 1, 0
        %v5868 = vsel %vm5740, 1, 0
        %v5869 = vsel %vm5741, 1, 0
        %v5870 = vsel %vm5742, 1, 0
        %v5871 = vsel %vm5743, 1, 0
        %v5872 = vsel %vm5744, 1, 0
        %v5873 = vsel %vm5745, 1, 0
        %v5874 = vsel %vm5746, 1, 0
        %v5875 = vsel %vm5747, 1, 0
        %v5876 = vsel %vm5748, 1, 0
        %v5877 = vsel %vm5749, 1, 0
        %v5878 = vsel %vm5750, 1, 0
        %v5879 = vsel %vm5751, 1, 0
        %v5880 = vsel %vm5752, 1, 0
        %v5881 = vsel %vm5753, 1, 0
        %v5882 = vsel %vm5754, 1, 0
        %v5883 = vsel %vm5755, 1, 0
        %v5884 = vsel %vm5756, 1, 0
        %v5885 = vsel %vm5757, 1, 0
        %v5886 = vsel %vm5758, 1, 0
        %v5887 = vsel %vm5759, 1, 0
        %v5888 = vsel %vm5760, 1, 0
        %v5889 = vsel %vm5761, 1, 0
        %v5890 = vsel %vm5762, 1, 0
        %v5891 = vsel %vm5763, 1, 0
        %v5892 = vsel %vm5764, 1, 0
        %v5893 = vsel %vm5765, 1, 0
        %v5894 = vsel %vm5766, 1, 0
        %v5895 = vsel %vm5767, 1, 0
        %v5896 = vsel %vm5768, 1, 0
        %v5897 = vsel %vm5769, 1, 0
        %v5898 = vsel %vm5770, 1, 0
        %v5899 = vsel %vm5771, 1, 0
        %v5900 = vsel %vm5772, 1, 0
        %v5901 = vcvt.s32.f32 %v5773
        %v5902 = vcvt.s32.f32 %v5774
        %v5903 = vcvt.s32.f32 %v5775
        %v5904 = vcvt.s32.f32 %v5776
        %v5905 = vcvt.s32.f32 %v5777
        %v5906 = vcvt.s32.f32 %v5778
        %v5907 = vcvt.s32.f32 %v5779
        %v5908 = vcvt.s32.f32 %v5780
        %v5909 = vcvt.s32.f32 %v5781
        %v5910 = vcvt.s32.f32 %v5782
        %v5911 = vcvt.s32.f32 %v5783
        %v5912 = vcvt.s32.f32 %v5784
        %v5913 = vcvt.s32.f32 %v5785
        %v5914 = vcvt.s32.f32 %v5786
        %v5915 = vcvt.s32.f32 %v5787
        %v5916 = vcvt.s32.f32 %v5788
        %v5917 = vcvt.s32.f32 %v5789
        %v5918 = vcvt.s32.f32 %v5790
        %v5919 = vcvt.s32.f32 %v5791
        %v5920 = vcvt.s32.f32 %v5792
        %v5921 = vcvt.s32.f32 %v5793
        %v5922 = vcvt.s32.f32 %v5794
        %v5923 = vcvt.s32.f32 %v5795
        %v5924 = vcvt.s32.f32 %v5796
        %v5925 = vcvt.s32.f32 %v5797
        %v5926 = vcvt.s32.f32 %v5798
        %v5927 = vcvt.s32.f32 %v5799
        %v5928 = vcvt.s32.f32 %v5800
        %v5929 = vcvt.s32.f32 %v5801
        %v5930 = vcvt.s32.f32 %v5802
        %v5931 = vcvt.s32.f32 %v5803
        %v5932 = vcvt.s32.f32 %v5804
        %v5933 = vcvt.s32.f32 %v5805
        %v5934 = vcvt.s32.f32 %v5806
        %v5935 = vcvt.s32.f32 %v5807
        %v5936 = vcvt.s32.f32 %v5808
        %v5937 = vcvt.s32.f32 %v5809
        %v5938 = vcvt.s32.f32 %v5810
        %v5939 = vcvt.s32.f32 %v5811
        %v5940 = vcvt.s32.f32 %v5812
        %v5941 = vcvt.s32.f32 %v5813
        %v5942 = vcvt.s32.f32 %v5814
        %v5943 = vcvt.s32.f32 %v5815
        %v5944 = vcvt.s32.f32 %v5816
        %v5945 = vcvt.s32.f32 %v5817
        %v5946 = vcvt.s32.f32 %v5818
        %v5947 = vcvt.s32.f32 %v5819
        %v5948 = vcvt.s32.f32 %v5820
        %v5949 = vcvt.s32.f32 %v5821
        %v5950 = vcvt.s32.f32 %v5822
        %v5951 = vcvt.s32.f32 %v5823
        %v5952 = vcvt.s32.f32 %v5824
        %v5953 = vcvt.s32.f32 %v5825
        %v5954 = vcvt.s32.f32 %v5826
        %v5955 = vcvt.s32.f32 %v5827
        %v5956 = vcvt.s32.f32 %v5828
        %v5957 = vcvt.s32.f32 %v5829
        %v5958 = vcvt.s32.f32 %v5830
        %v5959 = vcvt.s32.f32 %v5831
        %v5960 = vcvt.s32.f32 %v5832
        %v5961 = vcvt.s32.f32 %v5833
        %v5962 = vcvt.s32.f32 %v5834
        %v5963 = vcvt.s32.f32 %v5835
        %v5964 = vcvt.s32.f32 %v5836
        %v5965 = vcvt.s32.f32 %v5837
        %v5966 = vcvt.s32.f32 %v5838
        %v5967 = vcvt.s32.f32 %v5839
        %v5968 = vcvt.s32.f32 %v5840
        %v5969 = vcvt.s32.f32 %v5841
        %v5970 = vcvt.s32.f32 %v5842
        %v5971 = vcvt.s32.f32 %v5843
        %v5972 = vcvt.s32.f32 %v5844
        %v5973 = vcvt.s32.f32 %v5845
        %v5974 = vcvt.s32.f32 %v5846
        %v5975 = vcvt.s32.f32 %v5847
        %v5976 = vcvt.s32.f32 %v5848
        %v5977 = vcvt.s32.f32 %v5849
        %v5978 = vcvt.s32.f32 %v5850
        %v5979 = vcvt.s32.f32 %v5851
        %v5980 = vcvt.s32.f32 %v5852
        %v5981 = vcvt.s32.f32 %v5853
        %v5982 = vcvt.s32.f32 %v5854
        %v5983 = vcvt.s32.f32 %v5855
        %v5984 = vcvt.s32.f32 %v5856
        %v5985 = vcvt.s32.f32 %v5857
        %v5986 = vcvt.s32.f32 %v5858
        %v5987 = vcvt.s32.f32 %v5859
        %v5988 = vcvt.s32.f32 %v5860
        %v5989 = vcvt.s32.f32 %v5861
        %v5990 = vcvt.s32.f32 %v5862
        %v5991 = vcvt.s32.f32 %v5863
        %v5992 = vcvt.s32.f32 %v5864
        %v5993 = vcvt.s32.f32 %v5865
        %v5994 = vcvt.s32.f32 %v5866
        %v5995 = vcvt.s32.f32 %v5867
        %v5996 = vcvt.s32.f32 %v5868
        %v5997 = vcvt.s32.f32 %v5869
        %v5998 = vcvt.s32.f32 %v5870
        %v5999 = vcvt.s32.f32 %v5871
        %v6000 = vcvt.s32.f32 %v5872
        %v6001 = vcvt.s32.f32 %v5873
        %v6002 = vcvt.s32.f32 %v5874
        %v6003 = vcvt.s32.f32 %v5875
        %v6004 = vcvt.s32.f32 %v5876
        %v6005 = vcvt.s32.f32 %v5877
        %v6006 = vcvt.s32.f32 %v5878
        %v6007 = vcvt.s32.f32 %v5879
        %v6008 = vcvt.s32.f32 %v5880
        %v6009 = vcvt.s32.f32 %v5881
        %v6010 = vcvt.s32.f32 %v5882
        %v6011 = vcvt.s32.f32 %v5883
        %v6012 = vcvt.s32.f32 %v5884
        %v6013 = vcvt.s32.f32 %v5885
        %v6014 = vcvt.s32.f32 %v5886
        %v6015 = vcvt.s32.f32 %v5887
        %v6016 = vcvt.s32.f32 %v5888
        %v6017 = vcvt.s32.f32 %v5889
        %v6018 = vcvt.s32.f32 %v5890
        %v6019 = vcvt.s32.f32 %v5891
        %v6020 = vcvt.s32.f32 %v5892
        %v6021 = vcvt.s32.f32 %v5893
        %v6022 = vcvt.s32.f32 %v5894
        %v6023 = vcvt.s32.f32 %v5895
        %v6024 = vcvt.s32.f32 %v5896
        %v6025 = vcvt.s32.f32 %v5897
        %v6026 = vcvt.s32.f32 %v5898
        %v6027 = vcvt.s32.f32 %v5899
        %v6028 = vcvt.s32.f32 %v5900
        %v6029 = vmul.f32 %v5901, %v4995
        %v6030 = vmul.f32 %v5902, %v4996
        %v6031 = vmul.f32 %v5903, %v4997
        %v6032 = vmul.f32 %v5904, %v4998
        %v6033 = vmul.f32 %v5905, %v4999
        %v6034 = vmul.f32 %v5906, %v5000
        %v6035 = vmul.f32 %v5907, %v5001
        %v6036 = vmul.f32 %v5908, %v5002
        %v6037 = vmul.f32 %v5909, %v5003
        %v6038 = vmul.f32 %v5910, %v5004
        %v6039 = vmul.f32 %v5911, %v5005
        %v6040 = vmul.f32 %v5912, %v5006
        %v6041 = vmul.f32 %v5913, %v5007
        %v6042 = vmul.f32 %v5914, %v5008
        %v6043 = vmul.f32 %v5915, %v5009
        %v6044 = vmul.f32 %v5916, %v5010
        %v6045 = vmul.f32 %v5917, %v5011
        %v6046 = vmul.f32 %v5918, %v5012
        %v6047 = vmul.f32 %v5919, %v5013
        %v6048 = vmul.f32 %v5920, %v5014
        %v6049 = vmul.f32 %v5921, %v5015
        %v6050 = vmul.f32 %v5922, %v5016
        %v6051 = vmul.f32 %v5923, %v5017
        %v6052 = vmul.f32 %v5924, %v5018
        %v6053 = vmul.f32 %v5925, %v5019
        %v6054 = vmul.f32 %v5926, %v5020
        %v6055 = vmul.f32 %v5927, %v5021
        %v6056 = vmul.f32 %v5928, %v5022
        %v6057 = vmul.f32 %v5929, %v5023
        %v6058 = vmul.f32 %v5930, %v5024
        %v6059 = vmul.f32 %v5931, %v5025
        %v6060 = vmul.f32 %v5932, %v5026
        %v6061 = vmul.f32 %v5933, %v5027
        %v6062 = vmul.f32 %v5934, %v5028
        %v6063 = vmul.f32 %v5935, %v5029
        %v6064 = vmul.f32 %v5936, %v5030
        %v6065 = vmul.f32 %v5937, %v5031
        %v6066 = vmul.f32 %v5938, %v5032
        %v6067 = vmul.f32 %v5939, %v5033
        %v6068 = vmul.f32 %v5940, %v5034
        %v6069 = vmul.f32 %v5941, %v5035
        %v6070 = vmul.f32 %v5942, %v5036
        %v6071 = vmul.f32 %v5943, %v5037
        %v6072 = vmul.f32 %v5944, %v5038
        %v6073 = vmul.f32 %v5945, %v5039
        %v6074 = vmul.f32 %v5946, %v5040
        %v6075 = vmul.f32 %v5947, %v5041
        %v6076 = vmul.f32 %v5948, %v5042
        %v6077 = vmul.f32 %v5949, %v5043
        %v6078 = vmul.f32 %v5950, %v5044
        %v6079 = vmul.f32 %v5951, %v5045
        %v6080 = vmul.f32 %v5952, %v5046
        %v6081 = vmul.f32 %v5953, %v5047
        %v6082 = vmul.f32 %v5954, %v5048
        %v6083 = vmul.f32 %v5955, %v5049
        %v6084 = vmul.f32 %v5956, %v5050
        %v6085 = vmul.f32 %v5957, %v5051
        %v6086 = vmul.f32 %v5958, %v5052
        %v6087 = vmul.f32 %v5959, %v5053
        %v6088 = vmul.f32 %v5960, %v5054
        %v6089 = vmul.f32 %v5961, %v5055
        %v6090 = vmul.f32 %v5962, %v5056
        %v6091 = vmul.f32 %v5963, %v5057
        %v6092 = vmul.f32 %v5964, %v5058
        %v6093 = vmul.f32 %v5965, %v5059
        %v6094 = vmul.f32 %v5966, %v5060
        %v6095 = vmul.f32 %v5967, %v5061
        %v6096 = vmul.f32 %v5968, %v5062
        %v6097 = vmul.f32 %v5969, %v5063
        %v6098 = vmul.f32 %v5970, %v5064
        %v6099 = vmul.f32 %v5971, %v5065
        %v6100 = vmul.f32 %v5972, %v5066
        %v6101 = vmul.f32 %v5973, %v5067
        %v6102 = vmul.f32 %v5974, %v5068
        %v6103 = vmul.f32 %v5975, %v5069
        %v6104 = vmul.f32 %v5976, %v5070
        %v6105 = vmul.f32 %v5977, %v5071
        %v6106 = vmul.f32 %v5978, %v5072
        %v6107 = vmul.f32 %v5979, %v5073
        %v6108 = vmul.f32 %v5980, %v5074
        %v6109 = vmul.f32 %v5981, %v5075
        %v6110 = vmul.f32 %v5982, %v5076
        %v6111 = vmul.f32 %v5983, %v5077
        %v6112 = vmul.f32 %v5984, %v5078
        %v6113 = vmul.f32 %v5985, %v5079
        %v6114 = vmul.f32 %v5986, %v5080
        %v6115 = vmul.f32 %v5987, %v5081
        %v6116 = vmul.f32 %v5988, %v5082
        %v6117 = vmul.f32 %v5989, %v5083
        %v6118 = vmul.f32 %v5990, %v5084
        %v6119 = vmul.f32 %v5991, %v5085
        %v6120 = vmul.f32 %v5992, %v5086
        %v6121 = vmul.f32 %v5993, %v5087
        %v6122 = vmul.f32 %v5994, %v5088
        %v6123 = vmul.f32 %v5995, %v5089
        %v6124 = vmul.f32 %v5996, %v5090
        %v6125 = vmul.f32 %v5997, %v5091
        %v6126 = vmul.f32 %v5998, %v5092
        %v6127 = vmul.f32 %v5999, %v5093
        %v6128 = vmul.f32 %v6000, %v5094
        %v6129 = vmul.f32 %v6001, %v5095
        %v6130 = vmul.f32 %v6002, %v5096
        %v6131 = vmul.f32 %v6003, %v5097
        %v6132 = vmul.f32 %v6004, %v5098
        %v6133 = vmul.f32 %v6005, %v5099
        %v6134 = vmul.f32 %v6006, %v5100
        %v6135 = vmul.f32 %v6007, %v5101
        %v6136 = vmul.f32 %v6008, %v5102
        %v6137 = vmul.f32 %v6009, %v5103
        %v6138 = vmul.f32 %v6010, %v5104
        %v6139 = vmul.f32 %v6011, %v5105
        %v6140 = vmul.f32 %v6012, %v5106
        %v6141 = vmul.f32 %v6013, %v5107
        %v6142 = vmul.f32 %v6014, %v5108
        %v6143 = vmul.f32 %v6015, %v5109
        %v6144 = vmul.f32 %v6016, %v5110
        %v6145 = vmul.f32 %v6017, %v5111
        %v6146 = vmul.f32 %v6018, %v5112
        %v6147 = vmul.f32 %v6019, %v5113
        %v6148 = vmul.f32 %v6020, %v5114
        %v6149 = vmul.f32 %v6021, %v5115
        %v6150 = vmul.f32 %v6022, %v5116
        %v6151 = vmul.f32 %v6023, %v5117
        %v6152 = vmul.f32 %v6024, %v5118
        %v6153 = vmul.f32 %v6025, %v5119
        %v6154 = vmul.f32 %v6026, %v5120
        %v6155 = vmul.f32 %v6027, %v5121
        %v6156 = vmul.f32 %v6028, %v5122
        %v6157 = vadd.f32 %v6029, %v6030
        %v6158 = vadd.f32 %v6157, %v6031
        %v6159 = vadd.f32 %v6158, %v6032
        %v6160 = vadd.f32 %v6159, %v6033
        %v6161 = vadd.f32 %v6160, %v6034
        %v6162 = vadd.f32 %v6161, %v6035
        %v6163 = vadd.f32 %v6162, %v6036
        %v6164 = vadd.f32 %v6163, %v6037
        %v6165 = vadd.f32 %v6164, %v6038
        %v6166 = vadd.f32 %v6165, %v6039
        %v6167 = vadd.f32 %v6166, %v6040
        %v6168 = vadd.f32 %v6167, %v6041
        %v6169 = vadd.f32 %v6168, %v6042
        %v6170 = vadd.f32 %v6169, %v6043
        %v6171 = vadd.f32 %v6170, %v6044
        %v6172 = vadd.f32 %v6171, %v6045
        %v6173 = vadd.f32 %v6172, %v6046
        %v6174 = vadd.f32 %v6173, %v6047
        %v6175 = vadd.f32 %v6174, %v6048
        %v6176 = vadd.f32 %v6175, %v6049
        %v6177 = vadd.f32 %v6176, %v6050
        %v6178 = vadd.f32 %v6177, %v6051
        %v6179 = vadd.f32 %v6178, %v6052
        %v6180 = vadd.f32 %v6179, %v6053
        %v6181 = vadd.f32 %v6180, %v6054
        %v6182 = vadd.f32 %v6181, %v6055
        %v6183 = vadd.f32 %v6182, %v6056
        %v6184 = vadd.f32 %v6183, %v6057
        %v6185 = vadd.f32 %v6184, %v6058
        %v6186 = vadd.f32 %v6185, %v6059
        %v6187 = vadd.f32 %v6186, %v6060
        %v6188 = vadd.f32 %v6187, %v6061
        %v6189 = vadd.f32 %v6188, %v6062
        %v6190 = vadd.f32 %v6189, %v6063
        %v6191 = vadd.f32 %v6190, %v6064
        %v6192 = vadd.f32 %v6191, %v6065
        %v6193 = vadd.f32 %v6192, %v6066
        %v6194 = vadd.f32 %v6193, %v6067
        %v6195 = vadd.f32 %v6194, %v6068
        %v6196 = vadd.f32 %v6195, %v6069
        %v6197 = vadd.f32 %v6196, %v6070
        %v6198 = vadd.f32 %v6197, %v6071
        %v6199 = vadd.f32 %v6198, %v6072
        %v6200 = vadd.f32 %v6199, %v6073
        %v6201 = vadd.f32 %v6200, %v6074
        %v6202 = vadd.f32 %v6201, %v6075
        %v6203 = vadd.f32 %v6202, %v6076
        %v6204 = vadd.f32 %v6203, %v6077
        %v6205 = vadd.f32 %v6204, %v6078
        %v6206 = vadd.f32 %v6205, %v6079
        %v6207 = vadd.f32 %v6206, %v6080
        %v6208 = vadd.f32 %v6207, %v6081
        %v6209 = vadd.f32 %v6208, %v6082
        %v6210 = vadd.f32 %v6209, %v6083
        %v6211 = vadd.f32 %v6210, %v6084
        %v6212 = vadd.f32 %v6211, %v6085
        %v6213 = vadd.f32 %v6212, %v6086
        %v6214 = vadd.f32 %v6213, %v6087
        %v6215 = vadd.f32 %v6214, %v6088
        %v6216 = vadd.f32 %v6215, %v6089
        %v6217 = vadd.f32 %v6216, %v6090
        %v6218 = vadd.f32 %v6217, %v6091
        %v6219 = vadd.f32 %v6218, %v6092
        %v6220 = vadd.f32 %v6219, %v6093
        %v6221 = vadd.f32 %v6220, %v6094
        %v6222 = vadd.f32 %v6221, %v6095
        %v6223 = vadd.f32 %v6222, %v6096
        %v6224 = vadd.f32 %v6223, %v6097
        %v6225 = vadd.f32 %v6224, %v6098
        %v6226 = vadd.f32 %v6225, %v6099
        %v6227 = vadd.f32 %v6226, %v6100
        %v6228 = vadd.f32 %v6227, %v6101
        %v6229 = vadd.f32 %v6228, %v6102
        %v6230 = vadd.f32 %v6229, %v6103
        %v6231 = vadd.f32 %v6230, %v6104
        %v6232 = vadd.f32 %v6231, %v6105
        %v6233 = vadd.f32 %v6232, %v6106
        %v6234 = vadd.f32 %v6233, %v6107
        %v6235 = vadd.f32 %v6234, %v6108
        %v6236 = vadd.f32 %v6235, %v6109
        %v6237 = vadd.f32 %v6236, %v6110
        %v6238 = vadd.f32 %v6237, %v6111
        %v6239 = vadd.f32 %v6238, %v6112
        %v6240 = vadd.f32 %v6239, %v6113
        %v6241 = vadd.f32 %v6240, %v6114
        %v6242 = vadd.f32 %v6241, %v6115
        %v6243 = vadd.f32 %v6242, %v6116
        %v6244 = vadd.f32 %v6243, %v6117
        %v6245 = vadd.f32 %v6244, %v6118
        %v6246 = vadd.f32 %v6245, %v6119
        %v6247 = vadd.f32 %v6246, %v6120
        %v6248 = vadd.f32 %v6247, %v6121
        %v6249 = vadd.f32 %v6248, %v6122
        %v6250 = vadd.f32 %v6249, %v6123
        %v6251 = vadd.f32 %v6250, %v6124
        %v6252 = vadd.f32 %v6251, %v6125
        %v6253 = vadd.f32 %v6252, %v6126
        %v6254 = vadd.f32 %v6253, %v6127
        %v6255 = vadd.f32 %v6254, %v6128
        %v6256 = vadd.f32 %v6255, %v6129
        %v6257 = vadd.f32 %v6256, %v6130
        %v6258 = vadd.f32 %v6257, %v6131
        %v6259 = vadd.f32 %v6258, %v6132
        %v6260 = vadd.f32 %v6259, %v6133
        %v6261 = vadd.f32 %v6260, %v6134
        %v6262 = vadd.f32 %v6261, %v6135
        %v6263 = vadd.f32 %v6262, %v6136
        %v6264 = vadd.f32 %v6263, %v6137
        %v6265 = vadd.f32 %v6264, %v6138
        %v6266 = vadd.f32 %v6265, %v6139
        %v6267 = vadd.f32 %v6266, %v6140
        %v6268 = vadd.f32 %v6267, %v6141
        %v6269 = vadd.f32 %v6268, %v6142
        %v6270 = vadd.f32 %v6269, %v6143
        %v6271 = vadd.f32 %v6270, %v6144
        %v6272 = vadd.f32 %v6271, %v6145
        %v6273 = vadd.f32 %v6272, %v6146
        %v6274 = vadd.f32 %v6273, %v6147
        %v6275 = vadd.f32 %v6274, %v6148
        %v6276 = vadd.f32 %v6275, %v6149
        %v6277 = vadd.f32 %v6276, %v6150
        %v6278 = vadd.f32 %v6277, %v6151
        %v6279 = vadd.f32 %v6278, %v6152
        %v6280 = vadd.f32 %v6279, %v6153
        %v6281 = vadd.f32 %v6280, %v6154
        %v6282 = vadd.f32 %v6281, %v6155
        %v6283 = vadd.f32 %v6282, %v6156
        %v6284 = vrot.slane %v6283, 4
        %v6285 = vadd.f32 %v6283, %v6284
        %v6286 = vrot.slane %v6285, 2
        %v6287 = vadd.f32 %v6285, %v6286
        %v6288 = vrot.slane %v6287, 1
        %v6289 = vadd.f32 %v6287, %v6288
        %v6290 = vmul.f32 %v5901, %v5123
        %v6291 = vmul.f32 %v5902, %v5124
        %v6292 = vmul.f32 %v5903, %v5125
        %v6293 = vmul.f32 %v5904, %v5126
        %v6294 = vmul.f32 %v5905, %v5127
        %v6295 = vmul.f32 %v5906, %v5128
        %v6296 = vmul.f32 %v5907, %v5129
        %v6297 = vmul.f32 %v5908, %v5130
        %v6298 = vmul.f32 %v5909, %v5131
        %v6299 = vmul.f32 %v5910, %v5132
        %v6300 = vmul.f32 %v5911, %v5133
        %v6301 = vmul.f32 %v5912, %v5134
        %v6302 = vmul.f32 %v5913, %v5135
        %v6303 = vmul.f32 %v5914, %v5136
        %v6304 = vmul.f32 %v5915, %v5137
        %v6305 = vmul.f32 %v5916, %v5138
        %v6306 = vmul.f32 %v5917, %v5139
        %v6307 = vmul.f32 %v5918, %v5140
        %v6308 = vmul.f32 %v5919, %v5141
        %v6309 = vmul.f32 %v5920, %v5142
        %v6310 = vmul.f32 %v5921, %v5143
        %v6311 = vmul.f32 %v5922, %v5144
        %v6312 = vmul.f32 %v5923, %v5145
        %v6313 = vmul.f32 %v5924, %v5146
        %v6314 = vmul.f32 %v5925, %v5147
        %v6315 = vmul.f32 %v5926, %v5148
        %v6316 = vmul.f32 %v5927, %v5149
        %v6317 = vmul.f32 %v5928, %v5150
        %v6318 = vmul.f32 %v5929, %v5151
        %v6319 = vmul.f32 %v5930, %v5152
        %v6320 = vmul.f32 %v5931, %v5153
        %v6321 = vmul.f32 %v5932, %v5154
        %v6322 = vmul.f32 %v5933, %v5155
        %v6323 = vmul.f32 %v5934, %v5156
        %v6324 = vmul.f32 %v5935, %v5157
        %v6325 = vmul.f32 %v5936, %v5158
        %v6326 = vmul.f32 %v5937, %v5159
        %v6327 = vmul.f32 %v5938, %v5160
        %v6328 = vmul.f32 %v5939, %v5161
        %v6329 = vmul.f32 %v5940, %v5162
        %v6330 = vmul.f32 %v5941, %v5163
        %v6331 = vmul.f32 %v5942, %v5164
        %v6332 = vmul.f32 %v5943, %v5165
        %v6333 = vmul.f32 %v5944, %v5166
        %v6334 = vmul.f32 %v5945, %v5167
        %v6335 = vmul.f32 %v5946, %v5168
        %v6336 = vmul.f32 %v5947, %v5169
        %v6337 = vmul.f32 %v5948, %v5170
        %v6338 = vmul.f32 %v5949, %v5171
        %v6339 = vmul.f32 %v5950, %v5172
        %v6340 = vmul.f32 %v5951, %v5173
        %v6341 = vmul.f32 %v5952, %v5174
        %v6342 = vmul.f32 %v5953, %v5175
        %v6343 = vmul.f32 %v5954, %v5176
        %v6344 = vmul.f32 %v5955, %v5177
        %v6345 = vmul.f32 %v5956, %v5178
        %v6346 = vmul.f32 %v5957, %v5179
        %v6347 = vmul.f32 %v5958, %v5180
        %v6348 = vmul.f32 %v5959, %v5181
        %v6349 = vmul.f32 %v5960, %v5182
        %v6350 = vmul.f32 %v5961, %v5183
        %v6351 = vmul.f32 %v5962, %v5184
        %v6352 = vmul.f32 %v5963, %v5185
        %v6353 = vmul.f32 %v5964, %v5186
        %v6354 = vmul.f32 %v5965, %v5187
        %v6355 = vmul.f32 %v5966, %v5188
        %v6356 = vmul.f32 %v5967, %v5189
        %v6357 = vmul.f32 %v5968, %v5190
        %v6358 = vmul.f32 %v5969, %v5191
        %v6359 = vmul.f32 %v5970, %v5192
        %v6360 = vmul.f32 %v5971, %v5193
        %v6361 = vmul.f32 %v5972, %v5194
        %v6362 = vmul.f32 %v5973, %v5195
        %v6363 = vmul.f32 %v5974, %v5196
        %v6364 = vmul.f32 %v5975, %v5197
        %v6365 = vmul.f32 %v5976, %v5198
        %v6366 = vmul.f32 %v5977, %v5199
        %v6367 = vmul.f32 %v5978, %v5200
        %v6368 = vmul.f32 %v5979, %v5201
        %v6369 = vmul.f32 %v5980, %v5202
        %v6370 = vmul.f32 %v5981, %v5203
        %v6371 = vmul.f32 %v5982, %v5204
        %v6372 = vmul.f32 %v5983, %v5205
        %v6373 = vmul.f32 %v5984, %v5206
        %v6374 = vmul.f32 %v5985, %v5207
        %v6375 = vmul.f32 %v5986, %v5208
        %v6376 = vmul.f32 %v5987, %v5209
        %v6377 = vmul.f32 %v5988, %v5210
        %v6378 = vmul.f32 %v5989, %v5211
        %v6379 = vmul.f32 %v5990, %v5212
        %v6380 = vmul.f32 %v5991, %v5213
        %v6381 = vmul.f32 %v5992, %v5214
        %v6382 = vmul.f32 %v5993, %v5215
        %v6383 = vmul.f32 %v5994, %v5216
        %v6384 = vmul.f32 %v5995, %v5217
        %v6385 = vmul.f32 %v5996, %v5218
        %v6386 = vmul.f32 %v5997, %v5219
        %v6387 = vmul.f32 %v5998, %v5220
        %v6388 = vmul.f32 %v5999, %v5221
        %v6389 = vmul.f32 %v6000, %v5222
        %v6390 = vmul.f32 %v6001, %v5223
        %v6391 = vmul.f32 %v6002, %v5224
        %v6392 = vmul.f32 %v6003, %v5225
        %v6393 = vmul.f32 %v6004, %v5226
        %v6394 = vmul.f32 %v6005, %v5227
        %v6395 = vmul.f32 %v6006, %v5228
        %v6396 = vmul.f32 %v6007, %v5229
        %v6397 = vmul.f32 %v6008, %v5230
        %v6398 = vmul.f32 %v6009, %v5231
        %v6399 = vmul.f32 %v6010, %v5232
        %v6400 = vmul.f32 %v6011, %v5233
        %v6401 = vmul.f32 %v6012, %v5234
        %v6402 = vmul.f32 %v6013, %v5235
        %v6403 = vmul.f32 %v6014, %v5236
        %v6404 = vmul.f32 %v6015, %v5237
        %v6405 = vmul.f32 %v6016, %v5238
        %v6406 = vmul.f32 %v6017, %v5239
        %v6407 = vmul.f32 %v6018, %v5240
        %v6408 = vmul.f32 %v6019, %v5241
        %v6409 = vmul.f32 %v6020, %v5242
        %v6410 = vmul.f32 %v6021, %v5243
        %v6411 = vmul.f32 %v6022, %v5244
        %v6412 = vmul.f32 %v6023, %v5245
        %v6413 = vmul.f32 %v6024, %v5246
        %v6414 = vmul.f32 %v6025, %v5247
        %v6415 = vmul.f32 %v6026, %v5248
        %v6416 = vmul.f32 %v6027, %v5249
        %v6417 = vmul.f32 %v6028, %v5250
        %v6418 = vadd.f32 %v6290, %v6291
        %v6419 = vadd.f32 %v6418, %v6292
        %v6420 = vadd.f32 %v6419, %v6293
        %v6421 = vadd.f32 %v6420, %v6294
        %v6422 = vadd.f32 %v6421, %v6295
        %v6423 = vadd.f32 %v6422, %v6296
        %v6424 = vadd.f32 %v6423, %v6297
        %v6425 = vadd.f32 %v6424, %v6298
        %v6426 = vadd.f32 %v6425, %v6299
        %v6427 = vadd.f32 %v6426, %v6300
        %v6428 = vadd.f32 %v6427, %v6301
        %v6429 = vadd.f32 %v6428, %v6302
        %v6430 = vadd.f32 %v6429, %v6303
        %v6431 = vadd.f32 %v6430, %v6304
        %v6432 = vadd.f32 %v6431, %v6305
        %v6433 = vadd.f32 %v6432, %v6306
        %v6434 = vadd.f32 %v6433, %v6307
        %v6435 = vadd.f32 %v6434, %v6308
        %v6436 = vadd.f32 %v6435, %v6309
        %v6437 = vadd.f32 %v6436, %v6310
        %v6438 = vadd.f32 %v6437, %v6311
        %v6439 = vadd.f32 %v6438, %v6312
        %v6440 = vadd.f32 %v6439, %v6313
        %v6441 = vadd.f32 %v6440, %v6314
        %v6442 = vadd.f32 %v6441, %v6315
        %v6443 = vadd.f32 %v6442, %v6316
        %v6444 = vadd.f32 %v6443, %v6317
        %v6445 = vadd.f32 %v6444, %v6318
        %v6446 = vadd.f32 %v6445, %v6319
        %v6447 = vadd.f32 %v6446, %v6320
        %v6448 = vadd.f32 %v6447, %v6321
        %v6449 = vadd.f32 %v6448, %v6322
        %v6450 = vadd.f32 %v6449, %v6323
        %v6451 = vadd.f32 %v6450, %v6324
        %v6452 = vadd.f32 %v6451, %v6325
        %v6453 = vadd.f32 %v6452, %v6326
        %v6454 = vadd.f32 %v6453, %v6327
        %v6455 = vadd.f32 %v6454, %v6328
        %v6456 = vadd.f32 %v6455, %v6329
        %v6457 = vadd.f32 %v6456, %v6330
        %v6458 = vadd.f32 %v6457, %v6331
        %v6459 = vadd.f32 %v6458, %v6332
        %v6460 = vadd.f32 %v6459, %v6333
        %v6461 = vadd.f32 %v6460, %v6334
        %v6462 = vadd.f32 %v6461, %v6335
        %v6463 = vadd.f32 %v6462, %v6336
        %v6464 = vadd.f32 %v6463, %v6337
        %v6465 = vadd.f32 %v6464, %v6338
        %v6466 = vadd.f32 %v6465, %v6339
        %v6467 = vadd.f32 %v6466, %v6340
        %v6468 = vadd.f32 %v6467, %v6341
        %v6469 = vadd.f32 %v6468, %v6342
        %v6470 = vadd.f32 %v6469, %v6343
        %v6471 = vadd.f32 %v6470, %v6344
        %v6472 = vadd.f32 %v6471, %v6345
        %v6473 = vadd.f32 %v6472, %v6346
        %v6474 = vadd.f32 %v6473, %v6347
        %v6475 = vadd.f32 %v6474, %v6348
        %v6476 = vadd.f32 %v6475, %v6349
        %v6477 = vadd.f32 %v6476, %v6350
        %v6478 = vadd.f32 %v6477, %v6351
        %v6479 = vadd.f32 %v6478, %v6352
        %v6480 = vadd.f32 %v6479, %v6353
        %v6481 = vadd.f32 %v6480, %v6354
        %v6482 = vadd.f32 %v6481, %v6355
        %v6483 = vadd.f32 %v6482, %v6356
        %v6484 = vadd.f32 %v6483, %v6357
        %v6485 = vadd.f32 %v6484, %v6358
        %v6486 = vadd.f32 %v6485, %v6359
        %v6487 = vadd.f32 %v6486, %v6360
        %v6488 = vadd.f32 %v6487, %v6361
        %v6489 = vadd.f32 %v6488, %v6362
        %v6490 = vadd.f32 %v6489, %v6363
        %v6491 = vadd.f32 %v6490, %v6364
        %v6492 = vadd.f32 %v6491, %v6365
        %v6493 = vadd.f32 %v6492, %v6366
        %v6494 = vadd.f32 %v6493, %v6367
        %v6495 = vadd.f32 %v6494, %v6368
        %v6496 = vadd.f32 %v6495, %v6369
        %v6497 = vadd.f32 %v6496, %v6370
        %v6498 = vadd.f32 %v6497, %v6371
        %v6499 = vadd.f32 %v6498, %v6372
        %v6500 = vadd.f32 %v6499, %v6373
        %v6501 = vadd.f32 %v6500, %v6374
        %v6502 = vadd.f32 %v6501, %v6375
        %v6503 = vadd.f32 %v6502, %v6376
        %v6504 = vadd.f32 %v6503, %v6377
        %v6505 = vadd.f32 %v6504, %v6378
        %v6506 = vadd.f32 %v6505, %v6379
        %v6507 = vadd.f32 %v6506, %v6380
        %v6508 = vadd.f32 %v6507, %v6381
        %v6509 = vadd.f32 %v6508, %v6382
        %v6510 = vadd.f32 %v6509, %v6383
        %v6511 = vadd.f32 %v6510, %v6384
        %v6512 = vadd.f32 %v6511, %v6385
        %v6513 = vadd.f32 %v6512, %v6386
        %v6514 = vadd.f32 %v6513, %v6387
        %v6515 = vadd.f32 %v6514, %v6388
        %v6516 = vadd.f32 %v6515, %v6389
        %v6517 = vadd.f32 %v6516, %v6390
        %v6518 = vadd.f32 %v6517, %v6391
        %v6519 = vadd.f32 %v6518, %v6392
        %v6520 = vadd.f32 %v6519, %v6393
        %v6521 = vadd.f32 %v6520, %v6394
        %v6522 = vadd.f32 %v6521, %v6395
        %v6523 = vadd.f32 %v6522, %v6396
        %v6524 = vadd.f32 %v6523, %v6397
        %v6525 = vadd.f32 %v6524, %v6398
        %v6526 = vadd.f32 %v6525, %v6399
        %v6527 = vadd.f32 %v6526, %v6400
        %v6528 = vadd.f32 %v6527, %v6401
        %v6529 = vadd.f32 %v6528, %v6402
        %v6530 = vadd.f32 %v6529, %v6403
        %v6531 = vadd.f32 %v6530, %v6404
        %v6532 = vadd.f32 %v6531, %v6405
        %v6533 = vadd.f32 %v6532, %v6406
        %v6534 = vadd.f32 %v6533, %v6407
        %v6535 = vadd.f32 %v6534, %v6408
        %v6536 = vadd.f32 %v6535, %v6409
        %v6537 = vadd.f32 %v6536, %v6410
        %v6538 = vadd.f32 %v6537, %v6411
        %v6539 = vadd.f32 %v6538, %v6412
        %v6540 = vadd.f32 %v6539, %v6413
        %v6541 = vadd.f32 %v6540, %v6414
        %v6542 = vadd.f32 %v6541, %v6415
        %v6543 = vadd.f32 %v6542, %v6416
        %v6544 = vadd.f32 %v6543, %v6417
        %v6545 = vrot.slane %v6544, 4
        %v6546 = vadd.f32 %v6544, %v6545
        %v6547 = vrot.slane %v6546, 2
        %v6548 = vadd.f32 %v6546, %v6547
        %v6549 = vrot.slane %v6548, 1
        %v6550 = vadd.f32 %v6548, %v6549
        %6552 = vset.pattern.permute.xlu0 0
        %6553 = vperm.xlu0 %6552, %v5251
        %v6554 = vpop.permute.xlu0 %6553
        %6557 = vset.pattern.permute.xlu0 0
        %6558 = vperm.xlu0 %6557, %v5252
        %v6559 = vpop.permute.xlu0 %6558
        %6562 = vset.pattern.permute.xlu0 0
        %6563 = vperm.xlu0 %6562, %v5253
        %v6564 = vpop.permute.xlu0 %6563
        %6567 = vset.pattern.permute.xlu0 0
        %6568 = vperm.xlu0 %6567, %v5254
        %v6569 = vpop.permute.xlu0 %6568
        %6572 = vset.pattern.permute.xlu0 0
        %6573 = vperm.xlu0 %6572, %v5255
        %v6574 = vpop.permute.xlu0 %6573
        %6577 = vset.pattern.permute.xlu0 0
        %6578 = vperm.xlu0 %6577, %v5256
        %v6579 = vpop.permute.xlu0 %6578
        %6582 = vset.pattern.permute.xlu0 0
        %6583 = vperm.xlu0 %6582, %v5257
        %v6584 = vpop.permute.xlu0 %6583
        %6587 = vset.pattern.permute.xlu0 0
        %6588 = vperm.xlu0 %6587, %v5258
        %v6589 = vpop.permute.xlu0 %6588
        %6592 = vset.pattern.permute.xlu0 0
        %6593 = vperm.xlu0 %6592, %v5259
        %v6594 = vpop.permute.xlu0 %6593
        %6597 = vset.pattern.permute.xlu0 0
        %6598 = vperm.xlu0 %6597, %v5260
        %v6599 = vpop.permute.xlu0 %6598
        %6602 = vset.pattern.permute.xlu0 0
        %6603 = vperm.xlu0 %6602, %v5261
        %v6604 = vpop.permute.xlu0 %6603
        %6607 = vset.pattern.permute.xlu0 0
        %6608 = vperm.xlu0 %6607, %v5262
        %v6609 = vpop.permute.xlu0 %6608
        %6612 = vset.pattern.permute.xlu0 0
        %6613 = vperm.xlu0 %6612, %v5263
        %v6614 = vpop.permute.xlu0 %6613
        %6617 = vset.pattern.permute.xlu0 0
        %6618 = vperm.xlu0 %6617, %v5264
        %v6619 = vpop.permute.xlu0 %6618
        %6622 = vset.pattern.permute.xlu0 0
        %6623 = vperm.xlu0 %6622, %v5265
        %v6624 = vpop.permute.xlu0 %6623
        %6627 = vset.pattern.permute.xlu0 0
        %6628 = vperm.xlu0 %6627, %v5266
        %v6629 = vpop.permute.xlu0 %6628
        %6632 = vset.pattern.permute.xlu0 0
        %6633 = vperm.xlu0 %6632, %v5267
        %v6634 = vpop.permute.xlu0 %6633
        %6637 = vset.pattern.permute.xlu0 0
        %6638 = vperm.xlu0 %6637, %v5268
        %v6639 = vpop.permute.xlu0 %6638
        %6642 = vset.pattern.permute.xlu0 0
        %6643 = vperm.xlu0 %6642, %v5269
        %v6644 = vpop.permute.xlu0 %6643
        %6647 = vset.pattern.permute.xlu0 0
        %6648 = vperm.xlu0 %6647, %v5270
        %v6649 = vpop.permute.xlu0 %6648
        %6652 = vset.pattern.permute.xlu0 0
        %6653 = vperm.xlu0 %6652, %v5271
        %v6654 = vpop.permute.xlu0 %6653
        %6657 = vset.pattern.permute.xlu0 0
        %6658 = vperm.xlu0 %6657, %v5272
        %v6659 = vpop.permute.xlu0 %6658
        %6662 = vset.pattern.permute.xlu0 0
        %6663 = vperm.xlu0 %6662, %v5273
        %v6664 = vpop.permute.xlu0 %6663
        %6667 = vset.pattern.permute.xlu0 0
        %6668 = vperm.xlu0 %6667, %v5274
        %v6669 = vpop.permute.xlu0 %6668
        %6672 = vset.pattern.permute.xlu0 0
        %6673 = vperm.xlu0 %6672, %v5275
        %v6674 = vpop.permute.xlu0 %6673
        %6677 = vset.pattern.permute.xlu0 0
        %6678 = vperm.xlu0 %6677, %v5276
        %v6679 = vpop.permute.xlu0 %6678
        %6682 = vset.pattern.permute.xlu0 0
        %6683 = vperm.xlu0 %6682, %v5277
        %v6684 = vpop.permute.xlu0 %6683
        %6687 = vset.pattern.permute.xlu0 0
        %6688 = vperm.xlu0 %6687, %v5278
        %v6689 = vpop.permute.xlu0 %6688
        %6692 = vset.pattern.permute.xlu0 0
        %6693 = vperm.xlu0 %6692, %v5279
        %v6694 = vpop.permute.xlu0 %6693
        %6697 = vset.pattern.permute.xlu0 0
        %6698 = vperm.xlu0 %6697, %v5280
        %v6699 = vpop.permute.xlu0 %6698
        %6702 = vset.pattern.permute.xlu0 0
        %6703 = vperm.xlu0 %6702, %v5281
        %v6704 = vpop.permute.xlu0 %6703
        %6707 = vset.pattern.permute.xlu0 0
        %6708 = vperm.xlu0 %6707, %v5282
        %v6709 = vpop.permute.xlu0 %6708
        %6712 = vset.pattern.permute.xlu0 0
        %6713 = vperm.xlu0 %6712, %v5283
        %v6714 = vpop.permute.xlu0 %6713
        %6717 = vset.pattern.permute.xlu0 0
        %6718 = vperm.xlu0 %6717, %v5284
        %v6719 = vpop.permute.xlu0 %6718
        %6722 = vset.pattern.permute.xlu0 0
        %6723 = vperm.xlu0 %6722, %v5285
        %v6724 = vpop.permute.xlu0 %6723
        %6727 = vset.pattern.permute.xlu0 0
        %6728 = vperm.xlu0 %6727, %v5286
        %v6729 = vpop.permute.xlu0 %6728
        %6732 = vset.pattern.permute.xlu0 0
        %6733 = vperm.xlu0 %6732, %v5287
        %v6734 = vpop.permute.xlu0 %6733
        %6737 = vset.pattern.permute.xlu0 0
        %6738 = vperm.xlu0 %6737, %v5288
        %v6739 = vpop.permute.xlu0 %6738
        %6742 = vset.pattern.permute.xlu0 0
        %6743 = vperm.xlu0 %6742, %v5289
        %v6744 = vpop.permute.xlu0 %6743
        %6747 = vset.pattern.permute.xlu0 0
        %6748 = vperm.xlu0 %6747, %v5290
        %v6749 = vpop.permute.xlu0 %6748
        %6752 = vset.pattern.permute.xlu0 0
        %6753 = vperm.xlu0 %6752, %v5291
        %v6754 = vpop.permute.xlu0 %6753
        %6757 = vset.pattern.permute.xlu0 0
        %6758 = vperm.xlu0 %6757, %v5292
        %v6759 = vpop.permute.xlu0 %6758
        %6762 = vset.pattern.permute.xlu0 0
        %6763 = vperm.xlu0 %6762, %v5293
        %v6764 = vpop.permute.xlu0 %6763
        %6767 = vset.pattern.permute.xlu0 0
        %6768 = vperm.xlu0 %6767, %v5294
        %v6769 = vpop.permute.xlu0 %6768
        %6772 = vset.pattern.permute.xlu0 0
        %6773 = vperm.xlu0 %6772, %v5295
        %v6774 = vpop.permute.xlu0 %6773
        %6777 = vset.pattern.permute.xlu0 0
        %6778 = vperm.xlu0 %6777, %v5296
        %v6779 = vpop.permute.xlu0 %6778
        %6782 = vset.pattern.permute.xlu0 0
        %6783 = vperm.xlu0 %6782, %v5297
        %v6784 = vpop.permute.xlu0 %6783
        %6787 = vset.pattern.permute.xlu0 0
        %6788 = vperm.xlu0 %6787, %v5298
        %v6789 = vpop.permute.xlu0 %6788
        %6792 = vset.pattern.permute.xlu0 0
        %6793 = vperm.xlu0 %6792, %v5299
        %v6794 = vpop.permute.xlu0 %6793
        %6797 = vset.pattern.permute.xlu0 0
        %6798 = vperm.xlu0 %6797, %v5300
        %v6799 = vpop.permute.xlu0 %6798
        %6802 = vset.pattern.permute.xlu0 0
        %6803 = vperm.xlu0 %6802, %v5301
        %v6804 = vpop.permute.xlu0 %6803
        %6807 = vset.pattern.permute.xlu0 0
        %6808 = vperm.xlu0 %6807, %v5302
        %v6809 = vpop.permute.xlu0 %6808
        %6812 = vset.pattern.permute.xlu0 0
        %6813 = vperm.xlu0 %6812, %v5303
        %v6814 = vpop.permute.xlu0 %6813
        %6817 = vset.pattern.permute.xlu0 0
        %6818 = vperm.xlu0 %6817, %v5304
        %v6819 = vpop.permute.xlu0 %6818
        %6822 = vset.pattern.permute.xlu0 0
        %6823 = vperm.xlu0 %6822, %v5305
        %v6824 = vpop.permute.xlu0 %6823
        %6827 = vset.pattern.permute.xlu0 0
        %6828 = vperm.xlu0 %6827, %v5306
        %v6829 = vpop.permute.xlu0 %6828
        %6832 = vset.pattern.permute.xlu0 0
        %6833 = vperm.xlu0 %6832, %v5307
        %v6834 = vpop.permute.xlu0 %6833
        %6837 = vset.pattern.permute.xlu0 0
        %6838 = vperm.xlu0 %6837, %v5308
        %v6839 = vpop.permute.xlu0 %6838
        %6842 = vset.pattern.permute.xlu0 0
        %6843 = vperm.xlu0 %6842, %v5309
        %v6844 = vpop.permute.xlu0 %6843
        %6847 = vset.pattern.permute.xlu0 0
        %6848 = vperm.xlu0 %6847, %v5310
        %v6849 = vpop.permute.xlu0 %6848
        %6852 = vset.pattern.permute.xlu0 0
        %6853 = vperm.xlu0 %6852, %v5311
        %v6854 = vpop.permute.xlu0 %6853
        %6857 = vset.pattern.permute.xlu0 0
        %6858 = vperm.xlu0 %6857, %v5312
        %v6859 = vpop.permute.xlu0 %6858
        %6862 = vset.pattern.permute.xlu0 0
        %6863 = vperm.xlu0 %6862, %v5313
        %v6864 = vpop.permute.xlu0 %6863
        %6867 = vset.pattern.permute.xlu0 0
        %6868 = vperm.xlu0 %6867, %v5314
        %v6869 = vpop.permute.xlu0 %6868
        %6872 = vset.pattern.permute.xlu0 0
        %6873 = vperm.xlu0 %6872, %v5315
        %v6874 = vpop.permute.xlu0 %6873
        %6877 = vset.pattern.permute.xlu0 0
        %6878 = vperm.xlu0 %6877, %v5316
        %v6879 = vpop.permute.xlu0 %6878
        %6882 = vset.pattern.permute.xlu0 0
        %6883 = vperm.xlu0 %6882, %v5317
        %v6884 = vpop.permute.xlu0 %6883
        %6887 = vset.pattern.permute.xlu0 0
        %6888 = vperm.xlu0 %6887, %v5318
        %v6889 = vpop.permute.xlu0 %6888
        %6892 = vset.pattern.permute.xlu0 0
        %6893 = vperm.xlu0 %6892, %v5319
        %v6894 = vpop.permute.xlu0 %6893
        %6897 = vset.pattern.permute.xlu0 0
        %6898 = vperm.xlu0 %6897, %v5320
        %v6899 = vpop.permute.xlu0 %6898
        %6902 = vset.pattern.permute.xlu0 0
        %6903 = vperm.xlu0 %6902, %v5321
        %v6904 = vpop.permute.xlu0 %6903
        %6907 = vset.pattern.permute.xlu0 0
        %6908 = vperm.xlu0 %6907, %v5322
        %v6909 = vpop.permute.xlu0 %6908
        %6912 = vset.pattern.permute.xlu0 0
        %6913 = vperm.xlu0 %6912, %v5323
        %v6914 = vpop.permute.xlu0 %6913
        %6917 = vset.pattern.permute.xlu0 0
        %6918 = vperm.xlu0 %6917, %v5324
        %v6919 = vpop.permute.xlu0 %6918
        %6922 = vset.pattern.permute.xlu0 0
        %6923 = vperm.xlu0 %6922, %v5325
        %v6924 = vpop.permute.xlu0 %6923
        %6927 = vset.pattern.permute.xlu0 0
        %6928 = vperm.xlu0 %6927, %v5326
        %v6929 = vpop.permute.xlu0 %6928
        %6932 = vset.pattern.permute.xlu0 0
        %6933 = vperm.xlu0 %6932, %v5327
        %v6934 = vpop.permute.xlu0 %6933
        %6937 = vset.pattern.permute.xlu0 0
        %6938 = vperm.xlu0 %6937, %v5328
        %v6939 = vpop.permute.xlu0 %6938
        %6942 = vset.pattern.permute.xlu0 0
        %6943 = vperm.xlu0 %6942, %v5329
        %v6944 = vpop.permute.xlu0 %6943
        %6947 = vset.pattern.permute.xlu0 0
        %6948 = vperm.xlu0 %6947, %v5330
        %v6949 = vpop.permute.xlu0 %6948
        %6952 = vset.pattern.permute.xlu0 0
        %6953 = vperm.xlu0 %6952, %v5331
        %v6954 = vpop.permute.xlu0 %6953
        %6957 = vset.pattern.permute.xlu0 0
        %6958 = vperm.xlu0 %6957, %v5332
        %v6959 = vpop.permute.xlu0 %6958
        %6962 = vset.pattern.permute.xlu0 0
        %6963 = vperm.xlu0 %6962, %v5333
        %v6964 = vpop.permute.xlu0 %6963
        %6967 = vset.pattern.permute.xlu0 0
        %6968 = vperm.xlu0 %6967, %v5334
        %v6969 = vpop.permute.xlu0 %6968
        %6972 = vset.pattern.permute.xlu0 0
        %6973 = vperm.xlu0 %6972, %v5335
        %v6974 = vpop.permute.xlu0 %6973
        %6977 = vset.pattern.permute.xlu0 0
        %6978 = vperm.xlu0 %6977, %v5336
        %v6979 = vpop.permute.xlu0 %6978
        %6982 = vset.pattern.permute.xlu0 0
        %6983 = vperm.xlu0 %6982, %v5337
        %v6984 = vpop.permute.xlu0 %6983
        %6987 = vset.pattern.permute.xlu0 0
        %6988 = vperm.xlu0 %6987, %v5338
        %v6989 = vpop.permute.xlu0 %6988
        %6992 = vset.pattern.permute.xlu0 0
        %6993 = vperm.xlu0 %6992, %v5339
        %v6994 = vpop.permute.xlu0 %6993
        %6997 = vset.pattern.permute.xlu0 0
        %6998 = vperm.xlu0 %6997, %v5340
        %v6999 = vpop.permute.xlu0 %6998
        %7002 = vset.pattern.permute.xlu0 0
        %7003 = vperm.xlu0 %7002, %v5341
        %v7004 = vpop.permute.xlu0 %7003
        %7007 = vset.pattern.permute.xlu0 0
        %7008 = vperm.xlu0 %7007, %v5342
        %v7009 = vpop.permute.xlu0 %7008
        %7012 = vset.pattern.permute.xlu0 0
        %7013 = vperm.xlu0 %7012, %v5343
        %v7014 = vpop.permute.xlu0 %7013
        %7017 = vset.pattern.permute.xlu0 0
        %7018 = vperm.xlu0 %7017, %v5344
        %v7019 = vpop.permute.xlu0 %7018
        %7022 = vset.pattern.permute.xlu0 0
        %7023 = vperm.xlu0 %7022, %v5345
        %v7024 = vpop.permute.xlu0 %7023
        %7027 = vset.pattern.permute.xlu0 0
        %7028 = vperm.xlu0 %7027, %v5346
        %v7029 = vpop.permute.xlu0 %7028
        %7032 = vset.pattern.permute.xlu0 0
        %7033 = vperm.xlu0 %7032, %v5347
        %v7034 = vpop.permute.xlu0 %7033
        %7037 = vset.pattern.permute.xlu0 0
        %7038 = vperm.xlu0 %7037, %v5348
        %v7039 = vpop.permute.xlu0 %7038
        %7042 = vset.pattern.permute.xlu0 0
        %7043 = vperm.xlu0 %7042, %v5349
        %v7044 = vpop.permute.xlu0 %7043
        %7047 = vset.pattern.permute.xlu0 0
        %7048 = vperm.xlu0 %7047, %v5350
        %v7049 = vpop.permute.xlu0 %7048
        %7052 = vset.pattern.permute.xlu0 0
        %7053 = vperm.xlu0 %7052, %v5351
        %v7054 = vpop.permute.xlu0 %7053
        %7057 = vset.pattern.permute.xlu0 0
        %7058 = vperm.xlu0 %7057, %v5352
        %v7059 = vpop.permute.xlu0 %7058
        %7062 = vset.pattern.permute.xlu0 0
        %7063 = vperm.xlu0 %7062, %v5353
        %v7064 = vpop.permute.xlu0 %7063
        %7067 = vset.pattern.permute.xlu0 0
        %7068 = vperm.xlu0 %7067, %v5354
        %v7069 = vpop.permute.xlu0 %7068
        %7072 = vset.pattern.permute.xlu0 0
        %7073 = vperm.xlu0 %7072, %v5355
        %v7074 = vpop.permute.xlu0 %7073
        %7077 = vset.pattern.permute.xlu0 0
        %7078 = vperm.xlu0 %7077, %v5356
        %v7079 = vpop.permute.xlu0 %7078
        %7082 = vset.pattern.permute.xlu0 0
        %7083 = vperm.xlu0 %7082, %v5357
        %v7084 = vpop.permute.xlu0 %7083
        %7087 = vset.pattern.permute.xlu0 0
        %7088 = vperm.xlu0 %7087, %v5358
        %v7089 = vpop.permute.xlu0 %7088
        %7092 = vset.pattern.permute.xlu0 0
        %7093 = vperm.xlu0 %7092, %v5359
        %v7094 = vpop.permute.xlu0 %7093
        %7097 = vset.pattern.permute.xlu0 0
        %7098 = vperm.xlu0 %7097, %v5360
        %v7099 = vpop.permute.xlu0 %7098
        %7102 = vset.pattern.permute.xlu0 0
        %7103 = vperm.xlu0 %7102, %v5361
        %v7104 = vpop.permute.xlu0 %7103
        %7107 = vset.pattern.permute.xlu0 0
        %7108 = vperm.xlu0 %7107, %v5362
        %v7109 = vpop.permute.xlu0 %7108
        %7112 = vset.pattern.permute.xlu0 0
        %7113 = vperm.xlu0 %7112, %v5363
        %v7114 = vpop.permute.xlu0 %7113
        %7117 = vset.pattern.permute.xlu0 0
        %7118 = vperm.xlu0 %7117, %v5364
        %v7119 = vpop.permute.xlu0 %7118
        %7122 = vset.pattern.permute.xlu0 0
        %7123 = vperm.xlu0 %7122, %v5365
        %v7124 = vpop.permute.xlu0 %7123
        %7127 = vset.pattern.permute.xlu0 0
        %7128 = vperm.xlu0 %7127, %v5366
        %v7129 = vpop.permute.xlu0 %7128
        %7132 = vset.pattern.permute.xlu0 0
        %7133 = vperm.xlu0 %7132, %v5367
        %v7134 = vpop.permute.xlu0 %7133
        %7137 = vset.pattern.permute.xlu0 0
        %7138 = vperm.xlu0 %7137, %v5368
        %v7139 = vpop.permute.xlu0 %7138
        %7142 = vset.pattern.permute.xlu0 0
        %7143 = vperm.xlu0 %7142, %v5369
        %v7144 = vpop.permute.xlu0 %7143
        %7147 = vset.pattern.permute.xlu0 0
        %7148 = vperm.xlu0 %7147, %v5370
        %v7149 = vpop.permute.xlu0 %7148
        %7152 = vset.pattern.permute.xlu0 0
        %7153 = vperm.xlu0 %7152, %v5371
        %v7154 = vpop.permute.xlu0 %7153
        %7157 = vset.pattern.permute.xlu0 0
        %7158 = vperm.xlu0 %7157, %v5372
        %v7159 = vpop.permute.xlu0 %7158
        %7162 = vset.pattern.permute.xlu0 0
        %7163 = vperm.xlu0 %7162, %v5373
        %v7164 = vpop.permute.xlu0 %7163
        %7167 = vset.pattern.permute.xlu0 0
        %7168 = vperm.xlu0 %7167, %v5374
        %v7169 = vpop.permute.xlu0 %7168
        %7172 = vset.pattern.permute.xlu0 0
        %7173 = vperm.xlu0 %7172, %v5375
        %v7174 = vpop.permute.xlu0 %7173
        %7177 = vset.pattern.permute.xlu0 0
        %7178 = vperm.xlu0 %7177, %v5376
        %v7179 = vpop.permute.xlu0 %7178
        %7182 = vset.pattern.permute.xlu0 0
        %7183 = vperm.xlu0 %7182, %v5377
        %v7184 = vpop.permute.xlu0 %7183
        %7187 = vset.pattern.permute.xlu0 0
        %7188 = vperm.xlu0 %7187, %v5378
        %v7189 = vpop.permute.xlu0 %7188
        %v7191 = vmul.f32 %v5901, %v6554
        %v7192 = vmul.f32 %v5902, %v6559
        %v7193 = vmul.f32 %v5903, %v6564
        %v7194 = vmul.f32 %v5904, %v6569
        %v7195 = vmul.f32 %v5905, %v6574
        %v7196 = vmul.f32 %v5906, %v6579
        %v7197 = vmul.f32 %v5907, %v6584
        %v7198 = vmul.f32 %v5908, %v6589
        %v7199 = vmul.f32 %v5909, %v6594
        %v7200 = vmul.f32 %v5910, %v6599
        %v7201 = vmul.f32 %v5911, %v6604
        %v7202 = vmul.f32 %v5912, %v6609
        %v7203 = vmul.f32 %v5913, %v6614
        %v7204 = vmul.f32 %v5914, %v6619
        %v7205 = vmul.f32 %v5915, %v6624
        %v7206 = vmul.f32 %v5916, %v6629
        %v7207 = vmul.f32 %v5917, %v6634
        %v7208 = vmul.f32 %v5918, %v6639
        %v7209 = vmul.f32 %v5919, %v6644
        %v7210 = vmul.f32 %v5920, %v6649
        %v7211 = vmul.f32 %v5921, %v6654
        %v7212 = vmul.f32 %v5922, %v6659
        %v7213 = vmul.f32 %v5923, %v6664
        %v7214 = vmul.f32 %v5924, %v6669
        %v7215 = vmul.f32 %v5925, %v6674
        %v7216 = vmul.f32 %v5926, %v6679
        %v7217 = vmul.f32 %v5927, %v6684
        %v7218 = vmul.f32 %v5928, %v6689
        %v7219 = vmul.f32 %v5929, %v6694
        %v7220 = vmul.f32 %v5930, %v6699
        %v7221 = vmul.f32 %v5931, %v6704
        %v7222 = vmul.f32 %v5932, %v6709
        %v7223 = vmul.f32 %v5933, %v6714
        %v7224 = vmul.f32 %v5934, %v6719
        %v7225 = vmul.f32 %v5935, %v6724
        %v7226 = vmul.f32 %v5936, %v6729
        %v7227 = vmul.f32 %v5937, %v6734
        %v7228 = vmul.f32 %v5938, %v6739
        %v7229 = vmul.f32 %v5939, %v6744
        %v7230 = vmul.f32 %v5940, %v6749
        %v7231 = vmul.f32 %v5941, %v6754
        %v7232 = vmul.f32 %v5942, %v6759
        %v7233 = vmul.f32 %v5943, %v6764
        %v7234 = vmul.f32 %v5944, %v6769
        %v7235 = vmul.f32 %v5945, %v6774
        %v7236 = vmul.f32 %v5946, %v6779
        %v7237 = vmul.f32 %v5947, %v6784
        %v7238 = vmul.f32 %v5948, %v6789
        %v7239 = vmul.f32 %v5949, %v6794
        %v7240 = vmul.f32 %v5950, %v6799
        %v7241 = vmul.f32 %v5951, %v6804
        %v7242 = vmul.f32 %v5952, %v6809
        %v7243 = vmul.f32 %v5953, %v6814
        %v7244 = vmul.f32 %v5954, %v6819
        %v7245 = vmul.f32 %v5955, %v6824
        %v7246 = vmul.f32 %v5956, %v6829
        %v7247 = vmul.f32 %v5957, %v6834
        %v7248 = vmul.f32 %v5958, %v6839
        %v7249 = vmul.f32 %v5959, %v6844
        %v7250 = vmul.f32 %v5960, %v6849
        %v7251 = vmul.f32 %v5961, %v6854
        %v7252 = vmul.f32 %v5962, %v6859
        %v7253 = vmul.f32 %v5963, %v6864
        %v7254 = vmul.f32 %v5964, %v6869
        %v7255 = vmul.f32 %v5965, %v6874
        %v7256 = vmul.f32 %v5966, %v6879
        %v7257 = vmul.f32 %v5967, %v6884
        %v7258 = vmul.f32 %v5968, %v6889
        %v7259 = vmul.f32 %v5969, %v6894
        %v7260 = vmul.f32 %v5970, %v6899
        %v7261 = vmul.f32 %v5971, %v6904
        %v7262 = vmul.f32 %v5972, %v6909
        %v7263 = vmul.f32 %v5973, %v6914
        %v7264 = vmul.f32 %v5974, %v6919
        %v7265 = vmul.f32 %v5975, %v6924
        %v7266 = vmul.f32 %v5976, %v6929
        %v7267 = vmul.f32 %v5977, %v6934
        %v7268 = vmul.f32 %v5978, %v6939
        %v7269 = vmul.f32 %v5979, %v6944
        %v7270 = vmul.f32 %v5980, %v6949
        %v7271 = vmul.f32 %v5981, %v6954
        %v7272 = vmul.f32 %v5982, %v6959
        %v7273 = vmul.f32 %v5983, %v6964
        %v7274 = vmul.f32 %v5984, %v6969
        %v7275 = vmul.f32 %v5985, %v6974
        %v7276 = vmul.f32 %v5986, %v6979
        %v7277 = vmul.f32 %v5987, %v6984
        %v7278 = vmul.f32 %v5988, %v6989
        %v7279 = vmul.f32 %v5989, %v6994
        %v7280 = vmul.f32 %v5990, %v6999
        %v7281 = vmul.f32 %v5991, %v7004
        %v7282 = vmul.f32 %v5992, %v7009
        %v7283 = vmul.f32 %v5993, %v7014
        %v7284 = vmul.f32 %v5994, %v7019
        %v7285 = vmul.f32 %v5995, %v7024
        %v7286 = vmul.f32 %v5996, %v7029
        %v7287 = vmul.f32 %v5997, %v7034
        %v7288 = vmul.f32 %v5998, %v7039
        %v7289 = vmul.f32 %v5999, %v7044
        %v7290 = vmul.f32 %v6000, %v7049
        %v7291 = vmul.f32 %v6001, %v7054
        %v7292 = vmul.f32 %v6002, %v7059
        %v7293 = vmul.f32 %v6003, %v7064
        %v7294 = vmul.f32 %v6004, %v7069
        %v7295 = vmul.f32 %v6005, %v7074
        %v7296 = vmul.f32 %v6006, %v7079
        %v7297 = vmul.f32 %v6007, %v7084
        %v7298 = vmul.f32 %v6008, %v7089
        %v7299 = vmul.f32 %v6009, %v7094
        %v7300 = vmul.f32 %v6010, %v7099
        %v7301 = vmul.f32 %v6011, %v7104
        %v7302 = vmul.f32 %v6012, %v7109
        %v7303 = vmul.f32 %v6013, %v7114
        %v7304 = vmul.f32 %v6014, %v7119
        %v7305 = vmul.f32 %v6015, %v7124
        %v7306 = vmul.f32 %v6016, %v7129
        %v7307 = vmul.f32 %v6017, %v7134
        %v7308 = vmul.f32 %v6018, %v7139
        %v7309 = vmul.f32 %v6019, %v7144
        %v7310 = vmul.f32 %v6020, %v7149
        %v7311 = vmul.f32 %v6021, %v7154
        %v7312 = vmul.f32 %v6022, %v7159
        %v7313 = vmul.f32 %v6023, %v7164
        %v7314 = vmul.f32 %v6024, %v7169
        %v7315 = vmul.f32 %v6025, %v7174
        %v7316 = vmul.f32 %v6026, %v7179
        %v7317 = vmul.f32 %v6027, %v7184
        %v7318 = vmul.f32 %v6028, %v7189
        %v7319 = vadd.f32 %v7191, %v7192
        %v7320 = vadd.f32 %v7319, %v7193
        %v7321 = vadd.f32 %v7320, %v7194
        %v7322 = vadd.f32 %v7321, %v7195
        %v7323 = vadd.f32 %v7322, %v7196
        %v7324 = vadd.f32 %v7323, %v7197
        %v7325 = vadd.f32 %v7324, %v7198
        %v7326 = vadd.f32 %v7325, %v7199
        %v7327 = vadd.f32 %v7326, %v7200
        %v7328 = vadd.f32 %v7327, %v7201
        %v7329 = vadd.f32 %v7328, %v7202
        %v7330 = vadd.f32 %v7329, %v7203
        %v7331 = vadd.f32 %v7330, %v7204
        %v7332 = vadd.f32 %v7331, %v7205
        %v7333 = vadd.f32 %v7332, %v7206
        %v7334 = vadd.f32 %v7333, %v7207
        %v7335 = vadd.f32 %v7334, %v7208
        %v7336 = vadd.f32 %v7335, %v7209
        %v7337 = vadd.f32 %v7336, %v7210
        %v7338 = vadd.f32 %v7337, %v7211
        %v7339 = vadd.f32 %v7338, %v7212
        %v7340 = vadd.f32 %v7339, %v7213
        %v7341 = vadd.f32 %v7340, %v7214
        %v7342 = vadd.f32 %v7341, %v7215
        %v7343 = vadd.f32 %v7342, %v7216
        %v7344 = vadd.f32 %v7343, %v7217
        %v7345 = vadd.f32 %v7344, %v7218
        %v7346 = vadd.f32 %v7345, %v7219
        %v7347 = vadd.f32 %v7346, %v7220
        %v7348 = vadd.f32 %v7347, %v7221
        %v7349 = vadd.f32 %v7348, %v7222
        %v7350 = vadd.f32 %v7349, %v7223
        %v7351 = vadd.f32 %v7350, %v7224
        %v7352 = vadd.f32 %v7351, %v7225
        %v7353 = vadd.f32 %v7352, %v7226
        %v7354 = vadd.f32 %v7353, %v7227
        %v7355 = vadd.f32 %v7354, %v7228
        %v7356 = vadd.f32 %v7355, %v7229
        %v7357 = vadd.f32 %v7356, %v7230
        %v7358 = vadd.f32 %v7357, %v7231
        %v7359 = vadd.f32 %v7358, %v7232
        %v7360 = vadd.f32 %v7359, %v7233
        %v7361 = vadd.f32 %v7360, %v7234
        %v7362 = vadd.f32 %v7361, %v7235
        %v7363 = vadd.f32 %v7362, %v7236
        %v7364 = vadd.f32 %v7363, %v7237
        %v7365 = vadd.f32 %v7364, %v7238
        %v7366 = vadd.f32 %v7365, %v7239
        %v7367 = vadd.f32 %v7366, %v7240
        %v7368 = vadd.f32 %v7367, %v7241
        %v7369 = vadd.f32 %v7368, %v7242
        %v7370 = vadd.f32 %v7369, %v7243
        %v7371 = vadd.f32 %v7370, %v7244
        %v7372 = vadd.f32 %v7371, %v7245
        %v7373 = vadd.f32 %v7372, %v7246
        %v7374 = vadd.f32 %v7373, %v7247
        %v7375 = vadd.f32 %v7374, %v7248
        %v7376 = vadd.f32 %v7375, %v7249
        %v7377 = vadd.f32 %v7376, %v7250
        %v7378 = vadd.f32 %v7377, %v7251
        %v7379 = vadd.f32 %v7378, %v7252
        %v7380 = vadd.f32 %v7379, %v7253
        %v7381 = vadd.f32 %v7380, %v7254
        %v7382 = vadd.f32 %v7381, %v7255
        %v7383 = vadd.f32 %v7382, %v7256
        %v7384 = vadd.f32 %v7383, %v7257
        %v7385 = vadd.f32 %v7384, %v7258
        %v7386 = vadd.f32 %v7385, %v7259
        %v7387 = vadd.f32 %v7386, %v7260
        %v7388 = vadd.f32 %v7387, %v7261
        %v7389 = vadd.f32 %v7388, %v7262
        %v7390 = vadd.f32 %v7389, %v7263
        %v7391 = vadd.f32 %v7390, %v7264
        %v7392 = vadd.f32 %v7391, %v7265
        %v7393 = vadd.f32 %v7392, %v7266
        %v7394 = vadd.f32 %v7393, %v7267
        %v7395 = vadd.f32 %v7394, %v7268
        %v7396 = vadd.f32 %v7395, %v7269
        %v7397 = vadd.f32 %v7396, %v7270
        %v7398 = vadd.f32 %v7397, %v7271
        %v7399 = vadd.f32 %v7398, %v7272
        %v7400 = vadd.f32 %v7399, %v7273
        %v7401 = vadd.f32 %v7400, %v7274
        %v7402 = vadd.f32 %v7401, %v7275
        %v7403 = vadd.f32 %v7402, %v7276
        %v7404 = vadd.f32 %v7403, %v7277
        %v7405 = vadd.f32 %v7404, %v7278
        %v7406 = vadd.f32 %v7405, %v7279
        %v7407 = vadd.f32 %v7406, %v7280
        %v7408 = vadd.f32 %v7407, %v7281
        %v7409 = vadd.f32 %v7408, %v7282
        %v7410 = vadd.f32 %v7409, %v7283
        %v7411 = vadd.f32 %v7410, %v7284
        %v7412 = vadd.f32 %v7411, %v7285
        %v7413 = vadd.f32 %v7412, %v7286
        %v7414 = vadd.f32 %v7413, %v7287
        %v7415 = vadd.f32 %v7414, %v7288
        %v7416 = vadd.f32 %v7415, %v7289
        %v7417 = vadd.f32 %v7416, %v7290
        %v7418 = vadd.f32 %v7417, %v7291
        %v7419 = vadd.f32 %v7418, %v7292
        %v7420 = vadd.f32 %v7419, %v7293
        %v7421 = vadd.f32 %v7420, %v7294
        %v7422 = vadd.f32 %v7421, %v7295
        %v7423 = vadd.f32 %v7422, %v7296
        %v7424 = vadd.f32 %v7423, %v7297
        %v7425 = vadd.f32 %v7424, %v7298
        %v7426 = vadd.f32 %v7425, %v7299
        %v7427 = vadd.f32 %v7426, %v7300
        %v7428 = vadd.f32 %v7427, %v7301
        %v7429 = vadd.f32 %v7428, %v7302
        %v7430 = vadd.f32 %v7429, %v7303
        %v7431 = vadd.f32 %v7430, %v7304
        %v7432 = vadd.f32 %v7431, %v7305
        %v7433 = vadd.f32 %v7432, %v7306
        %v7434 = vadd.f32 %v7433, %v7307
        %v7435 = vadd.f32 %v7434, %v7308
        %v7436 = vadd.f32 %v7435, %v7309
        %v7437 = vadd.f32 %v7436, %v7310
        %v7438 = vadd.f32 %v7437, %v7311
        %v7439 = vadd.f32 %v7438, %v7312
        %v7440 = vadd.f32 %v7439, %v7313
        %v7441 = vadd.f32 %v7440, %v7314
        %v7442 = vadd.f32 %v7441, %v7315
        %v7443 = vadd.f32 %v7442, %v7316
        %v7444 = vadd.f32 %v7443, %v7317
        %v7445 = vadd.f32 %v7444, %v7318
        %v7446 = vrot.slane %v7445, 4
        %v7447 = vadd.f32 %v7445, %v7446
        %v7448 = vrot.slane %v7447, 2
        %v7449 = vadd.f32 %v7447, %v7448
        %v7450 = vrot.slane %v7449, 1
        %v7451 = vadd.f32 %v7449, %v7450
        %vm7452 = vcmp.eq.s32.totalorder %v4482, 0
        %v7453 = vsel %vm7452, 1, 0
        %vm7454 = vcmp.eq.s32.totalorder %v7453, 1
        %v7455 = vsel %vm7454, %v6289, 0.0
        %vm7456 = vcmp.eq.s32.totalorder %v4482, 1
        %v7457 = vsel %vm7456, 1, 0
        %vm7458 = vcmp.eq.s32.totalorder %v7457, 1
        %v7459 = vsel %vm7458, %v6550, 0.0
        %v7460 = vadd.f32 %v7455, %v7459
        %vm7461 = vcmp.eq.s32.totalorder %v4482, 2
        %v7462 = vsel %vm7461, 1, 0
        %vm7463 = vcmp.eq.s32.totalorder %v7462, 1
        %v7464 = vsel %vm7463, %v7451, 0.0
        %v7465 = vadd.f32 %v7460, %v7464
        %v7466 = vld [vmem:[%s222] sm:$0xff]
        %v7467 = vadd.f32 %v7466, %v7465
        %7468 = vst [vmem:[%s222] sm:$0xff] %v7467
        %s7469 = sand.u32 %s122, 1
        %s7470 = scalar_lea.sflag [#allocation3], %s7469
        %s7471 = sand.u32 %s122, 1
        %s7472 = smul.addr %s7471, 8
        %s7473 = scalar_lea.vmem [#allocation2], %s7472
        // Predicated region
        $region37: #{tpu_custom_call.1} parent=31 // pred_check
          %p7474 = pneg %p132
        $region38: #{tpu_custom_call.1} parent=31 // pred_check_branch
          %7476 = sbr.rel (%p7474) target = $region40
        $region39: #{tpu_custom_call.1} parent=31 // pred_region
          %s7478 = ssub.s32 128, 128
          %7479 = vsyncadd %s7470, %s7478
          %s7480 = smul.addr %s21, 128
          %s7481 = scalar_lea.hbm %s3, %s7480
          %s7483 = sshll.u32 %s7473, 4
          %s7484 = int_to_ptr.vmem [resolvable:$true] %s7483
          %7486 = dma.vmem_to_hbm [thread:$0]  %s7484, 128, %s7481, %s7470
        $region40: #{tpu_custom_call.1} parent=31 // pred_fallthru
          _
      $region32: #{tpu_custom_call.1} parent=5 // pred_fallthru
        _
      %p7487 = scmp.le.s32.totalorder 2, %s12
      // Predicated region
      $region41: #{tpu_custom_call.1} parent=5 // pred_check
        %p7488 = pneg %p7487
      $region42: #{tpu_custom_call.1} parent=5 // pred_check_branch
        %7490 = sbr.rel (%p7488) target = $region44
      $region43: #{tpu_custom_call.1} parent=5 // pred_region
        %s7491 = ssub.s32 %s12, 2
        // Predicated region
        $region45: #{tpu_custom_call.1} parent=43 // pred_check
          %p7492 = pneg %p138
        $region46: #{tpu_custom_call.1} parent=43 // pred_check_branch
          %7494 = sbr.rel (%p7492) target = $region48
        $region47: #{tpu_custom_call.1} parent=43 // pred_region
          %s7495 = sand.u32 %s123, 1
          %s7496 = scalar_lea.sflag [#allocation3], %s7495
          %s7497 = sand.u32 %s123, 1
          %s7498 = smul.addr %s7497, 8
          %s7499 = scalar_lea.vmem [#allocation2], %s7498
          %7500 = dma.done %s7496, 128
        $region48: #{tpu_custom_call.1} parent=43 // pred_fallthru
          _
      $region44: #{tpu_custom_call.1} parent=5 // pred_fallthru
        _
    $region6: #{tpu_custom_call.1} parent=1 // loop_footer
      %s16 = sadd.s32 1, %s12
    $region7: #{tpu_custom_call.1} parent=1 // loop_footer_branch
      %11 = sbr.rel target = $region3
    $region8: #{tpu_custom_call.1} parent=1 // loop_exit
      _
    %7501 = vsyncpa [#allocation3], 1
    %s7502 = scalar_lea.sflag [#allocation3], 1
    %7503 = vsyncpa %s7502, 1

</llo_original>
